<compile_context>
chip_gen: v5e
topology: v5e:2x2
jax: 0.10.0
libtpu: 0.0.40
codegen_flags: <defaults>
</compile_context>

<pallas_src>
import jax
import jax.numpy as jnp
from jax import lax
from jax.experimental import pallas as pl
from jax.experimental.pallas import tpu as pltpu

_EPS = 1e-5
_IM2COL_MAX_C = 128   # below this, fold the 9 taps into K=9*C to fill MXU depth


def _vmem_limit_bytes():
    """Generation-aware scoped-VMEM request: ~3/4 of physical VMEM, capped."""
    cap = 64 * 1024 * 1024
    try:
        info = pltpu.get_tpu_info()
        cap = int(getattr(info, "vmem_capacity_bytes", cap))
    except Exception:
        pass
    return max(32 * 1024 * 1024, min(3 * cap // 4, 96 * 1024 * 1024))


# --------------------------------------------------------------------------
# Kernels
# --------------------------------------------------------------------------
def _conv3x3_body(x, w_ref, y_ref, stats_ref, pad_ref, im2col_scratch):
    """Per-image tile: fused zero-pad in VMEM, 3x3 conv on the MXU (bf16
    operands, f32 accumulation), one-pass mean-shifted BN partial stats."""
    H, W, c_in = x.shape
    c_out = y_ref.shape[-1]
    hw = H * W

    # Fused zero pad: re-zero only the 1-pixel halo (4 thin strips) every grid
    # step -- no cross-step scratch state, so the batch axis stays "parallel".
    pad_ref[0:1, :, :] = jnp.zeros((1, W + 2, c_in), pad_ref.dtype)
    pad_ref[H + 1:H + 2, :, :] = jnp.zeros((1, W + 2, c_in), pad_ref.dtype)
    pad_ref[:, 0:1, :] = jnp.zeros((H + 2, 1, c_in), pad_ref.dtype)
    pad_ref[:, W + 1:W + 2, :] = jnp.zeros((H + 2, 1, c_in), pad_ref.dtype)
    pad_ref[1:H + 1, 1:W + 1, :] = x.astype(pad_ref.dtype)

    taps = [(dh, dw) for dh in range(3) for dw in range(3)]
    if im2col_scratch:
        # Small/medium C: fold all 9 taps into the contraction dim (K = 9*C)
        # so the conv is a single deep MXU matmul.  Each tap slice is cast to
        # bf16 and written straight into the patch scratch (no concat temp).
        patches_ref, = im2col_scratch
        for t, (dh, dw) in enumerate(taps):
            patches_ref[:, t * c_in:(t + 1) * c_in] = (
                pad_ref[dh:dh + H, dw:dw + W, :]
                .reshape(hw, c_in).astype(jnp.bfloat16))
        y = jnp.dot(patches_ref[...], w_ref[...],
                    preferred_element_type=jnp.float32)        # (hw, c_out) f32
    else:
        # Large C (>= _IM2COL_MAX_C): K=C already fills the MXU, so skip patch
        # materialization entirely -- 9 accumulated matmuls read each shifted
        # window straight off the padded scratch (zero patch-copy traffic).
        y = jnp.zeros((hw, c_out), jnp.float32)
        for t, (dh, dw) in enumerate(taps):
            tap = (pad_ref[dh:dh + H, dw:dw + W, :]
                   .reshape(hw, c_in).astype(jnp.bfloat16))
            y = y + jnp.dot(tap, w_ref[t * c_in:(t + 1) * c_in, :],
                            preferred_element_type=jnp.float32)

    # Mean-shifted one-pass BN partials: per-tile mean + M2 (sum of squared
    # deviations from the tile mean), combined with Chan's formula in the
    # wrapper -> exact global stats without E[x^2]-E[x]^2 cancellation.
    tile_mean = jnp.mean(y, axis=0, keepdims=True)             # (1, c_out)
    d = y - tile_mean
    tile_m2 = jnp.sum(d * d, axis=0, keepdims=True)            # (1, c_out)
    stats_ref[...] = jnp.concatenate([tile_mean, tile_m2],
                                     axis=0).reshape(1, 2, c_out)

    y_ref[...] = y.reshape(1, H, W, c_out).astype(y_ref.dtype)


def conv1_kernel(x_ref, w_ref, y_ref, stats_ref, pad_ref, *im2col_scratch):
    _conv3x3_body(x_ref[0], w_ref, y_ref, stats_ref, pad_ref, im2col_scratch)


def conv2_kernel(y1_ref, scale_ref, shift_ref, w_ref, y_ref, stats_ref,
                 pad_ref, *im2col_scratch):
    # bn1 affine + ReLU fused in front of conv2 (f32 elementwise on the
    # bf16-stored conv1 output; (1, C) scale/shift broadcast per channel).
    a = jnp.maximum(
        y1_ref[0].astype(jnp.float32) * scale_ref[...] + shift_ref[...], 0.0)
    _conv3x3_body(a, w_ref, y_ref, stats_ref, pad_ref, im2col_scratch)


def finalize_kernel(y2_ref, x_ref, scale_ref, shift_ref, o_ref):
    # bn2 affine + residual add + ReLU on lane-dense (rows, W*C) blocks; the
    # identity is read directly from the flattened unpadded input.
    y = y2_ref[...].astype(jnp.float32)
    o_ref[...] = jnp.maximum(y * scale_ref[...] + shift_ref[...] + x_ref[...], 0.0)


# --------------------------------------------------------------------------
# Wrappers
# --------------------------------------------------------------------------
def _bn_affine(stats, gamma, beta, per_tile_count):
    """Chan-combine per-tile (mean, M2) partials into global BN scale/shift so
    that bn(y) == y * scale + shift (training-mode batch statistics)."""
    tile_mean = stats[:, 0, :]                     # (n_tiles, C)
    tile_m2 = stats[:, 1, :]                       # (n_tiles, C)
    n_tiles = stats.shape[0]
    total = n_tiles * per_tile_count
    mean = jnp.mean(tile_mean, axis=0)             # equal per-tile counts
    m2 = (jnp.sum(tile_m2, axis=0)
          + per_tile_count * jnp.sum((tile_mean - mean) ** 2, axis=0))
    var = m2 / total                               # biased, as PyTorch BN uses
    inv = gamma * lax.rsqrt(var + _EPS)
    return inv, beta - mean * inv


def basic_block_forward_nhwc(x_nhwc, w1_oihw, w2_oihw, g1, b1, g2, b2):
    """x_nhwc: (N, H, W, C) float32; conv weights in PyTorch OIHW layout."""
    N, H, W, C = x_nhwc.shape
    assert w1_oihw.shape == (C, C, 3, 3) and w2_oihw.shape == (C, C, 3, 3), (
        "stride=1 BasicBlock without downsample requires inplanes == planes")

    # (dh, dw, cin, cout) -> (9*C, C): taps folded into the contraction dim.
    w1 = jnp.transpose(w1_oihw, (2, 3, 1, 0)).reshape(9 * C, C).astype(jnp.bfloat16)
    w2 = jnp.transpose(w2_oihw, (2, 3, 1, 0)).reshape(9 * C, C).astype(jnp.bfloat16)

    nhw = N * H * W
    hw = H * W
    wc = W * C
    use_im2col = C < _IM2COL_MAX_C

    conv_cost = pl.CostEstimate(
        flops=2 * nhw * 9 * C * C, transcendentals=0,
        bytes_accessed=nhw * C * (4 + 2) + 9 * C * C * 2 + N * 2 * C * 4)
    cparams = pltpu.CompilerParams(dimension_semantics=("parallel",),
                                   vmem_limit_bytes=_vmem_limit_bytes())

    img_spec = pl.BlockSpec((1, H, W, C), lambda i: (i, 0, 0, 0))
    vec_spec = pl.BlockSpec((1, C), lambda i: (0, 0))
    stats_spec = pl.BlockSpec((1, 2, C), lambda i: (i, 0, 0))
    if use_im2col:
        w_spec = pl.BlockSpec((9 * C, C), lambda i: (0, 0))
    else:
        # Constant weight block: single-buffer it to save VMEM (v7x, large C).
        w_spec = pl.BlockSpec((9 * C, C), lambda i: (0, 0),
                              pipeline_mode=pl.Buffered(1))

    scratch = [pltpu.VMEM((H + 2, W + 2, C), jnp.float32)]
    if use_im2col:
        scratch.append(pltpu.VMEM((hw, 9 * C), jnp.bfloat16))

    conv_out_shape = [jax.ShapeDtypeStruct((N, H, W, C), jnp.bfloat16),
                      jax.ShapeDtypeStruct((N, 2, C), jnp.float32)]

    # ---- call A: conv1 + per-image bn1 partial stats -----------------------
    y1, stats1 = pl.pallas_call(
        conv1_kernel, grid=(N,),
        in_specs=[img_spec, w_spec],
        out_specs=[img_spec, stats_spec],
        out_shape=conv_out_shape,
        scratch_shapes=scratch,
        compiler_params=cparams, cost_estimate=conv_cost,
    )(x_nhwc, w1)

    scale1, shift1 = _bn_affine(stats1, g1, b1, hw)      # tiny (C,) vectors

    # ---- call B: bn1 affine + relu + conv2 + per-image bn2 partial stats ---
    y2, stats2 = pl.pallas_call(
        conv2_kernel, grid=(N,),
        in_specs=[img_spec, vec_spec, vec_spec, w_spec],
        out_specs=[img_spec, stats_spec],
        out_shape=conv_out_shape,
        scratch_shapes=scratch,
        compiler_params=cparams, cost_estimate=conv_cost,
    )(y1, scale1.reshape(1, C), shift1.reshape(1, C), w2)

    scale2, shift2 = _bn_affine(stats2, g2, b2, hw)

    # ---- call C: bn2 affine + residual + relu -------------------------------
    # Lane-dense (rows, W*C) blocks gridded over row chunks so the pipeline
    # overlaps DMA/compute even when N is small.  Output stays f32 to match
    # the module contract (TODO(synk): emit bf16 when the consumer allows it).
    rows = N * H
    th = 8 if rows % 8 == 0 else rows
    flat_spec = pl.BlockSpec((th, wc), lambda i: (i, 0))
    row_spec = pl.BlockSpec((1, wc), lambda i: (0, 0))
    out_flat = pl.pallas_call(
        finalize_kernel, grid=(rows // th,),
        in_specs=[flat_spec, flat_spec, row_spec, row_spec],
        out_specs=flat_spec,
        out_shape=jax.ShapeDtypeStruct((rows, wc), jnp.float32),
        compiler_params=cparams,
        cost_estimate=pl.CostEstimate(flops=4 * nhw * C, transcendentals=0,
                                      bytes_accessed=nhw * C * (2 + 4 + 4)),
    )(y2.reshape(rows, wc), x_nhwc.reshape(rows, wc),
      jnp.tile(scale2, W).reshape(1, wc), jnp.tile(shift2, W).reshape(1, wc))

    return out_flat.reshape(N, H, W, C)


@jax.jit
def basic_block_forward(x_nchw, w1, w2, g1, b1, g2, b2):
    """PyTorch-layout entry point (NCHW).  The two transposes exist only to
    match the nn.Module contract; prefer basic_block_forward_nhwc end-to-end
    to avoid the extra HBM passes."""
    x_nhwc = jnp.transpose(x_nchw, (0, 2, 3, 1))
    out = basic_block_forward_nhwc(x_nhwc, w1, w2, g1, b1, g2, b2)
    return jnp.transpose(out, (0, 3, 1, 2))


# --------------------------------------------------------------------------
# Pure-JAX reference (mirrors the PyTorch forward, training-mode BN, f32)
# --------------------------------------------------------------------------
def reference_forward(x, w1, w2, g1, b1, g2, b2):
    def conv(y, w):
        return lax.conv_general_dilated(
            y, w, window_strides=(1, 1), padding=((1, 1), (1, 1)),
            dimension_numbers=('NCHW', 'OIHW', 'NCHW'))

    def bn(y, g, b):
        mean = y.mean(axis=(0, 2, 3), keepdims=True)
        var = ((y - mean) ** 2).mean(axis=(0, 2, 3), keepdims=True)
        return ((y - mean) * lax.rsqrt(var + _EPS) * g.reshape(1, -1, 1, 1)
                + b.reshape(1, -1, 1, 1))

    out = jax.nn.relu(bn(conv(x, w1), g1, b1))
    out = bn(conv(out, w2), g2, b2) + x
    return jax.nn.relu(out)


if __name__ == "__main__":
    key = jax.random.PRNGKey(0)
    kx, kw1, kw2 = jax.random.split(key, 3)

    N, C, H, W = 2, 4, 16, 16      # inplanes = planes = 4, stride=1, no downsample
    x = jax.random.normal(kx, (N, C, H, W), jnp.float32)
    w1 = jax.random.normal(kw1, (C, C, 3, 3), jnp.float32) * 0.2
    w2 = jax.random.normal(kw2, (C, C, 3, 3), jnp.float32) * 0.2
    # BatchNorm2d default affine init: weight=1, bias=0
    g1 = jnp.ones((C,), jnp.float32); b1 = jnp.zeros((C,), jnp.float32)
    g2 = jnp.ones((C,), jnp.float32); b2 = jnp.zeros((C,), jnp.float32)

    out = jax.block_until_ready(basic_block_forward(x, w1, w2, g1, b1, g2, b2))
    ref = reference_forward(x, w1, w2, g1, b1, g2, b2)

    assert out.shape == ref.shape == (N, C, H, W)
    max_err = float(jnp.max(jnp.abs(out - ref)))
    # bf16 MXU operands and bf16-stored intermediates vs. a pure-f32 reference
    # across two conv+BN stages -> loose tolerance.
    assert jnp.allclose(out, ref, atol=1e-1, rtol=1e-1), f"max_err={max_err}"
    print("KERNEL_OK")
</pallas_src>

<mosaic_0001>
module attributes {stable_mosaic.version = 11 : i64} {
  func.func @conv1_kernel(%arg0: i32, %arg1: memref<1x16x16x4xf32, #tpu.memory_space<vmem>>, %arg2: memref<36x4xbf16, #tpu.memory_space<vmem>>, %arg3: memref<1x16x16x4xbf16, #tpu.memory_space<vmem>>, %arg4: memref<1x2x4xf32, #tpu.memory_space<vmem>>, %arg5: memref<18x18x4xf32, #tpu.memory_space<vmem>>, %arg6: memref<256x36xbf16, #tpu.memory_space<vmem>>) attributes {dimension_semantics = [#tpu.dimension_semantics<parallel>], iteration_bounds = array<i64: 2>, scalar_prefetch = 0 : i64, scratch_operands = 2 : i64, tpu.core_type = #tpu.core_type<tc>, window_params = [{transform_indices = @transform_0, window_bounds = array<i64: 1, 16, 16, 4>}, {pipeline_mode = #tpu.pipeline_mode<synchronous>, transform_indices = @transform_1, window_bounds = array<i64: 36, 4>}, {transform_indices = @transform_2, window_bounds = array<i64: 1, 16, 16, 4>}, {transform_indices = @transform_3, window_bounds = array<i64: 1, 2, 4>}]} {
    %c0 = arith.constant 0 : index
    %c0_0 = arith.constant 0 : index
    %c0_1 = arith.constant 0 : index
    %c0_2 = arith.constant 0 : index
    %0 = vector.load %arg1[%c0, %c0_0, %c0_1, %c0_2] : memref<1x16x16x4xf32, #tpu.memory_space<vmem>>, vector<1x16x16x4xf32>
    %1 = vector.shape_cast %0 : vector<1x16x16x4xf32> to vector<16x16x4xf32>
    %cst = arith.constant 0.000000e+00 : f32
    %2 = vector.broadcast %cst : f32 to vector<1x18x4xf32>
    %c0_3 = arith.constant 0 : index
    %c0_4 = arith.constant 0 : index
    %c0_5 = arith.constant 0 : index
    %3 = vector.load %arg5[%c0_3, %c0_4, %c0_5] : memref<18x18x4xf32, #tpu.memory_space<vmem>>, vector<1x18x4xf32>
    tpu.vector_store %arg5[%c0_3, %c0_4, %c0_5], %2 {strides = array<i32>} : memref<18x18x4xf32, #tpu.memory_space<vmem>>, vector<1x18x4xf32>,
    %cst_6 = arith.constant 0.000000e+00 : f32
    %4 = vector.broadcast %cst_6 : f32 to vector<1x18x4xf32>
    %c17 = arith.constant 17 : index
    %c0_7 = arith.constant 0 : index
    %c0_8 = arith.constant 0 : index
    %5 = vector.load %arg5[%c17, %c0_7, %c0_8] : memref<18x18x4xf32, #tpu.memory_space<vmem>>, vector<1x18x4xf32>
    tpu.vector_store %arg5[%c17, %c0_7, %c0_8], %4 {strides = array<i32>} : memref<18x18x4xf32, #tpu.memory_space<vmem>>, vector<1x18x4xf32>,
    %cst_9 = arith.constant 0.000000e+00 : f32
    %6 = vector.broadcast %cst_9 : f32 to vector<18x1x4xf32>
    %c0_10 = arith.constant 0 : index
    %c0_11 = arith.constant 0 : index
    %c0_12 = arith.constant 0 : index
    %7 = vector.load %arg5[%c0_10, %c0_11, %c0_12] : memref<18x18x4xf32, #tpu.memory_space<vmem>>, vector<18x1x4xf32>
    tpu.vector_store %arg5[%c0_10, %c0_11, %c0_12], %6 {strides = array<i32>} : memref<18x18x4xf32, #tpu.memory_space<vmem>>, vector<18x1x4xf32>,
    %cst_13 = arith.constant 0.000000e+00 : f32
    %8 = vector.broadcast %cst_13 : f32 to vector<18x1x4xf32>
    %c0_14 = arith.constant 0 : index
    %c17_15 = arith.constant 17 : index
    %c0_16 = arith.constant 0 : index
    %9 = vector.load %arg5[%c0_14, %c17_15, %c0_16] : memref<18x18x4xf32, #tpu.memory_space<vmem>>, vector<18x1x4xf32>
    tpu.vector_store %arg5[%c0_14, %c17_15, %c0_16], %8 {strides = array<i32>} : memref<18x18x4xf32, #tpu.memory_space<vmem>>, vector<18x1x4xf32>,
    %c1 = arith.constant 1 : index
    %c1_17 = arith.constant 1 : index
    %c0_18 = arith.constant 0 : index
    %10 = vector.load %arg5[%c1, %c1_17, %c0_18] : memref<18x18x4xf32, #tpu.memory_space<vmem>>, vector<16x16x4xf32>
    tpu.vector_store %arg5[%c1, %c1_17, %c0_18], %1 {strides = array<i32>} : memref<18x18x4xf32, #tpu.memory_space<vmem>>, vector<16x16x4xf32>,
    %c0_19 = arith.constant 0 : index
    %c0_20 = arith.constant 0 : index
    %c0_21 = arith.constant 0 : index
    %11 = vector.load %arg5[%c0_19, %c0_20, %c0_21] : memref<18x18x4xf32, #tpu.memory_space<vmem>>, vector<16x16x4xf32>
    %12 = vector.shape_cast %11 : vector<16x16x4xf32> to vector<256x4xf32>
    %13 = arith.truncf %12 : vector<256x4xf32> to vector<256x4xbf16>
    %c0_22 = arith.constant 0 : index
    %c0_23 = arith.constant 0 : index
    %14 = vector.load %arg6[%c0_22, %c0_23] : memref<256x36xbf16, #tpu.memory_space<vmem>>, vector<256x4xbf16>
    tpu.vector_store %arg6[%c0_22, %c0_23], %13 {strides = array<i32>} : memref<256x36xbf16, #tpu.memory_space<vmem>>, vector<256x4xbf16>,
    %c0_24 = arith.constant 0 : index
    %c1_25 = arith.constant 1 : index
    %c0_26 = arith.constant 0 : index
    %15 = vector.load %arg5[%c0_24, %c1_25, %c0_26] : memref<18x18x4xf32, #tpu.memory_space<vmem>>, vector<16x16x4xf32>
    %16 = vector.shape_cast %15 : vector<16x16x4xf32> to vector<256x4xf32>
    %17 = arith.truncf %16 : vector<256x4xf32> to vector<256x4xbf16>
    %c0_27 = arith.constant 0 : index
    %c4 = arith.constant 4 : index
    %18 = vector.load %arg6[%c0_27, %c4] : memref<256x36xbf16, #tpu.memory_space<vmem>>, vector<256x4xbf16>
    tpu.vector_store %arg6[%c0_27, %c4], %17 {strides = array<i32>} : memref<256x36xbf16, #tpu.memory_space<vmem>>, vector<256x4xbf16>,
    %c0_28 = arith.constant 0 : index
    %c2 = arith.constant 2 : index
    %c0_29 = arith.constant 0 : index
    %19 = vector.load %arg5[%c0_28, %c2, %c0_29] : memref<18x18x4xf32, #tpu.memory_space<vmem>>, vector<16x16x4xf32>
    %20 = vector.shape_cast %19 : vector<16x16x4xf32> to vector<256x4xf32>
    %21 = arith.truncf %20 : vector<256x4xf32> to vector<256x4xbf16>
    %c0_30 = arith.constant 0 : index
    %c8 = arith.constant 8 : index
    %22 = vector.load %arg6[%c0_30, %c8] : memref<256x36xbf16, #tpu.memory_space<vmem>>, vector<256x4xbf16>
    tpu.vector_store %arg6[%c0_30, %c8], %21 {strides = array<i32>} : memref<256x36xbf16, #tpu.memory_space<vmem>>, vector<256x4xbf16>,
    %c1_31 = arith.constant 1 : index
    %c0_32 = arith.constant 0 : index
    %c0_33 = arith.constant 0 : index
    %23 = vector.load %arg5[%c1_31, %c0_32, %c0_33] : memref<18x18x4xf32, #tpu.memory_space<vmem>>, vector<16x16x4xf32>
    %24 = vector.shape_cast %23 : vector<16x16x4xf32> to vector<256x4xf32>
    %25 = arith.truncf %24 : vector<256x4xf32> to vector<256x4xbf16>
    %c0_34 = arith.constant 0 : index
    %c12 = arith.constant 12 : index
    %26 = vector.load %arg6[%c0_34, %c12] : memref<256x36xbf16, #tpu.memory_space<vmem>>, vector<256x4xbf16>
    tpu.vector_store %arg6[%c0_34, %c12], %25 {strides = array<i32>} : memref<256x36xbf16, #tpu.memory_space<vmem>>, vector<256x4xbf16>,
    %c1_35 = arith.constant 1 : index
    %c1_36 = arith.constant 1 : index
    %c0_37 = arith.constant 0 : index
    %27 = vector.load %arg5[%c1_35, %c1_36, %c0_37] : memref<18x18x4xf32, #tpu.memory_space<vmem>>, vector<16x16x4xf32>
    %28 = vector.shape_cast %27 : vector<16x16x4xf32> to vector<256x4xf32>
    %29 = arith.truncf %28 : vector<256x4xf32> to vector<256x4xbf16>
    %c0_38 = arith.constant 0 : index
    %c16 = arith.constant 16 : index
    %30 = vector.load %arg6[%c0_38, %c16] : memref<256x36xbf16, #tpu.memory_space<vmem>>, vector<256x4xbf16>
    tpu.vector_store %arg6[%c0_38, %c16], %29 {strides = array<i32>} : memref<256x36xbf16, #tpu.memory_space<vmem>>, vector<256x4xbf16>,
    %c1_39 = arith.constant 1 : index
    %c2_40 = arith.constant 2 : index
    %c0_41 = arith.constant 0 : index
    %31 = vector.load %arg5[%c1_39, %c2_40, %c0_41] : memref<18x18x4xf32, #tpu.memory_space<vmem>>, vector<16x16x4xf32>
    %32 = vector.shape_cast %31 : vector<16x16x4xf32> to vector<256x4xf32>
    %33 = arith.truncf %32 : vector<256x4xf32> to vector<256x4xbf16>
    %c0_42 = arith.constant 0 : index
    %c20 = arith.constant 20 : index
    %34 = vector.load %arg6[%c0_42, %c20] : memref<256x36xbf16, #tpu.memory_space<vmem>>, vector<256x4xbf16>
    tpu.vector_store %arg6[%c0_42, %c20], %33 {strides = array<i32>} : memref<256x36xbf16, #tpu.memory_space<vmem>>, vector<256x4xbf16>,
    %c2_43 = arith.constant 2 : index
    %c0_44 = arith.constant 0 : index
    %c0_45 = arith.constant 0 : index
    %35 = vector.load %arg5[%c2_43, %c0_44, %c0_45] : memref<18x18x4xf32, #tpu.memory_space<vmem>>, vector<16x16x4xf32>
    %36 = vector.shape_cast %35 : vector<16x16x4xf32> to vector<256x4xf32>
    %37 = arith.truncf %36 : vector<256x4xf32> to vector<256x4xbf16>
    %c0_46 = arith.constant 0 : index
    %c24 = arith.constant 24 : index
    %38 = vector.load %arg6[%c0_46, %c24] : memref<256x36xbf16, #tpu.memory_space<vmem>>, vector<256x4xbf16>
    tpu.vector_store %arg6[%c0_46, %c24], %37 {strides = array<i32>} : memref<256x36xbf16, #tpu.memory_space<vmem>>, vector<256x4xbf16>,
    %c2_47 = arith.constant 2 : index
    %c1_48 = arith.constant 1 : index
    %c0_49 = arith.constant 0 : index
    %39 = vector.load %arg5[%c2_47, %c1_48, %c0_49] : memref<18x18x4xf32, #tpu.memory_space<vmem>>, vector<16x16x4xf32>
    %40 = vector.shape_cast %39 : vector<16x16x4xf32> to vector<256x4xf32>
    %41 = arith.truncf %40 : vector<256x4xf32> to vector<256x4xbf16>
    %c0_50 = arith.constant 0 : index
    %c28 = arith.constant 28 : index
    %42 = vector.load %arg6[%c0_50, %c28] : memref<256x36xbf16, #tpu.memory_space<vmem>>, vector<256x4xbf16>
    tpu.vector_store %arg6[%c0_50, %c28], %41 {strides = array<i32>} : memref<256x36xbf16, #tpu.memory_space<vmem>>, vector<256x4xbf16>,
    %c2_51 = arith.constant 2 : index
    %c2_52 = arith.constant 2 : index
    %c0_53 = arith.constant 0 : index
    %43 = vector.load %arg5[%c2_51, %c2_52, %c0_53] : memref<18x18x4xf32, #tpu.memory_space<vmem>>, vector<16x16x4xf32>
    %44 = vector.shape_cast %43 : vector<16x16x4xf32> to vector<256x4xf32>
    %45 = arith.truncf %44 : vector<256x4xf32> to vector<256x4xbf16>
    %c0_54 = arith.constant 0 : index
    %c32 = arith.constant 32 : index
    %46 = vector.load %arg6[%c0_54, %c32] : memref<256x36xbf16, #tpu.memory_space<vmem>>, vector<256x4xbf16>
    tpu.vector_store %arg6[%c0_54, %c32], %45 {strides = array<i32>} : memref<256x36xbf16, #tpu.memory_space<vmem>>, vector<256x4xbf16>,
    %c0_55 = arith.constant 0 : index
    %c0_56 = arith.constant 0 : index
    %47 = vector.load %arg6[%c0_55, %c0_56] : memref<256x36xbf16, #tpu.memory_space<vmem>>, vector<256x36xbf16>
    %c0_57 = arith.constant 0 : index
    %c0_58 = arith.constant 0 : index
    %48 = vector.load %arg2[%c0_57, %c0_58] : memref<36x4xbf16, #tpu.memory_space<vmem>>, vector<36x4xbf16>
    %cst_59 = arith.constant dense<0.000000e+00> : vector<256x4xf32>
    %49 = tpu.matmul %47, %48, %cst_59 {dimension_numbers = #tpu.dot_dimension_numbers<[1], [0], [0], [1], [0, 0, 1, 1], [], []>} : vector<256x36xbf16>, vector<36x4xbf16>, vector<256x4xf32> -> vector<256x4xf32>
    %cst_60 = arith.constant dense<0.000000e+00> : vector<4xf32>
    %50 = vector.multi_reduction <add>, %49, %cst_60 [0] : vector<256x4xf32> to vector<4xf32>
    %51 = vector.shape_cast %50 : vector<4xf32> to vector<1x4xf32>
    %cst_61 = arith.constant 2.560000e+02 : f32
    %52 = vector.broadcast %cst_61 : f32 to vector<1x4xf32>
    %53 = arith.divf %51, %52 : vector<1x4xf32>
    %54 = vector.broadcast %53 : vector<1x4xf32> to vector<256x4xf32>
    %55 = arith.subf %49, %54 : vector<256x4xf32>
    %56 = arith.mulf %55, %55 : vector<256x4xf32>
    %cst_62 = arith.constant dense<0.000000e+00> : vector<4xf32>
    %57 = vector.multi_reduction <add>, %56, %cst_62 [0] : vector<256x4xf32> to vector<4xf32>
    %58 = vector.shape_cast %57 : vector<4xf32> to vector<1x4xf32>
    %59 = tpu.concatenate %53, %58 in 0 : vector<1x4xf32>, vector<1x4xf32> -> vector<2x4xf32>
    %60 = vector.shape_cast %59 : vector<2x4xf32> to vector<1x2x4xf32>
    %c0_63 = arith.constant 0 : index
    %c0_64 = arith.constant 0 : index
    %c0_65 = arith.constant 0 : index
    %61 = vector.load %arg4[%c0_63, %c0_64, %c0_65] : memref<1x2x4xf32, #tpu.memory_space<vmem>>, vector<1x2x4xf32>
    tpu.vector_store %arg4[%c0_63, %c0_64, %c0_65], %60 {strides = array<i32>} : memref<1x2x4xf32, #tpu.memory_space<vmem>>, vector<1x2x4xf32>,
    %62 = vector.shape_cast %49 : vector<256x4xf32> to vector<1x16x16x4xf32>
    %63 = arith.truncf %62 : vector<1x16x16x4xf32> to vector<1x16x16x4xbf16>
    %c0_66 = arith.constant 0 : index
    %c0_67 = arith.constant 0 : index
    %c0_68 = arith.constant 0 : index
    %c0_69 = arith.constant 0 : index
    %64 = vector.load %arg3[%c0_66, %c0_67, %c0_68, %c0_69] : memref<1x16x16x4xbf16, #tpu.memory_space<vmem>>, vector<1x16x16x4xbf16>
    tpu.vector_store %arg3[%c0_66, %c0_67, %c0_68, %c0_69], %63 {strides = array<i32>} : memref<1x16x16x4xbf16, #tpu.memory_space<vmem>>, vector<1x16x16x4xbf16>,
    return
  }
  func.func @transform_0(%arg0: i32) -> (i32, i32, i32, i32) {
    %c0_i32 = arith.constant 0 : i32
    %c0_i32_0 = arith.constant 0 : i32
    %c0_i32_1 = arith.constant 0 : i32
    %c0_i32_2 = arith.constant 0 : i32
    return %arg0, %c0_i32, %c0_i32_0, %c0_i32_1 : i32, i32, i32, i32
  }
  func.func @transform_1(%arg0: i32) -> (i32, i32) {
    %c0_i32 = arith.constant 0 : i32
    %c0_i32_0 = arith.constant 0 : i32
    %c0_i32_1 = arith.constant 0 : i32
    return %c0_i32, %c0_i32_0 : i32, i32
  }
  func.func @transform_2(%arg0: i32) -> (i32, i32, i32, i32) {
    %c0_i32 = arith.constant 0 : i32
    %c0_i32_0 = arith.constant 0 : i32
    %c0_i32_1 = arith.constant 0 : i32
    %c0_i32_2 = arith.constant 0 : i32
    return %arg0, %c0_i32, %c0_i32_0, %c0_i32_1 : i32, i32, i32, i32
  }
  func.func @transform_3(%arg0: i32) -> (i32, i32, i32) {
    %c0_i32 = arith.constant 0 : i32
    %c0_i32_0 = arith.constant 0 : i32
    %c0_i32_1 = arith.constant 0 : i32
    return %arg0, %c0_i32, %c0_i32_0 : i32, i32, i32
  }
}

module attributes {stable_mosaic.version = 11 : i64} {
  func.func @conv2_kernel(%arg0: i32, %arg1: memref<1x16x16x4xbf16, #tpu.memory_space<vmem>>, %arg2: memref<1x4xf32, #tpu.memory_space<vmem>>, %arg3: memref<1x4xf32, #tpu.memory_space<vmem>>, %arg4: memref<36x4xbf16, #tpu.memory_space<vmem>>, %arg5: memref<1x16x16x4xbf16, #tpu.memory_space<vmem>>, %arg6: memref<1x2x4xf32, #tpu.memory_space<vmem>>, %arg7: memref<18x18x4xf32, #tpu.memory_space<vmem>>, %arg8: memref<256x36xbf16, #tpu.memory_space<vmem>>) attributes {dimension_semantics = [#tpu.dimension_semantics<parallel>], iteration_bounds = array<i64: 2>, scalar_prefetch = 0 : i64, scratch_operands = 2 : i64, tpu.core_type = #tpu.core_type<tc>, window_params = [{transform_indices = @transform_0, window_bounds = array<i64: 1, 16, 16, 4>}, {pipeline_mode = #tpu.pipeline_mode<synchronous>, transform_indices = @transform_1, window_bounds = array<i64: 1, 4>}, {pipeline_mode = #tpu.pipeline_mode<synchronous>, transform_indices = @transform_2, window_bounds = array<i64: 1, 4>}, {pipeline_mode = #tpu.pipeline_mode<synchronous>, transform_indices = @transform_3, window_bounds = array<i64: 36, 4>}, {transform_indices = @transform_4, window_bounds = array<i64: 1, 16, 16, 4>}, {transform_indices = @transform_5, window_bounds = array<i64: 1, 2, 4>}]} {
    %c0 = arith.constant 0 : index
    %c0_0 = arith.constant 0 : index
    %c0_1 = arith.constant 0 : index
    %c0_2 = arith.constant 0 : index
    %0 = vector.load %arg1[%c0, %c0_0, %c0_1, %c0_2] : memref<1x16x16x4xbf16, #tpu.memory_space<vmem>>, vector<1x16x16x4xbf16>
    %1 = vector.shape_cast %0 : vector<1x16x16x4xbf16> to vector<16x16x4xbf16>
    %2 = arith.extf %1 : vector<16x16x4xbf16> to vector<16x16x4xf32>
    %c0_3 = arith.constant 0 : index
    %c0_4 = arith.constant 0 : index
    %3 = vector.load %arg2[%c0_3, %c0_4] : memref<1x4xf32, #tpu.memory_space<vmem>>, vector<1x4xf32>
    %4 = vector.shape_cast %3 : vector<1x4xf32> to vector<1x1x4xf32>
    %5 = vector.broadcast %4 : vector<1x1x4xf32> to vector<16x16x4xf32>
    %6 = arith.mulf %2, %5 : vector<16x16x4xf32>
    %c0_5 = arith.constant 0 : index
    %c0_6 = arith.constant 0 : index
    %7 = vector.load %arg3[%c0_5, %c0_6] : memref<1x4xf32, #tpu.memory_space<vmem>>, vector<1x4xf32>
    %8 = vector.shape_cast %7 : vector<1x4xf32> to vector<1x1x4xf32>
    %9 = vector.broadcast %8 : vector<1x1x4xf32> to vector<16x16x4xf32>
    %10 = arith.addf %6, %9 : vector<16x16x4xf32>
    %cst = arith.constant 0.000000e+00 : f32
    %11 = vector.broadcast %cst : f32 to vector<16x16x4xf32>
    %12 = arith.maximumf %10, %11 : vector<16x16x4xf32>
    %cst_7 = arith.constant 0.000000e+00 : f32
    %13 = vector.broadcast %cst_7 : f32 to vector<1x18x4xf32>
    %c0_8 = arith.constant 0 : index
    %c0_9 = arith.constant 0 : index
    %c0_10 = arith.constant 0 : index
    %14 = vector.load %arg7[%c0_8, %c0_9, %c0_10] : memref<18x18x4xf32, #tpu.memory_space<vmem>>, vector<1x18x4xf32>
    tpu.vector_store %arg7[%c0_8, %c0_9, %c0_10], %13 {strides = array<i32>} : memref<18x18x4xf32, #tpu.memory_space<vmem>>, vector<1x18x4xf32>,
    %cst_11 = arith.constant 0.000000e+00 : f32
    %15 = vector.broadcast %cst_11 : f32 to vector<1x18x4xf32>
    %c17 = arith.constant 17 : index
    %c0_12 = arith.constant 0 : index
    %c0_13 = arith.constant 0 : index
    %16 = vector.load %arg7[%c17, %c0_12, %c0_13] : memref<18x18x4xf32, #tpu.memory_space<vmem>>, vector<1x18x4xf32>
    tpu.vector_store %arg7[%c17, %c0_12, %c0_13], %15 {strides = array<i32>} : memref<18x18x4xf32, #tpu.memory_space<vmem>>, vector<1x18x4xf32>,
    %cst_14 = arith.constant 0.000000e+00 : f32
    %17 = vector.broadcast %cst_14 : f32 to vector<18x1x4xf32>
    %c0_15 = arith.constant 0 : index
    %c0_16 = arith.constant 0 : index
    %c0_17 = arith.constant 0 : index
    %18 = vector.load %arg7[%c0_15, %c0_16, %c0_17] : memref<18x18x4xf32, #tpu.memory_space<vmem>>, vector<18x1x4xf32>
    tpu.vector_store %arg7[%c0_15, %c0_16, %c0_17], %17 {strides = array<i32>} : memref<18x18x4xf32, #tpu.memory_space<vmem>>, vector<18x1x4xf32>,
    %cst_18 = arith.constant 0.000000e+00 : f32
    %19 = vector.broadcast %cst_18 : f32 to vector<18x1x4xf32>
    %c0_19 = arith.constant 0 : index
    %c17_20 = arith.constant 17 : index
    %c0_21 = arith.constant 0 : index
    %20 = vector.load %arg7[%c0_19, %c17_20, %c0_21] : memref<18x18x4xf32, #tpu.memory_space<vmem>>, vector<18x1x4xf32>
    tpu.vector_store %arg7[%c0_19, %c17_20, %c0_21], %19 {strides = array<i32>} : memref<18x18x4xf32, #tpu.memory_space<vmem>>, vector<18x1x4xf32>,
    %c1 = arith.constant 1 : index
    %c1_22 = arith.constant 1 : index
    %c0_23 = arith.constant 0 : index
    %21 = vector.load %arg7[%c1, %c1_22, %c0_23] : memref<18x18x4xf32, #tpu.memory_space<vmem>>, vector<16x16x4xf32>
    tpu.vector_store %arg7[%c1, %c1_22, %c0_23], %12 {strides = array<i32>} : memref<18x18x4xf32, #tpu.memory_space<vmem>>, vector<16x16x4xf32>,
    %c0_24 = arith.constant 0 : index
    %c0_25 = arith.constant 0 : index
    %c0_26 = arith.constant 0 : index
    %22 = vector.load %arg7[%c0_24, %c0_25, %c0_26] : memref<18x18x4xf32, #tpu.memory_space<vmem>>, vector<16x16x4xf32>
    %23 = vector.shape_cast %22 : vector<16x16x4xf32> to vector<256x4xf32>
    %24 = arith.truncf %23 : vector<256x4xf32> to vector<256x4xbf16>
    %c0_27 = arith.constant 0 : index
    %c0_28 = arith.constant 0 : index
    %25 = vector.load %arg8[%c0_27, %c0_28] : memref<256x36xbf16, #tpu.memory_space<vmem>>, vector<256x4xbf16>
    tpu.vector_store %arg8[%c0_27, %c0_28], %24 {strides = array<i32>} : memref<256x36xbf16, #tpu.memory_space<vmem>>, vector<256x4xbf16>,
    %c0_29 = arith.constant 0 : index
    %c1_30 = arith.constant 1 : index
    %c0_31 = arith.constant 0 : index
    %26 = vector.load %arg7[%c0_29, %c1_30, %c0_31] : memref<18x18x4xf32, #tpu.memory_space<vmem>>, vector<16x16x4xf32>
    %27 = vector.shape_cast %26 : vector<16x16x4xf32> to vector<256x4xf32>
    %28 = arith.truncf %27 : vector<256x4xf32> to vector<256x4xbf16>
    %c0_32 = arith.constant 0 : index
    %c4 = arith.constant 4 : index
    %29 = vector.load %arg8[%c0_32, %c4] : memref<256x36xbf16, #tpu.memory_space<vmem>>, vector<256x4xbf16>
    tpu.vector_store %arg8[%c0_32, %c4], %28 {strides = array<i32>} : memref<256x36xbf16, #tpu.memory_space<vmem>>, vector<256x4xbf16>,
    %c0_33 = arith.constant 0 : index
    %c2 = arith.constant 2 : index
    %c0_34 = arith.constant 0 : index
    %30 = vector.load %arg7[%c0_33, %c2, %c0_34] : memref<18x18x4xf32, #tpu.memory_space<vmem>>, vector<16x16x4xf32>
    %31 = vector.shape_cast %30 : vector<16x16x4xf32> to vector<256x4xf32>
    %32 = arith.truncf %31 : vector<256x4xf32> to vector<256x4xbf16>
    %c0_35 = arith.constant 0 : index
    %c8 = arith.constant 8 : index
    %33 = vector.load %arg8[%c0_35, %c8] : memref<256x36xbf16, #tpu.memory_space<vmem>>, vector<256x4xbf16>
    tpu.vector_store %arg8[%c0_35, %c8], %32 {strides = array<i32>} : memref<256x36xbf16, #tpu.memory_space<vmem>>, vector<256x4xbf16>,
    %c1_36 = arith.constant 1 : index
    %c0_37 = arith.constant 0 : index
    %c0_38 = arith.constant 0 : index
    %34 = vector.load %arg7[%c1_36, %c0_37, %c0_38] : memref<18x18x4xf32, #tpu.memory_space<vmem>>, vector<16x16x4xf32>
    %35 = vector.shape_cast %34 : vector<16x16x4xf32> to vector<256x4xf32>
    %36 = arith.truncf %35 : vector<256x4xf32> to vector<256x4xbf16>
    %c0_39 = arith.constant 0 : index
    %c12 = arith.constant 12 : index
    %37 = vector.load %arg8[%c0_39, %c12] : memref<256x36xbf16, #tpu.memory_space<vmem>>, vector<256x4xbf16>
    tpu.vector_store %arg8[%c0_39, %c12], %36 {strides = array<i32>} : memref<256x36xbf16, #tpu.memory_space<vmem>>, vector<256x4xbf16>,
    %c1_40 = arith.constant 1 : index
    %c1_41 = arith.constant 1 : index
    %c0_42 = arith.constant 0 : index
    %38 = vector.load %arg7[%c1_40, %c1_41, %c0_42] : memref<18x18x4xf32, #tpu.memory_space<vmem>>, vector<16x16x4xf32>
    %39 = vector.shape_cast %38 : vector<16x16x4xf32> to vector<256x4xf32>
    %40 = arith.truncf %39 : vector<256x4xf32> to vector<256x4xbf16>
    %c0_43 = arith.constant 0 : index
    %c16 = arith.constant 16 : index
    %41 = vector.load %arg8[%c0_43, %c16] : memref<256x36xbf16, #tpu.memory_space<vmem>>, vector<256x4xbf16>
    tpu.vector_store %arg8[%c0_43, %c16], %40 {strides = array<i32>} : memref<256x36xbf16, #tpu.memory_space<vmem>>, vector<256x4xbf16>,
    %c1_44 = arith.constant 1 : index
    %c2_45 = arith.constant 2 : index
    %c0_46 = arith.constant 0 : index
    %42 = vector.load %arg7[%c1_44, %c2_45, %c0_46] : memref<18x18x4xf32, #tpu.memory_space<vmem>>, vector<16x16x4xf32>
    %43 = vector.shape_cast %42 : vector<16x16x4xf32> to vector<256x4xf32>
    %44 = arith.truncf %43 : vector<256x4xf32> to vector<256x4xbf16>
    %c0_47 = arith.constant 0 : index
    %c20 = arith.constant 20 : index
    %45 = vector.load %arg8[%c0_47, %c20] : memref<256x36xbf16, #tpu.memory_space<vmem>>, vector<256x4xbf16>
    tpu.vector_store %arg8[%c0_47, %c20], %44 {strides = array<i32>} : memref<256x36xbf16, #tpu.memory_space<vmem>>, vector<256x4xbf16>,
    %c2_48 = arith.constant 2 : index
    %c0_49 = arith.constant 0 : index
    %c0_50 = arith.constant 0 : index
    %46 = vector.load %arg7[%c2_48, %c0_49, %c0_50] : memref<18x18x4xf32, #tpu.memory_space<vmem>>, vector<16x16x4xf32>
    %47 = vector.shape_cast %46 : vector<16x16x4xf32> to vector<256x4xf32>
    %48 = arith.truncf %47 : vector<256x4xf32> to vector<256x4xbf16>
    %c0_51 = arith.constant 0 : index
    %c24 = arith.constant 24 : index
    %49 = vector.load %arg8[%c0_51, %c24] : memref<256x36xbf16, #tpu.memory_space<vmem>>, vector<256x4xbf16>
    tpu.vector_store %arg8[%c0_51, %c24], %48 {strides = array<i32>} : memref<256x36xbf16, #tpu.memory_space<vmem>>, vector<256x4xbf16>,
    %c2_52 = arith.constant 2 : index
    %c1_53 = arith.constant 1 : index
    %c0_54 = arith.constant 0 : index
    %50 = vector.load %arg7[%c2_52, %c1_53, %c0_54] : memref<18x18x4xf32, #tpu.memory_space<vmem>>, vector<16x16x4xf32>
    %51 = vector.shape_cast %50 : vector<16x16x4xf32> to vector<256x4xf32>
    %52 = arith.truncf %51 : vector<256x4xf32> to vector<256x4xbf16>
    %c0_55 = arith.constant 0 : index
    %c28 = arith.constant 28 : index
    %53 = vector.load %arg8[%c0_55, %c28] : memref<256x36xbf16, #tpu.memory_space<vmem>>, vector<256x4xbf16>
    tpu.vector_store %arg8[%c0_55, %c28], %52 {strides = array<i32>} : memref<256x36xbf16, #tpu.memory_space<vmem>>, vector<256x4xbf16>,
    %c2_56 = arith.constant 2 : index
    %c2_57 = arith.constant 2 : index
    %c0_58 = arith.constant 0 : index
    %54 = vector.load %arg7[%c2_56, %c2_57, %c0_58] : memref<18x18x4xf32, #tpu.memory_space<vmem>>, vector<16x16x4xf32>
    %55 = vector.shape_cast %54 : vector<16x16x4xf32> to vector<256x4xf32>
    %56 = arith.truncf %55 : vector<256x4xf32> to vector<256x4xbf16>
    %c0_59 = arith.constant 0 : index
    %c32 = arith.constant 32 : index
    %57 = vector.load %arg8[%c0_59, %c32] : memref<256x36xbf16, #tpu.memory_space<vmem>>, vector<256x4xbf16>
    tpu.vector_store %arg8[%c0_59, %c32], %56 {strides = array<i32>} : memref<256x36xbf16, #tpu.memory_space<vmem>>, vector<256x4xbf16>,
    %c0_60 = arith.constant 0 : index
    %c0_61 = arith.constant 0 : index
    %58 = vector.load %arg8[%c0_60, %c0_61] : memref<256x36xbf16, #tpu.memory_space<vmem>>, vector<256x36xbf16>
    %c0_62 = arith.constant 0 : index
    %c0_63 = arith.constant 0 : index
    %59 = vector.load %arg4[%c0_62, %c0_63] : memref<36x4xbf16, #tpu.memory_space<vmem>>, vector<36x4xbf16>
    %cst_64 = arith.constant dense<0.000000e+00> : vector<256x4xf32>
    %60 = tpu.matmul %58, %59, %cst_64 {dimension_numbers = #tpu.dot_dimension_numbers<[1], [0], [0], [1], [0, 0, 1, 1], [], []>} : vector<256x36xbf16>, vector<36x4xbf16>, vector<256x4xf32> -> vector<256x4xf32>
    %cst_65 = arith.constant dense<0.000000e+00> : vector<4xf32>
    %61 = vector.multi_reduction <add>, %60, %cst_65 [0] : vector<256x4xf32> to vector<4xf32>
    %62 = vector.shape_cast %61 : vector<4xf32> to vector<1x4xf32>
    %cst_66 = arith.constant 2.560000e+02 : f32
    %63 = vector.broadcast %cst_66 : f32 to vector<1x4xf32>
    %64 = arith.divf %62, %63 : vector<1x4xf32>
    %65 = vector.broadcast %64 : vector<1x4xf32> to vector<256x4xf32>
    %66 = arith.subf %60, %65 : vector<256x4xf32>
    %67 = arith.mulf %66, %66 : vector<256x4xf32>
    %cst_67 = arith.constant dense<0.000000e+00> : vector<4xf32>
    %68 = vector.multi_reduction <add>, %67, %cst_67 [0] : vector<256x4xf32> to vector<4xf32>
    %69 = vector.shape_cast %68 : vector<4xf32> to vector<1x4xf32>
    %70 = tpu.concatenate %64, %69 in 0 : vector<1x4xf32>, vector<1x4xf32> -> vector<2x4xf32>
    %71 = vector.shape_cast %70 : vector<2x4xf32> to vector<1x2x4xf32>
    %c0_68 = arith.constant 0 : index
    %c0_69 = arith.constant 0 : index
    %c0_70 = arith.constant 0 : index
    %72 = vector.load %arg6[%c0_68, %c0_69, %c0_70] : memref<1x2x4xf32, #tpu.memory_space<vmem>>, vector<1x2x4xf32>
    tpu.vector_store %arg6[%c0_68, %c0_69, %c0_70], %71 {strides = array<i32>} : memref<1x2x4xf32, #tpu.memory_space<vmem>>, vector<1x2x4xf32>,
    %73 = vector.shape_cast %60 : vector<256x4xf32> to vector<1x16x16x4xf32>
    %74 = arith.truncf %73 : vector<1x16x16x4xf32> to vector<1x16x16x4xbf16>
    %c0_71 = arith.constant 0 : index
    %c0_72 = arith.constant 0 : index
    %c0_73 = arith.constant 0 : index
    %c0_74 = arith.constant 0 : index
    %75 = vector.load %arg5[%c0_71, %c0_72, %c0_73, %c0_74] : memref<1x16x16x4xbf16, #tpu.memory_space<vmem>>, vector<1x16x16x4xbf16>
    tpu.vector_store %arg5[%c0_71, %c0_72, %c0_73, %c0_74], %74 {strides = array<i32>} : memref<1x16x16x4xbf16, #tpu.memory_space<vmem>>, vector<1x16x16x4xbf16>,
    return
  }
  func.func @transform_0(%arg0: i32) -> (i32, i32, i32, i32) {
    %c0_i32 = arith.constant 0 : i32
    %c0_i32_0 = arith.constant 0 : i32
    %c0_i32_1 = arith.constant 0 : i32
    %c0_i32_2 = arith.constant 0 : i32
    return %arg0, %c0_i32, %c0_i32_0, %c0_i32_1 : i32, i32, i32, i32
  }
  func.func @transform_1(%arg0: i32) -> (i32, i32) {
    %c0_i32 = arith.constant 0 : i32
    %c0_i32_0 = arith.constant 0 : i32
    %c0_i32_1 = arith.constant 0 : i32
    return %c0_i32, %c0_i32_0 : i32, i32
  }
  func.func @transform_2(%arg0: i32) -> (i32, i32) {
    %c0_i32 = arith.constant 0 : i32
    %c0_i32_0 = arith.constant 0 : i32
    %c0_i32_1 = arith.constant 0 : i32
    return %c0_i32, %c0_i32_0 : i32, i32
  }
  func.func @transform_3(%arg0: i32) -> (i32, i32) {
    %c0_i32 = arith.constant 0 : i32
    %c0_i32_0 = arith.constant 0 : i32
    %c0_i32_1 = arith.constant 0 : i32
    return %c0_i32, %c0_i32_0 : i32, i32
  }
  func.func @transform_4(%arg0: i32) -> (i32, i32, i32, i32) {
    %c0_i32 = arith.constant 0 : i32
    %c0_i32_0 = arith.constant 0 : i32
    %c0_i32_1 = arith.constant 0 : i32
    %c0_i32_2 = arith.constant 0 : i32
    return %arg0, %c0_i32, %c0_i32_0, %c0_i32_1 : i32, i32, i32, i32
  }
  func.func @transform_5(%arg0: i32) -> (i32, i32, i32) {
    %c0_i32 = arith.constant 0 : i32
    %c0_i32_0 = arith.constant 0 : i32
    %c0_i32_1 = arith.constant 0 : i32
    return %arg0, %c0_i32, %c0_i32_0 : i32, i32, i32
  }
}

module attributes {stable_mosaic.version = 11 : i64} {
  func.func @finalize_kernel(%arg0: i32, %arg1: memref<8x64xbf16, #tpu.memory_space<vmem>>, %arg2: memref<8x64xf32, #tpu.memory_space<vmem>>, %arg3: memref<1x64xf32, #tpu.memory_space<vmem>>, %arg4: memref<1x64xf32, #tpu.memory_space<vmem>>, %arg5: memref<8x64xf32, #tpu.memory_space<vmem>>) attributes {dimension_semantics = [#tpu.dimension_semantics<parallel>], iteration_bounds = array<i64: 4>, scalar_prefetch = 0 : i64, scratch_operands = 0 : i64, tpu.core_type = #tpu.core_type<tc>, window_params = [{transform_indices = @transform_0, window_bounds = array<i64: 8, 64>}, {transform_indices = @transform_1, window_bounds = array<i64: 8, 64>}, {pipeline_mode = #tpu.pipeline_mode<synchronous>, transform_indices = @transform_2, window_bounds = array<i64: 1, 64>}, {pipeline_mode = #tpu.pipeline_mode<synchronous>, transform_indices = @transform_3, window_bounds = array<i64: 1, 64>}, {transform_indices = @transform_4, window_bounds = array<i64: 8, 64>}]} {
    %c0 = arith.constant 0 : index
    %c0_0 = arith.constant 0 : index
    %0 = vector.load %arg1[%c0, %c0_0] : memref<8x64xbf16, #tpu.memory_space<vmem>>, vector<8x64xbf16>
    %1 = arith.extf %0 : vector<8x64xbf16> to vector<8x64xf32>
    %c0_1 = arith.constant 0 : index
    %c0_2 = arith.constant 0 : index
    %2 = vector.load %arg3[%c0_1, %c0_2] : memref<1x64xf32, #tpu.memory_space<vmem>>, vector<1x64xf32>
    %3 = vector.broadcast %2 : vector<1x64xf32> to vector<8x64xf32>
    %4 = arith.mulf %1, %3 : vector<8x64xf32>
    %c0_3 = arith.constant 0 : index
    %c0_4 = arith.constant 0 : index
    %5 = vector.load %arg4[%c0_3, %c0_4] : memref<1x64xf32, #tpu.memory_space<vmem>>, vector<1x64xf32>
    %6 = vector.broadcast %5 : vector<1x64xf32> to vector<8x64xf32>
    %7 = arith.addf %4, %6 : vector<8x64xf32>
    %c0_5 = arith.constant 0 : index
    %c0_6 = arith.constant 0 : index
    %8 = vector.load %arg2[%c0_5, %c0_6] : memref<8x64xf32, #tpu.memory_space<vmem>>, vector<8x64xf32>
    %9 = arith.addf %7, %8 : vector<8x64xf32>
    %cst = arith.constant 0.000000e+00 : f32
    %10 = vector.broadcast %cst : f32 to vector<8x64xf32>
    %11 = arith.maximumf %9, %10 : vector<8x64xf32>
    %c0_7 = arith.constant 0 : index
    %c0_8 = arith.constant 0 : index
    %12 = vector.load %arg5[%c0_7, %c0_8] : memref<8x64xf32, #tpu.memory_space<vmem>>, vector<8x64xf32>
    tpu.vector_store %arg5[%c0_7, %c0_8], %11 {strides = array<i32>} : memref<8x64xf32, #tpu.memory_space<vmem>>, vector<8x64xf32>,
    return
  }
  func.func @transform_0(%arg0: i32) -> (i32, i32) {
    %c0_i32 = arith.constant 0 : i32
    %c0_i32_0 = arith.constant 0 : i32
    return %arg0, %c0_i32 : i32, i32
  }
  func.func @transform_1(%arg0: i32) -> (i32, i32) {
    %c0_i32 = arith.constant 0 : i32
    %c0_i32_0 = arith.constant 0 : i32
    return %arg0, %c0_i32 : i32, i32
  }
  func.func @transform_2(%arg0: i32) -> (i32, i32) {
    %c0_i32 = arith.constant 0 : i32
    %c0_i32_0 = arith.constant 0 : i32
    %c0_i32_1 = arith.constant 0 : i32
    return %c0_i32, %c0_i32_0 : i32, i32
  }
  func.func @transform_3(%arg0: i32) -> (i32, i32) {
    %c0_i32 = arith.constant 0 : i32
    %c0_i32_0 = arith.constant 0 : i32
    %c0_i32_1 = arith.constant 0 : i32
    return %c0_i32, %c0_i32_0 : i32, i32
  }
  func.func @transform_4(%arg0: i32) -> (i32, i32) {
    %c0_i32 = arith.constant 0 : i32
    %c0_i32_0 = arith.constant 0 : i32
    return %arg0, %c0_i32 : i32, i32
  }
}

</mosaic_0001>

<llo_original>
// kernel: tile.13
$region0: #{tile.13}
  #allocation0 [shape = 's32[1]{0}', space=sflag, size = 0x4, scoped, tag = 'scoped memory for tile.13']
  %s0 = inlined_call_operand.vmem [shape: f32[4], index: 0, kind: input, shape index: {}]
  %s1 = inlined_call_operand.vmem [shape: f32[16,4], index: 1, kind: output, shape index: {}]
  // Predicated region
  $region2: #{tile.13} parent=0 // pred_check
    _
  $region3: #{tile.13} parent=0 // pred_check_branch
    %3 = sbr.rel (0) target = $region5
  $region4: #{tile.13} parent=0 // pred_region
    _
  $region5: #{tile.13} parent=0 // pred_fallthru
    _
  %v4 = vld [vmem:[%s0] ss:$0 sm:$0xff]
  %5 = vst [vmem:[%s1] sm:$0xff] %v4
  %s6 = scalar_lea.vmem %s1, 8
  %7 = vst [vmem:[%s6] sm:$0xff] %v4

// kernel: tile.14
$region0: #{tile.14}
  %s0 = inlined_call_operand.vmem [shape: f32[16,4], index: 0, kind: input, shape index: {}]
  %s1 = inlined_call_operand.vmem [shape: f32[1,64], index: 1, kind: output, shape index: {}]
  $region1: #{tile.14} parent=0
    #allocation0 [shape = 'u8[4096]{0}', space=vmem, size = 0x1000, scoped, tag = 'scoped mem for output reshape']
    %v2 = vld [vmem:[%s0] sm:$0x1]
    %vm3 = vcmask 31744
    %4 = vst.msk [vmem:[#allocation0] sm:$0x1] %vm3, %v2
    %s5 = scalar_lea.vmem %s0, 15
    %v6 = vld [vmem:[%s5] sm:$0x1]
    %7 = vrot.lane.b32.xlu0 %v6, 60
    %v8 = vpop.permute.xlu0 %7
    %vm9 = vcmask 523744
    %10 = vst.msk [vmem:[#allocation0] sm:$0x1] %vm9, %v8
    %s11 = scalar_lea.vmem %s0, 14
    %v12 = vld [vmem:[%s11] sm:$0x1]
    %13 = vrot.lane.b32.xlu0 %v12, 56
    %v14 = vpop.permute.xlu0 %13
    %vm15 = vcmask 490944
    %16 = vst.msk [vmem:[#allocation0] sm:$0x1] %vm15, %v14
    %s17 = scalar_lea.vmem %s0, 13
    %v18 = vld [vmem:[%s17] sm:$0x1]
    %19 = vrot.lane.b32.xlu0 %v18, 52
    %v20 = vpop.permute.xlu0 %19
    %vm21 = vcmask 458144
    %22 = vst.msk [vmem:[#allocation0] sm:$0x1] %vm21, %v20
    %s23 = scalar_lea.vmem %s0, 12
    %v24 = vld [vmem:[%s23] sm:$0x1]
    %25 = vrot.lane.b32.xlu0 %v24, 48
    %v26 = vpop.permute.xlu0 %25
    %vm27 = vcmask 425344
    %28 = vst.msk [vmem:[#allocation0] sm:$0x1] %vm27, %v26
    %s29 = scalar_lea.vmem %s0, 11
    %v30 = vld [vmem:[%s29] sm:$0x1]
    %31 = vrot.lane.b32.xlu0 %v30, 44
    %v32 = vpop.permute.xlu0 %31
    %vm33 = vcmask 392544
    %34 = vst.msk [vmem:[#allocation0] sm:$0x1] %vm33, %v32
    %s35 = scalar_lea.vmem %s0, 10
    %v36 = vld [vmem:[%s35] sm:$0x1]
    %37 = vrot.lane.b32.xlu0 %v36, 40
    %v38 = vpop.permute.xlu0 %37
    %vm39 = vcmask 359744
    %40 = vst.msk [vmem:[#allocation0] sm:$0x1] %vm39, %v38
    %s41 = scalar_lea.vmem %s0, 9
    %v42 = vld [vmem:[%s41] sm:$0x1]
    %43 = vrot.lane.b32.xlu0 %v42, 36
    %v44 = vpop.permute.xlu0 %43
    %vm45 = vcmask 326944
    %46 = vst.msk [vmem:[#allocation0] sm:$0x1] %vm45, %v44
    %s47 = scalar_lea.vmem %s0, 8
    %v48 = vld [vmem:[%s47] sm:$0x1]
    %49 = vrot.lane.b32.xlu0 %v48, 32
    %v50 = vpop.permute.xlu0 %49
    %vm51 = vcmask 294144
    %52 = vst.msk [vmem:[#allocation0] sm:$0x1] %vm51, %v50
    %s53 = scalar_lea.vmem %s0, 7
    %v54 = vld [vmem:[%s53] sm:$0x1]
    %55 = vrot.lane.b32.xlu0 %v54, 28
    %v56 = vpop.permute.xlu0 %55
    %vm57 = vcmask 261344
    %58 = vst.msk [vmem:[#allocation0] sm:$0x1] %vm57, %v56
    %s59 = scalar_lea.vmem %s0, 6
    %v60 = vld [vmem:[%s59] sm:$0x1]
    %61 = vrot.lane.b32.xlu0 %v60, 24
    %v62 = vpop.permute.xlu0 %61
    %vm63 = vcmask 228544
    %64 = vst.msk [vmem:[#allocation0] sm:$0x1] %vm63, %v62
    %s65 = scalar_lea.vmem %s0, 5
    %v66 = vld [vmem:[%s65] sm:$0x1]
    %67 = vrot.lane.b32.xlu0 %v66, 20
    %v68 = vpop.permute.xlu0 %67
    %vm69 = vcmask 195744
    %70 = vst.msk [vmem:[#allocation0] sm:$0x1] %vm69, %v68
    %s71 = scalar_lea.vmem %s0, 4
    %v72 = vld [vmem:[%s71] sm:$0x1]
    %73 = vrot.lane.b32.xlu0 %v72, 16
    %v74 = vpop.permute.xlu0 %73
    %vm75 = vcmask 162944
    %76 = vst.msk [vmem:[#allocation0] sm:$0x1] %vm75, %v74
    %s77 = scalar_lea.vmem %s0, 3
    %v78 = vld [vmem:[%s77] sm:$0x1]
    %79 = vrot.lane.b32.xlu0 %v78, 12
    %v80 = vpop.permute.xlu0 %79
    %vm81 = vcmask 130144
    %82 = vst.msk [vmem:[#allocation0] sm:$0x1] %vm81, %v80
    %s83 = scalar_lea.vmem %s0, 2
    %v84 = vld [vmem:[%s83] sm:$0x1]
    %85 = vrot.lane.b32.xlu0 %v84, 8
    %v86 = vpop.permute.xlu0 %85
    %vm87 = vcmask 97344
    %88 = vst.msk [vmem:[#allocation0] sm:$0x1] %vm87, %v86
    %s89 = scalar_lea.vmem %s0, 1
    %v90 = vld [vmem:[%s89] sm:$0x1]
    %91 = vrot.lane.b32.xlu0 %v90, 4
    %v92 = vpop.permute.xlu0 %91
    %vm93 = vcmask 64544
    %94 = vst.msk [vmem:[#allocation0] sm:$0x1] %vm93, %v92
    %s96 = ssub.s32 2, 1
    %v97 = vld [vmem:[#allocation0] sm:%s96]
    %s99 = ssub.s32 2, 1
    %100 = vst [vmem:[%s1] sm:%s99] %v97

// kernel: basic_block_forward.5
$region0: #{basic_block_forward.5}
  #allocation0 [shape = 'u32[]', space=smem, size = 0x4, offset = 0x4, fixed_abs, tag = 'smem constant byte address 0x4 - core index']
  #allocation1 [shape = 'u32[72,128]{1,0:T(1,128)}', space=vmem, size = 0x9000, scoped, tag = 'internal scratch']
  %s0 = inlined_call_operand.vmem [shape: bf16[32,64], index: 0, kind: input, shape index: {}]
  %s1 = inlined_call_operand.vmem [shape: f32[32,64], index: 1, kind: input, shape index: {}]
  %s2 = inlined_call_operand.vmem [shape: f32[1,64], index: 2, kind: input, shape index: {}]
  %s3 = inlined_call_operand.vmem [shape: f32[1,64], index: 3, kind: input, shape index: {}]
  %s4 = inlined_call_operand.vmem [shape: f32[32,64], index: 4, kind: output, shape index: {}]
  %s5 = sld [smem:[#allocation0]]
  $region49: #{basic_block_forward.5} parent=0
    _
  %s7 = ssub.s32 1, %s5
  %s8 = scalar_select 0, %s7, %s5
  loop: start=0, step=1, limit=6
  $region2: #{basic_block_forward.5} parent=0 // loop_pre_header
    _
  $region3: #{basic_block_forward.5} parent=0 // loop_header
    %s10 = sphi 0, %s14
    %p11 = scmp.ge.s32.totalorder %s10, 6
    %s20 = sphi 0, %s22
    %s23 = sphi 0, %s20
    %s24 = sphi 0, %s23
    %s40 = sphi 0, %s24
    %s46 = sphi 0, %s48
    %s49 = sphi 0, %s46
    %s50 = sphi 0, %s49
    %s66 = sphi 0, %s50
    %s70 = sphi 0, %s70
    %s72 = sphi 0, %s70
    %s73 = sphi 0, %s72
    %s87 = sphi 0, %s73
    %s91 = sphi 0, %s91
    %s93 = sphi 0, %s91
    %s94 = sphi 0, %s93
    %s108 = sphi 0, %s94
    %s114 = sphi 0, %s116
    %s117 = sphi 0, %s114
    %s118 = sphi 0, %s117
    %s134 = sphi 0, %s118
  $region4: #{basic_block_forward.5} parent=0 // loop_header_branch
    %13 = sbr.rel (%p11) target = $region8
  $region5: #{basic_block_forward.5} parent=0 // loop_body
    %s15 = ssub.s32 %s10, 1
    %s16 = ssub.s32 %s10, 2
    %s17 = sadd.s32 %s10, 1
    %s18 = ssub.s32 %s10, %s17
    %p19 = scmp.eq.s32.totalorder %s18, 0
    %s21 = sadd.s32 %s20, 1
    %s22 = scalar_select %p19, %s20, %s21
    %p25 = pneg %p19
    %p26 = scmp.eq.s32.totalorder %s10, 3
    %p27 = por %p25, %p26
    %p28 = scmp.ne.s32.totalorder %s20, %s23
    %p29 = scmp.eq.s32.totalorder %s10, 0
    %p30 = por %p28, %p29
    %p31 = scmp.ne.s32.totalorder %s20, %s23
    %p32 = scmp.eq.s32.totalorder %s15, 3
    %p33 = por %p31, %p32
    %p34 = scmp.ne.s32.totalorder %s23, %s24
    %p35 = scmp.eq.s32.totalorder %s15, 0
    %p36 = por %p34, %p35
    %p37 = scmp.ne.s32.totalorder %s23, %s24
    %p38 = scmp.eq.s32.totalorder %s16, 3
    %p39 = por %p37, %p38
    %p41 = scmp.ne.s32.totalorder %s24, %s40
    %p42 = scmp.eq.s32.totalorder %s16, 0
    %p43 = por %p41, %p42
    %s44 = ssub.s32 %s10, %s17
    %p45 = scmp.eq.s32.totalorder %s44, 0
    %s47 = sadd.s32 %s46, 1
    %s48 = scalar_select %p45, %s46, %s47
    %p51 = pneg %p45
    %p52 = scmp.eq.s32.totalorder %s10, 3
    %p53 = por %p51, %p52
    %p54 = scmp.ne.s32.totalorder %s46, %s49
    %p55 = scmp.eq.s32.totalorder %s10, 0
    %p56 = por %p54, %p55
    %p57 = scmp.ne.s32.totalorder %s46, %s49
    %p58 = scmp.eq.s32.totalorder %s15, 3
    %p59 = por %p57, %p58
    %p60 = scmp.ne.s32.totalorder %s49, %s50
    %p61 = scmp.eq.s32.totalorder %s15, 0
    %p62 = por %p60, %p61
    %p63 = scmp.ne.s32.totalorder %s49, %s50
    %p64 = scmp.eq.s32.totalorder %s16, 3
    %p65 = por %p63, %p64
    %p67 = scmp.ne.s32.totalorder %s50, %s66
    %p68 = scmp.eq.s32.totalorder %s16, 0
    %p69 = por %p67, %p68
    %s71 = sadd.s32 %s70, 1
    %p74 = scmp.eq.s32.totalorder %s10, 3
    %p75 = scmp.ne.s32.totalorder %s70, %s72
    %p76 = scmp.eq.s32.totalorder %s10, 0
    %p77 = por %p75, %p76
    %p78 = scmp.ne.s32.totalorder %s70, %s72
    %p79 = scmp.eq.s32.totalorder %s15, 3
    %p80 = por %p78, %p79
    %p81 = scmp.ne.s32.totalorder %s72, %s73
    %p82 = scmp.eq.s32.totalorder %s15, 0
    %p83 = por %p81, %p82
    %p84 = scmp.ne.s32.totalorder %s72, %s73
    %p85 = scmp.eq.s32.totalorder %s16, 3
    %p86 = por %p84, %p85
    %p88 = scmp.ne.s32.totalorder %s73, %s87
    %p89 = scmp.eq.s32.totalorder %s16, 0
    %p90 = por %p88, %p89
    %s92 = sadd.s32 %s91, 1
    %p95 = scmp.eq.s32.totalorder %s10, 3
    %p96 = scmp.ne.s32.totalorder %s91, %s93
    %p97 = scmp.eq.s32.totalorder %s10, 0
    %p98 = por %p96, %p97
    %p99 = scmp.ne.s32.totalorder %s91, %s93
    %p100 = scmp.eq.s32.totalorder %s15, 3
    %p101 = por %p99, %p100
    %p102 = scmp.ne.s32.totalorder %s93, %s94
    %p103 = scmp.eq.s32.totalorder %s15, 0
    %p104 = por %p102, %p103
    %p105 = scmp.ne.s32.totalorder %s93, %s94
    %p106 = scmp.eq.s32.totalorder %s16, 3
    %p107 = por %p105, %p106
    %p109 = scmp.ne.s32.totalorder %s94, %s108
    %p110 = scmp.eq.s32.totalorder %s16, 0
    %p111 = por %p109, %p110
    %s112 = ssub.s32 %s10, %s17
    %p113 = scmp.eq.s32.totalorder %s112, 0
    %s115 = sadd.s32 %s114, 1
    %s116 = scalar_select %p113, %s114, %s115
    %p119 = pneg %p113
    %p120 = scmp.eq.s32.totalorder %s10, 3
    %p121 = por %p119, %p120
    %p122 = scmp.ne.s32.totalorder %s114, %s117
    %p123 = scmp.eq.s32.totalorder %s10, 0
    %p124 = por %p122, %p123
    %p125 = scmp.ne.s32.totalorder %s114, %s117
    %p126 = scmp.eq.s32.totalorder %s15, 3
    %p127 = por %p125, %p126
    %p128 = scmp.ne.s32.totalorder %s117, %s118
    %p129 = scmp.eq.s32.totalorder %s15, 0
    %p130 = por %p128, %p129
    %p131 = scmp.ne.s32.totalorder %s117, %s118
    %p132 = scmp.eq.s32.totalorder %s16, 3
    %p133 = por %p131, %p132
    %p135 = scmp.ne.s32.totalorder %s118, %s134
    %p136 = scmp.eq.s32.totalorder %s16, 0
    %p137 = por %p135, %p136
    %p138 = scmp.le.s32.totalorder 1, %s10
    %p139 = scmp.lt.s32.totalorder %s10, 5
    %p140 = pnand %p138, %p139
    %p141 = pneg %p140
    // Predicated region
    $region9: #{basic_block_forward.5} parent=5 // pred_check
      _
    $region10: #{basic_block_forward.5} parent=5 // pred_check_branch
      %143 = sbr.rel (%p140) target = $region12
    $region11: #{basic_block_forward.5} parent=5 // pred_region
      %s144 = ssub.s32 %s10, 1
      // Predicated region
      $region13: #{basic_block_forward.5} parent=11 // pred_check
        %p145 = pneg %p83
      $region14: #{basic_block_forward.5} parent=11 // pred_check_branch
        %147 = sbr.rel (%p145) target = $region16
      $region15: #{basic_block_forward.5} parent=11 // pred_region
        _
      $region16: #{basic_block_forward.5} parent=11 // pred_fallthru
        _
      // Predicated region
      $region17: #{basic_block_forward.5} parent=11 // pred_check
        %p148 = pneg %p104
      $region18: #{basic_block_forward.5} parent=11 // pred_check_branch
        %150 = sbr.rel (%p148) target = $region20
      $region19: #{basic_block_forward.5} parent=11 // pred_region
        _
      $region20: #{basic_block_forward.5} parent=11 // pred_fallthru
        _
    $region12: #{basic_block_forward.5} parent=5 // pred_fallthru
      _
    %p151 = scmp.lt.s32.totalorder %s10, 4
    // Predicated region
    $region21: #{basic_block_forward.5} parent=5 // pred_check
      %p152 = pneg %p151
    $region22: #{basic_block_forward.5} parent=5 // pred_check_branch
      %154 = sbr.rel (%p152) target = $region24
    $region23: #{basic_block_forward.5} parent=5 // pred_region
      // Predicated region
      $region25: #{basic_block_forward.5} parent=23 // pred_check
        %p155 = pneg %p30
      $region26: #{basic_block_forward.5} parent=23 // pred_check_branch
        %157 = sbr.rel (%p155) target = $region28
      $region27: #{basic_block_forward.5} parent=23 // pred_region
        %p158 = scmp.lt.s32.totalorder %s10, 3
        %s159 = scalar_select %p158, %s10, 3
        %s160 = smul.addr %s159, 4
        %s161 = scalar_lea.vmem %s0, %s160
      $region28: #{basic_block_forward.5} parent=23 // pred_fallthru
        _
      // Predicated region
      $region29: #{basic_block_forward.5} parent=23 // pred_check
        %p162 = pneg %p56
      $region30: #{basic_block_forward.5} parent=23 // pred_check_branch
        %164 = sbr.rel (%p162) target = $region32
      $region31: #{basic_block_forward.5} parent=23 // pred_region
        %p165 = scmp.lt.s32.totalorder %s10, 3
        %s166 = scalar_select %p165, %s10, 3
        %s167 = smul.addr %s166, 8
        %s168 = scalar_lea.vmem %s1, %s167
      $region32: #{basic_block_forward.5} parent=23 // pred_fallthru
        _
    $region24: #{basic_block_forward.5} parent=5 // pred_fallthru
      _
    %p169 = scmp.le.s32.totalorder 1, %s10
    %p170 = scmp.lt.s32.totalorder %s10, 5
    %p171 = pnand %p169, %p170
    %p172 = pneg %p171
    // Predicated region
    $region33: #{basic_block_forward.5} parent=5 // pred_check
      _
    $region34: #{basic_block_forward.5} parent=5 // pred_check_branch
      %174 = sbr.rel (%p171) target = $region36
    $region35: #{basic_block_forward.5} parent=5 // pred_region
      %s175 = ssub.s32 %s10, 1
      %p176 = scmp.lt.s32.totalorder %s15, 3
      %s177 = scalar_select %p176, %s15, 3
      %s178 = smul.addr %s177, 4
      %s179 = scalar_lea.vmem %s0, %s178
      %p180 = pneg %p36
      %p181 = pneg %p33
      %p182 = scmp.lt.s32.totalorder %s15, 3
      %s183 = scalar_select %p182, %s15, 3
      %s184 = smul.addr %s183, 8
      %s185 = scalar_lea.vmem %s1, %s184
      %p186 = pneg %p62
      %p187 = pneg %p59
      %p188 = pneg %p83
      %p189 = pneg %p80
      %p190 = pneg %p104
      %p191 = pneg %p101
      %p192 = pneg %p130
      %p193 = pneg %p127
      %p194 = scmp.lt.s32.totalorder %s15, 3
      %s195 = scalar_select %p194, %s15, 3
      %s196 = smul.addr %s195, 8
      %s197 = scalar_lea.vmem %s4, %s196
      %p198 = scmp.lt.s32.totalorder %s15, 3
      %s199 = scalar_select %p198, %s15, 3
      %s200 = smul.addr %s199, 4
      %s201 = scalar_lea.vmem %s0, %s200
      %p202 = scmp.lt.s32.totalorder %s15, 3
      %s203 = scalar_select %p202, %s15, 3
      %s204 = smul.addr %s203, 8
      %s205 = scalar_lea.vmem %s1, %s204
      %p206 = scmp.lt.s32.totalorder %s15, 3
      %s207 = scalar_select %p206, %s15, 3
      %s208 = smul.addr %s207, 8
      %s209 = scalar_lea.vmem %s4, %s208
      %v210 = vld [vmem:[%s201] sm:$0xf]
      %v211 = vunpack.c.l.bf16 %v210
      %v212 = vld [vmem:[%s2] sm:$0x1]
      %v214 = vperm.slane %v212, 0
      %v216 = vmul.f32 %v211, %v214
      %v217 = vld [vmem:[%s3] sm:$0x1]
      %v219 = vperm.slane %v217, 0
      %v221 = vadd.f32 %v216, %v219
      %v222 = vld [vmem:[%s205] sm:$0xff]
      %v223 = vadd.f32 %v221, %v222
      %v224 = vmax.f32 %v223, 0.0
      %vm225 = vcmask 523264
      %226 = vst.msk [vmem:[%s209] sm:$0xff] %vm225, %v224
      %p227 = scmp.lt.s32.totalorder %s15, 3
      %s228 = scalar_select %p227, %s15, 3
      %s229 = smul.addr %s228, 8
      %s230 = scalar_lea.vmem %s4, %s229
      // Predicated region
      $region37: #{basic_block_forward.5} parent=35 // pred_check
        %p231 = pneg %p127
      $region38: #{basic_block_forward.5} parent=35 // pred_check_branch
        %233 = sbr.rel (%p231) target = $region40
      $region39: #{basic_block_forward.5} parent=35 // pred_region
        _
      $region40: #{basic_block_forward.5} parent=35 // pred_fallthru
        _
    $region36: #{basic_block_forward.5} parent=5 // pred_fallthru
      _
    %p234 = scmp.le.s32.totalorder 2, %s10
    // Predicated region
    $region41: #{basic_block_forward.5} parent=5 // pred_check
      %p235 = pneg %p234
    $region42: #{basic_block_forward.5} parent=5 // pred_check_branch
      %237 = sbr.rel (%p235) target = $region44
    $region43: #{basic_block_forward.5} parent=5 // pred_region
      %s238 = ssub.s32 %s10, 2
      // Predicated region
      $region45: #{basic_block_forward.5} parent=43 // pred_check
        %p239 = pneg %p133
      $region46: #{basic_block_forward.5} parent=43 // pred_check_branch
        %241 = sbr.rel (%p239) target = $region48
      $region47: #{basic_block_forward.5} parent=43 // pred_region
        %p242 = scmp.lt.s32.totalorder %s16, 3
        %s243 = scalar_select %p242, %s16, 3
        %s244 = smul.addr %s243, 8
        %s245 = scalar_lea.vmem %s4, %s244
      $region48: #{basic_block_forward.5} parent=43 // pred_fallthru
        _
    $region44: #{basic_block_forward.5} parent=5 // pred_fallthru
      _
  $region6: #{basic_block_forward.5} parent=0 // loop_footer
    %s14 = sadd.s32 1, %s10
  $region7: #{basic_block_forward.5} parent=0 // loop_footer_branch
    %9 = sbr.rel target = $region3
  $region8: #{basic_block_forward.5} parent=0 // loop_exit
    _

// kernel: basic_block_forward.3
$region0: #{basic_block_forward.3}
  #allocation0 [shape = 'u32[]', space=smem, size = 0x4, offset = 0x4, fixed_abs, tag = 'smem constant byte address 0x4 - core index']
  #allocation1 [shape = 'u32[72,128]{1,0:T(1,128)}', space=vmem, size = 0x9000, scoped, tag = 'internal scratch']
  #allocation2 [shape = 'f32[18,18,4]{2,1,0:T(8,128)}', space=vmem, size = 0x36000, scoped, tag = 'scratch operand']
  #allocation3 [shape = 'bf16[256,36]{1,0:T(8,128)(2,1)}', space=vmem, size = 0x10000, scoped, tag = 'scratch operand']
  %s0 = inlined_call_operand.vmem [shape: f32[2,16,16,4], index: 0, kind: input, shape index: {}]
  %s1 = inlined_call_operand.vmem [shape: bf16[36,4], index: 1, kind: input, shape index: {}]
  %s2 = inlined_call_operand.vmem [shape: bf16[2,16,16,4], index: 2, kind: output, shape index: {0}]
  %s3 = inlined_call_operand.vmem [shape: f32[2,2,4], index: 3, kind: output, shape index: {1}]
  %4 = xla_tuple %s2, %s3
  %s5 = sld [smem:[#allocation0]]
  $region49: #{basic_block_forward.3} parent=0
    _
  %s7 = ssub.s32 1, %s5
  %s8 = scalar_select 0, %s7, %s5
  loop: start=0, step=1, limit=4
  $region2: #{basic_block_forward.3} parent=0 // loop_pre_header
    _
  $region3: #{basic_block_forward.3} parent=0 // loop_header
    %s10 = sphi 0, %s14
    %p11 = scmp.ge.s32.totalorder %s10, 4
    %s20 = sphi 0, %s22
    %s23 = sphi 0, %s20
    %s24 = sphi 0, %s23
    %s40 = sphi 0, %s24
    %s44 = sphi 0, %s44
    %s46 = sphi 0, %s44
    %s47 = sphi 0, %s46
    %s61 = sphi 0, %s47
    %s67 = sphi 0, %s69
    %s70 = sphi 0, %s67
    %s71 = sphi 0, %s70
    %s87 = sphi 0, %s71
    %s93 = sphi 0, %s95
    %s96 = sphi 0, %s93
    %s97 = sphi 0, %s96
    %s113 = sphi 0, %s97
  $region4: #{basic_block_forward.3} parent=0 // loop_header_branch
    %13 = sbr.rel (%p11) target = $region8
  $region5: #{basic_block_forward.3} parent=0 // loop_body
    %s15 = ssub.s32 %s10, 1
    %s16 = ssub.s32 %s10, 2
    %s17 = sadd.s32 %s10, 1
    %s18 = ssub.s32 %s10, %s17
    %p19 = scmp.eq.s32.totalorder %s18, 0
    %s21 = sadd.s32 %s20, 1
    %s22 = scalar_select %p19, %s20, %s21
    %p25 = pneg %p19
    %p26 = scmp.eq.s32.totalorder %s10, 1
    %p27 = por %p25, %p26
    %p28 = scmp.ne.s32.totalorder %s20, %s23
    %p29 = scmp.eq.s32.totalorder %s10, 0
    %p30 = por %p28, %p29
    %p31 = scmp.ne.s32.totalorder %s20, %s23
    %p32 = scmp.eq.s32.totalorder %s15, 1
    %p33 = por %p31, %p32
    %p34 = scmp.ne.s32.totalorder %s23, %s24
    %p35 = scmp.eq.s32.totalorder %s15, 0
    %p36 = por %p34, %p35
    %p37 = scmp.ne.s32.totalorder %s23, %s24
    %p38 = scmp.eq.s32.totalorder %s16, 1
    %p39 = por %p37, %p38
    %p41 = scmp.ne.s32.totalorder %s24, %s40
    %p42 = scmp.eq.s32.totalorder %s16, 0
    %p43 = por %p41, %p42
    %s45 = sadd.s32 %s44, 1
    %p48 = scmp.eq.s32.totalorder %s10, 1
    %p49 = scmp.ne.s32.totalorder %s44, %s46
    %p50 = scmp.eq.s32.totalorder %s10, 0
    %p51 = por %p49, %p50
    %p52 = scmp.ne.s32.totalorder %s44, %s46
    %p53 = scmp.eq.s32.totalorder %s15, 1
    %p54 = por %p52, %p53
    %p55 = scmp.ne.s32.totalorder %s46, %s47
    %p56 = scmp.eq.s32.totalorder %s15, 0
    %p57 = por %p55, %p56
    %p58 = scmp.ne.s32.totalorder %s46, %s47
    %p59 = scmp.eq.s32.totalorder %s16, 1
    %p60 = por %p58, %p59
    %p62 = scmp.ne.s32.totalorder %s47, %s61
    %p63 = scmp.eq.s32.totalorder %s16, 0
    %p64 = por %p62, %p63
    %s65 = ssub.s32 %s10, %s17
    %p66 = scmp.eq.s32.totalorder %s65, 0
    %s68 = sadd.s32 %s67, 1
    %s69 = scalar_select %p66, %s67, %s68
    %p72 = pneg %p66
    %p73 = scmp.eq.s32.totalorder %s10, 1
    %p74 = por %p72, %p73
    %p75 = scmp.ne.s32.totalorder %s67, %s70
    %p76 = scmp.eq.s32.totalorder %s10, 0
    %p77 = por %p75, %p76
    %p78 = scmp.ne.s32.totalorder %s67, %s70
    %p79 = scmp.eq.s32.totalorder %s15, 1
    %p80 = por %p78, %p79
    %p81 = scmp.ne.s32.totalorder %s70, %s71
    %p82 = scmp.eq.s32.totalorder %s15, 0
    %p83 = por %p81, %p82
    %p84 = scmp.ne.s32.totalorder %s70, %s71
    %p85 = scmp.eq.s32.totalorder %s16, 1
    %p86 = por %p84, %p85
    %p88 = scmp.ne.s32.totalorder %s71, %s87
    %p89 = scmp.eq.s32.totalorder %s16, 0
    %p90 = por %p88, %p89
    %s91 = ssub.s32 %s10, %s17
    %p92 = scmp.eq.s32.totalorder %s91, 0
    %s94 = sadd.s32 %s93, 1
    %s95 = scalar_select %p92, %s93, %s94
    %p98 = pneg %p92
    %p99 = scmp.eq.s32.totalorder %s10, 1
    %p100 = por %p98, %p99
    %p101 = scmp.ne.s32.totalorder %s93, %s96
    %p102 = scmp.eq.s32.totalorder %s10, 0
    %p103 = por %p101, %p102
    %p104 = scmp.ne.s32.totalorder %s93, %s96
    %p105 = scmp.eq.s32.totalorder %s15, 1
    %p106 = por %p104, %p105
    %p107 = scmp.ne.s32.totalorder %s96, %s97
    %p108 = scmp.eq.s32.totalorder %s15, 0
    %p109 = por %p107, %p108
    %p110 = scmp.ne.s32.totalorder %s96, %s97
    %p111 = scmp.eq.s32.totalorder %s16, 1
    %p112 = por %p110, %p111
    %p114 = scmp.ne.s32.totalorder %s97, %s113
    %p115 = scmp.eq.s32.totalorder %s16, 0
    %p116 = por %p114, %p115
    %p117 = scmp.le.s32.totalorder 1, %s10
    %p118 = scmp.lt.s32.totalorder %s10, 3
    %p119 = pnand %p117, %p118
    %p120 = pneg %p119
    // Predicated region
    $region9: #{basic_block_forward.3} parent=5 // pred_check
      _
    $region10: #{basic_block_forward.3} parent=5 // pred_check_branch
      %122 = sbr.rel (%p119) target = $region12
    $region11: #{basic_block_forward.3} parent=5 // pred_region
      %s123 = ssub.s32 %s10, 1
      // Predicated region
      $region13: #{basic_block_forward.3} parent=11 // pred_check
        %p124 = pneg %p57
      $region14: #{basic_block_forward.3} parent=11 // pred_check_branch
        %126 = sbr.rel (%p124) target = $region16
      $region15: #{basic_block_forward.3} parent=11 // pred_region
        _
      $region16: #{basic_block_forward.3} parent=11 // pred_fallthru
        _
    $region12: #{basic_block_forward.3} parent=5 // pred_fallthru
      _
    %p127 = scmp.lt.s32.totalorder %s10, 2
    // Predicated region
    $region17: #{basic_block_forward.3} parent=5 // pred_check
      %p128 = pneg %p127
    $region18: #{basic_block_forward.3} parent=5 // pred_check_branch
      %130 = sbr.rel (%p128) target = $region20
    $region19: #{basic_block_forward.3} parent=5 // pred_region
      // Predicated region
      $region21: #{basic_block_forward.3} parent=19 // pred_check
        %p131 = pneg %p30
      $region22: #{basic_block_forward.3} parent=19 // pred_check_branch
        %133 = sbr.rel (%p131) target = $region24
      $region23: #{basic_block_forward.3} parent=19 // pred_region
        %p134 = scmp.lt.s32.totalorder %s10, 1
        %s135 = scalar_select %p134, %s10, 1
        %s136 = smul.addr %s135, 32
        %s137 = smul.addr %s136, 8
        %s138 = scalar_lea.vmem %s0, %s137
      $region24: #{basic_block_forward.3} parent=19 // pred_fallthru
        _
    $region20: #{basic_block_forward.3} parent=5 // pred_fallthru
      _
    %p139 = scmp.le.s32.totalorder 1, %s10
    %p140 = scmp.lt.s32.totalorder %s10, 3
    %p141 = pnand %p139, %p140
    %p142 = pneg %p141
    // Predicated region
    $region25: #{basic_block_forward.3} parent=5 // pred_check
      _
    $region26: #{basic_block_forward.3} parent=5 // pred_check_branch
      %144 = sbr.rel (%p141) target = $region28
    $region27: #{basic_block_forward.3} parent=5 // pred_region
      %s145 = ssub.s32 %s10, 1
      %p146 = scmp.lt.s32.totalorder %s15, 1
      %s147 = scalar_select %p146, %s15, 1
      %s148 = smul.addr %s147, 32
      %s149 = smul.addr %s148, 8
      %s150 = scalar_lea.vmem %s0, %s149
      %p151 = pneg %p36
      %p152 = pneg %p33
      %p153 = pneg %p57
      %p154 = pneg %p54
      %p155 = pneg %p83
      %p156 = pneg %p80
      %p157 = scmp.lt.s32.totalorder %s15, 1
      %s158 = scalar_select %p157, %s15, 1
      %s159 = smul.addr %s158, 32
      %s160 = smul.addr %s159, 4
      %s161 = scalar_lea.vmem %s2, %s160
      %p162 = pneg %p109
      %p163 = pneg %p106
      %p164 = scmp.lt.s32.totalorder %s15, 1
      %s165 = scalar_select %p164, %s15, 1
      %s166 = smul.addr %s165, 2
      %s167 = scalar_lea.vmem %s3, %s166
      %p168 = scmp.lt.s32.totalorder %s15, 1
      %s169 = scalar_select %p168, %s15, 1
      %s170 = smul.addr %s169, 32
      %s171 = smul.addr %s170, 8
      %s172 = scalar_lea.vmem %s0, %s171
      %p173 = scmp.lt.s32.totalorder %s15, 1
      %s174 = scalar_select %p173, %s15, 1
      %s175 = smul.addr %s174, 32
      %s176 = smul.addr %s175, 4
      %s177 = scalar_lea.vmem %s2, %s176
      %p178 = scmp.lt.s32.totalorder %s15, 1
      %s179 = scalar_select %p178, %s15, 1
      %s180 = smul.addr %s179, 2
      %s181 = scalar_lea.vmem %s3, %s180
      %v183 = vld [vmem:[%s172] sm:$0xff]
      %v184 = vld [vmem:[%s172 + $0x8] sm:$0xff]
      %v185 = vld [vmem:[%s172 + $0x10] sm:$0xff]
      %v186 = vld [vmem:[%s172 + $0x18] sm:$0xff]
      %v187 = vld [vmem:[%s172 + $0x20] sm:$0xff]
      %v188 = vld [vmem:[%s172 + $0x28] sm:$0xff]
      %v189 = vld [vmem:[%s172 + $0x30] sm:$0xff]
      %v190 = vld [vmem:[%s172 + $0x38] sm:$0xff]
      %v191 = vld [vmem:[%s172 + $0x40] sm:$0xff]
      %v192 = vld [vmem:[%s172 + $0x48] sm:$0xff]
      %v193 = vld [vmem:[%s172 + $0x50] sm:$0xff]
      %v194 = vld [vmem:[%s172 + $0x58] sm:$0xff]
      %v195 = vld [vmem:[%s172 + $0x60] sm:$0xff]
      %v196 = vld [vmem:[%s172 + $0x68] sm:$0xff]
      %v197 = vld [vmem:[%s172 + $0x70] sm:$0xff]
      %v198 = vld [vmem:[%s172 + $0x78] sm:$0xff]
      %v199 = vld [vmem:[%s172 + $0x80] sm:$0xff]
      %v200 = vld [vmem:[%s172 + $0x88] sm:$0xff]
      %v201 = vld [vmem:[%s172 + $0x90] sm:$0xff]
      %v202 = vld [vmem:[%s172 + $0x98] sm:$0xff]
      %v203 = vld [vmem:[%s172 + $0xa0] sm:$0xff]
      %v204 = vld [vmem:[%s172 + $0xa8] sm:$0xff]
      %v205 = vld [vmem:[%s172 + $0xb0] sm:$0xff]
      %v206 = vld [vmem:[%s172 + $0xb8] sm:$0xff]
      %v207 = vld [vmem:[%s172 + $0xc0] sm:$0xff]
      %v208 = vld [vmem:[%s172 + $0xc8] sm:$0xff]
      %v209 = vld [vmem:[%s172 + $0xd0] sm:$0xff]
      %v210 = vld [vmem:[%s172 + $0xd8] sm:$0xff]
      %v211 = vld [vmem:[%s172 + $0xe0] sm:$0xff]
      %v212 = vld [vmem:[%s172 + $0xe8] sm:$0xff]
      %v213 = vld [vmem:[%s172 + $0xf0] sm:$0xff]
      %v214 = vld [vmem:[%s172 + $0xf8] sm:$0xff]
      %vm215 = vcmask 31744
      %216 = vst.msk [vmem:[#allocation2] sm:$0xff] %vm215, 0.0
      %217 = vst.msk [vmem:[#allocation2 + $0x8] sm:$0xff] %vm215, 0.0
      %vm218 = vcmask 25600
      %219 = vst.msk [vmem:[#allocation2 + $0x10] sm:$0x3] %vm218, 0.0
      %s220 = scalar_lea.vmem [#allocation2], 408
      %221 = vst.msk [vmem:[%s220] sm:$0xff] %vm215, 0.0
      %222 = vst.msk [vmem:[%s220 + $0x8] sm:$0xff] %vm215, 0.0
      %223 = vst.msk [vmem:[%s220 + $0x10] sm:$0x3] %vm218, 0.0
      %vm224 = vcmask 24576
      %225 = vst.msk [vmem:[#allocation2] sm:$0x1] %vm224, 0.0
      %226 = vst.msk [vmem:[#allocation2 + $0x18] sm:$0x1] %vm224, 0.0
      %227 = vst.msk [vmem:[#allocation2 + $0x30] sm:$0x1] %vm224, 0.0
      %228 = vst.msk [vmem:[#allocation2 + $0x48] sm:$0x1] %vm224, 0.0
      %229 = vst.msk [vmem:[#allocation2 + $0x60] sm:$0x1] %vm224, 0.0
      %230 = vst.msk [vmem:[#allocation2 + $0x78] sm:$0x1] %vm224, 0.0
      %231 = vst.msk [vmem:[#allocation2 + $0x90] sm:$0x1] %vm224, 0.0
      %232 = vst.msk [vmem:[#allocation2 + $0xa8] sm:$0x1] %vm224, 0.0
      %233 = vst.msk [vmem:[#allocation2 + $0xc0] sm:$0x1] %vm224, 0.0
      %234 = vst.msk [vmem:[#allocation2 + $0xd8] sm:$0x1] %vm224, 0.0
      %235 = vst.msk [vmem:[#allocation2 + $0xf0] sm:$0x1] %vm224, 0.0
      %236 = vst.msk [vmem:[#allocation2 + $0x108] sm:$0x1] %vm224, 0.0
      %237 = vst.msk [vmem:[#allocation2 + $0x120] sm:$0x1] %vm224, 0.0
      %238 = vst.msk [vmem:[#allocation2 + $0x138] sm:$0x1] %vm224, 0.0
      %239 = vst.msk [vmem:[#allocation2 + $0x150] sm:$0x1] %vm224, 0.0
      %240 = vst.msk [vmem:[#allocation2 + $0x168] sm:$0x1] %vm224, 0.0
      %241 = vst.msk [vmem:[#allocation2 + $0x180] sm:$0x1] %vm224, 0.0
      %242 = vst.msk [vmem:[#allocation2 + $0x198] sm:$0x1] %vm224, 0.0
      %243 = vst.msk [vmem:[#allocation2 + $0x11] sm:$0x1] %vm224, 0.0
      %244 = vst.msk [vmem:[#allocation2 + $0x29] sm:$0x1] %vm224, 0.0
      %245 = vst.msk [vmem:[#allocation2 + $0x41] sm:$0x1] %vm224, 0.0
      %246 = vst.msk [vmem:[#allocation2 + $0x59] sm:$0x1] %vm224, 0.0
      %247 = vst.msk [vmem:[#allocation2 + $0x71] sm:$0x1] %vm224, 0.0
      %248 = vst.msk [vmem:[#allocation2 + $0x89] sm:$0x1] %vm224, 0.0
      %249 = vst.msk [vmem:[#allocation2 + $0xa1] sm:$0x1] %vm224, 0.0
      %250 = vst.msk [vmem:[#allocation2 + $0xb9] sm:$0x1] %vm224, 0.0
      %251 = vst.msk [vmem:[#allocation2 + $0xd1] sm:$0x1] %vm224, 0.0
      %252 = vst.msk [vmem:[#allocation2 + $0xe9] sm:$0x1] %vm224, 0.0
      %253 = vst.msk [vmem:[#allocation2 + $0x101] sm:$0x1] %vm224, 0.0
      %254 = vst.msk [vmem:[#allocation2 + $0x119] sm:$0x1] %vm224, 0.0
      %255 = vst.msk [vmem:[#allocation2 + $0x131] sm:$0x1] %vm224, 0.0
      %256 = vst.msk [vmem:[#allocation2 + $0x149] sm:$0x1] %vm224, 0.0
      %257 = vst.msk [vmem:[#allocation2 + $0x161] sm:$0x1] %vm224, 0.0
      %258 = vst.msk [vmem:[#allocation2 + $0x179] sm:$0x1] %vm224, 0.0
      %259 = vst.msk [vmem:[#allocation2 + $0x191] sm:$0x1] %vm224, 0.0
      %260 = vst.msk [vmem:[#allocation2 + $0x1a9] sm:$0x1] %vm224, 0.0
      %s261 = scalar_lea.vmem [#allocation2], 24
      %262 = vst.msk [vmem:[%s261 + $0x1] sm:$0xff] %vm215, %v183
      %263 = vst.msk [vmem:[%s261 + $0x9] sm:$0xff] %vm215, %v184
      %264 = vst.msk [vmem:[%s261 + $0x19] sm:$0xff] %vm215, %v185
      %265 = vst.msk [vmem:[%s261 + $0x21] sm:$0xff] %vm215, %v186
      %266 = vst.msk [vmem:[%s261 + $0x31] sm:$0xff] %vm215, %v187
      %267 = vst.msk [vmem:[%s261 + $0x39] sm:$0xff] %vm215, %v188
      %268 = vst.msk [vmem:[%s261 + $0x49] sm:$0xff] %vm215, %v189
      %269 = vst.msk [vmem:[%s261 + $0x51] sm:$0xff] %vm215, %v190
      %270 = vst.msk [vmem:[%s261 + $0x61] sm:$0xff] %vm215, %v191
      %271 = vst.msk [vmem:[%s261 + $0x69] sm:$0xff] %vm215, %v192
      %272 = vst.msk [vmem:[%s261 + $0x79] sm:$0xff] %vm215, %v193
      %273 = vst.msk [vmem:[%s261 + $0x81] sm:$0xff] %vm215, %v194
      %274 = vst.msk [vmem:[%s261 + $0x91] sm:$0xff] %vm215, %v195
      %275 = vst.msk [vmem:[%s261 + $0x99] sm:$0xff] %vm215, %v196
      %276 = vst.msk [vmem:[%s261 + $0xa9] sm:$0xff] %vm215, %v197
      %277 = vst.msk [vmem:[%s261 + $0xb1] sm:$0xff] %vm215, %v198
      %278 = vst.msk [vmem:[%s261 + $0xc1] sm:$0xff] %vm215, %v199
      %279 = vst.msk [vmem:[%s261 + $0xc9] sm:$0xff] %vm215, %v200
      %280 = vst.msk [vmem:[%s261 + $0xd9] sm:$0xff] %vm215, %v201
      %281 = vst.msk [vmem:[%s261 + $0xe1] sm:$0xff] %vm215, %v202
      %282 = vst.msk [vmem:[%s261 + $0xf1] sm:$0xff] %vm215, %v203
      %283 = vst.msk [vmem:[%s261 + $0xf9] sm:$0xff] %vm215, %v204
      %284 = vst.msk [vmem:[%s261 + $0x109] sm:$0xff] %vm215, %v205
      %285 = vst.msk [vmem:[%s261 + $0x111] sm:$0xff] %vm215, %v206
      %286 = vst.msk [vmem:[%s261 + $0x121] sm:$0xff] %vm215, %v207
      %287 = vst.msk [vmem:[%s261 + $0x129] sm:$0xff] %vm215, %v208
      %288 = vst.msk [vmem:[%s261 + $0x139] sm:$0xff] %vm215, %v209
      %289 = vst.msk [vmem:[%s261 + $0x141] sm:$0xff] %vm215, %v210
      %290 = vst.msk [vmem:[%s261 + $0x151] sm:$0xff] %vm215, %v211
      %291 = vst.msk [vmem:[%s261 + $0x159] sm:$0xff] %vm215, %v212
      %292 = vst.msk [vmem:[%s261 + $0x169] sm:$0xff] %vm215, %v213
      %293 = vst.msk [vmem:[%s261 + $0x171] sm:$0xff] %vm215, %v214
      %v294 = vld [vmem:[#allocation2] sm:$0xff]
      %v295 = vld [vmem:[#allocation2 + $0x8] sm:$0xff]
      %v296 = vld [vmem:[#allocation2 + $0x18] sm:$0xff]
      %v297 = vld [vmem:[#allocation2 + $0x20] sm:$0xff]
      %v298 = vld [vmem:[#allocation2 + $0x30] sm:$0xff]
      %v299 = vld [vmem:[#allocation2 + $0x38] sm:$0xff]
      %v300 = vld [vmem:[#allocation2 + $0x48] sm:$0xff]
      %v301 = vld [vmem:[#allocation2 + $0x50] sm:$0xff]
      %v302 = vld [vmem:[#allocation2 + $0x60] sm:$0xff]
      %v303 = vld [vmem:[#allocation2 + $0x68] sm:$0xff]
      %v304 = vld [vmem:[#allocation2 + $0x78] sm:$0xff]
      %v305 = vld [vmem:[#allocation2 + $0x80] sm:$0xff]
      %v306 = vld [vmem:[#allocation2 + $0x90] sm:$0xff]
      %v307 = vld [vmem:[#allocation2 + $0x98] sm:$0xff]
      %v308 = vld [vmem:[#allocation2 + $0xa8] sm:$0xff]
      %v309 = vld [vmem:[#allocation2 + $0xb0] sm:$0xff]
      %v310 = vld [vmem:[#allocation2 + $0xc0] sm:$0xff]
      %v311 = vld [vmem:[#allocation2 + $0xc8] sm:$0xff]
      %v312 = vld [vmem:[#allocation2 + $0xd8] sm:$0xff]
      %v313 = vld [vmem:[#allocation2 + $0xe0] sm:$0xff]
      %v314 = vld [vmem:[#allocation2 + $0xf0] sm:$0xff]
      %v315 = vld [vmem:[#allocation2 + $0xf8] sm:$0xff]
      %v316 = vld [vmem:[#allocation2 + $0x108] sm:$0xff]
      %v317 = vld [vmem:[#allocation2 + $0x110] sm:$0xff]
      %v318 = vld [vmem:[#allocation2 + $0x120] sm:$0xff]
      %v319 = vld [vmem:[#allocation2 + $0x128] sm:$0xff]
      %v320 = vld [vmem:[#allocation2 + $0x138] sm:$0xff]
      %v321 = vld [vmem:[#allocation2 + $0x140] sm:$0xff]
      %v322 = vld [vmem:[#allocation2 + $0x150] sm:$0xff]
      %v323 = vld [vmem:[#allocation2 + $0x158] sm:$0xff]
      %v324 = vld [vmem:[#allocation2 + $0x168] sm:$0xff]
      %v325 = vld [vmem:[#allocation2 + $0x170] sm:$0xff]
      %v326 = vpack.c.bf16 %v294, %v294
      %v327 = vpack.c.bf16 %v295, %v295
      %v328 = vpack.c.bf16 %v296, %v296
      %v329 = vpack.c.bf16 %v297, %v297
      %v330 = vpack.c.bf16 %v298, %v298
      %v331 = vpack.c.bf16 %v299, %v299
      %v332 = vpack.c.bf16 %v300, %v300
      %v333 = vpack.c.bf16 %v301, %v301
      %v334 = vpack.c.bf16 %v302, %v302
      %v335 = vpack.c.bf16 %v303, %v303
      %v336 = vpack.c.bf16 %v304, %v304
      %v337 = vpack.c.bf16 %v305, %v305
      %v338 = vpack.c.bf16 %v306, %v306
      %v339 = vpack.c.bf16 %v307, %v307
      %v340 = vpack.c.bf16 %v308, %v308
      %v341 = vpack.c.bf16 %v309, %v309
      %v342 = vpack.c.bf16 %v310, %v310
      %v343 = vpack.c.bf16 %v311, %v311
      %v344 = vpack.c.bf16 %v312, %v312
      %v345 = vpack.c.bf16 %v313, %v313
      %v346 = vpack.c.bf16 %v314, %v314
      %v347 = vpack.c.bf16 %v315, %v315
      %v348 = vpack.c.bf16 %v316, %v316
      %v349 = vpack.c.bf16 %v317, %v317
      %v350 = vpack.c.bf16 %v318, %v318
      %v351 = vpack.c.bf16 %v319, %v319
      %v352 = vpack.c.bf16 %v320, %v320
      %v353 = vpack.c.bf16 %v321, %v321
      %v354 = vpack.c.bf16 %v322, %v322
      %v355 = vpack.c.bf16 %v323, %v323
      %v356 = vpack.c.bf16 %v324, %v324
      %v357 = vpack.c.bf16 %v325, %v325
      %vm358 = vcmask 27648
      %359 = vst.msk [vmem:[#allocation3] sm:$0xf] %vm358, %v326
      %360 = vst.msk [vmem:[#allocation3 + $0x4] sm:$0xf] %vm358, %v327
      %361 = vst.msk [vmem:[#allocation3 + $0x8] sm:$0xf] %vm358, %v328
      %362 = vst.msk [vmem:[#allocation3 + $0xc] sm:$0xf] %vm358, %v329
      %363 = vst.msk [vmem:[#allocation3 + $0x10] sm:$0xf] %vm358, %v330
      %364 = vst.msk [vmem:[#allocation3 + $0x14] sm:$0xf] %vm358, %v331
      %365 = vst.msk [vmem:[#allocation3 + $0x18] sm:$0xf] %vm358, %v332
      %366 = vst.msk [vmem:[#allocation3 + $0x1c] sm:$0xf] %vm358, %v333
      %367 = vst.msk [vmem:[#allocation3 + $0x20] sm:$0xf] %vm358, %v334
      %368 = vst.msk [vmem:[#allocation3 + $0x24] sm:$0xf] %vm358, %v335
      %369 = vst.msk [vmem:[#allocation3 + $0x28] sm:$0xf] %vm358, %v336
      %370 = vst.msk [vmem:[#allocation3 + $0x2c] sm:$0xf] %vm358, %v337
      %371 = vst.msk [vmem:[#allocation3 + $0x30] sm:$0xf] %vm358, %v338
      %372 = vst.msk [vmem:[#allocation3 + $0x34] sm:$0xf] %vm358, %v339
      %373 = vst.msk [vmem:[#allocation3 + $0x38] sm:$0xf] %vm358, %v340
      %374 = vst.msk [vmem:[#allocation3 + $0x3c] sm:$0xf] %vm358, %v341
      %375 = vst.msk [vmem:[#allocation3 + $0x40] sm:$0xf] %vm358, %v342
      %376 = vst.msk [vmem:[#allocation3 + $0x44] sm:$0xf] %vm358, %v343
      %377 = vst.msk [vmem:[#allocation3 + $0x48] sm:$0xf] %vm358, %v344
      %378 = vst.msk [vmem:[#allocation3 + $0x4c] sm:$0xf] %vm358, %v345
      %379 = vst.msk [vmem:[#allocation3 + $0x50] sm:$0xf] %vm358, %v346
      %380 = vst.msk [vmem:[#allocation3 + $0x54] sm:$0xf] %vm358, %v347
      %381 = vst.msk [vmem:[#allocation3 + $0x58] sm:$0xf] %vm358, %v348
      %382 = vst.msk [vmem:[#allocation3 + $0x5c] sm:$0xf] %vm358, %v349
      %383 = vst.msk [vmem:[#allocation3 + $0x60] sm:$0xf] %vm358, %v350
      %384 = vst.msk [vmem:[#allocation3 + $0x64] sm:$0xf] %vm358, %v351
      %385 = vst.msk [vmem:[#allocation3 + $0x68] sm:$0xf] %vm358, %v352
      %386 = vst.msk [vmem:[#allocation3 + $0x6c] sm:$0xf] %vm358, %v353
      %387 = vst.msk [vmem:[#allocation3 + $0x70] sm:$0xf] %vm358, %v354
      %388 = vst.msk [vmem:[#allocation3 + $0x74] sm:$0xf] %vm358, %v355
      %389 = vst.msk [vmem:[#allocation3 + $0x78] sm:$0xf] %vm358, %v356
      %390 = vst.msk [vmem:[#allocation3 + $0x7c] sm:$0xf] %vm358, %v357
      %v391 = vld [vmem:[#allocation2 + $0x1] sm:$0xff]
      %v392 = vld [vmem:[#allocation2 + $0x9] sm:$0xff]
      %v393 = vld [vmem:[#allocation2 + $0x19] sm:$0xff]
      %v394 = vld [vmem:[#allocation2 + $0x21] sm:$0xff]
      %v395 = vld [vmem:[#allocation2 + $0x31] sm:$0xff]
      %v396 = vld [vmem:[#allocation2 + $0x39] sm:$0xff]
      %v397 = vld [vmem:[#allocation2 + $0x49] sm:$0xff]
      %v398 = vld [vmem:[#allocation2 + $0x51] sm:$0xff]
      %v399 = vld [vmem:[#allocation2 + $0x61] sm:$0xff]
      %v400 = vld [vmem:[#allocation2 + $0x69] sm:$0xff]
      %v401 = vld [vmem:[#allocation2 + $0x79] sm:$0xff]
      %v402 = vld [vmem:[#allocation2 + $0x81] sm:$0xff]
      %v403 = vld [vmem:[#allocation2 + $0x91] sm:$0xff]
      %v404 = vld [vmem:[#allocation2 + $0x99] sm:$0xff]
      %v405 = vld [vmem:[#allocation2 + $0xa9] sm:$0xff]
      %v406 = vld [vmem:[#allocation2 + $0xb1] sm:$0xff]
      %v407 = vld [vmem:[#allocation2 + $0xc1] sm:$0xff]
      %v408 = vld [vmem:[#allocation2 + $0xc9] sm:$0xff]
      %v409 = vld [vmem:[#allocation2 + $0xd9] sm:$0xff]
      %v410 = vld [vmem:[#allocation2 + $0xe1] sm:$0xff]
      %v411 = vld [vmem:[#allocation2 + $0xf1] sm:$0xff]
      %v412 = vld [vmem:[#allocation2 + $0xf9] sm:$0xff]
      %v413 = vld [vmem:[#allocation2 + $0x109] sm:$0xff]
      %v414 = vld [vmem:[#allocation2 + $0x111] sm:$0xff]
      %v415 = vld [vmem:[#allocation2 + $0x121] sm:$0xff]
      %v416 = vld [vmem:[#allocation2 + $0x129] sm:$0xff]
      %v417 = vld [vmem:[#allocation2 + $0x139] sm:$0xff]
      %v418 = vld [vmem:[#allocation2 + $0x141] sm:$0xff]
      %v419 = vld [vmem:[#allocation2 + $0x151] sm:$0xff]
      %v420 = vld [vmem:[#allocation2 + $0x159] sm:$0xff]
      %v421 = vld [vmem:[#allocation2 + $0x169] sm:$0xff]
      %v422 = vld [vmem:[#allocation2 + $0x171] sm:$0xff]
      %v423 = vpack.c.bf16 %v391, %v391
      %v424 = vpack.c.bf16 %v392, %v392
      %v425 = vpack.c.bf16 %v393, %v393
      %v426 = vpack.c.bf16 %v394, %v394
      %v427 = vpack.c.bf16 %v395, %v395
      %v428 = vpack.c.bf16 %v396, %v396
      %v429 = vpack.c.bf16 %v397, %v397
      %v430 = vpack.c.bf16 %v398, %v398
      %v431 = vpack.c.bf16 %v399, %v399
      %v432 = vpack.c.bf16 %v400, %v400
      %v433 = vpack.c.bf16 %v401, %v401
      %v434 = vpack.c.bf16 %v402, %v402
      %v435 = vpack.c.bf16 %v403, %v403
      %v436 = vpack.c.bf16 %v404, %v404
      %v437 = vpack.c.bf16 %v405, %v405
      %v438 = vpack.c.bf16 %v406, %v406
      %v439 = vpack.c.bf16 %v407, %v407
      %v440 = vpack.c.bf16 %v408, %v408
      %v441 = vpack.c.bf16 %v409, %v409
      %v442 = vpack.c.bf16 %v410, %v410
      %v443 = vpack.c.bf16 %v411, %v411
      %v444 = vpack.c.bf16 %v412, %v412
      %v445 = vpack.c.bf16 %v413, %v413
      %v446 = vpack.c.bf16 %v414, %v414
      %v447 = vpack.c.bf16 %v415, %v415
      %v448 = vpack.c.bf16 %v416, %v416
      %v449 = vpack.c.bf16 %v417, %v417
      %v450 = vpack.c.bf16 %v418, %v418
      %v451 = vpack.c.bf16 %v419, %v419
      %v452 = vpack.c.bf16 %v420, %v420
      %v453 = vpack.c.bf16 %v421, %v421
      %v454 = vpack.c.bf16 %v422, %v422
      %487 = vrot.lane.b32.xlu0 %v423, 4
      %v488 = vpop.permute.xlu0 %487
      %489 = vrot.lane.b32.xlu0 %v424, 4
      %v490 = vpop.permute.xlu0 %489
      %491 = vrot.lane.b32.xlu0 %v425, 4
      %v492 = vpop.permute.xlu0 %491
      %493 = vrot.lane.b32.xlu0 %v426, 4
      %v494 = vpop.permute.xlu0 %493
      %495 = vrot.lane.b32.xlu0 %v427, 4
      %v496 = vpop.permute.xlu0 %495
      %497 = vrot.lane.b32.xlu0 %v428, 4
      %v498 = vpop.permute.xlu0 %497
      %499 = vrot.lane.b32.xlu0 %v429, 4
      %v500 = vpop.permute.xlu0 %499
      %501 = vrot.lane.b32.xlu0 %v430, 4
      %v502 = vpop.permute.xlu0 %501
      %503 = vrot.lane.b32.xlu0 %v431, 4
      %v504 = vpop.permute.xlu0 %503
      %505 = vrot.lane.b32.xlu0 %v432, 4
      %v506 = vpop.permute.xlu0 %505
      %507 = vrot.lane.b32.xlu0 %v433, 4
      %v508 = vpop.permute.xlu0 %507
      %509 = vrot.lane.b32.xlu0 %v434, 4
      %v510 = vpop.permute.xlu0 %509
      %511 = vrot.lane.b32.xlu0 %v435, 4
      %v512 = vpop.permute.xlu0 %511
      %513 = vrot.lane.b32.xlu0 %v436, 4
      %v514 = vpop.permute.xlu0 %513
      %515 = vrot.lane.b32.xlu0 %v437, 4
      %v516 = vpop.permute.xlu0 %515
      %517 = vrot.lane.b32.xlu0 %v438, 4
      %v518 = vpop.permute.xlu0 %517
      %519 = vrot.lane.b32.xlu0 %v439, 4
      %v520 = vpop.permute.xlu0 %519
      %521 = vrot.lane.b32.xlu0 %v440, 4
      %v522 = vpop.permute.xlu0 %521
      %523 = vrot.lane.b32.xlu0 %v441, 4
      %v524 = vpop.permute.xlu0 %523
      %525 = vrot.lane.b32.xlu0 %v442, 4
      %v526 = vpop.permute.xlu0 %525
      %527 = vrot.lane.b32.xlu0 %v443, 4
      %v528 = vpop.permute.xlu0 %527
      %529 = vrot.lane.b32.xlu0 %v444, 4
      %v530 = vpop.permute.xlu0 %529
      %531 = vrot.lane.b32.xlu0 %v445, 4
      %v532 = vpop.permute.xlu0 %531
      %533 = vrot.lane.b32.xlu0 %v446, 4
      %v534 = vpop.permute.xlu0 %533
      %535 = vrot.lane.b32.xlu0 %v447, 4
      %v536 = vpop.permute.xlu0 %535
      %537 = vrot.lane.b32.xlu0 %v448, 4
      %v538 = vpop.permute.xlu0 %537
      %539 = vrot.lane.b32.xlu0 %v449, 4
      %v540 = vpop.permute.xlu0 %539
      %541 = vrot.lane.b32.xlu0 %v450, 4
      %v542 = vpop.permute.xlu0 %541
      %543 = vrot.lane.b32.xlu0 %v451, 4
      %v544 = vpop.permute.xlu0 %543
      %545 = vrot.lane.b32.xlu0 %v452, 4
      %v546 = vpop.permute.xlu0 %545
      %547 = vrot.lane.b32.xlu0 %v453, 4
      %v548 = vpop.permute.xlu0 %547
      %549 = vrot.lane.b32.xlu0 %v454, 4
      %v550 = vpop.permute.xlu0 %549
      %vm583 = vcmask 60448
      %584 = vst.msk [vmem:[#allocation3] sm:$0xf] %vm583, %v488
      %585 = vst.msk [vmem:[#allocation3 + $0x4] sm:$0xf] %vm583, %v490
      %586 = vst.msk [vmem:[#allocation3 + $0x8] sm:$0xf] %vm583, %v492
      %587 = vst.msk [vmem:[#allocation3 + $0xc] sm:$0xf] %vm583, %v494
      %588 = vst.msk [vmem:[#allocation3 + $0x10] sm:$0xf] %vm583, %v496
      %589 = vst.msk [vmem:[#allocation3 + $0x14] sm:$0xf] %vm583, %v498
      %590 = vst.msk [vmem:[#allocation3 + $0x18] sm:$0xf] %vm583, %v500
      %591 = vst.msk [vmem:[#allocation3 + $0x1c] sm:$0xf] %vm583, %v502
      %592 = vst.msk [vmem:[#allocation3 + $0x20] sm:$0xf] %vm583, %v504
      %593 = vst.msk [vmem:[#allocation3 + $0x24] sm:$0xf] %vm583, %v506
      %594 = vst.msk [vmem:[#allocation3 + $0x28] sm:$0xf] %vm583, %v508
      %595 = vst.msk [vmem:[#allocation3 + $0x2c] sm:$0xf] %vm583, %v510
      %596 = vst.msk [vmem:[#allocation3 + $0x30] sm:$0xf] %vm583, %v512
      %597 = vst.msk [vmem:[#allocation3 + $0x34] sm:$0xf] %vm583, %v514
      %598 = vst.msk [vmem:[#allocation3 + $0x38] sm:$0xf] %vm583, %v516
      %599 = vst.msk [vmem:[#allocation3 + $0x3c] sm:$0xf] %vm583, %v518
      %600 = vst.msk [vmem:[#allocation3 + $0x40] sm:$0xf] %vm583, %v520
      %601 = vst.msk [vmem:[#allocation3 + $0x44] sm:$0xf] %vm583, %v522
      %602 = vst.msk [vmem:[#allocation3 + $0x48] sm:$0xf] %vm583, %v524
      %603 = vst.msk [vmem:[#allocation3 + $0x4c] sm:$0xf] %vm583, %v526
      %604 = vst.msk [vmem:[#allocation3 + $0x50] sm:$0xf] %vm583, %v528
      %605 = vst.msk [vmem:[#allocation3 + $0x54] sm:$0xf] %vm583, %v530
      %606 = vst.msk [vmem:[#allocation3 + $0x58] sm:$0xf] %vm583, %v532
      %607 = vst.msk [vmem:[#allocation3 + $0x5c] sm:$0xf] %vm583, %v534
      %608 = vst.msk [vmem:[#allocation3 + $0x60] sm:$0xf] %vm583, %v536
      %609 = vst.msk [vmem:[#allocation3 + $0x64] sm:$0xf] %vm583, %v538
      %610 = vst.msk [vmem:[#allocation3 + $0x68] sm:$0xf] %vm583, %v540
      %611 = vst.msk [vmem:[#allocation3 + $0x6c] sm:$0xf] %vm583, %v542
      %612 = vst.msk [vmem:[#allocation3 + $0x70] sm:$0xf] %vm583, %v544
      %613 = vst.msk [vmem:[#allocation3 + $0x74] sm:$0xf] %vm583, %v546
      %614 = vst.msk [vmem:[#allocation3 + $0x78] sm:$0xf] %vm583, %v548
      %615 = vst.msk [vmem:[#allocation3 + $0x7c] sm:$0xf] %vm583, %v550
      %v616 = vld [vmem:[#allocation2 + $0x2] sm:$0xff]
      %v617 = vld [vmem:[#allocation2 + $0xa] sm:$0xff]
      %v618 = vld [vmem:[#allocation2 + $0x1a] sm:$0xff]
      %v619 = vld [vmem:[#allocation2 + $0x22] sm:$0xff]
      %v620 = vld [vmem:[#allocation2 + $0x32] sm:$0xff]
      %v621 = vld [vmem:[#allocation2 + $0x3a] sm:$0xff]
      %v622 = vld [vmem:[#allocation2 + $0x4a] sm:$0xff]
      %v623 = vld [vmem:[#allocation2 + $0x52] sm:$0xff]
      %v624 = vld [vmem:[#allocation2 + $0x62] sm:$0xff]
      %v625 = vld [vmem:[#allocation2 + $0x6a] sm:$0xff]
      %v626 = vld [vmem:[#allocation2 + $0x7a] sm:$0xff]
      %v627 = vld [vmem:[#allocation2 + $0x82] sm:$0xff]
      %v628 = vld [vmem:[#allocation2 + $0x92] sm:$0xff]
      %v629 = vld [vmem:[#allocation2 + $0x9a] sm:$0xff]
      %v630 = vld [vmem:[#allocation2 + $0xaa] sm:$0xff]
      %v631 = vld [vmem:[#allocation2 + $0xb2] sm:$0xff]
      %v632 = vld [vmem:[#allocation2 + $0xc2] sm:$0xff]
      %v633 = vld [vmem:[#allocation2 + $0xca] sm:$0xff]
      %v634 = vld [vmem:[#allocation2 + $0xda] sm:$0xff]
      %v635 = vld [vmem:[#allocation2 + $0xe2] sm:$0xff]
      %v636 = vld [vmem:[#allocation2 + $0xf2] sm:$0xff]
      %v637 = vld [vmem:[#allocation2 + $0xfa] sm:$0xff]
      %v638 = vld [vmem:[#allocation2 + $0x10a] sm:$0xff]
      %v639 = vld [vmem:[#allocation2 + $0x112] sm:$0xff]
      %v640 = vld [vmem:[#allocation2 + $0x122] sm:$0xff]
      %v641 = vld [vmem:[#allocation2 + $0x12a] sm:$0xff]
      %v642 = vld [vmem:[#allocation2 + $0x13a] sm:$0xff]
      %v643 = vld [vmem:[#allocation2 + $0x142] sm:$0xff]
      %v644 = vld [vmem:[#allocation2 + $0x152] sm:$0xff]
      %v645 = vld [vmem:[#allocation2 + $0x15a] sm:$0xff]
      %v646 = vld [vmem:[#allocation2 + $0x16a] sm:$0xff]
      %v647 = vld [vmem:[#allocation2 + $0x172] sm:$0xff]
      %v648 = vpack.c.bf16 %v616, %v616
      %v649 = vpack.c.bf16 %v617, %v617
      %v650 = vpack.c.bf16 %v618, %v618
      %v651 = vpack.c.bf16 %v619, %v619
      %v652 = vpack.c.bf16 %v620, %v620
      %v653 = vpack.c.bf16 %v621, %v621
      %v654 = vpack.c.bf16 %v622, %v622
      %v655 = vpack.c.bf16 %v623, %v623
      %v656 = vpack.c.bf16 %v624, %v624
      %v657 = vpack.c.bf16 %v625, %v625
      %v658 = vpack.c.bf16 %v626, %v626
      %v659 = vpack.c.bf16 %v627, %v627
      %v660 = vpack.c.bf16 %v628, %v628
      %v661 = vpack.c.bf16 %v629, %v629
      %v662 = vpack.c.bf16 %v630, %v630
      %v663 = vpack.c.bf16 %v631, %v631
      %v664 = vpack.c.bf16 %v632, %v632
      %v665 = vpack.c.bf16 %v633, %v633
      %v666 = vpack.c.bf16 %v634, %v634
      %v667 = vpack.c.bf16 %v635, %v635
      %v668 = vpack.c.bf16 %v636, %v636
      %v669 = vpack.c.bf16 %v637, %v637
      %v670 = vpack.c.bf16 %v638, %v638
      %v671 = vpack.c.bf16 %v639, %v639
      %v672 = vpack.c.bf16 %v640, %v640
      %v673 = vpack.c.bf16 %v641, %v641
      %v674 = vpack.c.bf16 %v642, %v642
      %v675 = vpack.c.bf16 %v643, %v643
      %v676 = vpack.c.bf16 %v644, %v644
      %v677 = vpack.c.bf16 %v645, %v645
      %v678 = vpack.c.bf16 %v646, %v646
      %v679 = vpack.c.bf16 %v647, %v647
      %712 = vrot.lane.b32.xlu0 %v648, 8
      %v713 = vpop.permute.xlu0 %712
      %714 = vrot.lane.b32.xlu0 %v649, 8
      %v715 = vpop.permute.xlu0 %714
      %716 = vrot.lane.b32.xlu0 %v650, 8
      %v717 = vpop.permute.xlu0 %716
      %718 = vrot.lane.b32.xlu0 %v651, 8
      %v719 = vpop.permute.xlu0 %718
      %720 = vrot.lane.b32.xlu0 %v652, 8
      %v721 = vpop.permute.xlu0 %720
      %722 = vrot.lane.b32.xlu0 %v653, 8
      %v723 = vpop.permute.xlu0 %722
      %724 = vrot.lane.b32.xlu0 %v654, 8
      %v725 = vpop.permute.xlu0 %724
      %726 = vrot.lane.b32.xlu0 %v655, 8
      %v727 = vpop.permute.xlu0 %726
      %728 = vrot.lane.b32.xlu0 %v656, 8
      %v729 = vpop.permute.xlu0 %728
      %730 = vrot.lane.b32.xlu0 %v657, 8
      %v731 = vpop.permute.xlu0 %730
      %732 = vrot.lane.b32.xlu0 %v658, 8
      %v733 = vpop.permute.xlu0 %732
      %734 = vrot.lane.b32.xlu0 %v659, 8
      %v735 = vpop.permute.xlu0 %734
      %736 = vrot.lane.b32.xlu0 %v660, 8
      %v737 = vpop.permute.xlu0 %736
      %738 = vrot.lane.b32.xlu0 %v661, 8
      %v739 = vpop.permute.xlu0 %738
      %740 = vrot.lane.b32.xlu0 %v662, 8
      %v741 = vpop.permute.xlu0 %740
      %742 = vrot.lane.b32.xlu0 %v663, 8
      %v743 = vpop.permute.xlu0 %742
      %744 = vrot.lane.b32.xlu0 %v664, 8
      %v745 = vpop.permute.xlu0 %744
      %746 = vrot.lane.b32.xlu0 %v665, 8
      %v747 = vpop.permute.xlu0 %746
      %748 = vrot.lane.b32.xlu0 %v666, 8
      %v749 = vpop.permute.xlu0 %748
      %750 = vrot.lane.b32.xlu0 %v667, 8
      %v751 = vpop.permute.xlu0 %750
      %752 = vrot.lane.b32.xlu0 %v668, 8
      %v753 = vpop.permute.xlu0 %752
      %754 = vrot.lane.b32.xlu0 %v669, 8
      %v755 = vpop.permute.xlu0 %754
      %756 = vrot.lane.b32.xlu0 %v670, 8
      %v757 = vpop.permute.xlu0 %756
      %758 = vrot.lane.b32.xlu0 %v671, 8
      %v759 = vpop.permute.xlu0 %758
      %760 = vrot.lane.b32.xlu0 %v672, 8
      %v761 = vpop.permute.xlu0 %760
      %762 = vrot.lane.b32.xlu0 %v673, 8
      %v763 = vpop.permute.xlu0 %762
      %764 = vrot.lane.b32.xlu0 %v674, 8
      %v765 = vpop.permute.xlu0 %764
      %766 = vrot.lane.b32.xlu0 %v675, 8
      %v767 = vpop.permute.xlu0 %766
      %768 = vrot.lane.b32.xlu0 %v676, 8
      %v769 = vpop.permute.xlu0 %768
      %770 = vrot.lane.b32.xlu0 %v677, 8
      %v771 = vpop.permute.xlu0 %770
      %772 = vrot.lane.b32.xlu0 %v678, 8
      %v773 = vpop.permute.xlu0 %772
      %774 = vrot.lane.b32.xlu0 %v679, 8
      %v775 = vpop.permute.xlu0 %774
      %vm808 = vcmask 93248
      %809 = vst.msk [vmem:[#allocation3] sm:$0xf] %vm808, %v713
      %810 = vst.msk [vmem:[#allocation3 + $0x4] sm:$0xf] %vm808, %v715
      %811 = vst.msk [vmem:[#allocation3 + $0x8] sm:$0xf] %vm808, %v717
      %812 = vst.msk [vmem:[#allocation3 + $0xc] sm:$0xf] %vm808, %v719
      %813 = vst.msk [vmem:[#allocation3 + $0x10] sm:$0xf] %vm808, %v721
      %814 = vst.msk [vmem:[#allocation3 + $0x14] sm:$0xf] %vm808, %v723
      %815 = vst.msk [vmem:[#allocation3 + $0x18] sm:$0xf] %vm808, %v725
      %816 = vst.msk [vmem:[#allocation3 + $0x1c] sm:$0xf] %vm808, %v727
      %817 = vst.msk [vmem:[#allocation3 + $0x20] sm:$0xf] %vm808, %v729
      %818 = vst.msk [vmem:[#allocation3 + $0x24] sm:$0xf] %vm808, %v731
      %819 = vst.msk [vmem:[#allocation3 + $0x28] sm:$0xf] %vm808, %v733
      %820 = vst.msk [vmem:[#allocation3 + $0x2c] sm:$0xf] %vm808, %v735
      %821 = vst.msk [vmem:[#allocation3 + $0x30] sm:$0xf] %vm808, %v737
      %822 = vst.msk [vmem:[#allocation3 + $0x34] sm:$0xf] %vm808, %v739
      %823 = vst.msk [vmem:[#allocation3 + $0x38] sm:$0xf] %vm808, %v741
      %824 = vst.msk [vmem:[#allocation3 + $0x3c] sm:$0xf] %vm808, %v743
      %825 = vst.msk [vmem:[#allocation3 + $0x40] sm:$0xf] %vm808, %v745
      %826 = vst.msk [vmem:[#allocation3 + $0x44] sm:$0xf] %vm808, %v747
      %827 = vst.msk [vmem:[#allocation3 + $0x48] sm:$0xf] %vm808, %v749
      %828 = vst.msk [vmem:[#allocation3 + $0x4c] sm:$0xf] %vm808, %v751
      %829 = vst.msk [vmem:[#allocation3 + $0x50] sm:$0xf] %vm808, %v753
      %830 = vst.msk [vmem:[#allocation3 + $0x54] sm:$0xf] %vm808, %v755
      %831 = vst.msk [vmem:[#allocation3 + $0x58] sm:$0xf] %vm808, %v757
      %832 = vst.msk [vmem:[#allocation3 + $0x5c] sm:$0xf] %vm808, %v759
      %833 = vst.msk [vmem:[#allocation3 + $0x60] sm:$0xf] %vm808, %v761
      %834 = vst.msk [vmem:[#allocation3 + $0x64] sm:$0xf] %vm808, %v763
      %835 = vst.msk [vmem:[#allocation3 + $0x68] sm:$0xf] %vm808, %v765
      %836 = vst.msk [vmem:[#allocation3 + $0x6c] sm:$0xf] %vm808, %v767
      %837 = vst.msk [vmem:[#allocation3 + $0x70] sm:$0xf] %vm808, %v769
      %838 = vst.msk [vmem:[#allocation3 + $0x74] sm:$0xf] %vm808, %v771
      %839 = vst.msk [vmem:[#allocation3 + $0x78] sm:$0xf] %vm808, %v773
      %840 = vst.msk [vmem:[#allocation3 + $0x7c] sm:$0xf] %vm808, %v775
      %v841 = vld [vmem:[%s261] sm:$0xff]
      %v842 = vld [vmem:[%s261 + $0x8] sm:$0xff]
      %v843 = vld [vmem:[%s261 + $0x18] sm:$0xff]
      %v844 = vld [vmem:[%s261 + $0x20] sm:$0xff]
      %v845 = vld [vmem:[%s261 + $0x30] sm:$0xff]
      %v846 = vld [vmem:[%s261 + $0x38] sm:$0xff]
      %v847 = vld [vmem:[%s261 + $0x48] sm:$0xff]
      %v848 = vld [vmem:[%s261 + $0x50] sm:$0xff]
      %v849 = vld [vmem:[%s261 + $0x60] sm:$0xff]
      %v850 = vld [vmem:[%s261 + $0x68] sm:$0xff]
      %v851 = vld [vmem:[%s261 + $0x78] sm:$0xff]
      %v852 = vld [vmem:[%s261 + $0x80] sm:$0xff]
      %v853 = vld [vmem:[%s261 + $0x90] sm:$0xff]
      %v854 = vld [vmem:[%s261 + $0x98] sm:$0xff]
      %v855 = vld [vmem:[%s261 + $0xa8] sm:$0xff]
      %v856 = vld [vmem:[%s261 + $0xb0] sm:$0xff]
      %v857 = vld [vmem:[%s261 + $0xc0] sm:$0xff]
      %v858 = vld [vmem:[%s261 + $0xc8] sm:$0xff]
      %v859 = vld [vmem:[%s261 + $0xd8] sm:$0xff]
      %v860 = vld [vmem:[%s261 + $0xe0] sm:$0xff]
      %v861 = vld [vmem:[%s261 + $0xf0] sm:$0xff]
      %v862 = vld [vmem:[%s261 + $0xf8] sm:$0xff]
      %v863 = vld [vmem:[%s261 + $0x108] sm:$0xff]
      %v864 = vld [vmem:[%s261 + $0x110] sm:$0xff]
      %v865 = vld [vmem:[%s261 + $0x120] sm:$0xff]
      %v866 = vld [vmem:[%s261 + $0x128] sm:$0xff]
      %v867 = vld [vmem:[%s261 + $0x138] sm:$0xff]
      %v868 = vld [vmem:[%s261 + $0x140] sm:$0xff]
      %v869 = vld [vmem:[%s261 + $0x150] sm:$0xff]
      %v870 = vld [vmem:[%s261 + $0x158] sm:$0xff]
      %v871 = vld [vmem:[%s261 + $0x168] sm:$0xff]
      %v872 = vld [vmem:[%s261 + $0x170] sm:$0xff]
      %v873 = vpack.c.bf16 %v841, %v841
      %v874 = vpack.c.bf16 %v842, %v842
      %v875 = vpack.c.bf16 %v843, %v843
      %v876 = vpack.c.bf16 %v844, %v844
      %v877 = vpack.c.bf16 %v845, %v845
      %v878 = vpack.c.bf16 %v846, %v846
      %v879 = vpack.c.bf16 %v847, %v847
      %v880 = vpack.c.bf16 %v848, %v848
      %v881 = vpack.c.bf16 %v849, %v849
      %v882 = vpack.c.bf16 %v850, %v850
      %v883 = vpack.c.bf16 %v851, %v851
      %v884 = vpack.c.bf16 %v852, %v852
      %v885 = vpack.c.bf16 %v853, %v853
      %v886 = vpack.c.bf16 %v854, %v854
      %v887 = vpack.c.bf16 %v855, %v855
      %v888 = vpack.c.bf16 %v856, %v856
      %v889 = vpack.c.bf16 %v857, %v857
      %v890 = vpack.c.bf16 %v858, %v858
      %v891 = vpack.c.bf16 %v859, %v859
      %v892 = vpack.c.bf16 %v860, %v860
      %v893 = vpack.c.bf16 %v861, %v861
      %v894 = vpack.c.bf16 %v862, %v862
      %v895 = vpack.c.bf16 %v863, %v863
      %v896 = vpack.c.bf16 %v864, %v864
      %v897 = vpack.c.bf16 %v865, %v865
      %v898 = vpack.c.bf16 %v866, %v866
      %v899 = vpack.c.bf16 %v867, %v867
      %v900 = vpack.c.bf16 %v868, %v868
      %v901 = vpack.c.bf16 %v869, %v869
      %v902 = vpack.c.bf16 %v870, %v870
      %v903 = vpack.c.bf16 %v871, %v871
      %v904 = vpack.c.bf16 %v872, %v872
      %937 = vrot.lane.b32.xlu0 %v873, 12
      %v938 = vpop.permute.xlu0 %937
      %939 = vrot.lane.b32.xlu0 %v874, 12
      %v940 = vpop.permute.xlu0 %939
      %941 = vrot.lane.b32.xlu0 %v875, 12
      %v942 = vpop.permute.xlu0 %941
      %943 = vrot.lane.b32.xlu0 %v876, 12
      %v944 = vpop.permute.xlu0 %943
      %945 = vrot.lane.b32.xlu0 %v877, 12
      %v946 = vpop.permute.xlu0 %945
      %947 = vrot.lane.b32.xlu0 %v878, 12
      %v948 = vpop.permute.xlu0 %947
      %949 = vrot.lane.b32.xlu0 %v879, 12
      %v950 = vpop.permute.xlu0 %949
      %951 = vrot.lane.b32.xlu0 %v880, 12
      %v952 = vpop.permute.xlu0 %951
      %953 = vrot.lane.b32.xlu0 %v881, 12
      %v954 = vpop.permute.xlu0 %953
      %955 = vrot.lane.b32.xlu0 %v882, 12
      %v956 = vpop.permute.xlu0 %955
      %957 = vrot.lane.b32.xlu0 %v883, 12
      %v958 = vpop.permute.xlu0 %957
      %959 = vrot.lane.b32.xlu0 %v884, 12
      %v960 = vpop.permute.xlu0 %959
      %961 = vrot.lane.b32.xlu0 %v885, 12
      %v962 = vpop.permute.xlu0 %961
      %963 = vrot.lane.b32.xlu0 %v886, 12
      %v964 = vpop.permute.xlu0 %963
      %965 = vrot.lane.b32.xlu0 %v887, 12
      %v966 = vpop.permute.xlu0 %965
      %967 = vrot.lane.b32.xlu0 %v888, 12
      %v968 = vpop.permute.xlu0 %967
      %969 = vrot.lane.b32.xlu0 %v889, 12
      %v970 = vpop.permute.xlu0 %969
      %971 = vrot.lane.b32.xlu0 %v890, 12
      %v972 = vpop.permute.xlu0 %971
      %973 = vrot.lane.b32.xlu0 %v891, 12
      %v974 = vpop.permute.xlu0 %973
      %975 = vrot.lane.b32.xlu0 %v892, 12
      %v976 = vpop.permute.xlu0 %975
      %977 = vrot.lane.b32.xlu0 %v893, 12
      %v978 = vpop.permute.xlu0 %977
      %979 = vrot.lane.b32.xlu0 %v894, 12
      %v980 = vpop.permute.xlu0 %979
      %981 = vrot.lane.b32.xlu0 %v895, 12
      %v982 = vpop.permute.xlu0 %981
      %983 = vrot.lane.b32.xlu0 %v896, 12
      %v984 = vpop.permute.xlu0 %983
      %985 = vrot.lane.b32.xlu0 %v897, 12
      %v986 = vpop.permute.xlu0 %985
      %987 = vrot.lane.b32.xlu0 %v898, 12
      %v988 = vpop.permute.xlu0 %987
      %989 = vrot.lane.b32.xlu0 %v899, 12
      %v990 = vpop.permute.xlu0 %989
      %991 = vrot.lane.b32.xlu0 %v900, 12
      %v992 = vpop.permute.xlu0 %991
      %993 = vrot.lane.b32.xlu0 %v901, 12
      %v994 = vpop.permute.xlu0 %993
      %995 = vrot.lane.b32.xlu0 %v902, 12
      %v996 = vpop.permute.xlu0 %995
      %997 = vrot.lane.b32.xlu0 %v903, 12
      %v998 = vpop.permute.xlu0 %997
      %999 = vrot.lane.b32.xlu0 %v904, 12
      %v1000 = vpop.permute.xlu0 %999
      %vm1033 = vcmask 126048
      %1034 = vst.msk [vmem:[#allocation3] sm:$0xf] %vm1033, %v938
      %1035 = vst.msk [vmem:[#allocation3 + $0x4] sm:$0xf] %vm1033, %v940
      %1036 = vst.msk [vmem:[#allocation3 + $0x8] sm:$0xf] %vm1033, %v942
      %1037 = vst.msk [vmem:[#allocation3 + $0xc] sm:$0xf] %vm1033, %v944
      %1038 = vst.msk [vmem:[#allocation3 + $0x10] sm:$0xf] %vm1033, %v946
      %1039 = vst.msk [vmem:[#allocation3 + $0x14] sm:$0xf] %vm1033, %v948
      %1040 = vst.msk [vmem:[#allocation3 + $0x18] sm:$0xf] %vm1033, %v950
      %1041 = vst.msk [vmem:[#allocation3 + $0x1c] sm:$0xf] %vm1033, %v952
      %1042 = vst.msk [vmem:[#allocation3 + $0x20] sm:$0xf] %vm1033, %v954
      %1043 = vst.msk [vmem:[#allocation3 + $0x24] sm:$0xf] %vm1033, %v956
      %1044 = vst.msk [vmem:[#allocation3 + $0x28] sm:$0xf] %vm1033, %v958
      %1045 = vst.msk [vmem:[#allocation3 + $0x2c] sm:$0xf] %vm1033, %v960
      %1046 = vst.msk [vmem:[#allocation3 + $0x30] sm:$0xf] %vm1033, %v962
      %1047 = vst.msk [vmem:[#allocation3 + $0x34] sm:$0xf] %vm1033, %v964
      %1048 = vst.msk [vmem:[#allocation3 + $0x38] sm:$0xf] %vm1033, %v966
      %1049 = vst.msk [vmem:[#allocation3 + $0x3c] sm:$0xf] %vm1033, %v968
      %1050 = vst.msk [vmem:[#allocation3 + $0x40] sm:$0xf] %vm1033, %v970
      %1051 = vst.msk [vmem:[#allocation3 + $0x44] sm:$0xf] %vm1033, %v972
      %1052 = vst.msk [vmem:[#allocation3 + $0x48] sm:$0xf] %vm1033, %v974
      %1053 = vst.msk [vmem:[#allocation3 + $0x4c] sm:$0xf] %vm1033, %v976
      %1054 = vst.msk [vmem:[#allocation3 + $0x50] sm:$0xf] %vm1033, %v978
      %1055 = vst.msk [vmem:[#allocation3 + $0x54] sm:$0xf] %vm1033, %v980
      %1056 = vst.msk [vmem:[#allocation3 + $0x58] sm:$0xf] %vm1033, %v982
      %1057 = vst.msk [vmem:[#allocation3 + $0x5c] sm:$0xf] %vm1033, %v984
      %1058 = vst.msk [vmem:[#allocation3 + $0x60] sm:$0xf] %vm1033, %v986
      %1059 = vst.msk [vmem:[#allocation3 + $0x64] sm:$0xf] %vm1033, %v988
      %1060 = vst.msk [vmem:[#allocation3 + $0x68] sm:$0xf] %vm1033, %v990
      %1061 = vst.msk [vmem:[#allocation3 + $0x6c] sm:$0xf] %vm1033, %v992
      %1062 = vst.msk [vmem:[#allocation3 + $0x70] sm:$0xf] %vm1033, %v994
      %1063 = vst.msk [vmem:[#allocation3 + $0x74] sm:$0xf] %vm1033, %v996
      %1064 = vst.msk [vmem:[#allocation3 + $0x78] sm:$0xf] %vm1033, %v998
      %1065 = vst.msk [vmem:[#allocation3 + $0x7c] sm:$0xf] %vm1033, %v1000
      %v1066 = vld [vmem:[%s261 + $0x1] sm:$0xff]
      %v1067 = vld [vmem:[%s261 + $0x9] sm:$0xff]
      %v1068 = vld [vmem:[%s261 + $0x19] sm:$0xff]
      %v1069 = vld [vmem:[%s261 + $0x21] sm:$0xff]
      %v1070 = vld [vmem:[%s261 + $0x31] sm:$0xff]
      %v1071 = vld [vmem:[%s261 + $0x39] sm:$0xff]
      %v1072 = vld [vmem:[%s261 + $0x49] sm:$0xff]
      %v1073 = vld [vmem:[%s261 + $0x51] sm:$0xff]
      %v1074 = vld [vmem:[%s261 + $0x61] sm:$0xff]
      %v1075 = vld [vmem:[%s261 + $0x69] sm:$0xff]
      %v1076 = vld [vmem:[%s261 + $0x79] sm:$0xff]
      %v1077 = vld [vmem:[%s261 + $0x81] sm:$0xff]
      %v1078 = vld [vmem:[%s261 + $0x91] sm:$0xff]
      %v1079 = vld [vmem:[%s261 + $0x99] sm:$0xff]
      %v1080 = vld [vmem:[%s261 + $0xa9] sm:$0xff]
      %v1081 = vld [vmem:[%s261 + $0xb1] sm:$0xff]
      %v1082 = vld [vmem:[%s261 + $0xc1] sm:$0xff]
      %v1083 = vld [vmem:[%s261 + $0xc9] sm:$0xff]
      %v1084 = vld [vmem:[%s261 + $0xd9] sm:$0xff]
      %v1085 = vld [vmem:[%s261 + $0xe1] sm:$0xff]
      %v1086 = vld [vmem:[%s261 + $0xf1] sm:$0xff]
      %v1087 = vld [vmem:[%s261 + $0xf9] sm:$0xff]
      %v1088 = vld [vmem:[%s261 + $0x109] sm:$0xff]
      %v1089 = vld [vmem:[%s261 + $0x111] sm:$0xff]
      %v1090 = vld [vmem:[%s261 + $0x121] sm:$0xff]
      %v1091 = vld [vmem:[%s261 + $0x129] sm:$0xff]
      %v1092 = vld [vmem:[%s261 + $0x139] sm:$0xff]
      %v1093 = vld [vmem:[%s261 + $0x141] sm:$0xff]
      %v1094 = vld [vmem:[%s261 + $0x151] sm:$0xff]
      %v1095 = vld [vmem:[%s261 + $0x159] sm:$0xff]
      %v1096 = vld [vmem:[%s261 + $0x169] sm:$0xff]
      %v1097 = vld [vmem:[%s261 + $0x171] sm:$0xff]
      %v1098 = vpack.c.bf16 %v1066, %v1066
      %v1099 = vpack.c.bf16 %v1067, %v1067
      %v1100 = vpack.c.bf16 %v1068, %v1068
      %v1101 = vpack.c.bf16 %v1069, %v1069
      %v1102 = vpack.c.bf16 %v1070, %v1070
      %v1103 = vpack.c.bf16 %v1071, %v1071
      %v1104 = vpack.c.bf16 %v1072, %v1072
      %v1105 = vpack.c.bf16 %v1073, %v1073
      %v1106 = vpack.c.bf16 %v1074, %v1074
      %v1107 = vpack.c.bf16 %v1075, %v1075
      %v1108 = vpack.c.bf16 %v1076, %v1076
      %v1109 = vpack.c.bf16 %v1077, %v1077
      %v1110 = vpack.c.bf16 %v1078, %v1078
      %v1111 = vpack.c.bf16 %v1079, %v1079
      %v1112 = vpack.c.bf16 %v1080, %v1080
      %v1113 = vpack.c.bf16 %v1081, %v1081
      %v1114 = vpack.c.bf16 %v1082, %v1082
      %v1115 = vpack.c.bf16 %v1083, %v1083
      %v1116 = vpack.c.bf16 %v1084, %v1084
      %v1117 = vpack.c.bf16 %v1085, %v1085
      %v1118 = vpack.c.bf16 %v1086, %v1086
      %v1119 = vpack.c.bf16 %v1087, %v1087
      %v1120 = vpack.c.bf16 %v1088, %v1088
      %v1121 = vpack.c.bf16 %v1089, %v1089
      %v1122 = vpack.c.bf16 %v1090, %v1090
      %v1123 = vpack.c.bf16 %v1091, %v1091
      %v1124 = vpack.c.bf16 %v1092, %v1092
      %v1125 = vpack.c.bf16 %v1093, %v1093
      %v1126 = vpack.c.bf16 %v1094, %v1094
      %v1127 = vpack.c.bf16 %v1095, %v1095
      %v1128 = vpack.c.bf16 %v1096, %v1096
      %v1129 = vpack.c.bf16 %v1097, %v1097
      %1162 = vrot.lane.b32.xlu0 %v1098, 16
      %v1163 = vpop.permute.xlu0 %1162
      %1164 = vrot.lane.b32.xlu0 %v1099, 16
      %v1165 = vpop.permute.xlu0 %1164
      %1166 = vrot.lane.b32.xlu0 %v1100, 16
      %v1167 = vpop.permute.xlu0 %1166
      %1168 = vrot.lane.b32.xlu0 %v1101, 16
      %v1169 = vpop.permute.xlu0 %1168
      %1170 = vrot.lane.b32.xlu0 %v1102, 16
      %v1171 = vpop.permute.xlu0 %1170
      %1172 = vrot.lane.b32.xlu0 %v1103, 16
      %v1173 = vpop.permute.xlu0 %1172
      %1174 = vrot.lane.b32.xlu0 %v1104, 16
      %v1175 = vpop.permute.xlu0 %1174
      %1176 = vrot.lane.b32.xlu0 %v1105, 16
      %v1177 = vpop.permute.xlu0 %1176
      %1178 = vrot.lane.b32.xlu0 %v1106, 16
      %v1179 = vpop.permute.xlu0 %1178
      %1180 = vrot.lane.b32.xlu0 %v1107, 16
      %v1181 = vpop.permute.xlu0 %1180
      %1182 = vrot.lane.b32.xlu0 %v1108, 16
      %v1183 = vpop.permute.xlu0 %1182
      %1184 = vrot.lane.b32.xlu0 %v1109, 16
      %v1185 = vpop.permute.xlu0 %1184
      %1186 = vrot.lane.b32.xlu0 %v1110, 16
      %v1187 = vpop.permute.xlu0 %1186
      %1188 = vrot.lane.b32.xlu0 %v1111, 16
      %v1189 = vpop.permute.xlu0 %1188
      %1190 = vrot.lane.b32.xlu0 %v1112, 16
      %v1191 = vpop.permute.xlu0 %1190
      %1192 = vrot.lane.b32.xlu0 %v1113, 16
      %v1193 = vpop.permute.xlu0 %1192
      %1194 = vrot.lane.b32.xlu0 %v1114, 16
      %v1195 = vpop.permute.xlu0 %1194
      %1196 = vrot.lane.b32.xlu0 %v1115, 16
      %v1197 = vpop.permute.xlu0 %1196
      %1198 = vrot.lane.b32.xlu0 %v1116, 16
      %v1199 = vpop.permute.xlu0 %1198
      %1200 = vrot.lane.b32.xlu0 %v1117, 16
      %v1201 = vpop.permute.xlu0 %1200
      %1202 = vrot.lane.b32.xlu0 %v1118, 16
      %v1203 = vpop.permute.xlu0 %1202
      %1204 = vrot.lane.b32.xlu0 %v1119, 16
      %v1205 = vpop.permute.xlu0 %1204
      %1206 = vrot.lane.b32.xlu0 %v1120, 16
      %v1207 = vpop.permute.xlu0 %1206
      %1208 = vrot.lane.b32.xlu0 %v1121, 16
      %v1209 = vpop.permute.xlu0 %1208
      %1210 = vrot.lane.b32.xlu0 %v1122, 16
      %v1211 = vpop.permute.xlu0 %1210
      %1212 = vrot.lane.b32.xlu0 %v1123, 16
      %v1213 = vpop.permute.xlu0 %1212
      %1214 = vrot.lane.b32.xlu0 %v1124, 16
      %v1215 = vpop.permute.xlu0 %1214
      %1216 = vrot.lane.b32.xlu0 %v1125, 16
      %v1217 = vpop.permute.xlu0 %1216
      %1218 = vrot.lane.b32.xlu0 %v1126, 16
      %v1219 = vpop.permute.xlu0 %1218
      %1220 = vrot.lane.b32.xlu0 %v1127, 16
      %v1221 = vpop.permute.xlu0 %1220
      %1222 = vrot.lane.b32.xlu0 %v1128, 16
      %v1223 = vpop.permute.xlu0 %1222
      %1224 = vrot.lane.b32.xlu0 %v1129, 16
      %v1225 = vpop.permute.xlu0 %1224
      %vm1258 = vcmask 158848
      %1259 = vst.msk [vmem:[#allocation3] sm:$0xf] %vm1258, %v1163
      %1260 = vst.msk [vmem:[#allocation3 + $0x4] sm:$0xf] %vm1258, %v1165
      %1261 = vst.msk [vmem:[#allocation3 + $0x8] sm:$0xf] %vm1258, %v1167
      %1262 = vst.msk [vmem:[#allocation3 + $0xc] sm:$0xf] %vm1258, %v1169
      %1263 = vst.msk [vmem:[#allocation3 + $0x10] sm:$0xf] %vm1258, %v1171
      %1264 = vst.msk [vmem:[#allocation3 + $0x14] sm:$0xf] %vm1258, %v1173
      %1265 = vst.msk [vmem:[#allocation3 + $0x18] sm:$0xf] %vm1258, %v1175
      %1266 = vst.msk [vmem:[#allocation3 + $0x1c] sm:$0xf] %vm1258, %v1177
      %1267 = vst.msk [vmem:[#allocation3 + $0x20] sm:$0xf] %vm1258, %v1179
      %1268 = vst.msk [vmem:[#allocation3 + $0x24] sm:$0xf] %vm1258, %v1181
      %1269 = vst.msk [vmem:[#allocation3 + $0x28] sm:$0xf] %vm1258, %v1183
      %1270 = vst.msk [vmem:[#allocation3 + $0x2c] sm:$0xf] %vm1258, %v1185
      %1271 = vst.msk [vmem:[#allocation3 + $0x30] sm:$0xf] %vm1258, %v1187
      %1272 = vst.msk [vmem:[#allocation3 + $0x34] sm:$0xf] %vm1258, %v1189
      %1273 = vst.msk [vmem:[#allocation3 + $0x38] sm:$0xf] %vm1258, %v1191
      %1274 = vst.msk [vmem:[#allocation3 + $0x3c] sm:$0xf] %vm1258, %v1193
      %1275 = vst.msk [vmem:[#allocation3 + $0x40] sm:$0xf] %vm1258, %v1195
      %1276 = vst.msk [vmem:[#allocation3 + $0x44] sm:$0xf] %vm1258, %v1197
      %1277 = vst.msk [vmem:[#allocation3 + $0x48] sm:$0xf] %vm1258, %v1199
      %1278 = vst.msk [vmem:[#allocation3 + $0x4c] sm:$0xf] %vm1258, %v1201
      %1279 = vst.msk [vmem:[#allocation3 + $0x50] sm:$0xf] %vm1258, %v1203
      %1280 = vst.msk [vmem:[#allocation3 + $0x54] sm:$0xf] %vm1258, %v1205
      %1281 = vst.msk [vmem:[#allocation3 + $0x58] sm:$0xf] %vm1258, %v1207
      %1282 = vst.msk [vmem:[#allocation3 + $0x5c] sm:$0xf] %vm1258, %v1209
      %1283 = vst.msk [vmem:[#allocation3 + $0x60] sm:$0xf] %vm1258, %v1211
      %1284 = vst.msk [vmem:[#allocation3 + $0x64] sm:$0xf] %vm1258, %v1213
      %1285 = vst.msk [vmem:[#allocation3 + $0x68] sm:$0xf] %vm1258, %v1215
      %1286 = vst.msk [vmem:[#allocation3 + $0x6c] sm:$0xf] %vm1258, %v1217
      %1287 = vst.msk [vmem:[#allocation3 + $0x70] sm:$0xf] %vm1258, %v1219
      %1288 = vst.msk [vmem:[#allocation3 + $0x74] sm:$0xf] %vm1258, %v1221
      %1289 = vst.msk [vmem:[#allocation3 + $0x78] sm:$0xf] %vm1258, %v1223
      %1290 = vst.msk [vmem:[#allocation3 + $0x7c] sm:$0xf] %vm1258, %v1225
      %v1291 = vld [vmem:[%s261 + $0x2] sm:$0xff]
      %v1292 = vld [vmem:[%s261 + $0xa] sm:$0xff]
      %v1293 = vld [vmem:[%s261 + $0x1a] sm:$0xff]
      %v1294 = vld [vmem:[%s261 + $0x22] sm:$0xff]
      %v1295 = vld [vmem:[%s261 + $0x32] sm:$0xff]
      %v1296 = vld [vmem:[%s261 + $0x3a] sm:$0xff]
      %v1297 = vld [vmem:[%s261 + $0x4a] sm:$0xff]
      %v1298 = vld [vmem:[%s261 + $0x52] sm:$0xff]
      %v1299 = vld [vmem:[%s261 + $0x62] sm:$0xff]
      %v1300 = vld [vmem:[%s261 + $0x6a] sm:$0xff]
      %v1301 = vld [vmem:[%s261 + $0x7a] sm:$0xff]
      %v1302 = vld [vmem:[%s261 + $0x82] sm:$0xff]
      %v1303 = vld [vmem:[%s261 + $0x92] sm:$0xff]
      %v1304 = vld [vmem:[%s261 + $0x9a] sm:$0xff]
      %v1305 = vld [vmem:[%s261 + $0xaa] sm:$0xff]
      %v1306 = vld [vmem:[%s261 + $0xb2] sm:$0xff]
      %v1307 = vld [vmem:[%s261 + $0xc2] sm:$0xff]
      %v1308 = vld [vmem:[%s261 + $0xca] sm:$0xff]
      %v1309 = vld [vmem:[%s261 + $0xda] sm:$0xff]
      %v1310 = vld [vmem:[%s261 + $0xe2] sm:$0xff]
      %v1311 = vld [vmem:[%s261 + $0xf2] sm:$0xff]
      %v1312 = vld [vmem:[%s261 + $0xfa] sm:$0xff]
      %v1313 = vld [vmem:[%s261 + $0x10a] sm:$0xff]
      %v1314 = vld [vmem:[%s261 + $0x112] sm:$0xff]
      %v1315 = vld [vmem:[%s261 + $0x122] sm:$0xff]
      %v1316 = vld [vmem:[%s261 + $0x12a] sm:$0xff]
      %v1317 = vld [vmem:[%s261 + $0x13a] sm:$0xff]
      %v1318 = vld [vmem:[%s261 + $0x142] sm:$0xff]
      %v1319 = vld [vmem:[%s261 + $0x152] sm:$0xff]
      %v1320 = vld [vmem:[%s261 + $0x15a] sm:$0xff]
      %v1321 = vld [vmem:[%s261 + $0x16a] sm:$0xff]
      %v1322 = vld [vmem:[%s261 + $0x172] sm:$0xff]
      %v1323 = vpack.c.bf16 %v1291, %v1291
      %v1324 = vpack.c.bf16 %v1292, %v1292
      %v1325 = vpack.c.bf16 %v1293, %v1293
      %v1326 = vpack.c.bf16 %v1294, %v1294
      %v1327 = vpack.c.bf16 %v1295, %v1295
      %v1328 = vpack.c.bf16 %v1296, %v1296
      %v1329 = vpack.c.bf16 %v1297, %v1297
      %v1330 = vpack.c.bf16 %v1298, %v1298
      %v1331 = vpack.c.bf16 %v1299, %v1299
      %v1332 = vpack.c.bf16 %v1300, %v1300
      %v1333 = vpack.c.bf16 %v1301, %v1301
      %v1334 = vpack.c.bf16 %v1302, %v1302
      %v1335 = vpack.c.bf16 %v1303, %v1303
      %v1336 = vpack.c.bf16 %v1304, %v1304
      %v1337 = vpack.c.bf16 %v1305, %v1305
      %v1338 = vpack.c.bf16 %v1306, %v1306
      %v1339 = vpack.c.bf16 %v1307, %v1307
      %v1340 = vpack.c.bf16 %v1308, %v1308
      %v1341 = vpack.c.bf16 %v1309, %v1309
      %v1342 = vpack.c.bf16 %v1310, %v1310
      %v1343 = vpack.c.bf16 %v1311, %v1311
      %v1344 = vpack.c.bf16 %v1312, %v1312
      %v1345 = vpack.c.bf16 %v1313, %v1313
      %v1346 = vpack.c.bf16 %v1314, %v1314
      %v1347 = vpack.c.bf16 %v1315, %v1315
      %v1348 = vpack.c.bf16 %v1316, %v1316
      %v1349 = vpack.c.bf16 %v1317, %v1317
      %v1350 = vpack.c.bf16 %v1318, %v1318
      %v1351 = vpack.c.bf16 %v1319, %v1319
      %v1352 = vpack.c.bf16 %v1320, %v1320
      %v1353 = vpack.c.bf16 %v1321, %v1321
      %v1354 = vpack.c.bf16 %v1322, %v1322
      %1387 = vrot.lane.b32.xlu0 %v1323, 20
      %v1388 = vpop.permute.xlu0 %1387
      %1389 = vrot.lane.b32.xlu0 %v1324, 20
      %v1390 = vpop.permute.xlu0 %1389
      %1391 = vrot.lane.b32.xlu0 %v1325, 20
      %v1392 = vpop.permute.xlu0 %1391
      %1393 = vrot.lane.b32.xlu0 %v1326, 20
      %v1394 = vpop.permute.xlu0 %1393
      %1395 = vrot.lane.b32.xlu0 %v1327, 20
      %v1396 = vpop.permute.xlu0 %1395
      %1397 = vrot.lane.b32.xlu0 %v1328, 20
      %v1398 = vpop.permute.xlu0 %1397
      %1399 = vrot.lane.b32.xlu0 %v1329, 20
      %v1400 = vpop.permute.xlu0 %1399
      %1401 = vrot.lane.b32.xlu0 %v1330, 20
      %v1402 = vpop.permute.xlu0 %1401
      %1403 = vrot.lane.b32.xlu0 %v1331, 20
      %v1404 = vpop.permute.xlu0 %1403
      %1405 = vrot.lane.b32.xlu0 %v1332, 20
      %v1406 = vpop.permute.xlu0 %1405
      %1407 = vrot.lane.b32.xlu0 %v1333, 20
      %v1408 = vpop.permute.xlu0 %1407
      %1409 = vrot.lane.b32.xlu0 %v1334, 20
      %v1410 = vpop.permute.xlu0 %1409
      %1411 = vrot.lane.b32.xlu0 %v1335, 20
      %v1412 = vpop.permute.xlu0 %1411
      %1413 = vrot.lane.b32.xlu0 %v1336, 20
      %v1414 = vpop.permute.xlu0 %1413
      %1415 = vrot.lane.b32.xlu0 %v1337, 20
      %v1416 = vpop.permute.xlu0 %1415
      %1417 = vrot.lane.b32.xlu0 %v1338, 20
      %v1418 = vpop.permute.xlu0 %1417
      %1419 = vrot.lane.b32.xlu0 %v1339, 20
      %v1420 = vpop.permute.xlu0 %1419
      %1421 = vrot.lane.b32.xlu0 %v1340, 20
      %v1422 = vpop.permute.xlu0 %1421
      %1423 = vrot.lane.b32.xlu0 %v1341, 20
      %v1424 = vpop.permute.xlu0 %1423
      %1425 = vrot.lane.b32.xlu0 %v1342, 20
      %v1426 = vpop.permute.xlu0 %1425
      %1427 = vrot.lane.b32.xlu0 %v1343, 20
      %v1428 = vpop.permute.xlu0 %1427
      %1429 = vrot.lane.b32.xlu0 %v1344, 20
      %v1430 = vpop.permute.xlu0 %1429
      %1431 = vrot.lane.b32.xlu0 %v1345, 20
      %v1432 = vpop.permute.xlu0 %1431
      %1433 = vrot.lane.b32.xlu0 %v1346, 20
      %v1434 = vpop.permute.xlu0 %1433
      %1435 = vrot.lane.b32.xlu0 %v1347, 20
      %v1436 = vpop.permute.xlu0 %1435
      %1437 = vrot.lane.b32.xlu0 %v1348, 20
      %v1438 = vpop.permute.xlu0 %1437
      %1439 = vrot.lane.b32.xlu0 %v1349, 20
      %v1440 = vpop.permute.xlu0 %1439
      %1441 = vrot.lane.b32.xlu0 %v1350, 20
      %v1442 = vpop.permute.xlu0 %1441
      %1443 = vrot.lane.b32.xlu0 %v1351, 20
      %v1444 = vpop.permute.xlu0 %1443
      %1445 = vrot.lane.b32.xlu0 %v1352, 20
      %v1446 = vpop.permute.xlu0 %1445
      %1447 = vrot.lane.b32.xlu0 %v1353, 20
      %v1448 = vpop.permute.xlu0 %1447
      %1449 = vrot.lane.b32.xlu0 %v1354, 20
      %v1450 = vpop.permute.xlu0 %1449
      %vm1483 = vcmask 191648
      %1484 = vst.msk [vmem:[#allocation3] sm:$0xf] %vm1483, %v1388
      %1485 = vst.msk [vmem:[#allocation3 + $0x4] sm:$0xf] %vm1483, %v1390
      %1486 = vst.msk [vmem:[#allocation3 + $0x8] sm:$0xf] %vm1483, %v1392
      %1487 = vst.msk [vmem:[#allocation3 + $0xc] sm:$0xf] %vm1483, %v1394
      %1488 = vst.msk [vmem:[#allocation3 + $0x10] sm:$0xf] %vm1483, %v1396
      %1489 = vst.msk [vmem:[#allocation3 + $0x14] sm:$0xf] %vm1483, %v1398
      %1490 = vst.msk [vmem:[#allocation3 + $0x18] sm:$0xf] %vm1483, %v1400
      %1491 = vst.msk [vmem:[#allocation3 + $0x1c] sm:$0xf] %vm1483, %v1402
      %1492 = vst.msk [vmem:[#allocation3 + $0x20] sm:$0xf] %vm1483, %v1404
      %1493 = vst.msk [vmem:[#allocation3 + $0x24] sm:$0xf] %vm1483, %v1406
      %1494 = vst.msk [vmem:[#allocation3 + $0x28] sm:$0xf] %vm1483, %v1408
      %1495 = vst.msk [vmem:[#allocation3 + $0x2c] sm:$0xf] %vm1483, %v1410
      %1496 = vst.msk [vmem:[#allocation3 + $0x30] sm:$0xf] %vm1483, %v1412
      %1497 = vst.msk [vmem:[#allocation3 + $0x34] sm:$0xf] %vm1483, %v1414
      %1498 = vst.msk [vmem:[#allocation3 + $0x38] sm:$0xf] %vm1483, %v1416
      %1499 = vst.msk [vmem:[#allocation3 + $0x3c] sm:$0xf] %vm1483, %v1418
      %1500 = vst.msk [vmem:[#allocation3 + $0x40] sm:$0xf] %vm1483, %v1420
      %1501 = vst.msk [vmem:[#allocation3 + $0x44] sm:$0xf] %vm1483, %v1422
      %1502 = vst.msk [vmem:[#allocation3 + $0x48] sm:$0xf] %vm1483, %v1424
      %1503 = vst.msk [vmem:[#allocation3 + $0x4c] sm:$0xf] %vm1483, %v1426
      %1504 = vst.msk [vmem:[#allocation3 + $0x50] sm:$0xf] %vm1483, %v1428
      %1505 = vst.msk [vmem:[#allocation3 + $0x54] sm:$0xf] %vm1483, %v1430
      %1506 = vst.msk [vmem:[#allocation3 + $0x58] sm:$0xf] %vm1483, %v1432
      %1507 = vst.msk [vmem:[#allocation3 + $0x5c] sm:$0xf] %vm1483, %v1434
      %1508 = vst.msk [vmem:[#allocation3 + $0x60] sm:$0xf] %vm1483, %v1436
      %1509 = vst.msk [vmem:[#allocation3 + $0x64] sm:$0xf] %vm1483, %v1438
      %1510 = vst.msk [vmem:[#allocation3 + $0x68] sm:$0xf] %vm1483, %v1440
      %1511 = vst.msk [vmem:[#allocation3 + $0x6c] sm:$0xf] %vm1483, %v1442
      %1512 = vst.msk [vmem:[#allocation3 + $0x70] sm:$0xf] %vm1483, %v1444
      %1513 = vst.msk [vmem:[#allocation3 + $0x74] sm:$0xf] %vm1483, %v1446
      %1514 = vst.msk [vmem:[#allocation3 + $0x78] sm:$0xf] %vm1483, %v1448
      %1515 = vst.msk [vmem:[#allocation3 + $0x7c] sm:$0xf] %vm1483, %v1450
      %s1516 = scalar_lea.vmem [#allocation2], 48
      %v1517 = vld [vmem:[%s1516] sm:$0xff]
      %v1518 = vld [vmem:[%s1516 + $0x8] sm:$0xff]
      %v1519 = vld [vmem:[%s1516 + $0x18] sm:$0xff]
      %v1520 = vld [vmem:[%s1516 + $0x20] sm:$0xff]
      %v1521 = vld [vmem:[%s1516 + $0x30] sm:$0xff]
      %v1522 = vld [vmem:[%s1516 + $0x38] sm:$0xff]
      %v1523 = vld [vmem:[%s1516 + $0x48] sm:$0xff]
      %v1524 = vld [vmem:[%s1516 + $0x50] sm:$0xff]
      %v1525 = vld [vmem:[%s1516 + $0x60] sm:$0xff]
      %v1526 = vld [vmem:[%s1516 + $0x68] sm:$0xff]
      %v1527 = vld [vmem:[%s1516 + $0x78] sm:$0xff]
      %v1528 = vld [vmem:[%s1516 + $0x80] sm:$0xff]
      %v1529 = vld [vmem:[%s1516 + $0x90] sm:$0xff]
      %v1530 = vld [vmem:[%s1516 + $0x98] sm:$0xff]
      %v1531 = vld [vmem:[%s1516 + $0xa8] sm:$0xff]
      %v1532 = vld [vmem:[%s1516 + $0xb0] sm:$0xff]
      %v1533 = vld [vmem:[%s1516 + $0xc0] sm:$0xff]
      %v1534 = vld [vmem:[%s1516 + $0xc8] sm:$0xff]
      %v1535 = vld [vmem:[%s1516 + $0xd8] sm:$0xff]
      %v1536 = vld [vmem:[%s1516 + $0xe0] sm:$0xff]
      %v1537 = vld [vmem:[%s1516 + $0xf0] sm:$0xff]
      %v1538 = vld [vmem:[%s1516 + $0xf8] sm:$0xff]
      %v1539 = vld [vmem:[%s1516 + $0x108] sm:$0xff]
      %v1540 = vld [vmem:[%s1516 + $0x110] sm:$0xff]
      %v1541 = vld [vmem:[%s1516 + $0x120] sm:$0xff]
      %v1542 = vld [vmem:[%s1516 + $0x128] sm:$0xff]
      %v1543 = vld [vmem:[%s1516 + $0x138] sm:$0xff]
      %v1544 = vld [vmem:[%s1516 + $0x140] sm:$0xff]
      %v1545 = vld [vmem:[%s1516 + $0x150] sm:$0xff]
      %v1546 = vld [vmem:[%s1516 + $0x158] sm:$0xff]
      %v1547 = vld [vmem:[%s1516 + $0x168] sm:$0xff]
      %v1548 = vld [vmem:[%s1516 + $0x170] sm:$0xff]
      %v1549 = vpack.c.bf16 %v1517, %v1517
      %v1550 = vpack.c.bf16 %v1518, %v1518
      %v1551 = vpack.c.bf16 %v1519, %v1519
      %v1552 = vpack.c.bf16 %v1520, %v1520
      %v1553 = vpack.c.bf16 %v1521, %v1521
      %v1554 = vpack.c.bf16 %v1522, %v1522
      %v1555 = vpack.c.bf16 %v1523, %v1523
      %v1556 = vpack.c.bf16 %v1524, %v1524
      %v1557 = vpack.c.bf16 %v1525, %v1525
      %v1558 = vpack.c.bf16 %v1526, %v1526
      %v1559 = vpack.c.bf16 %v1527, %v1527
      %v1560 = vpack.c.bf16 %v1528, %v1528
      %v1561 = vpack.c.bf16 %v1529, %v1529
      %v1562 = vpack.c.bf16 %v1530, %v1530
      %v1563 = vpack.c.bf16 %v1531, %v1531
      %v1564 = vpack.c.bf16 %v1532, %v1532
      %v1565 = vpack.c.bf16 %v1533, %v1533
      %v1566 = vpack.c.bf16 %v1534, %v1534
      %v1567 = vpack.c.bf16 %v1535, %v1535
      %v1568 = vpack.c.bf16 %v1536, %v1536
      %v1569 = vpack.c.bf16 %v1537, %v1537
      %v1570 = vpack.c.bf16 %v1538, %v1538
      %v1571 = vpack.c.bf16 %v1539, %v1539
      %v1572 = vpack.c.bf16 %v1540, %v1540
      %v1573 = vpack.c.bf16 %v1541, %v1541
      %v1574 = vpack.c.bf16 %v1542, %v1542
      %v1575 = vpack.c.bf16 %v1543, %v1543
      %v1576 = vpack.c.bf16 %v1544, %v1544
      %v1577 = vpack.c.bf16 %v1545, %v1545
      %v1578 = vpack.c.bf16 %v1546, %v1546
      %v1579 = vpack.c.bf16 %v1547, %v1547
      %v1580 = vpack.c.bf16 %v1548, %v1548
      %1613 = vrot.lane.b32.xlu0 %v1549, 24
      %v1614 = vpop.permute.xlu0 %1613
      %1615 = vrot.lane.b32.xlu0 %v1550, 24
      %v1616 = vpop.permute.xlu0 %1615
      %1617 = vrot.lane.b32.xlu0 %v1551, 24
      %v1618 = vpop.permute.xlu0 %1617
      %1619 = vrot.lane.b32.xlu0 %v1552, 24
      %v1620 = vpop.permute.xlu0 %1619
      %1621 = vrot.lane.b32.xlu0 %v1553, 24
      %v1622 = vpop.permute.xlu0 %1621
      %1623 = vrot.lane.b32.xlu0 %v1554, 24
      %v1624 = vpop.permute.xlu0 %1623
      %1625 = vrot.lane.b32.xlu0 %v1555, 24
      %v1626 = vpop.permute.xlu0 %1625
      %1627 = vrot.lane.b32.xlu0 %v1556, 24
      %v1628 = vpop.permute.xlu0 %1627
      %1629 = vrot.lane.b32.xlu0 %v1557, 24
      %v1630 = vpop.permute.xlu0 %1629
      %1631 = vrot.lane.b32.xlu0 %v1558, 24
      %v1632 = vpop.permute.xlu0 %1631
      %1633 = vrot.lane.b32.xlu0 %v1559, 24
      %v1634 = vpop.permute.xlu0 %1633
      %1635 = vrot.lane.b32.xlu0 %v1560, 24
      %v1636 = vpop.permute.xlu0 %1635
      %1637 = vrot.lane.b32.xlu0 %v1561, 24
      %v1638 = vpop.permute.xlu0 %1637
      %1639 = vrot.lane.b32.xlu0 %v1562, 24
      %v1640 = vpop.permute.xlu0 %1639
      %1641 = vrot.lane.b32.xlu0 %v1563, 24
      %v1642 = vpop.permute.xlu0 %1641
      %1643 = vrot.lane.b32.xlu0 %v1564, 24
      %v1644 = vpop.permute.xlu0 %1643
      %1645 = vrot.lane.b32.xlu0 %v1565, 24
      %v1646 = vpop.permute.xlu0 %1645
      %1647 = vrot.lane.b32.xlu0 %v1566, 24
      %v1648 = vpop.permute.xlu0 %1647
      %1649 = vrot.lane.b32.xlu0 %v1567, 24
      %v1650 = vpop.permute.xlu0 %1649
      %1651 = vrot.lane.b32.xlu0 %v1568, 24
      %v1652 = vpop.permute.xlu0 %1651
      %1653 = vrot.lane.b32.xlu0 %v1569, 24
      %v1654 = vpop.permute.xlu0 %1653
      %1655 = vrot.lane.b32.xlu0 %v1570, 24
      %v1656 = vpop.permute.xlu0 %1655
      %1657 = vrot.lane.b32.xlu0 %v1571, 24
      %v1658 = vpop.permute.xlu0 %1657
      %1659 = vrot.lane.b32.xlu0 %v1572, 24
      %v1660 = vpop.permute.xlu0 %1659
      %1661 = vrot.lane.b32.xlu0 %v1573, 24
      %v1662 = vpop.permute.xlu0 %1661
      %1663 = vrot.lane.b32.xlu0 %v1574, 24
      %v1664 = vpop.permute.xlu0 %1663
      %1665 = vrot.lane.b32.xlu0 %v1575, 24
      %v1666 = vpop.permute.xlu0 %1665
      %1667 = vrot.lane.b32.xlu0 %v1576, 24
      %v1668 = vpop.permute.xlu0 %1667
      %1669 = vrot.lane.b32.xlu0 %v1577, 24
      %v1670 = vpop.permute.xlu0 %1669
      %1671 = vrot.lane.b32.xlu0 %v1578, 24
      %v1672 = vpop.permute.xlu0 %1671
      %1673 = vrot.lane.b32.xlu0 %v1579, 24
      %v1674 = vpop.permute.xlu0 %1673
      %1675 = vrot.lane.b32.xlu0 %v1580, 24
      %v1676 = vpop.permute.xlu0 %1675
      %vm1709 = vcmask 224448
      %1710 = vst.msk [vmem:[#allocation3] sm:$0xf] %vm1709, %v1614
      %1711 = vst.msk [vmem:[#allocation3 + $0x4] sm:$0xf] %vm1709, %v1616
      %1712 = vst.msk [vmem:[#allocation3 + $0x8] sm:$0xf] %vm1709, %v1618
      %1713 = vst.msk [vmem:[#allocation3 + $0xc] sm:$0xf] %vm1709, %v1620
      %1714 = vst.msk [vmem:[#allocation3 + $0x10] sm:$0xf] %vm1709, %v1622
      %1715 = vst.msk [vmem:[#allocation3 + $0x14] sm:$0xf] %vm1709, %v1624
      %1716 = vst.msk [vmem:[#allocation3 + $0x18] sm:$0xf] %vm1709, %v1626
      %1717 = vst.msk [vmem:[#allocation3 + $0x1c] sm:$0xf] %vm1709, %v1628
      %1718 = vst.msk [vmem:[#allocation3 + $0x20] sm:$0xf] %vm1709, %v1630
      %1719 = vst.msk [vmem:[#allocation3 + $0x24] sm:$0xf] %vm1709, %v1632
      %1720 = vst.msk [vmem:[#allocation3 + $0x28] sm:$0xf] %vm1709, %v1634
      %1721 = vst.msk [vmem:[#allocation3 + $0x2c] sm:$0xf] %vm1709, %v1636
      %1722 = vst.msk [vmem:[#allocation3 + $0x30] sm:$0xf] %vm1709, %v1638
      %1723 = vst.msk [vmem:[#allocation3 + $0x34] sm:$0xf] %vm1709, %v1640
      %1724 = vst.msk [vmem:[#allocation3 + $0x38] sm:$0xf] %vm1709, %v1642
      %1725 = vst.msk [vmem:[#allocation3 + $0x3c] sm:$0xf] %vm1709, %v1644
      %1726 = vst.msk [vmem:[#allocation3 + $0x40] sm:$0xf] %vm1709, %v1646
      %1727 = vst.msk [vmem:[#allocation3 + $0x44] sm:$0xf] %vm1709, %v1648
      %1728 = vst.msk [vmem:[#allocation3 + $0x48] sm:$0xf] %vm1709, %v1650
      %1729 = vst.msk [vmem:[#allocation3 + $0x4c] sm:$0xf] %vm1709, %v1652
      %1730 = vst.msk [vmem:[#allocation3 + $0x50] sm:$0xf] %vm1709, %v1654
      %1731 = vst.msk [vmem:[#allocation3 + $0x54] sm:$0xf] %vm1709, %v1656
      %1732 = vst.msk [vmem:[#allocation3 + $0x58] sm:$0xf] %vm1709, %v1658
      %1733 = vst.msk [vmem:[#allocation3 + $0x5c] sm:$0xf] %vm1709, %v1660
      %1734 = vst.msk [vmem:[#allocation3 + $0x60] sm:$0xf] %vm1709, %v1662
      %1735 = vst.msk [vmem:[#allocation3 + $0x64] sm:$0xf] %vm1709, %v1664
      %1736 = vst.msk [vmem:[#allocation3 + $0x68] sm:$0xf] %vm1709, %v1666
      %1737 = vst.msk [vmem:[#allocation3 + $0x6c] sm:$0xf] %vm1709, %v1668
      %1738 = vst.msk [vmem:[#allocation3 + $0x70] sm:$0xf] %vm1709, %v1670
      %1739 = vst.msk [vmem:[#allocation3 + $0x74] sm:$0xf] %vm1709, %v1672
      %1740 = vst.msk [vmem:[#allocation3 + $0x78] sm:$0xf] %vm1709, %v1674
      %1741 = vst.msk [vmem:[#allocation3 + $0x7c] sm:$0xf] %vm1709, %v1676
      %v1742 = vld [vmem:[%s1516 + $0x1] sm:$0xff]
      %v1743 = vld [vmem:[%s1516 + $0x9] sm:$0xff]
      %v1744 = vld [vmem:[%s1516 + $0x19] sm:$0xff]
      %v1745 = vld [vmem:[%s1516 + $0x21] sm:$0xff]
      %v1746 = vld [vmem:[%s1516 + $0x31] sm:$0xff]
      %v1747 = vld [vmem:[%s1516 + $0x39] sm:$0xff]
      %v1748 = vld [vmem:[%s1516 + $0x49] sm:$0xff]
      %v1749 = vld [vmem:[%s1516 + $0x51] sm:$0xff]
      %v1750 = vld [vmem:[%s1516 + $0x61] sm:$0xff]
      %v1751 = vld [vmem:[%s1516 + $0x69] sm:$0xff]
      %v1752 = vld [vmem:[%s1516 + $0x79] sm:$0xff]
      %v1753 = vld [vmem:[%s1516 + $0x81] sm:$0xff]
      %v1754 = vld [vmem:[%s1516 + $0x91] sm:$0xff]
      %v1755 = vld [vmem:[%s1516 + $0x99] sm:$0xff]
      %v1756 = vld [vmem:[%s1516 + $0xa9] sm:$0xff]
      %v1757 = vld [vmem:[%s1516 + $0xb1] sm:$0xff]
      %v1758 = vld [vmem:[%s1516 + $0xc1] sm:$0xff]
      %v1759 = vld [vmem:[%s1516 + $0xc9] sm:$0xff]
      %v1760 = vld [vmem:[%s1516 + $0xd9] sm:$0xff]
      %v1761 = vld [vmem:[%s1516 + $0xe1] sm:$0xff]
      %v1762 = vld [vmem:[%s1516 + $0xf1] sm:$0xff]
      %v1763 = vld [vmem:[%s1516 + $0xf9] sm:$0xff]
      %v1764 = vld [vmem:[%s1516 + $0x109] sm:$0xff]
      %v1765 = vld [vmem:[%s1516 + $0x111] sm:$0xff]
      %v1766 = vld [vmem:[%s1516 + $0x121] sm:$0xff]
      %v1767 = vld [vmem:[%s1516 + $0x129] sm:$0xff]
      %v1768 = vld [vmem:[%s1516 + $0x139] sm:$0xff]
      %v1769 = vld [vmem:[%s1516 + $0x141] sm:$0xff]
      %v1770 = vld [vmem:[%s1516 + $0x151] sm:$0xff]
      %v1771 = vld [vmem:[%s1516 + $0x159] sm:$0xff]
      %v1772 = vld [vmem:[%s1516 + $0x169] sm:$0xff]
      %v1773 = vld [vmem:[%s1516 + $0x171] sm:$0xff]
      %v1774 = vpack.c.bf16 %v1742, %v1742
      %v1775 = vpack.c.bf16 %v1743, %v1743
      %v1776 = vpack.c.bf16 %v1744, %v1744
      %v1777 = vpack.c.bf16 %v1745, %v1745
      %v1778 = vpack.c.bf16 %v1746, %v1746
      %v1779 = vpack.c.bf16 %v1747, %v1747
      %v1780 = vpack.c.bf16 %v1748, %v1748
      %v1781 = vpack.c.bf16 %v1749, %v1749
      %v1782 = vpack.c.bf16 %v1750, %v1750
      %v1783 = vpack.c.bf16 %v1751, %v1751
      %v1784 = vpack.c.bf16 %v1752, %v1752
      %v1785 = vpack.c.bf16 %v1753, %v1753
      %v1786 = vpack.c.bf16 %v1754, %v1754
      %v1787 = vpack.c.bf16 %v1755, %v1755
      %v1788 = vpack.c.bf16 %v1756, %v1756
      %v1789 = vpack.c.bf16 %v1757, %v1757
      %v1790 = vpack.c.bf16 %v1758, %v1758
      %v1791 = vpack.c.bf16 %v1759, %v1759
      %v1792 = vpack.c.bf16 %v1760, %v1760
      %v1793 = vpack.c.bf16 %v1761, %v1761
      %v1794 = vpack.c.bf16 %v1762, %v1762
      %v1795 = vpack.c.bf16 %v1763, %v1763
      %v1796 = vpack.c.bf16 %v1764, %v1764
      %v1797 = vpack.c.bf16 %v1765, %v1765
      %v1798 = vpack.c.bf16 %v1766, %v1766
      %v1799 = vpack.c.bf16 %v1767, %v1767
      %v1800 = vpack.c.bf16 %v1768, %v1768
      %v1801 = vpack.c.bf16 %v1769, %v1769
      %v1802 = vpack.c.bf16 %v1770, %v1770
      %v1803 = vpack.c.bf16 %v1771, %v1771
      %v1804 = vpack.c.bf16 %v1772, %v1772
      %v1805 = vpack.c.bf16 %v1773, %v1773
      %1838 = vrot.lane.b32.xlu0 %v1774, 28
      %v1839 = vpop.permute.xlu0 %1838
      %1840 = vrot.lane.b32.xlu0 %v1775, 28
      %v1841 = vpop.permute.xlu0 %1840
      %1842 = vrot.lane.b32.xlu0 %v1776, 28
      %v1843 = vpop.permute.xlu0 %1842
      %1844 = vrot.lane.b32.xlu0 %v1777, 28
      %v1845 = vpop.permute.xlu0 %1844
      %1846 = vrot.lane.b32.xlu0 %v1778, 28
      %v1847 = vpop.permute.xlu0 %1846
      %1848 = vrot.lane.b32.xlu0 %v1779, 28
      %v1849 = vpop.permute.xlu0 %1848
      %1850 = vrot.lane.b32.xlu0 %v1780, 28
      %v1851 = vpop.permute.xlu0 %1850
      %1852 = vrot.lane.b32.xlu0 %v1781, 28
      %v1853 = vpop.permute.xlu0 %1852
      %1854 = vrot.lane.b32.xlu0 %v1782, 28
      %v1855 = vpop.permute.xlu0 %1854
      %1856 = vrot.lane.b32.xlu0 %v1783, 28
      %v1857 = vpop.permute.xlu0 %1856
      %1858 = vrot.lane.b32.xlu0 %v1784, 28
      %v1859 = vpop.permute.xlu0 %1858
      %1860 = vrot.lane.b32.xlu0 %v1785, 28
      %v1861 = vpop.permute.xlu0 %1860
      %1862 = vrot.lane.b32.xlu0 %v1786, 28
      %v1863 = vpop.permute.xlu0 %1862
      %1864 = vrot.lane.b32.xlu0 %v1787, 28
      %v1865 = vpop.permute.xlu0 %1864
      %1866 = vrot.lane.b32.xlu0 %v1788, 28
      %v1867 = vpop.permute.xlu0 %1866
      %1868 = vrot.lane.b32.xlu0 %v1789, 28
      %v1869 = vpop.permute.xlu0 %1868
      %1870 = vrot.lane.b32.xlu0 %v1790, 28
      %v1871 = vpop.permute.xlu0 %1870
      %1872 = vrot.lane.b32.xlu0 %v1791, 28
      %v1873 = vpop.permute.xlu0 %1872
      %1874 = vrot.lane.b32.xlu0 %v1792, 28
      %v1875 = vpop.permute.xlu0 %1874
      %1876 = vrot.lane.b32.xlu0 %v1793, 28
      %v1877 = vpop.permute.xlu0 %1876
      %1878 = vrot.lane.b32.xlu0 %v1794, 28
      %v1879 = vpop.permute.xlu0 %1878
      %1880 = vrot.lane.b32.xlu0 %v1795, 28
      %v1881 = vpop.permute.xlu0 %1880
      %1882 = vrot.lane.b32.xlu0 %v1796, 28
      %v1883 = vpop.permute.xlu0 %1882
      %1884 = vrot.lane.b32.xlu0 %v1797, 28
      %v1885 = vpop.permute.xlu0 %1884
      %1886 = vrot.lane.b32.xlu0 %v1798, 28
      %v1887 = vpop.permute.xlu0 %1886
      %1888 = vrot.lane.b32.xlu0 %v1799, 28
      %v1889 = vpop.permute.xlu0 %1888
      %1890 = vrot.lane.b32.xlu0 %v1800, 28
      %v1891 = vpop.permute.xlu0 %1890
      %1892 = vrot.lane.b32.xlu0 %v1801, 28
      %v1893 = vpop.permute.xlu0 %1892
      %1894 = vrot.lane.b32.xlu0 %v1802, 28
      %v1895 = vpop.permute.xlu0 %1894
      %1896 = vrot.lane.b32.xlu0 %v1803, 28
      %v1897 = vpop.permute.xlu0 %1896
      %1898 = vrot.lane.b32.xlu0 %v1804, 28
      %v1899 = vpop.permute.xlu0 %1898
      %1900 = vrot.lane.b32.xlu0 %v1805, 28
      %v1901 = vpop.permute.xlu0 %1900
      %vm1934 = vcmask 257248
      %1935 = vst.msk [vmem:[#allocation3] sm:$0xf] %vm1934, %v1839
      %1936 = vst.msk [vmem:[#allocation3 + $0x4] sm:$0xf] %vm1934, %v1841
      %1937 = vst.msk [vmem:[#allocation3 + $0x8] sm:$0xf] %vm1934, %v1843
      %1938 = vst.msk [vmem:[#allocation3 + $0xc] sm:$0xf] %vm1934, %v1845
      %1939 = vst.msk [vmem:[#allocation3 + $0x10] sm:$0xf] %vm1934, %v1847
      %1940 = vst.msk [vmem:[#allocation3 + $0x14] sm:$0xf] %vm1934, %v1849
      %1941 = vst.msk [vmem:[#allocation3 + $0x18] sm:$0xf] %vm1934, %v1851
      %1942 = vst.msk [vmem:[#allocation3 + $0x1c] sm:$0xf] %vm1934, %v1853
      %1943 = vst.msk [vmem:[#allocation3 + $0x20] sm:$0xf] %vm1934, %v1855
      %1944 = vst.msk [vmem:[#allocation3 + $0x24] sm:$0xf] %vm1934, %v1857
      %1945 = vst.msk [vmem:[#allocation3 + $0x28] sm:$0xf] %vm1934, %v1859
      %1946 = vst.msk [vmem:[#allocation3 + $0x2c] sm:$0xf] %vm1934, %v1861
      %1947 = vst.msk [vmem:[#allocation3 + $0x30] sm:$0xf] %vm1934, %v1863
      %1948 = vst.msk [vmem:[#allocation3 + $0x34] sm:$0xf] %vm1934, %v1865
      %1949 = vst.msk [vmem:[#allocation3 + $0x38] sm:$0xf] %vm1934, %v1867
      %1950 = vst.msk [vmem:[#allocation3 + $0x3c] sm:$0xf] %vm1934, %v1869
      %1951 = vst.msk [vmem:[#allocation3 + $0x40] sm:$0xf] %vm1934, %v1871
      %1952 = vst.msk [vmem:[#allocation3 + $0x44] sm:$0xf] %vm1934, %v1873
      %1953 = vst.msk [vmem:[#allocation3 + $0x48] sm:$0xf] %vm1934, %v1875
      %1954 = vst.msk [vmem:[#allocation3 + $0x4c] sm:$0xf] %vm1934, %v1877
      %1955 = vst.msk [vmem:[#allocation3 + $0x50] sm:$0xf] %vm1934, %v1879
      %1956 = vst.msk [vmem:[#allocation3 + $0x54] sm:$0xf] %vm1934, %v1881
      %1957 = vst.msk [vmem:[#allocation3 + $0x58] sm:$0xf] %vm1934, %v1883
      %1958 = vst.msk [vmem:[#allocation3 + $0x5c] sm:$0xf] %vm1934, %v1885
      %1959 = vst.msk [vmem:[#allocation3 + $0x60] sm:$0xf] %vm1934, %v1887
      %1960 = vst.msk [vmem:[#allocation3 + $0x64] sm:$0xf] %vm1934, %v1889
      %1961 = vst.msk [vmem:[#allocation3 + $0x68] sm:$0xf] %vm1934, %v1891
      %1962 = vst.msk [vmem:[#allocation3 + $0x6c] sm:$0xf] %vm1934, %v1893
      %1963 = vst.msk [vmem:[#allocation3 + $0x70] sm:$0xf] %vm1934, %v1895
      %1964 = vst.msk [vmem:[#allocation3 + $0x74] sm:$0xf] %vm1934, %v1897
      %1965 = vst.msk [vmem:[#allocation3 + $0x78] sm:$0xf] %vm1934, %v1899
      %1966 = vst.msk [vmem:[#allocation3 + $0x7c] sm:$0xf] %vm1934, %v1901
      %v1967 = vld [vmem:[%s1516 + $0x2] sm:$0xff]
      %v1968 = vld [vmem:[%s1516 + $0xa] sm:$0xff]
      %v1969 = vld [vmem:[%s1516 + $0x1a] sm:$0xff]
      %v1970 = vld [vmem:[%s1516 + $0x22] sm:$0xff]
      %v1971 = vld [vmem:[%s1516 + $0x32] sm:$0xff]
      %v1972 = vld [vmem:[%s1516 + $0x3a] sm:$0xff]
      %v1973 = vld [vmem:[%s1516 + $0x4a] sm:$0xff]
      %v1974 = vld [vmem:[%s1516 + $0x52] sm:$0xff]
      %v1975 = vld [vmem:[%s1516 + $0x62] sm:$0xff]
      %v1976 = vld [vmem:[%s1516 + $0x6a] sm:$0xff]
      %v1977 = vld [vmem:[%s1516 + $0x7a] sm:$0xff]
      %v1978 = vld [vmem:[%s1516 + $0x82] sm:$0xff]
      %v1979 = vld [vmem:[%s1516 + $0x92] sm:$0xff]
      %v1980 = vld [vmem:[%s1516 + $0x9a] sm:$0xff]
      %v1981 = vld [vmem:[%s1516 + $0xaa] sm:$0xff]
      %v1982 = vld [vmem:[%s1516 + $0xb2] sm:$0xff]
      %v1983 = vld [vmem:[%s1516 + $0xc2] sm:$0xff]
      %v1984 = vld [vmem:[%s1516 + $0xca] sm:$0xff]
      %v1985 = vld [vmem:[%s1516 + $0xda] sm:$0xff]
      %v1986 = vld [vmem:[%s1516 + $0xe2] sm:$0xff]
      %v1987 = vld [vmem:[%s1516 + $0xf2] sm:$0xff]
      %v1988 = vld [vmem:[%s1516 + $0xfa] sm:$0xff]
      %v1989 = vld [vmem:[%s1516 + $0x10a] sm:$0xff]
      %v1990 = vld [vmem:[%s1516 + $0x112] sm:$0xff]
      %v1991 = vld [vmem:[%s1516 + $0x122] sm:$0xff]
      %v1992 = vld [vmem:[%s1516 + $0x12a] sm:$0xff]
      %v1993 = vld [vmem:[%s1516 + $0x13a] sm:$0xff]
      %v1994 = vld [vmem:[%s1516 + $0x142] sm:$0xff]
      %v1995 = vld [vmem:[%s1516 + $0x152] sm:$0xff]
      %v1996 = vld [vmem:[%s1516 + $0x15a] sm:$0xff]
      %v1997 = vld [vmem:[%s1516 + $0x16a] sm:$0xff]
      %v1998 = vld [vmem:[%s1516 + $0x172] sm:$0xff]
      %v1999 = vpack.c.bf16 %v1967, %v1967
      %v2000 = vpack.c.bf16 %v1968, %v1968
      %v2001 = vpack.c.bf16 %v1969, %v1969
      %v2002 = vpack.c.bf16 %v1970, %v1970
      %v2003 = vpack.c.bf16 %v1971, %v1971
      %v2004 = vpack.c.bf16 %v1972, %v1972
      %v2005 = vpack.c.bf16 %v1973, %v1973
      %v2006 = vpack.c.bf16 %v1974, %v1974
      %v2007 = vpack.c.bf16 %v1975, %v1975
      %v2008 = vpack.c.bf16 %v1976, %v1976
      %v2009 = vpack.c.bf16 %v1977, %v1977
      %v2010 = vpack.c.bf16 %v1978, %v1978
      %v2011 = vpack.c.bf16 %v1979, %v1979
      %v2012 = vpack.c.bf16 %v1980, %v1980
      %v2013 = vpack.c.bf16 %v1981, %v1981
      %v2014 = vpack.c.bf16 %v1982, %v1982
      %v2015 = vpack.c.bf16 %v1983, %v1983
      %v2016 = vpack.c.bf16 %v1984, %v1984
      %v2017 = vpack.c.bf16 %v1985, %v1985
      %v2018 = vpack.c.bf16 %v1986, %v1986
      %v2019 = vpack.c.bf16 %v1987, %v1987
      %v2020 = vpack.c.bf16 %v1988, %v1988
      %v2021 = vpack.c.bf16 %v1989, %v1989
      %v2022 = vpack.c.bf16 %v1990, %v1990
      %v2023 = vpack.c.bf16 %v1991, %v1991
      %v2024 = vpack.c.bf16 %v1992, %v1992
      %v2025 = vpack.c.bf16 %v1993, %v1993
      %v2026 = vpack.c.bf16 %v1994, %v1994
      %v2027 = vpack.c.bf16 %v1995, %v1995
      %v2028 = vpack.c.bf16 %v1996, %v1996
      %v2029 = vpack.c.bf16 %v1997, %v1997
      %v2030 = vpack.c.bf16 %v1998, %v1998
      %2063 = vrot.lane.b32.xlu0 %v1999, 32
      %v2064 = vpop.permute.xlu0 %2063
      %2065 = vrot.lane.b32.xlu0 %v2000, 32
      %v2066 = vpop.permute.xlu0 %2065
      %2067 = vrot.lane.b32.xlu0 %v2001, 32
      %v2068 = vpop.permute.xlu0 %2067
      %2069 = vrot.lane.b32.xlu0 %v2002, 32
      %v2070 = vpop.permute.xlu0 %2069
      %2071 = vrot.lane.b32.xlu0 %v2003, 32
      %v2072 = vpop.permute.xlu0 %2071
      %2073 = vrot.lane.b32.xlu0 %v2004, 32
      %v2074 = vpop.permute.xlu0 %2073
      %2075 = vrot.lane.b32.xlu0 %v2005, 32
      %v2076 = vpop.permute.xlu0 %2075
      %2077 = vrot.lane.b32.xlu0 %v2006, 32
      %v2078 = vpop.permute.xlu0 %2077
      %2079 = vrot.lane.b32.xlu0 %v2007, 32
      %v2080 = vpop.permute.xlu0 %2079
      %2081 = vrot.lane.b32.xlu0 %v2008, 32
      %v2082 = vpop.permute.xlu0 %2081
      %2083 = vrot.lane.b32.xlu0 %v2009, 32
      %v2084 = vpop.permute.xlu0 %2083
      %2085 = vrot.lane.b32.xlu0 %v2010, 32
      %v2086 = vpop.permute.xlu0 %2085
      %2087 = vrot.lane.b32.xlu0 %v2011, 32
      %v2088 = vpop.permute.xlu0 %2087
      %2089 = vrot.lane.b32.xlu0 %v2012, 32
      %v2090 = vpop.permute.xlu0 %2089
      %2091 = vrot.lane.b32.xlu0 %v2013, 32
      %v2092 = vpop.permute.xlu0 %2091
      %2093 = vrot.lane.b32.xlu0 %v2014, 32
      %v2094 = vpop.permute.xlu0 %2093
      %2095 = vrot.lane.b32.xlu0 %v2015, 32
      %v2096 = vpop.permute.xlu0 %2095
      %2097 = vrot.lane.b32.xlu0 %v2016, 32
      %v2098 = vpop.permute.xlu0 %2097
      %2099 = vrot.lane.b32.xlu0 %v2017, 32
      %v2100 = vpop.permute.xlu0 %2099
      %2101 = vrot.lane.b32.xlu0 %v2018, 32
      %v2102 = vpop.permute.xlu0 %2101
      %2103 = vrot.lane.b32.xlu0 %v2019, 32
      %v2104 = vpop.permute.xlu0 %2103
      %2105 = vrot.lane.b32.xlu0 %v2020, 32
      %v2106 = vpop.permute.xlu0 %2105
      %2107 = vrot.lane.b32.xlu0 %v2021, 32
      %v2108 = vpop.permute.xlu0 %2107
      %2109 = vrot.lane.b32.xlu0 %v2022, 32
      %v2110 = vpop.permute.xlu0 %2109
      %2111 = vrot.lane.b32.xlu0 %v2023, 32
      %v2112 = vpop.permute.xlu0 %2111
      %2113 = vrot.lane.b32.xlu0 %v2024, 32
      %v2114 = vpop.permute.xlu0 %2113
      %2115 = vrot.lane.b32.xlu0 %v2025, 32
      %v2116 = vpop.permute.xlu0 %2115
      %2117 = vrot.lane.b32.xlu0 %v2026, 32
      %v2118 = vpop.permute.xlu0 %2117
      %2119 = vrot.lane.b32.xlu0 %v2027, 32
      %v2120 = vpop.permute.xlu0 %2119
      %2121 = vrot.lane.b32.xlu0 %v2028, 32
      %v2122 = vpop.permute.xlu0 %2121
      %2123 = vrot.lane.b32.xlu0 %v2029, 32
      %v2124 = vpop.permute.xlu0 %2123
      %2125 = vrot.lane.b32.xlu0 %v2030, 32
      %v2126 = vpop.permute.xlu0 %2125
      %vm2159 = vcmask 290048
      %2160 = vst.msk [vmem:[#allocation3] sm:$0xf] %vm2159, %v2064
      %2161 = vst.msk [vmem:[#allocation3 + $0x4] sm:$0xf] %vm2159, %v2066
      %2162 = vst.msk [vmem:[#allocation3 + $0x8] sm:$0xf] %vm2159, %v2068
      %2163 = vst.msk [vmem:[#allocation3 + $0xc] sm:$0xf] %vm2159, %v2070
      %2164 = vst.msk [vmem:[#allocation3 + $0x10] sm:$0xf] %vm2159, %v2072
      %2165 = vst.msk [vmem:[#allocation3 + $0x14] sm:$0xf] %vm2159, %v2074
      %2166 = vst.msk [vmem:[#allocation3 + $0x18] sm:$0xf] %vm2159, %v2076
      %2167 = vst.msk [vmem:[#allocation3 + $0x1c] sm:$0xf] %vm2159, %v2078
      %2168 = vst.msk [vmem:[#allocation3 + $0x20] sm:$0xf] %vm2159, %v2080
      %2169 = vst.msk [vmem:[#allocation3 + $0x24] sm:$0xf] %vm2159, %v2082
      %2170 = vst.msk [vmem:[#allocation3 + $0x28] sm:$0xf] %vm2159, %v2084
      %2171 = vst.msk [vmem:[#allocation3 + $0x2c] sm:$0xf] %vm2159, %v2086
      %2172 = vst.msk [vmem:[#allocation3 + $0x30] sm:$0xf] %vm2159, %v2088
      %2173 = vst.msk [vmem:[#allocation3 + $0x34] sm:$0xf] %vm2159, %v2090
      %2174 = vst.msk [vmem:[#allocation3 + $0x38] sm:$0xf] %vm2159, %v2092
      %2175 = vst.msk [vmem:[#allocation3 + $0x3c] sm:$0xf] %vm2159, %v2094
      %2176 = vst.msk [vmem:[#allocation3 + $0x40] sm:$0xf] %vm2159, %v2096
      %2177 = vst.msk [vmem:[#allocation3 + $0x44] sm:$0xf] %vm2159, %v2098
      %2178 = vst.msk [vmem:[#allocation3 + $0x48] sm:$0xf] %vm2159, %v2100
      %2179 = vst.msk [vmem:[#allocation3 + $0x4c] sm:$0xf] %vm2159, %v2102
      %2180 = vst.msk [vmem:[#allocation3 + $0x50] sm:$0xf] %vm2159, %v2104
      %2181 = vst.msk [vmem:[#allocation3 + $0x54] sm:$0xf] %vm2159, %v2106
      %2182 = vst.msk [vmem:[#allocation3 + $0x58] sm:$0xf] %vm2159, %v2108
      %2183 = vst.msk [vmem:[#allocation3 + $0x5c] sm:$0xf] %vm2159, %v2110
      %2184 = vst.msk [vmem:[#allocation3 + $0x60] sm:$0xf] %vm2159, %v2112
      %2185 = vst.msk [vmem:[#allocation3 + $0x64] sm:$0xf] %vm2159, %v2114
      %2186 = vst.msk [vmem:[#allocation3 + $0x68] sm:$0xf] %vm2159, %v2116
      %2187 = vst.msk [vmem:[#allocation3 + $0x6c] sm:$0xf] %vm2159, %v2118
      %2188 = vst.msk [vmem:[#allocation3 + $0x70] sm:$0xf] %vm2159, %v2120
      %2189 = vst.msk [vmem:[#allocation3 + $0x74] sm:$0xf] %vm2159, %v2122
      %2190 = vst.msk [vmem:[#allocation3 + $0x78] sm:$0xf] %vm2159, %v2124
      %2191 = vst.msk [vmem:[#allocation3 + $0x7c] sm:$0xf] %vm2159, %v2126
      %v2192 = vld [vmem:[#allocation3] sm:$0xf]
      %v2193 = vld [vmem:[#allocation3 + $0x4] sm:$0xf]
      %v2194 = vld [vmem:[#allocation3 + $0x8] sm:$0xf]
      %v2195 = vld [vmem:[#allocation3 + $0xc] sm:$0xf]
      %v2196 = vld [vmem:[#allocation3 + $0x10] sm:$0xf]
      %v2197 = vld [vmem:[#allocation3 + $0x14] sm:$0xf]
      %v2198 = vld [vmem:[#allocation3 + $0x18] sm:$0xf]
      %v2199 = vld [vmem:[#allocation3 + $0x1c] sm:$0xf]
      %v2200 = vld [vmem:[#allocation3 + $0x20] sm:$0xf]
      %v2201 = vld [vmem:[#allocation3 + $0x24] sm:$0xf]
      %v2202 = vld [vmem:[#allocation3 + $0x28] sm:$0xf]
      %v2203 = vld [vmem:[#allocation3 + $0x2c] sm:$0xf]
      %v2204 = vld [vmem:[#allocation3 + $0x30] sm:$0xf]
      %v2205 = vld [vmem:[#allocation3 + $0x34] sm:$0xf]
      %v2206 = vld [vmem:[#allocation3 + $0x38] sm:$0xf]
      %v2207 = vld [vmem:[#allocation3 + $0x3c] sm:$0xf]
      %v2208 = vld [vmem:[#allocation3 + $0x40] sm:$0xf]
      %v2209 = vld [vmem:[#allocation3 + $0x44] sm:$0xf]
      %v2210 = vld [vmem:[#allocation3 + $0x48] sm:$0xf]
      %v2211 = vld [vmem:[#allocation3 + $0x4c] sm:$0xf]
      %v2212 = vld [vmem:[#allocation3 + $0x50] sm:$0xf]
      %v2213 = vld [vmem:[#allocation3 + $0x54] sm:$0xf]
      %v2214 = vld [vmem:[#allocation3 + $0x58] sm:$0xf]
      %v2215 = vld [vmem:[#allocation3 + $0x5c] sm:$0xf]
      %v2216 = vld [vmem:[#allocation3 + $0x60] sm:$0xf]
      %v2217 = vld [vmem:[#allocation3 + $0x64] sm:$0xf]
      %v2218 = vld [vmem:[#allocation3 + $0x68] sm:$0xf]
      %v2219 = vld [vmem:[#allocation3 + $0x6c] sm:$0xf]
      %v2220 = vld [vmem:[#allocation3 + $0x70] sm:$0xf]
      %v2221 = vld [vmem:[#allocation3 + $0x74] sm:$0xf]
      %v2222 = vld [vmem:[#allocation3 + $0x78] sm:$0xf]
      %v2223 = vld [vmem:[#allocation3 + $0x7c] sm:$0xf]
      %v2224 = vld [vmem:[%s1] sm:$0xf]
      %v2225 = vld [vmem:[%s1 + $0x4] sm:$0xf]
      %v2226 = vld [vmem:[%s1 + $0x8] sm:$0xf]
      %v2227 = vld [vmem:[%s1 + $0xc] sm:$0xf]
      %v2228 = vld [vmem:[%s1 + $0x10] sm:$0x3]
      %v2261 = vunpack.c.l.b16 %v2192
      %v2262 = vunpack.c.l.b16 %v2193
      %v2263 = vunpack.c.l.b16 %v2194
      %v2264 = vunpack.c.l.b16 %v2195
      %v2265 = vunpack.c.l.b16 %v2196
      %v2266 = vunpack.c.l.b16 %v2197
      %v2267 = vunpack.c.l.b16 %v2198
      %v2268 = vunpack.c.l.b16 %v2199
      %v2269 = vunpack.c.l.b16 %v2200
      %v2270 = vunpack.c.l.b16 %v2201
      %v2271 = vunpack.c.l.b16 %v2202
      %v2272 = vunpack.c.l.b16 %v2203
      %v2273 = vunpack.c.l.b16 %v2204
      %v2274 = vunpack.c.l.b16 %v2205
      %v2275 = vunpack.c.l.b16 %v2206
      %v2276 = vunpack.c.l.b16 %v2207
      %v2277 = vunpack.c.l.b16 %v2208
      %v2278 = vunpack.c.l.b16 %v2209
      %v2279 = vunpack.c.l.b16 %v2210
      %v2280 = vunpack.c.l.b16 %v2211
      %v2281 = vunpack.c.l.b16 %v2212
      %v2282 = vunpack.c.l.b16 %v2213
      %v2283 = vunpack.c.l.b16 %v2214
      %v2284 = vunpack.c.l.b16 %v2215
      %v2285 = vunpack.c.l.b16 %v2216
      %v2286 = vunpack.c.l.b16 %v2217
      %v2287 = vunpack.c.l.b16 %v2218
      %v2288 = vunpack.c.l.b16 %v2219
      %v2289 = vunpack.c.l.b16 %v2220
      %v2290 = vunpack.c.l.b16 %v2221
      %v2291 = vunpack.c.l.b16 %v2222
      %v2292 = vunpack.c.l.b16 %v2223
      %v2293 = vpack.c.b16 %v2262, %v2261
      %v2294 = vpack.c.b16 %v2264, %v2263
      %v2295 = vpack.c.b16 %v2266, %v2265
      %v2296 = vpack.c.b16 %v2268, %v2267
      %v2297 = vpack.c.b16 %v2270, %v2269
      %v2298 = vpack.c.b16 %v2272, %v2271
      %v2299 = vpack.c.b16 %v2274, %v2273
      %v2300 = vpack.c.b16 %v2276, %v2275
      %v2301 = vpack.c.b16 %v2278, %v2277
      %v2302 = vpack.c.b16 %v2280, %v2279
      %v2303 = vpack.c.b16 %v2282, %v2281
      %v2304 = vpack.c.b16 %v2284, %v2283
      %v2305 = vpack.c.b16 %v2286, %v2285
      %v2306 = vpack.c.b16 %v2288, %v2287
      %v2307 = vpack.c.b16 %v2290, %v2289
      %v2308 = vpack.c.b16 %v2292, %v2291
      %v2314 = vunpack.c.l.b16 %v2224
      %v2315 = vunpack.c.l.b16 %v2225
      %v2316 = vunpack.c.l.b16 %v2226
      %v2317 = vunpack.c.l.b16 %v2227
      %v2318 = vunpack.c.l.b16 %v2228
      %v2319 = vpack.c.b16 %v2315, %v2314
      %v2320 = vpack.c.b16 %v2317, %v2316
      %v2321 = vpack.c.b16 %v2318, %v2318
      %vm2324 = vcmask 293888
      %v2326 = vsel %vm2324, %v2293, 0
      %v2329 = vsel %vm2324, %v2294, 0
      %v2332 = vsel %vm2324, %v2295, 0
      %v2335 = vsel %vm2324, %v2296, 0
      %v2338 = vsel %vm2324, %v2297, 0
      %v2341 = vsel %vm2324, %v2298, 0
      %v2344 = vsel %vm2324, %v2299, 0
      %v2347 = vsel %vm2324, %v2300, 0
      %v2350 = vsel %vm2324, %v2301, 0
      %v2353 = vsel %vm2324, %v2302, 0
      %v2356 = vsel %vm2324, %v2303, 0
      %v2359 = vsel %vm2324, %v2304, 0
      %v2362 = vsel %vm2324, %v2305, 0
      %v2365 = vsel %vm2324, %v2306, 0
      %v2368 = vsel %vm2324, %v2307, 0
      %v2371 = vsel %vm2324, %v2308, 0
      %vm2373 = vcmask 1041408
      %v2375 = vsel %vm2373, %v2321, 0
      %2377 = vmatpush.bf16.msra.mxu0 0
      %2378 = vmatpush.bf16.msra.mxu0 0
      %2379 = vmatpush.bf16.msra.mxu0 0
      %2380 = vmatpush.bf16.msra.mxu0 0
      %2381 = vmatpush.bf16.msra.mxu0 0
      %2382 = vmatpush.bf16.msra.mxu0 %v2375
      %2383 = vmatpush.bf16.msra.mxu0 %v2320
      %2384 = vmatpush.bf16.msra.mxu0 %v2319
      %2385 = vmatmul.bf16.gmra.mxu0 %v2326
      %v2386 = vpop.f32.mrf.mxu0
      %v2387 = vadd.f32 0.0, %v2386
      %v2388 = vpop.f32.mrf.mxu0
      %v2389 = vadd.f32 0.0, %v2388
      %2390 = vmatmul.bf16.gmra.mxu0 %v2329
      %v2391 = vpop.f32.mrf.mxu0
      %v2392 = vadd.f32 0.0, %v2391
      %v2393 = vpop.f32.mrf.mxu0
      %v2394 = vadd.f32 0.0, %v2393
      %2395 = vmatmul.bf16.gmra.mxu0 %v2332
      %v2396 = vpop.f32.mrf.mxu0
      %v2397 = vadd.f32 0.0, %v2396
      %v2398 = vpop.f32.mrf.mxu0
      %v2399 = vadd.f32 0.0, %v2398
      %2400 = vmatmul.bf16.gmra.mxu0 %v2335
      %v2401 = vpop.f32.mrf.mxu0
      %v2402 = vadd.f32 0.0, %v2401
      %v2403 = vpop.f32.mrf.mxu0
      %v2404 = vadd.f32 0.0, %v2403
      %2405 = vmatmul.bf16.gmra.mxu0 %v2338
      %v2406 = vpop.f32.mrf.mxu0
      %v2407 = vadd.f32 0.0, %v2406
      %v2408 = vpop.f32.mrf.mxu0
      %v2409 = vadd.f32 0.0, %v2408
      %2410 = vmatmul.bf16.gmra.mxu0 %v2341
      %v2411 = vpop.f32.mrf.mxu0
      %v2412 = vadd.f32 0.0, %v2411
      %v2413 = vpop.f32.mrf.mxu0
      %v2414 = vadd.f32 0.0, %v2413
      %2415 = vmatmul.bf16.gmra.mxu0 %v2344
      %v2416 = vpop.f32.mrf.mxu0
      %v2417 = vadd.f32 0.0, %v2416
      %v2418 = vpop.f32.mrf.mxu0
      %v2419 = vadd.f32 0.0, %v2418
      %2420 = vmatmul.bf16.gmra.mxu0 %v2347
      %v2421 = vpop.f32.mrf.mxu0
      %v2422 = vadd.f32 0.0, %v2421
      %v2423 = vpop.f32.mrf.mxu0
      %v2424 = vadd.f32 0.0, %v2423
      %2425 = vmatmul.bf16.gmra.mxu0 %v2350
      %v2426 = vpop.f32.mrf.mxu0
      %v2427 = vadd.f32 0.0, %v2426
      %v2428 = vpop.f32.mrf.mxu0
      %v2429 = vadd.f32 0.0, %v2428
      %2430 = vmatmul.bf16.gmra.mxu0 %v2353
      %v2431 = vpop.f32.mrf.mxu0
      %v2432 = vadd.f32 0.0, %v2431
      %v2433 = vpop.f32.mrf.mxu0
      %v2434 = vadd.f32 0.0, %v2433
      %2435 = vmatmul.bf16.gmra.mxu0 %v2356
      %v2436 = vpop.f32.mrf.mxu0
      %v2437 = vadd.f32 0.0, %v2436
      %v2438 = vpop.f32.mrf.mxu0
      %v2439 = vadd.f32 0.0, %v2438
      %2440 = vmatmul.bf16.gmra.mxu0 %v2359
      %v2441 = vpop.f32.mrf.mxu0
      %v2442 = vadd.f32 0.0, %v2441
      %v2443 = vpop.f32.mrf.mxu0
      %v2444 = vadd.f32 0.0, %v2443
      %2445 = vmatmul.bf16.gmra.mxu0 %v2362
      %v2446 = vpop.f32.mrf.mxu0
      %v2447 = vadd.f32 0.0, %v2446
      %v2448 = vpop.f32.mrf.mxu0
      %v2449 = vadd.f32 0.0, %v2448
      %2450 = vmatmul.bf16.gmra.mxu0 %v2365
      %v2451 = vpop.f32.mrf.mxu0
      %v2452 = vadd.f32 0.0, %v2451
      %v2453 = vpop.f32.mrf.mxu0
      %v2454 = vadd.f32 0.0, %v2453
      %2455 = vmatmul.bf16.gmra.mxu0 %v2368
      %v2456 = vpop.f32.mrf.mxu0
      %v2457 = vadd.f32 0.0, %v2456
      %v2458 = vpop.f32.mrf.mxu0
      %v2459 = vadd.f32 0.0, %v2458
      %2460 = vmatmul.bf16.gmra.mxu0 %v2371
      %v2461 = vpop.f32.mrf.mxu0
      %v2462 = vadd.f32 0.0, %v2461
      %v2463 = vpop.f32.mrf.mxu0
      %v2464 = vadd.f32 0.0, %v2463
      %2465 = vdwg.mxu0
      %v2466 = vsel %vm215, %v2387, 0.0
      %v2467 = vsel %vm215, %v2389, 0.0
      %v2468 = vadd.f32 %v2466, %v2467
      %v2469 = vsel %vm215, %v2392, 0.0
      %v2470 = vadd.f32 %v2468, %v2469
      %v2471 = vsel %vm215, %v2394, 0.0
      %v2472 = vadd.f32 %v2470, %v2471
      %v2473 = vsel %vm215, %v2397, 0.0
      %v2474 = vadd.f32 %v2472, %v2473
      %v2475 = vsel %vm215, %v2399, 0.0
      %v2476 = vadd.f32 %v2474, %v2475
      %v2477 = vsel %vm215, %v2402, 0.0
      %v2478 = vadd.f32 %v2476, %v2477
      %v2479 = vsel %vm215, %v2404, 0.0
      %v2480 = vadd.f32 %v2478, %v2479
      %v2481 = vsel %vm215, %v2407, 0.0
      %v2482 = vadd.f32 %v2480, %v2481
      %v2483 = vsel %vm215, %v2409, 0.0
      %v2484 = vadd.f32 %v2482, %v2483
      %v2485 = vsel %vm215, %v2412, 0.0
      %v2486 = vadd.f32 %v2484, %v2485
      %v2487 = vsel %vm215, %v2414, 0.0
      %v2488 = vadd.f32 %v2486, %v2487
      %v2489 = vsel %vm215, %v2417, 0.0
      %v2490 = vadd.f32 %v2488, %v2489
      %v2491 = vsel %vm215, %v2419, 0.0
      %v2492 = vadd.f32 %v2490, %v2491
      %v2493 = vsel %vm215, %v2422, 0.0
      %v2494 = vadd.f32 %v2492, %v2493
      %v2495 = vsel %vm215, %v2424, 0.0
      %v2496 = vadd.f32 %v2494, %v2495
      %v2497 = vsel %vm215, %v2427, 0.0
      %v2498 = vadd.f32 %v2496, %v2497
      %v2499 = vsel %vm215, %v2429, 0.0
      %v2500 = vadd.f32 %v2498, %v2499
      %v2501 = vsel %vm215, %v2432, 0.0
      %v2502 = vadd.f32 %v2500, %v2501
      %v2503 = vsel %vm215, %v2434, 0.0
      %v2504 = vadd.f32 %v2502, %v2503
      %v2505 = vsel %vm215, %v2437, 0.0
      %v2506 = vadd.f32 %v2504, %v2505
      %v2507 = vsel %vm215, %v2439, 0.0
      %v2508 = vadd.f32 %v2506, %v2507
      %v2509 = vsel %vm215, %v2442, 0.0
      %v2510 = vadd.f32 %v2508, %v2509
      %v2511 = vsel %vm215, %v2444, 0.0
      %v2512 = vadd.f32 %v2510, %v2511
      %v2513 = vsel %vm215, %v2447, 0.0
      %v2514 = vadd.f32 %v2512, %v2513
      %v2515 = vsel %vm215, %v2449, 0.0
      %v2516 = vadd.f32 %v2514, %v2515
      %v2517 = vsel %vm215, %v2452, 0.0
      %v2518 = vadd.f32 %v2516, %v2517
      %v2519 = vsel %vm215, %v2454, 0.0
      %v2520 = vadd.f32 %v2518, %v2519
      %v2521 = vsel %vm215, %v2457, 0.0
      %v2522 = vadd.f32 %v2520, %v2521
      %v2523 = vsel %vm215, %v2459, 0.0
      %v2524 = vadd.f32 %v2522, %v2523
      %v2525 = vsel %vm215, %v2462, 0.0
      %v2526 = vadd.f32 %v2524, %v2525
      %v2527 = vsel %vm215, %v2464, 0.0
      %v2528 = vadd.f32 %v2526, %v2527
      %v2529 = vrot.slane %v2528, 4
      %v2530 = vadd.f32 %v2528, %v2529
      %v2531 = vrot.slane %v2530, 2
      %v2532 = vadd.f32 %v2530, %v2531
      %v2533 = vrot.slane %v2532, 1
      %v2534 = vadd.f32 %v2532, %v2533
      %v2535 = vrcp.pop 256.0
      %v2536 = vmul.f32 256.0, %v2535
      %v2537 = vsub.f32 1.0, %v2536
      %v2538 = vmul.f32 %v2535, %v2537
      %v2539 = vadd.f32 %v2535, %v2538
      %vm2540 = vweird.f32 %v2535
      %v2541 = vsel %vm2540, %v2535, %v2539
      %v2542 = vmul.f32 %v2534, %v2541
      %v2543 = vsub.f32 %v2387, %v2542
      %v2544 = vsub.f32 %v2389, %v2542
      %v2545 = vsub.f32 %v2392, %v2542
      %v2546 = vsub.f32 %v2394, %v2542
      %v2547 = vsub.f32 %v2397, %v2542
      %v2548 = vsub.f32 %v2399, %v2542
      %v2549 = vsub.f32 %v2402, %v2542
      %v2550 = vsub.f32 %v2404, %v2542
      %v2551 = vsub.f32 %v2407, %v2542
      %v2552 = vsub.f32 %v2409, %v2542
      %v2553 = vsub.f32 %v2412, %v2542
      %v2554 = vsub.f32 %v2414, %v2542
      %v2555 = vsub.f32 %v2417, %v2542
      %v2556 = vsub.f32 %v2419, %v2542
      %v2557 = vsub.f32 %v2422, %v2542
      %v2558 = vsub.f32 %v2424, %v2542
      %v2559 = vsub.f32 %v2427, %v2542
      %v2560 = vsub.f32 %v2429, %v2542
      %v2561 = vsub.f32 %v2432, %v2542
      %v2562 = vsub.f32 %v2434, %v2542
      %v2563 = vsub.f32 %v2437, %v2542
      %v2564 = vsub.f32 %v2439, %v2542
      %v2565 = vsub.f32 %v2442, %v2542
      %v2566 = vsub.f32 %v2444, %v2542
      %v2567 = vsub.f32 %v2447, %v2542
      %v2568 = vsub.f32 %v2449, %v2542
      %v2569 = vsub.f32 %v2452, %v2542
      %v2570 = vsub.f32 %v2454, %v2542
      %v2571 = vsub.f32 %v2457, %v2542
      %v2572 = vsub.f32 %v2459, %v2542
      %v2573 = vsub.f32 %v2462, %v2542
      %v2574 = vsub.f32 %v2464, %v2542
      %v2575 = vmul.f32 %v2543, %v2543
      %v2576 = vmul.f32 %v2544, %v2544
      %v2577 = vmul.f32 %v2545, %v2545
      %v2578 = vmul.f32 %v2546, %v2546
      %v2579 = vmul.f32 %v2547, %v2547
      %v2580 = vmul.f32 %v2548, %v2548
      %v2581 = vmul.f32 %v2549, %v2549
      %v2582 = vmul.f32 %v2550, %v2550
      %v2583 = vmul.f32 %v2551, %v2551
      %v2584 = vmul.f32 %v2552, %v2552
      %v2585 = vmul.f32 %v2553, %v2553
      %v2586 = vmul.f32 %v2554, %v2554
      %v2587 = vmul.f32 %v2555, %v2555
      %v2588 = vmul.f32 %v2556, %v2556
      %v2589 = vmul.f32 %v2557, %v2557
      %v2590 = vmul.f32 %v2558, %v2558
      %v2591 = vmul.f32 %v2559, %v2559
      %v2592 = vmul.f32 %v2560, %v2560
      %v2593 = vmul.f32 %v2561, %v2561
      %v2594 = vmul.f32 %v2562, %v2562
      %v2595 = vmul.f32 %v2563, %v2563
      %v2596 = vmul.f32 %v2564, %v2564
      %v2597 = vmul.f32 %v2565, %v2565
      %v2598 = vmul.f32 %v2566, %v2566
      %v2599 = vmul.f32 %v2567, %v2567
      %v2600 = vmul.f32 %v2568, %v2568
      %v2601 = vmul.f32 %v2569, %v2569
      %v2602 = vmul.f32 %v2570, %v2570
      %v2603 = vmul.f32 %v2571, %v2571
      %v2604 = vmul.f32 %v2572, %v2572
      %v2605 = vmul.f32 %v2573, %v2573
      %v2606 = vmul.f32 %v2574, %v2574
      %v2607 = vsel %vm215, %v2575, 0.0
      %v2608 = vsel %vm215, %v2576, 0.0
      %v2609 = vadd.f32 %v2607, %v2608
      %v2610 = vsel %vm215, %v2577, 0.0
      %v2611 = vadd.f32 %v2609, %v2610
      %v2612 = vsel %vm215, %v2578, 0.0
      %v2613 = vadd.f32 %v2611, %v2612
      %v2614 = vsel %vm215, %v2579, 0.0
      %v2615 = vadd.f32 %v2613, %v2614
      %v2616 = vsel %vm215, %v2580, 0.0
      %v2617 = vadd.f32 %v2615, %v2616
      %v2618 = vsel %vm215, %v2581, 0.0
      %v2619 = vadd.f32 %v2617, %v2618
      %v2620 = vsel %vm215, %v2582, 0.0
      %v2621 = vadd.f32 %v2619, %v2620
      %v2622 = vsel %vm215, %v2583, 0.0
      %v2623 = vadd.f32 %v2621, %v2622
      %v2624 = vsel %vm215, %v2584, 0.0
      %v2625 = vadd.f32 %v2623, %v2624
      %v2626 = vsel %vm215, %v2585, 0.0
      %v2627 = vadd.f32 %v2625, %v2626
      %v2628 = vsel %vm215, %v2586, 0.0
      %v2629 = vadd.f32 %v2627, %v2628
      %v2630 = vsel %vm215, %v2587, 0.0
      %v2631 = vadd.f32 %v2629, %v2630
      %v2632 = vsel %vm215, %v2588, 0.0
      %v2633 = vadd.f32 %v2631, %v2632
      %v2634 = vsel %vm215, %v2589, 0.0
      %v2635 = vadd.f32 %v2633, %v2634
      %v2636 = vsel %vm215, %v2590, 0.0
      %v2637 = vadd.f32 %v2635, %v2636
      %v2638 = vsel %vm215, %v2591, 0.0
      %v2639 = vadd.f32 %v2637, %v2638
      %v2640 = vsel %vm215, %v2592, 0.0
      %v2641 = vadd.f32 %v2639, %v2640
      %v2642 = vsel %vm215, %v2593, 0.0
      %v2643 = vadd.f32 %v2641, %v2642
      %v2644 = vsel %vm215, %v2594, 0.0
      %v2645 = vadd.f32 %v2643, %v2644
      %v2646 = vsel %vm215, %v2595, 0.0
      %v2647 = vadd.f32 %v2645, %v2646
      %v2648 = vsel %vm215, %v2596, 0.0
      %v2649 = vadd.f32 %v2647, %v2648
      %v2650 = vsel %vm215, %v2597, 0.0
      %v2651 = vadd.f32 %v2649, %v2650
      %v2652 = vsel %vm215, %v2598, 0.0
      %v2653 = vadd.f32 %v2651, %v2652
      %v2654 = vsel %vm215, %v2599, 0.0
      %v2655 = vadd.f32 %v2653, %v2654
      %v2656 = vsel %vm215, %v2600, 0.0
      %v2657 = vadd.f32 %v2655, %v2656
      %v2658 = vsel %vm215, %v2601, 0.0
      %v2659 = vadd.f32 %v2657, %v2658
      %v2660 = vsel %vm215, %v2602, 0.0
      %v2661 = vadd.f32 %v2659, %v2660
      %v2662 = vsel %vm215, %v2603, 0.0
      %v2663 = vadd.f32 %v2661, %v2662
      %v2664 = vsel %vm215, %v2604, 0.0
      %v2665 = vadd.f32 %v2663, %v2664
      %v2666 = vsel %vm215, %v2605, 0.0
      %v2667 = vadd.f32 %v2665, %v2666
      %v2668 = vsel %vm215, %v2606, 0.0
      %v2669 = vadd.f32 %v2667, %v2668
      %v2670 = vrot.slane %v2669, 4
      %v2671 = vadd.f32 %v2669, %v2670
      %v2672 = vrot.slane %v2671, 2
      %v2673 = vadd.f32 %v2671, %v2672
      %v2674 = vrot.slane %v2673, 1
      %v2675 = vadd.f32 %v2673, %v2674
      %vm2676 = vcmask 1040384
      %v2677 = vsel %vm2676, %v2542, %v2675
      %2678 = vst.msk [vmem:[%s181] sm:$0x3] %vm218, %v2677
      %v2679 = vpack.c.bf16 %v2387, %v2387
      %v2680 = vpack.c.bf16 %v2389, %v2389
      %v2681 = vpack.c.bf16 %v2392, %v2392
      %v2682 = vpack.c.bf16 %v2394, %v2394
      %v2683 = vpack.c.bf16 %v2397, %v2397
      %v2684 = vpack.c.bf16 %v2399, %v2399
      %v2685 = vpack.c.bf16 %v2402, %v2402
      %v2686 = vpack.c.bf16 %v2404, %v2404
      %v2687 = vpack.c.bf16 %v2407, %v2407
      %v2688 = vpack.c.bf16 %v2409, %v2409
      %v2689 = vpack.c.bf16 %v2412, %v2412
      %v2690 = vpack.c.bf16 %v2414, %v2414
      %v2691 = vpack.c.bf16 %v2417, %v2417
      %v2692 = vpack.c.bf16 %v2419, %v2419
      %v2693 = vpack.c.bf16 %v2422, %v2422
      %v2694 = vpack.c.bf16 %v2424, %v2424
      %v2695 = vpack.c.bf16 %v2427, %v2427
      %v2696 = vpack.c.bf16 %v2429, %v2429
      %v2697 = vpack.c.bf16 %v2432, %v2432
      %v2698 = vpack.c.bf16 %v2434, %v2434
      %v2699 = vpack.c.bf16 %v2437, %v2437
      %v2700 = vpack.c.bf16 %v2439, %v2439
      %v2701 = vpack.c.bf16 %v2442, %v2442
      %v2702 = vpack.c.bf16 %v2444, %v2444
      %v2703 = vpack.c.bf16 %v2447, %v2447
      %v2704 = vpack.c.bf16 %v2449, %v2449
      %v2705 = vpack.c.bf16 %v2452, %v2452
      %v2706 = vpack.c.bf16 %v2454, %v2454
      %v2707 = vpack.c.bf16 %v2457, %v2457
      %v2708 = vpack.c.bf16 %v2459, %v2459
      %v2709 = vpack.c.bf16 %v2462, %v2462
      %v2710 = vpack.c.bf16 %v2464, %v2464
      %2711 = vst.msk [vmem:[%s177] sm:$0xf] %vm358, %v2679
      %2712 = vst.msk [vmem:[%s177 + $0x4] sm:$0xf] %vm358, %v2680
      %2713 = vst.msk [vmem:[%s177 + $0x8] sm:$0xf] %vm358, %v2681
      %2714 = vst.msk [vmem:[%s177 + $0xc] sm:$0xf] %vm358, %v2682
      %2715 = vst.msk [vmem:[%s177 + $0x10] sm:$0xf] %vm358, %v2683
      %2716 = vst.msk [vmem:[%s177 + $0x14] sm:$0xf] %vm358, %v2684
      %2717 = vst.msk [vmem:[%s177 + $0x18] sm:$0xf] %vm358, %v2685
      %2718 = vst.msk [vmem:[%s177 + $0x1c] sm:$0xf] %vm358, %v2686
      %2719 = vst.msk [vmem:[%s177 + $0x20] sm:$0xf] %vm358, %v2687
      %2720 = vst.msk [vmem:[%s177 + $0x24] sm:$0xf] %vm358, %v2688
      %2721 = vst.msk [vmem:[%s177 + $0x28] sm:$0xf] %vm358, %v2689
      %2722 = vst.msk [vmem:[%s177 + $0x2c] sm:$0xf] %vm358, %v2690
      %2723 = vst.msk [vmem:[%s177 + $0x30] sm:$0xf] %vm358, %v2691
      %2724 = vst.msk [vmem:[%s177 + $0x34] sm:$0xf] %vm358, %v2692
      %2725 = vst.msk [vmem:[%s177 + $0x38] sm:$0xf] %vm358, %v2693
      %2726 = vst.msk [vmem:[%s177 + $0x3c] sm:$0xf] %vm358, %v2694
      %2727 = vst.msk [vmem:[%s177 + $0x40] sm:$0xf] %vm358, %v2695
      %2728 = vst.msk [vmem:[%s177 + $0x44] sm:$0xf] %vm358, %v2696
      %2729 = vst.msk [vmem:[%s177 + $0x48] sm:$0xf] %vm358, %v2697
      %2730 = vst.msk [vmem:[%s177 + $0x4c] sm:$0xf] %vm358, %v2698
      %2731 = vst.msk [vmem:[%s177 + $0x50] sm:$0xf] %vm358, %v2699
      %2732 = vst.msk [vmem:[%s177 + $0x54] sm:$0xf] %vm358, %v2700
      %2733 = vst.msk [vmem:[%s177 + $0x58] sm:$0xf] %vm358, %v2701
      %2734 = vst.msk [vmem:[%s177 + $0x5c] sm:$0xf] %vm358, %v2702
      %2735 = vst.msk [vmem:[%s177 + $0x60] sm:$0xf] %vm358, %v2703
      %2736 = vst.msk [vmem:[%s177 + $0x64] sm:$0xf] %vm358, %v2704
      %2737 = vst.msk [vmem:[%s177 + $0x68] sm:$0xf] %vm358, %v2705
      %2738 = vst.msk [vmem:[%s177 + $0x6c] sm:$0xf] %vm358, %v2706
      %2739 = vst.msk [vmem:[%s177 + $0x70] sm:$0xf] %vm358, %v2707
      %2740 = vst.msk [vmem:[%s177 + $0x74] sm:$0xf] %vm358, %v2708
      %2741 = vst.msk [vmem:[%s177 + $0x78] sm:$0xf] %vm358, %v2709
      %2742 = vst.msk [vmem:[%s177 + $0x7c] sm:$0xf] %vm358, %v2710
      %p2743 = scmp.lt.s32.totalorder %s15, 1
      %s2744 = scalar_select %p2743, %s15, 1
      %s2745 = smul.addr %s2744, 32
      %s2746 = smul.addr %s2745, 4
      %s2747 = scalar_lea.vmem %s2, %s2746
      %p2748 = scmp.lt.s32.totalorder %s15, 1
      %s2749 = scalar_select %p2748, %s15, 1
      %s2750 = smul.addr %s2749, 2
      %s2751 = scalar_lea.vmem %s3, %s2750
      // Predicated region
      $region29: #{basic_block_forward.3} parent=27 // pred_check
        %p2752 = pneg %p80
      $region30: #{basic_block_forward.3} parent=27 // pred_check_branch
        %2754 = sbr.rel (%p2752) target = $region32
      $region31: #{basic_block_forward.3} parent=27 // pred_region
        _
      $region32: #{basic_block_forward.3} parent=27 // pred_fallthru
        _
      // Predicated region
      $region33: #{basic_block_forward.3} parent=27 // pred_check
        %p2755 = pneg %p106
      $region34: #{basic_block_forward.3} parent=27 // pred_check_branch
        %2757 = sbr.rel (%p2755) target = $region36
      $region35: #{basic_block_forward.3} parent=27 // pred_region
        _
      $region36: #{basic_block_forward.3} parent=27 // pred_fallthru
        _
    $region28: #{basic_block_forward.3} parent=5 // pred_fallthru
      _
    %p2758 = scmp.le.s32.totalorder 2, %s10
    // Predicated region
    $region37: #{basic_block_forward.3} parent=5 // pred_check
      %p2759 = pneg %p2758
    $region38: #{basic_block_forward.3} parent=5 // pred_check_branch
      %2761 = sbr.rel (%p2759) target = $region40
    $region39: #{basic_block_forward.3} parent=5 // pred_region
      %s2762 = ssub.s32 %s10, 2
      // Predicated region
      $region41: #{basic_block_forward.3} parent=39 // pred_check
        %p2763 = pneg %p86
      $region42: #{basic_block_forward.3} parent=39 // pred_check_branch
        %2765 = sbr.rel (%p2763) target = $region44
      $region43: #{basic_block_forward.3} parent=39 // pred_region
        %p2766 = scmp.lt.s32.totalorder %s16, 1
        %s2767 = scalar_select %p2766, %s16, 1
        %s2768 = smul.addr %s2767, 32
        %s2769 = smul.addr %s2768, 4
        %s2770 = scalar_lea.vmem %s2, %s2769
      $region44: #{basic_block_forward.3} parent=39 // pred_fallthru
        _
      // Predicated region
      $region45: #{basic_block_forward.3} parent=39 // pred_check
        %p2771 = pneg %p112
      $region46: #{basic_block_forward.3} parent=39 // pred_check_branch
        %2773 = sbr.rel (%p2771) target = $region48
      $region47: #{basic_block_forward.3} parent=39 // pred_region
        %p2774 = scmp.lt.s32.totalorder %s16, 1
        %s2775 = scalar_select %p2774, %s16, 1
        %s2776 = smul.addr %s2775, 2
        %s2777 = scalar_lea.vmem %s3, %s2776
      $region48: #{basic_block_forward.3} parent=39 // pred_fallthru
        _
    $region40: #{basic_block_forward.3} parent=5 // pred_fallthru
      _
  $region6: #{basic_block_forward.3} parent=0 // loop_footer
    %s14 = sadd.s32 1, %s10
  $region7: #{basic_block_forward.3} parent=0 // loop_footer_branch
    %9 = sbr.rel target = $region3
  $region8: #{basic_block_forward.3} parent=0 // loop_exit
    _

// kernel: basic_block_forward.4
$region0: #{basic_block_forward.4}
  #allocation0 [shape = 'u32[]', space=smem, size = 0x4, offset = 0x4, fixed_abs, tag = 'smem constant byte address 0x4 - core index']
  #allocation1 [shape = 'u32[72,128]{1,0:T(1,128)}', space=vmem, size = 0x9000, scoped, tag = 'internal scratch']
  #allocation2 [shape = 'f32[18,18,4]{2,1,0:T(8,128)}', space=vmem, size = 0x36000, scoped, tag = 'scratch operand']
  #allocation3 [shape = 'bf16[256,36]{1,0:T(8,128)(2,1)}', space=vmem, size = 0x10000, scoped, tag = 'scratch operand']
  %s0 = inlined_call_operand.vmem [shape: bf16[2,16,16,4], index: 0, kind: input, shape index: {}]
  %s1 = inlined_call_operand.vmem [shape: f32[1,4], index: 1, kind: input, shape index: {}]
  %s2 = inlined_call_operand.vmem [shape: f32[1,4], index: 2, kind: input, shape index: {}]
  %s3 = inlined_call_operand.vmem [shape: bf16[36,4], index: 3, kind: input, shape index: {}]
  %s4 = inlined_call_operand.vmem [shape: bf16[2,16,16,4], index: 4, kind: output, shape index: {0}]
  %s5 = inlined_call_operand.vmem [shape: f32[2,2,4], index: 5, kind: output, shape index: {1}]
  %6 = xla_tuple %s4, %s5
  %s7 = sld [smem:[#allocation0]]
  $region57: #{basic_block_forward.4} parent=0
    _
  %s9 = ssub.s32 1, %s7
  %s10 = scalar_select 0, %s9, %s7
  loop: start=0, step=1, limit=4
  $region2: #{basic_block_forward.4} parent=0 // loop_pre_header
    _
  $region3: #{basic_block_forward.4} parent=0 // loop_header
    %s12 = sphi 0, %s16
    %p13 = scmp.ge.s32.totalorder %s12, 4
    %s22 = sphi 0, %s24
    %s25 = sphi 0, %s22
    %s26 = sphi 0, %s25
    %s42 = sphi 0, %s26
    %s46 = sphi 0, %s46
    %s48 = sphi 0, %s46
    %s49 = sphi 0, %s48
    %s63 = sphi 0, %s49
    %s67 = sphi 0, %s67
    %s69 = sphi 0, %s67
    %s70 = sphi 0, %s69
    %s84 = sphi 0, %s70
    %s88 = sphi 0, %s88
    %s90 = sphi 0, %s88
    %s91 = sphi 0, %s90
    %s105 = sphi 0, %s91
    %s111 = sphi 0, %s113
    %s114 = sphi 0, %s111
    %s115 = sphi 0, %s114
    %s131 = sphi 0, %s115
    %s137 = sphi 0, %s139
    %s140 = sphi 0, %s137
    %s141 = sphi 0, %s140
    %s157 = sphi 0, %s141
  $region4: #{basic_block_forward.4} parent=0 // loop_header_branch
    %15 = sbr.rel (%p13) target = $region8
  $region5: #{basic_block_forward.4} parent=0 // loop_body
    %s17 = ssub.s32 %s12, 1
    %s18 = ssub.s32 %s12, 2
    %s19 = sadd.s32 %s12, 1
    %s20 = ssub.s32 %s12, %s19
    %p21 = scmp.eq.s32.totalorder %s20, 0
    %s23 = sadd.s32 %s22, 1
    %s24 = scalar_select %p21, %s22, %s23
    %p27 = pneg %p21
    %p28 = scmp.eq.s32.totalorder %s12, 1
    %p29 = por %p27, %p28
    %p30 = scmp.ne.s32.totalorder %s22, %s25
    %p31 = scmp.eq.s32.totalorder %s12, 0
    %p32 = por %p30, %p31
    %p33 = scmp.ne.s32.totalorder %s22, %s25
    %p34 = scmp.eq.s32.totalorder %s17, 1
    %p35 = por %p33, %p34
    %p36 = scmp.ne.s32.totalorder %s25, %s26
    %p37 = scmp.eq.s32.totalorder %s17, 0
    %p38 = por %p36, %p37
    %p39 = scmp.ne.s32.totalorder %s25, %s26
    %p40 = scmp.eq.s32.totalorder %s18, 1
    %p41 = por %p39, %p40
    %p43 = scmp.ne.s32.totalorder %s26, %s42
    %p44 = scmp.eq.s32.totalorder %s18, 0
    %p45 = por %p43, %p44
    %s47 = sadd.s32 %s46, 1
    %p50 = scmp.eq.s32.totalorder %s12, 1
    %p51 = scmp.ne.s32.totalorder %s46, %s48
    %p52 = scmp.eq.s32.totalorder %s12, 0
    %p53 = por %p51, %p52
    %p54 = scmp.ne.s32.totalorder %s46, %s48
    %p55 = scmp.eq.s32.totalorder %s17, 1
    %p56 = por %p54, %p55
    %p57 = scmp.ne.s32.totalorder %s48, %s49
    %p58 = scmp.eq.s32.totalorder %s17, 0
    %p59 = por %p57, %p58
    %p60 = scmp.ne.s32.totalorder %s48, %s49
    %p61 = scmp.eq.s32.totalorder %s18, 1
    %p62 = por %p60, %p61
    %p64 = scmp.ne.s32.totalorder %s49, %s63
    %p65 = scmp.eq.s32.totalorder %s18, 0
    %p66 = por %p64, %p65
    %s68 = sadd.s32 %s67, 1
    %p71 = scmp.eq.s32.totalorder %s12, 1
    %p72 = scmp.ne.s32.totalorder %s67, %s69
    %p73 = scmp.eq.s32.totalorder %s12, 0
    %p74 = por %p72, %p73
    %p75 = scmp.ne.s32.totalorder %s67, %s69
    %p76 = scmp.eq.s32.totalorder %s17, 1
    %p77 = por %p75, %p76
    %p78 = scmp.ne.s32.totalorder %s69, %s70
    %p79 = scmp.eq.s32.totalorder %s17, 0
    %p80 = por %p78, %p79
    %p81 = scmp.ne.s32.totalorder %s69, %s70
    %p82 = scmp.eq.s32.totalorder %s18, 1
    %p83 = por %p81, %p82
    %p85 = scmp.ne.s32.totalorder %s70, %s84
    %p86 = scmp.eq.s32.totalorder %s18, 0
    %p87 = por %p85, %p86
    %s89 = sadd.s32 %s88, 1
    %p92 = scmp.eq.s32.totalorder %s12, 1
    %p93 = scmp.ne.s32.totalorder %s88, %s90
    %p94 = scmp.eq.s32.totalorder %s12, 0
    %p95 = por %p93, %p94
    %p96 = scmp.ne.s32.totalorder %s88, %s90
    %p97 = scmp.eq.s32.totalorder %s17, 1
    %p98 = por %p96, %p97
    %p99 = scmp.ne.s32.totalorder %s90, %s91
    %p100 = scmp.eq.s32.totalorder %s17, 0
    %p101 = por %p99, %p100
    %p102 = scmp.ne.s32.totalorder %s90, %s91
    %p103 = scmp.eq.s32.totalorder %s18, 1
    %p104 = por %p102, %p103
    %p106 = scmp.ne.s32.totalorder %s91, %s105
    %p107 = scmp.eq.s32.totalorder %s18, 0
    %p108 = por %p106, %p107
    %s109 = ssub.s32 %s12, %s19
    %p110 = scmp.eq.s32.totalorder %s109, 0
    %s112 = sadd.s32 %s111, 1
    %s113 = scalar_select %p110, %s111, %s112
    %p116 = pneg %p110
    %p117 = scmp.eq.s32.totalorder %s12, 1
    %p118 = por %p116, %p117
    %p119 = scmp.ne.s32.totalorder %s111, %s114
    %p120 = scmp.eq.s32.totalorder %s12, 0
    %p121 = por %p119, %p120
    %p122 = scmp.ne.s32.totalorder %s111, %s114
    %p123 = scmp.eq.s32.totalorder %s17, 1
    %p124 = por %p122, %p123
    %p125 = scmp.ne.s32.totalorder %s114, %s115
    %p126 = scmp.eq.s32.totalorder %s17, 0
    %p127 = por %p125, %p126
    %p128 = scmp.ne.s32.totalorder %s114, %s115
    %p129 = scmp.eq.s32.totalorder %s18, 1
    %p130 = por %p128, %p129
    %p132 = scmp.ne.s32.totalorder %s115, %s131
    %p133 = scmp.eq.s32.totalorder %s18, 0
    %p134 = por %p132, %p133
    %s135 = ssub.s32 %s12, %s19
    %p136 = scmp.eq.s32.totalorder %s135, 0
    %s138 = sadd.s32 %s137, 1
    %s139 = scalar_select %p136, %s137, %s138
    %p142 = pneg %p136
    %p143 = scmp.eq.s32.totalorder %s12, 1
    %p144 = por %p142, %p143
    %p145 = scmp.ne.s32.totalorder %s137, %s140
    %p146 = scmp.eq.s32.totalorder %s12, 0
    %p147 = por %p145, %p146
    %p148 = scmp.ne.s32.totalorder %s137, %s140
    %p149 = scmp.eq.s32.totalorder %s17, 1
    %p150 = por %p148, %p149
    %p151 = scmp.ne.s32.totalorder %s140, %s141
    %p152 = scmp.eq.s32.totalorder %s17, 0
    %p153 = por %p151, %p152
    %p154 = scmp.ne.s32.totalorder %s140, %s141
    %p155 = scmp.eq.s32.totalorder %s18, 1
    %p156 = por %p154, %p155
    %p158 = scmp.ne.s32.totalorder %s141, %s157
    %p159 = scmp.eq.s32.totalorder %s18, 0
    %p160 = por %p158, %p159
    %p161 = scmp.le.s32.totalorder 1, %s12
    %p162 = scmp.lt.s32.totalorder %s12, 3
    %p163 = pnand %p161, %p162
    %p164 = pneg %p163
    // Predicated region
    $region9: #{basic_block_forward.4} parent=5 // pred_check
      _
    $region10: #{basic_block_forward.4} parent=5 // pred_check_branch
      %166 = sbr.rel (%p163) target = $region12
    $region11: #{basic_block_forward.4} parent=5 // pred_region
      %s167 = ssub.s32 %s12, 1
      // Predicated region
      $region13: #{basic_block_forward.4} parent=11 // pred_check
        %p168 = pneg %p59
      $region14: #{basic_block_forward.4} parent=11 // pred_check_branch
        %170 = sbr.rel (%p168) target = $region16
      $region15: #{basic_block_forward.4} parent=11 // pred_region
        _
      $region16: #{basic_block_forward.4} parent=11 // pred_fallthru
        _
      // Predicated region
      $region17: #{basic_block_forward.4} parent=11 // pred_check
        %p171 = pneg %p80
      $region18: #{basic_block_forward.4} parent=11 // pred_check_branch
        %173 = sbr.rel (%p171) target = $region20
      $region19: #{basic_block_forward.4} parent=11 // pred_region
        _
      $region20: #{basic_block_forward.4} parent=11 // pred_fallthru
        _
      // Predicated region
      $region21: #{basic_block_forward.4} parent=11 // pred_check
        %p174 = pneg %p101
      $region22: #{basic_block_forward.4} parent=11 // pred_check_branch
        %176 = sbr.rel (%p174) target = $region24
      $region23: #{basic_block_forward.4} parent=11 // pred_region
        _
      $region24: #{basic_block_forward.4} parent=11 // pred_fallthru
        _
    $region12: #{basic_block_forward.4} parent=5 // pred_fallthru
      _
    %p177 = scmp.lt.s32.totalorder %s12, 2
    // Predicated region
    $region25: #{basic_block_forward.4} parent=5 // pred_check
      %p178 = pneg %p177
    $region26: #{basic_block_forward.4} parent=5 // pred_check_branch
      %180 = sbr.rel (%p178) target = $region28
    $region27: #{basic_block_forward.4} parent=5 // pred_region
      // Predicated region
      $region29: #{basic_block_forward.4} parent=27 // pred_check
        %p181 = pneg %p32
      $region30: #{basic_block_forward.4} parent=27 // pred_check_branch
        %183 = sbr.rel (%p181) target = $region32
      $region31: #{basic_block_forward.4} parent=27 // pred_region
        %p184 = scmp.lt.s32.totalorder %s12, 1
        %s185 = scalar_select %p184, %s12, 1
        %s186 = smul.addr %s185, 32
        %s187 = smul.addr %s186, 4
        %s188 = scalar_lea.vmem %s0, %s187
      $region32: #{basic_block_forward.4} parent=27 // pred_fallthru
        _
    $region28: #{basic_block_forward.4} parent=5 // pred_fallthru
      _
    %p189 = scmp.le.s32.totalorder 1, %s12
    %p190 = scmp.lt.s32.totalorder %s12, 3
    %p191 = pnand %p189, %p190
    %p192 = pneg %p191
    // Predicated region
    $region33: #{basic_block_forward.4} parent=5 // pred_check
      _
    $region34: #{basic_block_forward.4} parent=5 // pred_check_branch
      %194 = sbr.rel (%p191) target = $region36
    $region35: #{basic_block_forward.4} parent=5 // pred_region
      %s195 = ssub.s32 %s12, 1
      %p196 = scmp.lt.s32.totalorder %s17, 1
      %s197 = scalar_select %p196, %s17, 1
      %s198 = smul.addr %s197, 32
      %s199 = smul.addr %s198, 4
      %s200 = scalar_lea.vmem %s0, %s199
      %p201 = pneg %p38
      %p202 = pneg %p35
      %p203 = pneg %p59
      %p204 = pneg %p56
      %p205 = pneg %p80
      %p206 = pneg %p77
      %p207 = pneg %p101
      %p208 = pneg %p98
      %p209 = pneg %p127
      %p210 = pneg %p124
      %p211 = scmp.lt.s32.totalorder %s17, 1
      %s212 = scalar_select %p211, %s17, 1
      %s213 = smul.addr %s212, 32
      %s214 = smul.addr %s213, 4
      %s215 = scalar_lea.vmem %s4, %s214
      %p216 = pneg %p153
      %p217 = pneg %p150
      %p218 = scmp.lt.s32.totalorder %s17, 1
      %s219 = scalar_select %p218, %s17, 1
      %s220 = smul.addr %s219, 2
      %s221 = scalar_lea.vmem %s5, %s220
      %p222 = scmp.lt.s32.totalorder %s17, 1
      %s223 = scalar_select %p222, %s17, 1
      %s224 = smul.addr %s223, 32
      %s225 = smul.addr %s224, 4
      %s226 = scalar_lea.vmem %s0, %s225
      %p227 = scmp.lt.s32.totalorder %s17, 1
      %s228 = scalar_select %p227, %s17, 1
      %s229 = smul.addr %s228, 32
      %s230 = smul.addr %s229, 4
      %s231 = scalar_lea.vmem %s4, %s230
      %p232 = scmp.lt.s32.totalorder %s17, 1
      %s233 = scalar_select %p232, %s17, 1
      %s234 = smul.addr %s233, 2
      %s235 = scalar_lea.vmem %s5, %s234
      %v237 = vld [vmem:[%s226] sm:$0xf]
      %v238 = vld [vmem:[%s226 + $0x4] sm:$0xf]
      %v239 = vld [vmem:[%s226 + $0x8] sm:$0xf]
      %v240 = vld [vmem:[%s226 + $0xc] sm:$0xf]
      %v241 = vld [vmem:[%s226 + $0x10] sm:$0xf]
      %v242 = vld [vmem:[%s226 + $0x14] sm:$0xf]
      %v243 = vld [vmem:[%s226 + $0x18] sm:$0xf]
      %v244 = vld [vmem:[%s226 + $0x1c] sm:$0xf]
      %v245 = vld [vmem:[%s226 + $0x20] sm:$0xf]
      %v246 = vld [vmem:[%s226 + $0x24] sm:$0xf]
      %v247 = vld [vmem:[%s226 + $0x28] sm:$0xf]
      %v248 = vld [vmem:[%s226 + $0x2c] sm:$0xf]
      %v249 = vld [vmem:[%s226 + $0x30] sm:$0xf]
      %v250 = vld [vmem:[%s226 + $0x34] sm:$0xf]
      %v251 = vld [vmem:[%s226 + $0x38] sm:$0xf]
      %v252 = vld [vmem:[%s226 + $0x3c] sm:$0xf]
      %v253 = vld [vmem:[%s226 + $0x40] sm:$0xf]
      %v254 = vld [vmem:[%s226 + $0x44] sm:$0xf]
      %v255 = vld [vmem:[%s226 + $0x48] sm:$0xf]
      %v256 = vld [vmem:[%s226 + $0x4c] sm:$0xf]
      %v257 = vld [vmem:[%s226 + $0x50] sm:$0xf]
      %v258 = vld [vmem:[%s226 + $0x54] sm:$0xf]
      %v259 = vld [vmem:[%s226 + $0x58] sm:$0xf]
      %v260 = vld [vmem:[%s226 + $0x5c] sm:$0xf]
      %v261 = vld [vmem:[%s226 + $0x60] sm:$0xf]
      %v262 = vld [vmem:[%s226 + $0x64] sm:$0xf]
      %v263 = vld [vmem:[%s226 + $0x68] sm:$0xf]
      %v264 = vld [vmem:[%s226 + $0x6c] sm:$0xf]
      %v265 = vld [vmem:[%s226 + $0x70] sm:$0xf]
      %v266 = vld [vmem:[%s226 + $0x74] sm:$0xf]
      %v267 = vld [vmem:[%s226 + $0x78] sm:$0xf]
      %v268 = vld [vmem:[%s226 + $0x7c] sm:$0xf]
      %v269 = vunpack.c.l.bf16 %v237
      %v270 = vunpack.c.l.bf16 %v238
      %v271 = vunpack.c.l.bf16 %v239
      %v272 = vunpack.c.l.bf16 %v240
      %v273 = vunpack.c.l.bf16 %v241
      %v274 = vunpack.c.l.bf16 %v242
      %v275 = vunpack.c.l.bf16 %v243
      %v276 = vunpack.c.l.bf16 %v244
      %v277 = vunpack.c.l.bf16 %v245
      %v278 = vunpack.c.l.bf16 %v246
      %v279 = vunpack.c.l.bf16 %v247
      %v280 = vunpack.c.l.bf16 %v248
      %v281 = vunpack.c.l.bf16 %v249
      %v282 = vunpack.c.l.bf16 %v250
      %v283 = vunpack.c.l.bf16 %v251
      %v284 = vunpack.c.l.bf16 %v252
      %v285 = vunpack.c.l.bf16 %v253
      %v286 = vunpack.c.l.bf16 %v254
      %v287 = vunpack.c.l.bf16 %v255
      %v288 = vunpack.c.l.bf16 %v256
      %v289 = vunpack.c.l.bf16 %v257
      %v290 = vunpack.c.l.bf16 %v258
      %v291 = vunpack.c.l.bf16 %v259
      %v292 = vunpack.c.l.bf16 %v260
      %v293 = vunpack.c.l.bf16 %v261
      %v294 = vunpack.c.l.bf16 %v262
      %v295 = vunpack.c.l.bf16 %v263
      %v296 = vunpack.c.l.bf16 %v264
      %v297 = vunpack.c.l.bf16 %v265
      %v298 = vunpack.c.l.bf16 %v266
      %v299 = vunpack.c.l.bf16 %v267
      %v300 = vunpack.c.l.bf16 %v268
      %v301 = vld [vmem:[%s1] sm:$0x1]
      %v303 = vperm.slane %v301, 0
      %v305 = vmul.f32 %v269, %v303
      %v306 = vmul.f32 %v270, %v303
      %v307 = vmul.f32 %v271, %v303
      %v308 = vmul.f32 %v272, %v303
      %v309 = vmul.f32 %v273, %v303
      %v310 = vmul.f32 %v274, %v303
      %v311 = vmul.f32 %v275, %v303
      %v312 = vmul.f32 %v276, %v303
      %v313 = vmul.f32 %v277, %v303
      %v314 = vmul.f32 %v278, %v303
      %v315 = vmul.f32 %v279, %v303
      %v316 = vmul.f32 %v280, %v303
      %v317 = vmul.f32 %v281, %v303
      %v318 = vmul.f32 %v282, %v303
      %v319 = vmul.f32 %v283, %v303
      %v320 = vmul.f32 %v284, %v303
      %v321 = vmul.f32 %v285, %v303
      %v322 = vmul.f32 %v286, %v303
      %v323 = vmul.f32 %v287, %v303
      %v324 = vmul.f32 %v288, %v303
      %v325 = vmul.f32 %v289, %v303
      %v326 = vmul.f32 %v290, %v303
      %v327 = vmul.f32 %v291, %v303
      %v328 = vmul.f32 %v292, %v303
      %v329 = vmul.f32 %v293, %v303
      %v330 = vmul.f32 %v294, %v303
      %v331 = vmul.f32 %v295, %v303
      %v332 = vmul.f32 %v296, %v303
      %v333 = vmul.f32 %v297, %v303
      %v334 = vmul.f32 %v298, %v303
      %v335 = vmul.f32 %v299, %v303
      %v336 = vmul.f32 %v300, %v303
      %v337 = vld [vmem:[%s2] sm:$0x1]
      %v339 = vperm.slane %v337, 0
      %v341 = vadd.f32 %v305, %v339
      %v342 = vadd.f32 %v306, %v339
      %v343 = vadd.f32 %v307, %v339
      %v344 = vadd.f32 %v308, %v339
      %v345 = vadd.f32 %v309, %v339
      %v346 = vadd.f32 %v310, %v339
      %v347 = vadd.f32 %v311, %v339
      %v348 = vadd.f32 %v312, %v339
      %v349 = vadd.f32 %v313, %v339
      %v350 = vadd.f32 %v314, %v339
      %v351 = vadd.f32 %v315, %v339
      %v352 = vadd.f32 %v316, %v339
      %v353 = vadd.f32 %v317, %v339
      %v354 = vadd.f32 %v318, %v339
      %v355 = vadd.f32 %v319, %v339
      %v356 = vadd.f32 %v320, %v339
      %v357 = vadd.f32 %v321, %v339
      %v358 = vadd.f32 %v322, %v339
      %v359 = vadd.f32 %v323, %v339
      %v360 = vadd.f32 %v324, %v339
      %v361 = vadd.f32 %v325, %v339
      %v362 = vadd.f32 %v326, %v339
      %v363 = vadd.f32 %v327, %v339
      %v364 = vadd.f32 %v328, %v339
      %v365 = vadd.f32 %v329, %v339
      %v366 = vadd.f32 %v330, %v339
      %v367 = vadd.f32 %v331, %v339
      %v368 = vadd.f32 %v332, %v339
      %v369 = vadd.f32 %v333, %v339
      %v370 = vadd.f32 %v334, %v339
      %v371 = vadd.f32 %v335, %v339
      %v372 = vadd.f32 %v336, %v339
      %v373 = vmax.f32 %v341, 0.0
      %v374 = vmax.f32 %v342, 0.0
      %v375 = vmax.f32 %v343, 0.0
      %v376 = vmax.f32 %v344, 0.0
      %v377 = vmax.f32 %v345, 0.0
      %v378 = vmax.f32 %v346, 0.0
      %v379 = vmax.f32 %v347, 0.0
      %v380 = vmax.f32 %v348, 0.0
      %v381 = vmax.f32 %v349, 0.0
      %v382 = vmax.f32 %v350, 0.0
      %v383 = vmax.f32 %v351, 0.0
      %v384 = vmax.f32 %v352, 0.0
      %v385 = vmax.f32 %v353, 0.0
      %v386 = vmax.f32 %v354, 0.0
      %v387 = vmax.f32 %v355, 0.0
      %v388 = vmax.f32 %v356, 0.0
      %v389 = vmax.f32 %v357, 0.0
      %v390 = vmax.f32 %v358, 0.0
      %v391 = vmax.f32 %v359, 0.0
      %v392 = vmax.f32 %v360, 0.0
      %v393 = vmax.f32 %v361, 0.0
      %v394 = vmax.f32 %v362, 0.0
      %v395 = vmax.f32 %v363, 0.0
      %v396 = vmax.f32 %v364, 0.0
      %v397 = vmax.f32 %v365, 0.0
      %v398 = vmax.f32 %v366, 0.0
      %v399 = vmax.f32 %v367, 0.0
      %v400 = vmax.f32 %v368, 0.0
      %v401 = vmax.f32 %v369, 0.0
      %v402 = vmax.f32 %v370, 0.0
      %v403 = vmax.f32 %v371, 0.0
      %v404 = vmax.f32 %v372, 0.0
      %vm405 = vcmask 31744
      %406 = vst.msk [vmem:[#allocation2] sm:$0xff] %vm405, 0.0
      %407 = vst.msk [vmem:[#allocation2 + $0x8] sm:$0xff] %vm405, 0.0
      %vm408 = vcmask 25600
      %409 = vst.msk [vmem:[#allocation2 + $0x10] sm:$0x3] %vm408, 0.0
      %s410 = scalar_lea.vmem [#allocation2], 408
      %411 = vst.msk [vmem:[%s410] sm:$0xff] %vm405, 0.0
      %412 = vst.msk [vmem:[%s410 + $0x8] sm:$0xff] %vm405, 0.0
      %413 = vst.msk [vmem:[%s410 + $0x10] sm:$0x3] %vm408, 0.0
      %vm414 = vcmask 24576
      %415 = vst.msk [vmem:[#allocation2] sm:$0x1] %vm414, 0.0
      %416 = vst.msk [vmem:[#allocation2 + $0x18] sm:$0x1] %vm414, 0.0
      %417 = vst.msk [vmem:[#allocation2 + $0x30] sm:$0x1] %vm414, 0.0
      %418 = vst.msk [vmem:[#allocation2 + $0x48] sm:$0x1] %vm414, 0.0
      %419 = vst.msk [vmem:[#allocation2 + $0x60] sm:$0x1] %vm414, 0.0
      %420 = vst.msk [vmem:[#allocation2 + $0x78] sm:$0x1] %vm414, 0.0
      %421 = vst.msk [vmem:[#allocation2 + $0x90] sm:$0x1] %vm414, 0.0
      %422 = vst.msk [vmem:[#allocation2 + $0xa8] sm:$0x1] %vm414, 0.0
      %423 = vst.msk [vmem:[#allocation2 + $0xc0] sm:$0x1] %vm414, 0.0
      %424 = vst.msk [vmem:[#allocation2 + $0xd8] sm:$0x1] %vm414, 0.0
      %425 = vst.msk [vmem:[#allocation2 + $0xf0] sm:$0x1] %vm414, 0.0
      %426 = vst.msk [vmem:[#allocation2 + $0x108] sm:$0x1] %vm414, 0.0
      %427 = vst.msk [vmem:[#allocation2 + $0x120] sm:$0x1] %vm414, 0.0
      %428 = vst.msk [vmem:[#allocation2 + $0x138] sm:$0x1] %vm414, 0.0
      %429 = vst.msk [vmem:[#allocation2 + $0x150] sm:$0x1] %vm414, 0.0
      %430 = vst.msk [vmem:[#allocation2 + $0x168] sm:$0x1] %vm414, 0.0
      %431 = vst.msk [vmem:[#allocation2 + $0x180] sm:$0x1] %vm414, 0.0
      %432 = vst.msk [vmem:[#allocation2 + $0x198] sm:$0x1] %vm414, 0.0
      %433 = vst.msk [vmem:[#allocation2 + $0x11] sm:$0x1] %vm414, 0.0
      %434 = vst.msk [vmem:[#allocation2 + $0x29] sm:$0x1] %vm414, 0.0
      %435 = vst.msk [vmem:[#allocation2 + $0x41] sm:$0x1] %vm414, 0.0
      %436 = vst.msk [vmem:[#allocation2 + $0x59] sm:$0x1] %vm414, 0.0
      %437 = vst.msk [vmem:[#allocation2 + $0x71] sm:$0x1] %vm414, 0.0
      %438 = vst.msk [vmem:[#allocation2 + $0x89] sm:$0x1] %vm414, 0.0
      %439 = vst.msk [vmem:[#allocation2 + $0xa1] sm:$0x1] %vm414, 0.0
      %440 = vst.msk [vmem:[#allocation2 + $0xb9] sm:$0x1] %vm414, 0.0
      %441 = vst.msk [vmem:[#allocation2 + $0xd1] sm:$0x1] %vm414, 0.0
      %442 = vst.msk [vmem:[#allocation2 + $0xe9] sm:$0x1] %vm414, 0.0
      %443 = vst.msk [vmem:[#allocation2 + $0x101] sm:$0x1] %vm414, 0.0
      %444 = vst.msk [vmem:[#allocation2 + $0x119] sm:$0x1] %vm414, 0.0
      %445 = vst.msk [vmem:[#allocation2 + $0x131] sm:$0x1] %vm414, 0.0
      %446 = vst.msk [vmem:[#allocation2 + $0x149] sm:$0x1] %vm414, 0.0
      %447 = vst.msk [vmem:[#allocation2 + $0x161] sm:$0x1] %vm414, 0.0
      %448 = vst.msk [vmem:[#allocation2 + $0x179] sm:$0x1] %vm414, 0.0
      %449 = vst.msk [vmem:[#allocation2 + $0x191] sm:$0x1] %vm414, 0.0
      %450 = vst.msk [vmem:[#allocation2 + $0x1a9] sm:$0x1] %vm414, 0.0
      %s451 = scalar_lea.vmem [#allocation2], 24
      %452 = vst.msk [vmem:[%s451 + $0x1] sm:$0xff] %vm405, %v373
      %453 = vst.msk [vmem:[%s451 + $0x9] sm:$0xff] %vm405, %v374
      %454 = vst.msk [vmem:[%s451 + $0x19] sm:$0xff] %vm405, %v375
      %455 = vst.msk [vmem:[%s451 + $0x21] sm:$0xff] %vm405, %v376
      %456 = vst.msk [vmem:[%s451 + $0x31] sm:$0xff] %vm405, %v377
      %457 = vst.msk [vmem:[%s451 + $0x39] sm:$0xff] %vm405, %v378
      %458 = vst.msk [vmem:[%s451 + $0x49] sm:$0xff] %vm405, %v379
      %459 = vst.msk [vmem:[%s451 + $0x51] sm:$0xff] %vm405, %v380
      %460 = vst.msk [vmem:[%s451 + $0x61] sm:$0xff] %vm405, %v381
      %461 = vst.msk [vmem:[%s451 + $0x69] sm:$0xff] %vm405, %v382
      %462 = vst.msk [vmem:[%s451 + $0x79] sm:$0xff] %vm405, %v383
      %463 = vst.msk [vmem:[%s451 + $0x81] sm:$0xff] %vm405, %v384
      %464 = vst.msk [vmem:[%s451 + $0x91] sm:$0xff] %vm405, %v385
      %465 = vst.msk [vmem:[%s451 + $0x99] sm:$0xff] %vm405, %v386
      %466 = vst.msk [vmem:[%s451 + $0xa9] sm:$0xff] %vm405, %v387
      %467 = vst.msk [vmem:[%s451 + $0xb1] sm:$0xff] %vm405, %v388
      %468 = vst.msk [vmem:[%s451 + $0xc1] sm:$0xff] %vm405, %v389
      %469 = vst.msk [vmem:[%s451 + $0xc9] sm:$0xff] %vm405, %v390
      %470 = vst.msk [vmem:[%s451 + $0xd9] sm:$0xff] %vm405, %v391
      %471 = vst.msk [vmem:[%s451 + $0xe1] sm:$0xff] %vm405, %v392
      %472 = vst.msk [vmem:[%s451 + $0xf1] sm:$0xff] %vm405, %v393
      %473 = vst.msk [vmem:[%s451 + $0xf9] sm:$0xff] %vm405, %v394
      %474 = vst.msk [vmem:[%s451 + $0x109] sm:$0xff] %vm405, %v395
      %475 = vst.msk [vmem:[%s451 + $0x111] sm:$0xff] %vm405, %v396
      %476 = vst.msk [vmem:[%s451 + $0x121] sm:$0xff] %vm405, %v397
      %477 = vst.msk [vmem:[%s451 + $0x129] sm:$0xff] %vm405, %v398
      %478 = vst.msk [vmem:[%s451 + $0x139] sm:$0xff] %vm405, %v399
      %479 = vst.msk [vmem:[%s451 + $0x141] sm:$0xff] %vm405, %v400
      %480 = vst.msk [vmem:[%s451 + $0x151] sm:$0xff] %vm405, %v401
      %481 = vst.msk [vmem:[%s451 + $0x159] sm:$0xff] %vm405, %v402
      %482 = vst.msk [vmem:[%s451 + $0x169] sm:$0xff] %vm405, %v403
      %483 = vst.msk [vmem:[%s451 + $0x171] sm:$0xff] %vm405, %v404
      %v484 = vld [vmem:[#allocation2] sm:$0xff]
      %v485 = vld [vmem:[#allocation2 + $0x8] sm:$0xff]
      %v486 = vld [vmem:[#allocation2 + $0x18] sm:$0xff]
      %v487 = vld [vmem:[#allocation2 + $0x20] sm:$0xff]
      %v488 = vld [vmem:[#allocation2 + $0x30] sm:$0xff]
      %v489 = vld [vmem:[#allocation2 + $0x38] sm:$0xff]
      %v490 = vld [vmem:[#allocation2 + $0x48] sm:$0xff]
      %v491 = vld [vmem:[#allocation2 + $0x50] sm:$0xff]
      %v492 = vld [vmem:[#allocation2 + $0x60] sm:$0xff]
      %v493 = vld [vmem:[#allocation2 + $0x68] sm:$0xff]
      %v494 = vld [vmem:[#allocation2 + $0x78] sm:$0xff]
      %v495 = vld [vmem:[#allocation2 + $0x80] sm:$0xff]
      %v496 = vld [vmem:[#allocation2 + $0x90] sm:$0xff]
      %v497 = vld [vmem:[#allocation2 + $0x98] sm:$0xff]
      %v498 = vld [vmem:[#allocation2 + $0xa8] sm:$0xff]
      %v499 = vld [vmem:[#allocation2 + $0xb0] sm:$0xff]
      %v500 = vld [vmem:[#allocation2 + $0xc0] sm:$0xff]
      %v501 = vld [vmem:[#allocation2 + $0xc8] sm:$0xff]
      %v502 = vld [vmem:[#allocation2 + $0xd8] sm:$0xff]
      %v503 = vld [vmem:[#allocation2 + $0xe0] sm:$0xff]
      %v504 = vld [vmem:[#allocation2 + $0xf0] sm:$0xff]
      %v505 = vld [vmem:[#allocation2 + $0xf8] sm:$0xff]
      %v506 = vld [vmem:[#allocation2 + $0x108] sm:$0xff]
      %v507 = vld [vmem:[#allocation2 + $0x110] sm:$0xff]
      %v508 = vld [vmem:[#allocation2 + $0x120] sm:$0xff]
      %v509 = vld [vmem:[#allocation2 + $0x128] sm:$0xff]
      %v510 = vld [vmem:[#allocation2 + $0x138] sm:$0xff]
      %v511 = vld [vmem:[#allocation2 + $0x140] sm:$0xff]
      %v512 = vld [vmem:[#allocation2 + $0x150] sm:$0xff]
      %v513 = vld [vmem:[#allocation2 + $0x158] sm:$0xff]
      %v514 = vld [vmem:[#allocation2 + $0x168] sm:$0xff]
      %v515 = vld [vmem:[#allocation2 + $0x170] sm:$0xff]
      %v516 = vpack.c.bf16 %v484, %v484
      %v517 = vpack.c.bf16 %v485, %v485
      %v518 = vpack.c.bf16 %v486, %v486
      %v519 = vpack.c.bf16 %v487, %v487
      %v520 = vpack.c.bf16 %v488, %v488
      %v521 = vpack.c.bf16 %v489, %v489
      %v522 = vpack.c.bf16 %v490, %v490
      %v523 = vpack.c.bf16 %v491, %v491
      %v524 = vpack.c.bf16 %v492, %v492
      %v525 = vpack.c.bf16 %v493, %v493
      %v526 = vpack.c.bf16 %v494, %v494
      %v527 = vpack.c.bf16 %v495, %v495
      %v528 = vpack.c.bf16 %v496, %v496
      %v529 = vpack.c.bf16 %v497, %v497
      %v530 = vpack.c.bf16 %v498, %v498
      %v531 = vpack.c.bf16 %v499, %v499
      %v532 = vpack.c.bf16 %v500, %v500
      %v533 = vpack.c.bf16 %v501, %v501
      %v534 = vpack.c.bf16 %v502, %v502
      %v535 = vpack.c.bf16 %v503, %v503
      %v536 = vpack.c.bf16 %v504, %v504
      %v537 = vpack.c.bf16 %v505, %v505
      %v538 = vpack.c.bf16 %v506, %v506
      %v539 = vpack.c.bf16 %v507, %v507
      %v540 = vpack.c.bf16 %v508, %v508
      %v541 = vpack.c.bf16 %v509, %v509
      %v542 = vpack.c.bf16 %v510, %v510
      %v543 = vpack.c.bf16 %v511, %v511
      %v544 = vpack.c.bf16 %v512, %v512
      %v545 = vpack.c.bf16 %v513, %v513
      %v546 = vpack.c.bf16 %v514, %v514
      %v547 = vpack.c.bf16 %v515, %v515
      %vm548 = vcmask 27648
      %549 = vst.msk [vmem:[#allocation3] sm:$0xf] %vm548, %v516
      %550 = vst.msk [vmem:[#allocation3 + $0x4] sm:$0xf] %vm548, %v517
      %551 = vst.msk [vmem:[#allocation3 + $0x8] sm:$0xf] %vm548, %v518
      %552 = vst.msk [vmem:[#allocation3 + $0xc] sm:$0xf] %vm548, %v519
      %553 = vst.msk [vmem:[#allocation3 + $0x10] sm:$0xf] %vm548, %v520
      %554 = vst.msk [vmem:[#allocation3 + $0x14] sm:$0xf] %vm548, %v521
      %555 = vst.msk [vmem:[#allocation3 + $0x18] sm:$0xf] %vm548, %v522
      %556 = vst.msk [vmem:[#allocation3 + $0x1c] sm:$0xf] %vm548, %v523
      %557 = vst.msk [vmem:[#allocation3 + $0x20] sm:$0xf] %vm548, %v524
      %558 = vst.msk [vmem:[#allocation3 + $0x24] sm:$0xf] %vm548, %v525
      %559 = vst.msk [vmem:[#allocation3 + $0x28] sm:$0xf] %vm548, %v526
      %560 = vst.msk [vmem:[#allocation3 + $0x2c] sm:$0xf] %vm548, %v527
      %561 = vst.msk [vmem:[#allocation3 + $0x30] sm:$0xf] %vm548, %v528
      %562 = vst.msk [vmem:[#allocation3 + $0x34] sm:$0xf] %vm548, %v529
      %563 = vst.msk [vmem:[#allocation3 + $0x38] sm:$0xf] %vm548, %v530
      %564 = vst.msk [vmem:[#allocation3 + $0x3c] sm:$0xf] %vm548, %v531
      %565 = vst.msk [vmem:[#allocation3 + $0x40] sm:$0xf] %vm548, %v532
      %566 = vst.msk [vmem:[#allocation3 + $0x44] sm:$0xf] %vm548, %v533
      %567 = vst.msk [vmem:[#allocation3 + $0x48] sm:$0xf] %vm548, %v534
      %568 = vst.msk [vmem:[#allocation3 + $0x4c] sm:$0xf] %vm548, %v535
      %569 = vst.msk [vmem:[#allocation3 + $0x50] sm:$0xf] %vm548, %v536
      %570 = vst.msk [vmem:[#allocation3 + $0x54] sm:$0xf] %vm548, %v537
      %571 = vst.msk [vmem:[#allocation3 + $0x58] sm:$0xf] %vm548, %v538
      %572 = vst.msk [vmem:[#allocation3 + $0x5c] sm:$0xf] %vm548, %v539
      %573 = vst.msk [vmem:[#allocation3 + $0x60] sm:$0xf] %vm548, %v540
      %574 = vst.msk [vmem:[#allocation3 + $0x64] sm:$0xf] %vm548, %v541
      %575 = vst.msk [vmem:[#allocation3 + $0x68] sm:$0xf] %vm548, %v542
      %576 = vst.msk [vmem:[#allocation3 + $0x6c] sm:$0xf] %vm548, %v543
      %577 = vst.msk [vmem:[#allocation3 + $0x70] sm:$0xf] %vm548, %v544
      %578 = vst.msk [vmem:[#allocation3 + $0x74] sm:$0xf] %vm548, %v545
      %579 = vst.msk [vmem:[#allocation3 + $0x78] sm:$0xf] %vm548, %v546
      %580 = vst.msk [vmem:[#allocation3 + $0x7c] sm:$0xf] %vm548, %v547
      %v581 = vld [vmem:[#allocation2 + $0x1] sm:$0xff]
      %v582 = vld [vmem:[#allocation2 + $0x9] sm:$0xff]
      %v583 = vld [vmem:[#allocation2 + $0x19] sm:$0xff]
      %v584 = vld [vmem:[#allocation2 + $0x21] sm:$0xff]
      %v585 = vld [vmem:[#allocation2 + $0x31] sm:$0xff]
      %v586 = vld [vmem:[#allocation2 + $0x39] sm:$0xff]
      %v587 = vld [vmem:[#allocation2 + $0x49] sm:$0xff]
      %v588 = vld [vmem:[#allocation2 + $0x51] sm:$0xff]
      %v589 = vld [vmem:[#allocation2 + $0x61] sm:$0xff]
      %v590 = vld [vmem:[#allocation2 + $0x69] sm:$0xff]
      %v591 = vld [vmem:[#allocation2 + $0x79] sm:$0xff]
      %v592 = vld [vmem:[#allocation2 + $0x81] sm:$0xff]
      %v593 = vld [vmem:[#allocation2 + $0x91] sm:$0xff]
      %v594 = vld [vmem:[#allocation2 + $0x99] sm:$0xff]
      %v595 = vld [vmem:[#allocation2 + $0xa9] sm:$0xff]
      %v596 = vld [vmem:[#allocation2 + $0xb1] sm:$0xff]
      %v597 = vld [vmem:[#allocation2 + $0xc1] sm:$0xff]
      %v598 = vld [vmem:[#allocation2 + $0xc9] sm:$0xff]
      %v599 = vld [vmem:[#allocation2 + $0xd9] sm:$0xff]
      %v600 = vld [vmem:[#allocation2 + $0xe1] sm:$0xff]
      %v601 = vld [vmem:[#allocation2 + $0xf1] sm:$0xff]
      %v602 = vld [vmem:[#allocation2 + $0xf9] sm:$0xff]
      %v603 = vld [vmem:[#allocation2 + $0x109] sm:$0xff]
      %v604 = vld [vmem:[#allocation2 + $0x111] sm:$0xff]
      %v605 = vld [vmem:[#allocation2 + $0x121] sm:$0xff]
      %v606 = vld [vmem:[#allocation2 + $0x129] sm:$0xff]
      %v607 = vld [vmem:[#allocation2 + $0x139] sm:$0xff]
      %v608 = vld [vmem:[#allocation2 + $0x141] sm:$0xff]
      %v609 = vld [vmem:[#allocation2 + $0x151] sm:$0xff]
      %v610 = vld [vmem:[#allocation2 + $0x159] sm:$0xff]
      %v611 = vld [vmem:[#allocation2 + $0x169] sm:$0xff]
      %v612 = vld [vmem:[#allocation2 + $0x171] sm:$0xff]
      %v613 = vpack.c.bf16 %v581, %v581
      %v614 = vpack.c.bf16 %v582, %v582
      %v615 = vpack.c.bf16 %v583, %v583
      %v616 = vpack.c.bf16 %v584, %v584
      %v617 = vpack.c.bf16 %v585, %v585
      %v618 = vpack.c.bf16 %v586, %v586
      %v619 = vpack.c.bf16 %v587, %v587
      %v620 = vpack.c.bf16 %v588, %v588
      %v621 = vpack.c.bf16 %v589, %v589
      %v622 = vpack.c.bf16 %v590, %v590
      %v623 = vpack.c.bf16 %v591, %v591
      %v624 = vpack.c.bf16 %v592, %v592
      %v625 = vpack.c.bf16 %v593, %v593
      %v626 = vpack.c.bf16 %v594, %v594
      %v627 = vpack.c.bf16 %v595, %v595
      %v628 = vpack.c.bf16 %v596, %v596
      %v629 = vpack.c.bf16 %v597, %v597
      %v630 = vpack.c.bf16 %v598, %v598
      %v631 = vpack.c.bf16 %v599, %v599
      %v632 = vpack.c.bf16 %v600, %v600
      %v633 = vpack.c.bf16 %v601, %v601
      %v634 = vpack.c.bf16 %v602, %v602
      %v635 = vpack.c.bf16 %v603, %v603
      %v636 = vpack.c.bf16 %v604, %v604
      %v637 = vpack.c.bf16 %v605, %v605
      %v638 = vpack.c.bf16 %v606, %v606
      %v639 = vpack.c.bf16 %v607, %v607
      %v640 = vpack.c.bf16 %v608, %v608
      %v641 = vpack.c.bf16 %v609, %v609
      %v642 = vpack.c.bf16 %v610, %v610
      %v643 = vpack.c.bf16 %v611, %v611
      %v644 = vpack.c.bf16 %v612, %v612
      %677 = vrot.lane.b32.xlu0 %v613, 4
      %v678 = vpop.permute.xlu0 %677
      %679 = vrot.lane.b32.xlu0 %v614, 4
      %v680 = vpop.permute.xlu0 %679
      %681 = vrot.lane.b32.xlu0 %v615, 4
      %v682 = vpop.permute.xlu0 %681
      %683 = vrot.lane.b32.xlu0 %v616, 4
      %v684 = vpop.permute.xlu0 %683
      %685 = vrot.lane.b32.xlu0 %v617, 4
      %v686 = vpop.permute.xlu0 %685
      %687 = vrot.lane.b32.xlu0 %v618, 4
      %v688 = vpop.permute.xlu0 %687
      %689 = vrot.lane.b32.xlu0 %v619, 4
      %v690 = vpop.permute.xlu0 %689
      %691 = vrot.lane.b32.xlu0 %v620, 4
      %v692 = vpop.permute.xlu0 %691
      %693 = vrot.lane.b32.xlu0 %v621, 4
      %v694 = vpop.permute.xlu0 %693
      %695 = vrot.lane.b32.xlu0 %v622, 4
      %v696 = vpop.permute.xlu0 %695
      %697 = vrot.lane.b32.xlu0 %v623, 4
      %v698 = vpop.permute.xlu0 %697
      %699 = vrot.lane.b32.xlu0 %v624, 4
      %v700 = vpop.permute.xlu0 %699
      %701 = vrot.lane.b32.xlu0 %v625, 4
      %v702 = vpop.permute.xlu0 %701
      %703 = vrot.lane.b32.xlu0 %v626, 4
      %v704 = vpop.permute.xlu0 %703
      %705 = vrot.lane.b32.xlu0 %v627, 4
      %v706 = vpop.permute.xlu0 %705
      %707 = vrot.lane.b32.xlu0 %v628, 4
      %v708 = vpop.permute.xlu0 %707
      %709 = vrot.lane.b32.xlu0 %v629, 4
      %v710 = vpop.permute.xlu0 %709
      %711 = vrot.lane.b32.xlu0 %v630, 4
      %v712 = vpop.permute.xlu0 %711
      %713 = vrot.lane.b32.xlu0 %v631, 4
      %v714 = vpop.permute.xlu0 %713
      %715 = vrot.lane.b32.xlu0 %v632, 4
      %v716 = vpop.permute.xlu0 %715
      %717 = vrot.lane.b32.xlu0 %v633, 4
      %v718 = vpop.permute.xlu0 %717
      %719 = vrot.lane.b32.xlu0 %v634, 4
      %v720 = vpop.permute.xlu0 %719
      %721 = vrot.lane.b32.xlu0 %v635, 4
      %v722 = vpop.permute.xlu0 %721
      %723 = vrot.lane.b32.xlu0 %v636, 4
      %v724 = vpop.permute.xlu0 %723
      %725 = vrot.lane.b32.xlu0 %v637, 4
      %v726 = vpop.permute.xlu0 %725
      %727 = vrot.lane.b32.xlu0 %v638, 4
      %v728 = vpop.permute.xlu0 %727
      %729 = vrot.lane.b32.xlu0 %v639, 4
      %v730 = vpop.permute.xlu0 %729
      %731 = vrot.lane.b32.xlu0 %v640, 4
      %v732 = vpop.permute.xlu0 %731
      %733 = vrot.lane.b32.xlu0 %v641, 4
      %v734 = vpop.permute.xlu0 %733
      %735 = vrot.lane.b32.xlu0 %v642, 4
      %v736 = vpop.permute.xlu0 %735
      %737 = vrot.lane.b32.xlu0 %v643, 4
      %v738 = vpop.permute.xlu0 %737
      %739 = vrot.lane.b32.xlu0 %v644, 4
      %v740 = vpop.permute.xlu0 %739
      %vm773 = vcmask 60448
      %774 = vst.msk [vmem:[#allocation3] sm:$0xf] %vm773, %v678
      %775 = vst.msk [vmem:[#allocation3 + $0x4] sm:$0xf] %vm773, %v680
      %776 = vst.msk [vmem:[#allocation3 + $0x8] sm:$0xf] %vm773, %v682
      %777 = vst.msk [vmem:[#allocation3 + $0xc] sm:$0xf] %vm773, %v684
      %778 = vst.msk [vmem:[#allocation3 + $0x10] sm:$0xf] %vm773, %v686
      %779 = vst.msk [vmem:[#allocation3 + $0x14] sm:$0xf] %vm773, %v688
      %780 = vst.msk [vmem:[#allocation3 + $0x18] sm:$0xf] %vm773, %v690
      %781 = vst.msk [vmem:[#allocation3 + $0x1c] sm:$0xf] %vm773, %v692
      %782 = vst.msk [vmem:[#allocation3 + $0x20] sm:$0xf] %vm773, %v694
      %783 = vst.msk [vmem:[#allocation3 + $0x24] sm:$0xf] %vm773, %v696
      %784 = vst.msk [vmem:[#allocation3 + $0x28] sm:$0xf] %vm773, %v698
      %785 = vst.msk [vmem:[#allocation3 + $0x2c] sm:$0xf] %vm773, %v700
      %786 = vst.msk [vmem:[#allocation3 + $0x30] sm:$0xf] %vm773, %v702
      %787 = vst.msk [vmem:[#allocation3 + $0x34] sm:$0xf] %vm773, %v704
      %788 = vst.msk [vmem:[#allocation3 + $0x38] sm:$0xf] %vm773, %v706
      %789 = vst.msk [vmem:[#allocation3 + $0x3c] sm:$0xf] %vm773, %v708
      %790 = vst.msk [vmem:[#allocation3 + $0x40] sm:$0xf] %vm773, %v710
      %791 = vst.msk [vmem:[#allocation3 + $0x44] sm:$0xf] %vm773, %v712
      %792 = vst.msk [vmem:[#allocation3 + $0x48] sm:$0xf] %vm773, %v714
      %793 = vst.msk [vmem:[#allocation3 + $0x4c] sm:$0xf] %vm773, %v716
      %794 = vst.msk [vmem:[#allocation3 + $0x50] sm:$0xf] %vm773, %v718
      %795 = vst.msk [vmem:[#allocation3 + $0x54] sm:$0xf] %vm773, %v720
      %796 = vst.msk [vmem:[#allocation3 + $0x58] sm:$0xf] %vm773, %v722
      %797 = vst.msk [vmem:[#allocation3 + $0x5c] sm:$0xf] %vm773, %v724
      %798 = vst.msk [vmem:[#allocation3 + $0x60] sm:$0xf] %vm773, %v726
      %799 = vst.msk [vmem:[#allocation3 + $0x64] sm:$0xf] %vm773, %v728
      %800 = vst.msk [vmem:[#allocation3 + $0x68] sm:$0xf] %vm773, %v730
      %801 = vst.msk [vmem:[#allocation3 + $0x6c] sm:$0xf] %vm773, %v732
      %802 = vst.msk [vmem:[#allocation3 + $0x70] sm:$0xf] %vm773, %v734
      %803 = vst.msk [vmem:[#allocation3 + $0x74] sm:$0xf] %vm773, %v736
      %804 = vst.msk [vmem:[#allocation3 + $0x78] sm:$0xf] %vm773, %v738
      %805 = vst.msk [vmem:[#allocation3 + $0x7c] sm:$0xf] %vm773, %v740
      %v806 = vld [vmem:[#allocation2 + $0x2] sm:$0xff]
      %v807 = vld [vmem:[#allocation2 + $0xa] sm:$0xff]
      %v808 = vld [vmem:[#allocation2 + $0x1a] sm:$0xff]
      %v809 = vld [vmem:[#allocation2 + $0x22] sm:$0xff]
      %v810 = vld [vmem:[#allocation2 + $0x32] sm:$0xff]
      %v811 = vld [vmem:[#allocation2 + $0x3a] sm:$0xff]
      %v812 = vld [vmem:[#allocation2 + $0x4a] sm:$0xff]
      %v813 = vld [vmem:[#allocation2 + $0x52] sm:$0xff]
      %v814 = vld [vmem:[#allocation2 + $0x62] sm:$0xff]
      %v815 = vld [vmem:[#allocation2 + $0x6a] sm:$0xff]
      %v816 = vld [vmem:[#allocation2 + $0x7a] sm:$0xff]
      %v817 = vld [vmem:[#allocation2 + $0x82] sm:$0xff]
      %v818 = vld [vmem:[#allocation2 + $0x92] sm:$0xff]
      %v819 = vld [vmem:[#allocation2 + $0x9a] sm:$0xff]
      %v820 = vld [vmem:[#allocation2 + $0xaa] sm:$0xff]
      %v821 = vld [vmem:[#allocation2 + $0xb2] sm:$0xff]
      %v822 = vld [vmem:[#allocation2 + $0xc2] sm:$0xff]
      %v823 = vld [vmem:[#allocation2 + $0xca] sm:$0xff]
      %v824 = vld [vmem:[#allocation2 + $0xda] sm:$0xff]
      %v825 = vld [vmem:[#allocation2 + $0xe2] sm:$0xff]
      %v826 = vld [vmem:[#allocation2 + $0xf2] sm:$0xff]
      %v827 = vld [vmem:[#allocation2 + $0xfa] sm:$0xff]
      %v828 = vld [vmem:[#allocation2 + $0x10a] sm:$0xff]
      %v829 = vld [vmem:[#allocation2 + $0x112] sm:$0xff]
      %v830 = vld [vmem:[#allocation2 + $0x122] sm:$0xff]
      %v831 = vld [vmem:[#allocation2 + $0x12a] sm:$0xff]
      %v832 = vld [vmem:[#allocation2 + $0x13a] sm:$0xff]
      %v833 = vld [vmem:[#allocation2 + $0x142] sm:$0xff]
      %v834 = vld [vmem:[#allocation2 + $0x152] sm:$0xff]
      %v835 = vld [vmem:[#allocation2 + $0x15a] sm:$0xff]
      %v836 = vld [vmem:[#allocation2 + $0x16a] sm:$0xff]
      %v837 = vld [vmem:[#allocation2 + $0x172] sm:$0xff]
      %v838 = vpack.c.bf16 %v806, %v806
      %v839 = vpack.c.bf16 %v807, %v807
      %v840 = vpack.c.bf16 %v808, %v808
      %v841 = vpack.c.bf16 %v809, %v809
      %v842 = vpack.c.bf16 %v810, %v810
      %v843 = vpack.c.bf16 %v811, %v811
      %v844 = vpack.c.bf16 %v812, %v812
      %v845 = vpack.c.bf16 %v813, %v813
      %v846 = vpack.c.bf16 %v814, %v814
      %v847 = vpack.c.bf16 %v815, %v815
      %v848 = vpack.c.bf16 %v816, %v816
      %v849 = vpack.c.bf16 %v817, %v817
      %v850 = vpack.c.bf16 %v818, %v818
      %v851 = vpack.c.bf16 %v819, %v819
      %v852 = vpack.c.bf16 %v820, %v820
      %v853 = vpack.c.bf16 %v821, %v821
      %v854 = vpack.c.bf16 %v822, %v822
      %v855 = vpack.c.bf16 %v823, %v823
      %v856 = vpack.c.bf16 %v824, %v824
      %v857 = vpack.c.bf16 %v825, %v825
      %v858 = vpack.c.bf16 %v826, %v826
      %v859 = vpack.c.bf16 %v827, %v827
      %v860 = vpack.c.bf16 %v828, %v828
      %v861 = vpack.c.bf16 %v829, %v829
      %v862 = vpack.c.bf16 %v830, %v830
      %v863 = vpack.c.bf16 %v831, %v831
      %v864 = vpack.c.bf16 %v832, %v832
      %v865 = vpack.c.bf16 %v833, %v833
      %v866 = vpack.c.bf16 %v834, %v834
      %v867 = vpack.c.bf16 %v835, %v835
      %v868 = vpack.c.bf16 %v836, %v836
      %v869 = vpack.c.bf16 %v837, %v837
      %902 = vrot.lane.b32.xlu0 %v838, 8
      %v903 = vpop.permute.xlu0 %902
      %904 = vrot.lane.b32.xlu0 %v839, 8
      %v905 = vpop.permute.xlu0 %904
      %906 = vrot.lane.b32.xlu0 %v840, 8
      %v907 = vpop.permute.xlu0 %906
      %908 = vrot.lane.b32.xlu0 %v841, 8
      %v909 = vpop.permute.xlu0 %908
      %910 = vrot.lane.b32.xlu0 %v842, 8
      %v911 = vpop.permute.xlu0 %910
      %912 = vrot.lane.b32.xlu0 %v843, 8
      %v913 = vpop.permute.xlu0 %912
      %914 = vrot.lane.b32.xlu0 %v844, 8
      %v915 = vpop.permute.xlu0 %914
      %916 = vrot.lane.b32.xlu0 %v845, 8
      %v917 = vpop.permute.xlu0 %916
      %918 = vrot.lane.b32.xlu0 %v846, 8
      %v919 = vpop.permute.xlu0 %918
      %920 = vrot.lane.b32.xlu0 %v847, 8
      %v921 = vpop.permute.xlu0 %920
      %922 = vrot.lane.b32.xlu0 %v848, 8
      %v923 = vpop.permute.xlu0 %922
      %924 = vrot.lane.b32.xlu0 %v849, 8
      %v925 = vpop.permute.xlu0 %924
      %926 = vrot.lane.b32.xlu0 %v850, 8
      %v927 = vpop.permute.xlu0 %926
      %928 = vrot.lane.b32.xlu0 %v851, 8
      %v929 = vpop.permute.xlu0 %928
      %930 = vrot.lane.b32.xlu0 %v852, 8
      %v931 = vpop.permute.xlu0 %930
      %932 = vrot.lane.b32.xlu0 %v853, 8
      %v933 = vpop.permute.xlu0 %932
      %934 = vrot.lane.b32.xlu0 %v854, 8
      %v935 = vpop.permute.xlu0 %934
      %936 = vrot.lane.b32.xlu0 %v855, 8
      %v937 = vpop.permute.xlu0 %936
      %938 = vrot.lane.b32.xlu0 %v856, 8
      %v939 = vpop.permute.xlu0 %938
      %940 = vrot.lane.b32.xlu0 %v857, 8
      %v941 = vpop.permute.xlu0 %940
      %942 = vrot.lane.b32.xlu0 %v858, 8
      %v943 = vpop.permute.xlu0 %942
      %944 = vrot.lane.b32.xlu0 %v859, 8
      %v945 = vpop.permute.xlu0 %944
      %946 = vrot.lane.b32.xlu0 %v860, 8
      %v947 = vpop.permute.xlu0 %946
      %948 = vrot.lane.b32.xlu0 %v861, 8
      %v949 = vpop.permute.xlu0 %948
      %950 = vrot.lane.b32.xlu0 %v862, 8
      %v951 = vpop.permute.xlu0 %950
      %952 = vrot.lane.b32.xlu0 %v863, 8
      %v953 = vpop.permute.xlu0 %952
      %954 = vrot.lane.b32.xlu0 %v864, 8
      %v955 = vpop.permute.xlu0 %954
      %956 = vrot.lane.b32.xlu0 %v865, 8
      %v957 = vpop.permute.xlu0 %956
      %958 = vrot.lane.b32.xlu0 %v866, 8
      %v959 = vpop.permute.xlu0 %958
      %960 = vrot.lane.b32.xlu0 %v867, 8
      %v961 = vpop.permute.xlu0 %960
      %962 = vrot.lane.b32.xlu0 %v868, 8
      %v963 = vpop.permute.xlu0 %962
      %964 = vrot.lane.b32.xlu0 %v869, 8
      %v965 = vpop.permute.xlu0 %964
      %vm998 = vcmask 93248
      %999 = vst.msk [vmem:[#allocation3] sm:$0xf] %vm998, %v903
      %1000 = vst.msk [vmem:[#allocation3 + $0x4] sm:$0xf] %vm998, %v905
      %1001 = vst.msk [vmem:[#allocation3 + $0x8] sm:$0xf] %vm998, %v907
      %1002 = vst.msk [vmem:[#allocation3 + $0xc] sm:$0xf] %vm998, %v909
      %1003 = vst.msk [vmem:[#allocation3 + $0x10] sm:$0xf] %vm998, %v911
      %1004 = vst.msk [vmem:[#allocation3 + $0x14] sm:$0xf] %vm998, %v913
      %1005 = vst.msk [vmem:[#allocation3 + $0x18] sm:$0xf] %vm998, %v915
      %1006 = vst.msk [vmem:[#allocation3 + $0x1c] sm:$0xf] %vm998, %v917
      %1007 = vst.msk [vmem:[#allocation3 + $0x20] sm:$0xf] %vm998, %v919
      %1008 = vst.msk [vmem:[#allocation3 + $0x24] sm:$0xf] %vm998, %v921
      %1009 = vst.msk [vmem:[#allocation3 + $0x28] sm:$0xf] %vm998, %v923
      %1010 = vst.msk [vmem:[#allocation3 + $0x2c] sm:$0xf] %vm998, %v925
      %1011 = vst.msk [vmem:[#allocation3 + $0x30] sm:$0xf] %vm998, %v927
      %1012 = vst.msk [vmem:[#allocation3 + $0x34] sm:$0xf] %vm998, %v929
      %1013 = vst.msk [vmem:[#allocation3 + $0x38] sm:$0xf] %vm998, %v931
      %1014 = vst.msk [vmem:[#allocation3 + $0x3c] sm:$0xf] %vm998, %v933
      %1015 = vst.msk [vmem:[#allocation3 + $0x40] sm:$0xf] %vm998, %v935
      %1016 = vst.msk [vmem:[#allocation3 + $0x44] sm:$0xf] %vm998, %v937
      %1017 = vst.msk [vmem:[#allocation3 + $0x48] sm:$0xf] %vm998, %v939
      %1018 = vst.msk [vmem:[#allocation3 + $0x4c] sm:$0xf] %vm998, %v941
      %1019 = vst.msk [vmem:[#allocation3 + $0x50] sm:$0xf] %vm998, %v943
      %1020 = vst.msk [vmem:[#allocation3 + $0x54] sm:$0xf] %vm998, %v945
      %1021 = vst.msk [vmem:[#allocation3 + $0x58] sm:$0xf] %vm998, %v947
      %1022 = vst.msk [vmem:[#allocation3 + $0x5c] sm:$0xf] %vm998, %v949
      %1023 = vst.msk [vmem:[#allocation3 + $0x60] sm:$0xf] %vm998, %v951
      %1024 = vst.msk [vmem:[#allocation3 + $0x64] sm:$0xf] %vm998, %v953
      %1025 = vst.msk [vmem:[#allocation3 + $0x68] sm:$0xf] %vm998, %v955
      %1026 = vst.msk [vmem:[#allocation3 + $0x6c] sm:$0xf] %vm998, %v957
      %1027 = vst.msk [vmem:[#allocation3 + $0x70] sm:$0xf] %vm998, %v959
      %1028 = vst.msk [vmem:[#allocation3 + $0x74] sm:$0xf] %vm998, %v961
      %1029 = vst.msk [vmem:[#allocation3 + $0x78] sm:$0xf] %vm998, %v963
      %1030 = vst.msk [vmem:[#allocation3 + $0x7c] sm:$0xf] %vm998, %v965
      %v1031 = vld [vmem:[%s451] sm:$0xff]
      %v1032 = vld [vmem:[%s451 + $0x8] sm:$0xff]
      %v1033 = vld [vmem:[%s451 + $0x18] sm:$0xff]
      %v1034 = vld [vmem:[%s451 + $0x20] sm:$0xff]
      %v1035 = vld [vmem:[%s451 + $0x30] sm:$0xff]
      %v1036 = vld [vmem:[%s451 + $0x38] sm:$0xff]
      %v1037 = vld [vmem:[%s451 + $0x48] sm:$0xff]
      %v1038 = vld [vmem:[%s451 + $0x50] sm:$0xff]
      %v1039 = vld [vmem:[%s451 + $0x60] sm:$0xff]
      %v1040 = vld [vmem:[%s451 + $0x68] sm:$0xff]
      %v1041 = vld [vmem:[%s451 + $0x78] sm:$0xff]
      %v1042 = vld [vmem:[%s451 + $0x80] sm:$0xff]
      %v1043 = vld [vmem:[%s451 + $0x90] sm:$0xff]
      %v1044 = vld [vmem:[%s451 + $0x98] sm:$0xff]
      %v1045 = vld [vmem:[%s451 + $0xa8] sm:$0xff]
      %v1046 = vld [vmem:[%s451 + $0xb0] sm:$0xff]
      %v1047 = vld [vmem:[%s451 + $0xc0] sm:$0xff]
      %v1048 = vld [vmem:[%s451 + $0xc8] sm:$0xff]
      %v1049 = vld [vmem:[%s451 + $0xd8] sm:$0xff]
      %v1050 = vld [vmem:[%s451 + $0xe0] sm:$0xff]
      %v1051 = vld [vmem:[%s451 + $0xf0] sm:$0xff]
      %v1052 = vld [vmem:[%s451 + $0xf8] sm:$0xff]
      %v1053 = vld [vmem:[%s451 + $0x108] sm:$0xff]
      %v1054 = vld [vmem:[%s451 + $0x110] sm:$0xff]
      %v1055 = vld [vmem:[%s451 + $0x120] sm:$0xff]
      %v1056 = vld [vmem:[%s451 + $0x128] sm:$0xff]
      %v1057 = vld [vmem:[%s451 + $0x138] sm:$0xff]
      %v1058 = vld [vmem:[%s451 + $0x140] sm:$0xff]
      %v1059 = vld [vmem:[%s451 + $0x150] sm:$0xff]
      %v1060 = vld [vmem:[%s451 + $0x158] sm:$0xff]
      %v1061 = vld [vmem:[%s451 + $0x168] sm:$0xff]
      %v1062 = vld [vmem:[%s451 + $0x170] sm:$0xff]
      %v1063 = vpack.c.bf16 %v1031, %v1031
      %v1064 = vpack.c.bf16 %v1032, %v1032
      %v1065 = vpack.c.bf16 %v1033, %v1033
      %v1066 = vpack.c.bf16 %v1034, %v1034
      %v1067 = vpack.c.bf16 %v1035, %v1035
      %v1068 = vpack.c.bf16 %v1036, %v1036
      %v1069 = vpack.c.bf16 %v1037, %v1037
      %v1070 = vpack.c.bf16 %v1038, %v1038
      %v1071 = vpack.c.bf16 %v1039, %v1039
      %v1072 = vpack.c.bf16 %v1040, %v1040
      %v1073 = vpack.c.bf16 %v1041, %v1041
      %v1074 = vpack.c.bf16 %v1042, %v1042
      %v1075 = vpack.c.bf16 %v1043, %v1043
      %v1076 = vpack.c.bf16 %v1044, %v1044
      %v1077 = vpack.c.bf16 %v1045, %v1045
      %v1078 = vpack.c.bf16 %v1046, %v1046
      %v1079 = vpack.c.bf16 %v1047, %v1047
      %v1080 = vpack.c.bf16 %v1048, %v1048
      %v1081 = vpack.c.bf16 %v1049, %v1049
      %v1082 = vpack.c.bf16 %v1050, %v1050
      %v1083 = vpack.c.bf16 %v1051, %v1051
      %v1084 = vpack.c.bf16 %v1052, %v1052
      %v1085 = vpack.c.bf16 %v1053, %v1053
      %v1086 = vpack.c.bf16 %v1054, %v1054
      %v1087 = vpack.c.bf16 %v1055, %v1055
      %v1088 = vpack.c.bf16 %v1056, %v1056
      %v1089 = vpack.c.bf16 %v1057, %v1057
      %v1090 = vpack.c.bf16 %v1058, %v1058
      %v1091 = vpack.c.bf16 %v1059, %v1059
      %v1092 = vpack.c.bf16 %v1060, %v1060
      %v1093 = vpack.c.bf16 %v1061, %v1061
      %v1094 = vpack.c.bf16 %v1062, %v1062
      %1127 = vrot.lane.b32.xlu0 %v1063, 12
      %v1128 = vpop.permute.xlu0 %1127
      %1129 = vrot.lane.b32.xlu0 %v1064, 12
      %v1130 = vpop.permute.xlu0 %1129
      %1131 = vrot.lane.b32.xlu0 %v1065, 12
      %v1132 = vpop.permute.xlu0 %1131
      %1133 = vrot.lane.b32.xlu0 %v1066, 12
      %v1134 = vpop.permute.xlu0 %1133
      %1135 = vrot.lane.b32.xlu0 %v1067, 12
      %v1136 = vpop.permute.xlu0 %1135
      %1137 = vrot.lane.b32.xlu0 %v1068, 12
      %v1138 = vpop.permute.xlu0 %1137
      %1139 = vrot.lane.b32.xlu0 %v1069, 12
      %v1140 = vpop.permute.xlu0 %1139
      %1141 = vrot.lane.b32.xlu0 %v1070, 12
      %v1142 = vpop.permute.xlu0 %1141
      %1143 = vrot.lane.b32.xlu0 %v1071, 12
      %v1144 = vpop.permute.xlu0 %1143
      %1145 = vrot.lane.b32.xlu0 %v1072, 12
      %v1146 = vpop.permute.xlu0 %1145
      %1147 = vrot.lane.b32.xlu0 %v1073, 12
      %v1148 = vpop.permute.xlu0 %1147
      %1149 = vrot.lane.b32.xlu0 %v1074, 12
      %v1150 = vpop.permute.xlu0 %1149
      %1151 = vrot.lane.b32.xlu0 %v1075, 12
      %v1152 = vpop.permute.xlu0 %1151
      %1153 = vrot.lane.b32.xlu0 %v1076, 12
      %v1154 = vpop.permute.xlu0 %1153
      %1155 = vrot.lane.b32.xlu0 %v1077, 12
      %v1156 = vpop.permute.xlu0 %1155
      %1157 = vrot.lane.b32.xlu0 %v1078, 12
      %v1158 = vpop.permute.xlu0 %1157
      %1159 = vrot.lane.b32.xlu0 %v1079, 12
      %v1160 = vpop.permute.xlu0 %1159
      %1161 = vrot.lane.b32.xlu0 %v1080, 12
      %v1162 = vpop.permute.xlu0 %1161
      %1163 = vrot.lane.b32.xlu0 %v1081, 12
      %v1164 = vpop.permute.xlu0 %1163
      %1165 = vrot.lane.b32.xlu0 %v1082, 12
      %v1166 = vpop.permute.xlu0 %1165
      %1167 = vrot.lane.b32.xlu0 %v1083, 12
      %v1168 = vpop.permute.xlu0 %1167
      %1169 = vrot.lane.b32.xlu0 %v1084, 12
      %v1170 = vpop.permute.xlu0 %1169
      %1171 = vrot.lane.b32.xlu0 %v1085, 12
      %v1172 = vpop.permute.xlu0 %1171
      %1173 = vrot.lane.b32.xlu0 %v1086, 12
      %v1174 = vpop.permute.xlu0 %1173
      %1175 = vrot.lane.b32.xlu0 %v1087, 12
      %v1176 = vpop.permute.xlu0 %1175
      %1177 = vrot.lane.b32.xlu0 %v1088, 12
      %v1178 = vpop.permute.xlu0 %1177
      %1179 = vrot.lane.b32.xlu0 %v1089, 12
      %v1180 = vpop.permute.xlu0 %1179
      %1181 = vrot.lane.b32.xlu0 %v1090, 12
      %v1182 = vpop.permute.xlu0 %1181
      %1183 = vrot.lane.b32.xlu0 %v1091, 12
      %v1184 = vpop.permute.xlu0 %1183
      %1185 = vrot.lane.b32.xlu0 %v1092, 12
      %v1186 = vpop.permute.xlu0 %1185
      %1187 = vrot.lane.b32.xlu0 %v1093, 12
      %v1188 = vpop.permute.xlu0 %1187
      %1189 = vrot.lane.b32.xlu0 %v1094, 12
      %v1190 = vpop.permute.xlu0 %1189
      %vm1223 = vcmask 126048
      %1224 = vst.msk [vmem:[#allocation3] sm:$0xf] %vm1223, %v1128
      %1225 = vst.msk [vmem:[#allocation3 + $0x4] sm:$0xf] %vm1223, %v1130
      %1226 = vst.msk [vmem:[#allocation3 + $0x8] sm:$0xf] %vm1223, %v1132
      %1227 = vst.msk [vmem:[#allocation3 + $0xc] sm:$0xf] %vm1223, %v1134
      %1228 = vst.msk [vmem:[#allocation3 + $0x10] sm:$0xf] %vm1223, %v1136
      %1229 = vst.msk [vmem:[#allocation3 + $0x14] sm:$0xf] %vm1223, %v1138
      %1230 = vst.msk [vmem:[#allocation3 + $0x18] sm:$0xf] %vm1223, %v1140
      %1231 = vst.msk [vmem:[#allocation3 + $0x1c] sm:$0xf] %vm1223, %v1142
      %1232 = vst.msk [vmem:[#allocation3 + $0x20] sm:$0xf] %vm1223, %v1144
      %1233 = vst.msk [vmem:[#allocation3 + $0x24] sm:$0xf] %vm1223, %v1146
      %1234 = vst.msk [vmem:[#allocation3 + $0x28] sm:$0xf] %vm1223, %v1148
      %1235 = vst.msk [vmem:[#allocation3 + $0x2c] sm:$0xf] %vm1223, %v1150
      %1236 = vst.msk [vmem:[#allocation3 + $0x30] sm:$0xf] %vm1223, %v1152
      %1237 = vst.msk [vmem:[#allocation3 + $0x34] sm:$0xf] %vm1223, %v1154
      %1238 = vst.msk [vmem:[#allocation3 + $0x38] sm:$0xf] %vm1223, %v1156
      %1239 = vst.msk [vmem:[#allocation3 + $0x3c] sm:$0xf] %vm1223, %v1158
      %1240 = vst.msk [vmem:[#allocation3 + $0x40] sm:$0xf] %vm1223, %v1160
      %1241 = vst.msk [vmem:[#allocation3 + $0x44] sm:$0xf] %vm1223, %v1162
      %1242 = vst.msk [vmem:[#allocation3 + $0x48] sm:$0xf] %vm1223, %v1164
      %1243 = vst.msk [vmem:[#allocation3 + $0x4c] sm:$0xf] %vm1223, %v1166
      %1244 = vst.msk [vmem:[#allocation3 + $0x50] sm:$0xf] %vm1223, %v1168
      %1245 = vst.msk [vmem:[#allocation3 + $0x54] sm:$0xf] %vm1223, %v1170
      %1246 = vst.msk [vmem:[#allocation3 + $0x58] sm:$0xf] %vm1223, %v1172
      %1247 = vst.msk [vmem:[#allocation3 + $0x5c] sm:$0xf] %vm1223, %v1174
      %1248 = vst.msk [vmem:[#allocation3 + $0x60] sm:$0xf] %vm1223, %v1176
      %1249 = vst.msk [vmem:[#allocation3 + $0x64] sm:$0xf] %vm1223, %v1178
      %1250 = vst.msk [vmem:[#allocation3 + $0x68] sm:$0xf] %vm1223, %v1180
      %1251 = vst.msk [vmem:[#allocation3 + $0x6c] sm:$0xf] %vm1223, %v1182
      %1252 = vst.msk [vmem:[#allocation3 + $0x70] sm:$0xf] %vm1223, %v1184
      %1253 = vst.msk [vmem:[#allocation3 + $0x74] sm:$0xf] %vm1223, %v1186
      %1254 = vst.msk [vmem:[#allocation3 + $0x78] sm:$0xf] %vm1223, %v1188
      %1255 = vst.msk [vmem:[#allocation3 + $0x7c] sm:$0xf] %vm1223, %v1190
      %v1256 = vld [vmem:[%s451 + $0x1] sm:$0xff]
      %v1257 = vld [vmem:[%s451 + $0x9] sm:$0xff]
      %v1258 = vld [vmem:[%s451 + $0x19] sm:$0xff]
      %v1259 = vld [vmem:[%s451 + $0x21] sm:$0xff]
      %v1260 = vld [vmem:[%s451 + $0x31] sm:$0xff]
      %v1261 = vld [vmem:[%s451 + $0x39] sm:$0xff]
      %v1262 = vld [vmem:[%s451 + $0x49] sm:$0xff]
      %v1263 = vld [vmem:[%s451 + $0x51] sm:$0xff]
      %v1264 = vld [vmem:[%s451 + $0x61] sm:$0xff]
      %v1265 = vld [vmem:[%s451 + $0x69] sm:$0xff]
      %v1266 = vld [vmem:[%s451 + $0x79] sm:$0xff]
      %v1267 = vld [vmem:[%s451 + $0x81] sm:$0xff]
      %v1268 = vld [vmem:[%s451 + $0x91] sm:$0xff]
      %v1269 = vld [vmem:[%s451 + $0x99] sm:$0xff]
      %v1270 = vld [vmem:[%s451 + $0xa9] sm:$0xff]
      %v1271 = vld [vmem:[%s451 + $0xb1] sm:$0xff]
      %v1272 = vld [vmem:[%s451 + $0xc1] sm:$0xff]
      %v1273 = vld [vmem:[%s451 + $0xc9] sm:$0xff]
      %v1274 = vld [vmem:[%s451 + $0xd9] sm:$0xff]
      %v1275 = vld [vmem:[%s451 + $0xe1] sm:$0xff]
      %v1276 = vld [vmem:[%s451 + $0xf1] sm:$0xff]
      %v1277 = vld [vmem:[%s451 + $0xf9] sm:$0xff]
      %v1278 = vld [vmem:[%s451 + $0x109] sm:$0xff]
      %v1279 = vld [vmem:[%s451 + $0x111] sm:$0xff]
      %v1280 = vld [vmem:[%s451 + $0x121] sm:$0xff]
      %v1281 = vld [vmem:[%s451 + $0x129] sm:$0xff]
      %v1282 = vld [vmem:[%s451 + $0x139] sm:$0xff]
      %v1283 = vld [vmem:[%s451 + $0x141] sm:$0xff]
      %v1284 = vld [vmem:[%s451 + $0x151] sm:$0xff]
      %v1285 = vld [vmem:[%s451 + $0x159] sm:$0xff]
      %v1286 = vld [vmem:[%s451 + $0x169] sm:$0xff]
      %v1287 = vld [vmem:[%s451 + $0x171] sm:$0xff]
      %v1288 = vpack.c.bf16 %v1256, %v1256
      %v1289 = vpack.c.bf16 %v1257, %v1257
      %v1290 = vpack.c.bf16 %v1258, %v1258
      %v1291 = vpack.c.bf16 %v1259, %v1259
      %v1292 = vpack.c.bf16 %v1260, %v1260
      %v1293 = vpack.c.bf16 %v1261, %v1261
      %v1294 = vpack.c.bf16 %v1262, %v1262
      %v1295 = vpack.c.bf16 %v1263, %v1263
      %v1296 = vpack.c.bf16 %v1264, %v1264
      %v1297 = vpack.c.bf16 %v1265, %v1265
      %v1298 = vpack.c.bf16 %v1266, %v1266
      %v1299 = vpack.c.bf16 %v1267, %v1267
      %v1300 = vpack.c.bf16 %v1268, %v1268
      %v1301 = vpack.c.bf16 %v1269, %v1269
      %v1302 = vpack.c.bf16 %v1270, %v1270
      %v1303 = vpack.c.bf16 %v1271, %v1271
      %v1304 = vpack.c.bf16 %v1272, %v1272
      %v1305 = vpack.c.bf16 %v1273, %v1273
      %v1306 = vpack.c.bf16 %v1274, %v1274
      %v1307 = vpack.c.bf16 %v1275, %v1275
      %v1308 = vpack.c.bf16 %v1276, %v1276
      %v1309 = vpack.c.bf16 %v1277, %v1277
      %v1310 = vpack.c.bf16 %v1278, %v1278
      %v1311 = vpack.c.bf16 %v1279, %v1279
      %v1312 = vpack.c.bf16 %v1280, %v1280
      %v1313 = vpack.c.bf16 %v1281, %v1281
      %v1314 = vpack.c.bf16 %v1282, %v1282
      %v1315 = vpack.c.bf16 %v1283, %v1283
      %v1316 = vpack.c.bf16 %v1284, %v1284
      %v1317 = vpack.c.bf16 %v1285, %v1285
      %v1318 = vpack.c.bf16 %v1286, %v1286
      %v1319 = vpack.c.bf16 %v1287, %v1287
      %1352 = vrot.lane.b32.xlu0 %v1288, 16
      %v1353 = vpop.permute.xlu0 %1352
      %1354 = vrot.lane.b32.xlu0 %v1289, 16
      %v1355 = vpop.permute.xlu0 %1354
      %1356 = vrot.lane.b32.xlu0 %v1290, 16
      %v1357 = vpop.permute.xlu0 %1356
      %1358 = vrot.lane.b32.xlu0 %v1291, 16
      %v1359 = vpop.permute.xlu0 %1358
      %1360 = vrot.lane.b32.xlu0 %v1292, 16
      %v1361 = vpop.permute.xlu0 %1360
      %1362 = vrot.lane.b32.xlu0 %v1293, 16
      %v1363 = vpop.permute.xlu0 %1362
      %1364 = vrot.lane.b32.xlu0 %v1294, 16
      %v1365 = vpop.permute.xlu0 %1364
      %1366 = vrot.lane.b32.xlu0 %v1295, 16
      %v1367 = vpop.permute.xlu0 %1366
      %1368 = vrot.lane.b32.xlu0 %v1296, 16
      %v1369 = vpop.permute.xlu0 %1368
      %1370 = vrot.lane.b32.xlu0 %v1297, 16
      %v1371 = vpop.permute.xlu0 %1370
      %1372 = vrot.lane.b32.xlu0 %v1298, 16
      %v1373 = vpop.permute.xlu0 %1372
      %1374 = vrot.lane.b32.xlu0 %v1299, 16
      %v1375 = vpop.permute.xlu0 %1374
      %1376 = vrot.lane.b32.xlu0 %v1300, 16
      %v1377 = vpop.permute.xlu0 %1376
      %1378 = vrot.lane.b32.xlu0 %v1301, 16
      %v1379 = vpop.permute.xlu0 %1378
      %1380 = vrot.lane.b32.xlu0 %v1302, 16
      %v1381 = vpop.permute.xlu0 %1380
      %1382 = vrot.lane.b32.xlu0 %v1303, 16
      %v1383 = vpop.permute.xlu0 %1382
      %1384 = vrot.lane.b32.xlu0 %v1304, 16
      %v1385 = vpop.permute.xlu0 %1384
      %1386 = vrot.lane.b32.xlu0 %v1305, 16
      %v1387 = vpop.permute.xlu0 %1386
      %1388 = vrot.lane.b32.xlu0 %v1306, 16
      %v1389 = vpop.permute.xlu0 %1388
      %1390 = vrot.lane.b32.xlu0 %v1307, 16
      %v1391 = vpop.permute.xlu0 %1390
      %1392 = vrot.lane.b32.xlu0 %v1308, 16
      %v1393 = vpop.permute.xlu0 %1392
      %1394 = vrot.lane.b32.xlu0 %v1309, 16
      %v1395 = vpop.permute.xlu0 %1394
      %1396 = vrot.lane.b32.xlu0 %v1310, 16
      %v1397 = vpop.permute.xlu0 %1396
      %1398 = vrot.lane.b32.xlu0 %v1311, 16
      %v1399 = vpop.permute.xlu0 %1398
      %1400 = vrot.lane.b32.xlu0 %v1312, 16
      %v1401 = vpop.permute.xlu0 %1400
      %1402 = vrot.lane.b32.xlu0 %v1313, 16
      %v1403 = vpop.permute.xlu0 %1402
      %1404 = vrot.lane.b32.xlu0 %v1314, 16
      %v1405 = vpop.permute.xlu0 %1404
      %1406 = vrot.lane.b32.xlu0 %v1315, 16
      %v1407 = vpop.permute.xlu0 %1406
      %1408 = vrot.lane.b32.xlu0 %v1316, 16
      %v1409 = vpop.permute.xlu0 %1408
      %1410 = vrot.lane.b32.xlu0 %v1317, 16
      %v1411 = vpop.permute.xlu0 %1410
      %1412 = vrot.lane.b32.xlu0 %v1318, 16
      %v1413 = vpop.permute.xlu0 %1412
      %1414 = vrot.lane.b32.xlu0 %v1319, 16
      %v1415 = vpop.permute.xlu0 %1414
      %vm1448 = vcmask 158848
      %1449 = vst.msk [vmem:[#allocation3] sm:$0xf] %vm1448, %v1353
      %1450 = vst.msk [vmem:[#allocation3 + $0x4] sm:$0xf] %vm1448, %v1355
      %1451 = vst.msk [vmem:[#allocation3 + $0x8] sm:$0xf] %vm1448, %v1357
      %1452 = vst.msk [vmem:[#allocation3 + $0xc] sm:$0xf] %vm1448, %v1359
      %1453 = vst.msk [vmem:[#allocation3 + $0x10] sm:$0xf] %vm1448, %v1361
      %1454 = vst.msk [vmem:[#allocation3 + $0x14] sm:$0xf] %vm1448, %v1363
      %1455 = vst.msk [vmem:[#allocation3 + $0x18] sm:$0xf] %vm1448, %v1365
      %1456 = vst.msk [vmem:[#allocation3 + $0x1c] sm:$0xf] %vm1448, %v1367
      %1457 = vst.msk [vmem:[#allocation3 + $0x20] sm:$0xf] %vm1448, %v1369
      %1458 = vst.msk [vmem:[#allocation3 + $0x24] sm:$0xf] %vm1448, %v1371
      %1459 = vst.msk [vmem:[#allocation3 + $0x28] sm:$0xf] %vm1448, %v1373
      %1460 = vst.msk [vmem:[#allocation3 + $0x2c] sm:$0xf] %vm1448, %v1375
      %1461 = vst.msk [vmem:[#allocation3 + $0x30] sm:$0xf] %vm1448, %v1377
      %1462 = vst.msk [vmem:[#allocation3 + $0x34] sm:$0xf] %vm1448, %v1379
      %1463 = vst.msk [vmem:[#allocation3 + $0x38] sm:$0xf] %vm1448, %v1381
      %1464 = vst.msk [vmem:[#allocation3 + $0x3c] sm:$0xf] %vm1448, %v1383
      %1465 = vst.msk [vmem:[#allocation3 + $0x40] sm:$0xf] %vm1448, %v1385
      %1466 = vst.msk [vmem:[#allocation3 + $0x44] sm:$0xf] %vm1448, %v1387
      %1467 = vst.msk [vmem:[#allocation3 + $0x48] sm:$0xf] %vm1448, %v1389
      %1468 = vst.msk [vmem:[#allocation3 + $0x4c] sm:$0xf] %vm1448, %v1391
      %1469 = vst.msk [vmem:[#allocation3 + $0x50] sm:$0xf] %vm1448, %v1393
      %1470 = vst.msk [vmem:[#allocation3 + $0x54] sm:$0xf] %vm1448, %v1395
      %1471 = vst.msk [vmem:[#allocation3 + $0x58] sm:$0xf] %vm1448, %v1397
      %1472 = vst.msk [vmem:[#allocation3 + $0x5c] sm:$0xf] %vm1448, %v1399
      %1473 = vst.msk [vmem:[#allocation3 + $0x60] sm:$0xf] %vm1448, %v1401
      %1474 = vst.msk [vmem:[#allocation3 + $0x64] sm:$0xf] %vm1448, %v1403
      %1475 = vst.msk [vmem:[#allocation3 + $0x68] sm:$0xf] %vm1448, %v1405
      %1476 = vst.msk [vmem:[#allocation3 + $0x6c] sm:$0xf] %vm1448, %v1407
      %1477 = vst.msk [vmem:[#allocation3 + $0x70] sm:$0xf] %vm1448, %v1409
      %1478 = vst.msk [vmem:[#allocation3 + $0x74] sm:$0xf] %vm1448, %v1411
      %1479 = vst.msk [vmem:[#allocation3 + $0x78] sm:$0xf] %vm1448, %v1413
      %1480 = vst.msk [vmem:[#allocation3 + $0x7c] sm:$0xf] %vm1448, %v1415
      %v1481 = vld [vmem:[%s451 + $0x2] sm:$0xff]
      %v1482 = vld [vmem:[%s451 + $0xa] sm:$0xff]
      %v1483 = vld [vmem:[%s451 + $0x1a] sm:$0xff]
      %v1484 = vld [vmem:[%s451 + $0x22] sm:$0xff]
      %v1485 = vld [vmem:[%s451 + $0x32] sm:$0xff]
      %v1486 = vld [vmem:[%s451 + $0x3a] sm:$0xff]
      %v1487 = vld [vmem:[%s451 + $0x4a] sm:$0xff]
      %v1488 = vld [vmem:[%s451 + $0x52] sm:$0xff]
      %v1489 = vld [vmem:[%s451 + $0x62] sm:$0xff]
      %v1490 = vld [vmem:[%s451 + $0x6a] sm:$0xff]
      %v1491 = vld [vmem:[%s451 + $0x7a] sm:$0xff]
      %v1492 = vld [vmem:[%s451 + $0x82] sm:$0xff]
      %v1493 = vld [vmem:[%s451 + $0x92] sm:$0xff]
      %v1494 = vld [vmem:[%s451 + $0x9a] sm:$0xff]
      %v1495 = vld [vmem:[%s451 + $0xaa] sm:$0xff]
      %v1496 = vld [vmem:[%s451 + $0xb2] sm:$0xff]
      %v1497 = vld [vmem:[%s451 + $0xc2] sm:$0xff]
      %v1498 = vld [vmem:[%s451 + $0xca] sm:$0xff]
      %v1499 = vld [vmem:[%s451 + $0xda] sm:$0xff]
      %v1500 = vld [vmem:[%s451 + $0xe2] sm:$0xff]
      %v1501 = vld [vmem:[%s451 + $0xf2] sm:$0xff]
      %v1502 = vld [vmem:[%s451 + $0xfa] sm:$0xff]
      %v1503 = vld [vmem:[%s451 + $0x10a] sm:$0xff]
      %v1504 = vld [vmem:[%s451 + $0x112] sm:$0xff]
      %v1505 = vld [vmem:[%s451 + $0x122] sm:$0xff]
      %v1506 = vld [vmem:[%s451 + $0x12a] sm:$0xff]
      %v1507 = vld [vmem:[%s451 + $0x13a] sm:$0xff]
      %v1508 = vld [vmem:[%s451 + $0x142] sm:$0xff]
      %v1509 = vld [vmem:[%s451 + $0x152] sm:$0xff]
      %v1510 = vld [vmem:[%s451 + $0x15a] sm:$0xff]
      %v1511 = vld [vmem:[%s451 + $0x16a] sm:$0xff]
      %v1512 = vld [vmem:[%s451 + $0x172] sm:$0xff]
      %v1513 = vpack.c.bf16 %v1481, %v1481
      %v1514 = vpack.c.bf16 %v1482, %v1482
      %v1515 = vpack.c.bf16 %v1483, %v1483
      %v1516 = vpack.c.bf16 %v1484, %v1484
      %v1517 = vpack.c.bf16 %v1485, %v1485
      %v1518 = vpack.c.bf16 %v1486, %v1486
      %v1519 = vpack.c.bf16 %v1487, %v1487
      %v1520 = vpack.c.bf16 %v1488, %v1488
      %v1521 = vpack.c.bf16 %v1489, %v1489
      %v1522 = vpack.c.bf16 %v1490, %v1490
      %v1523 = vpack.c.bf16 %v1491, %v1491
      %v1524 = vpack.c.bf16 %v1492, %v1492
      %v1525 = vpack.c.bf16 %v1493, %v1493
      %v1526 = vpack.c.bf16 %v1494, %v1494
      %v1527 = vpack.c.bf16 %v1495, %v1495
      %v1528 = vpack.c.bf16 %v1496, %v1496
      %v1529 = vpack.c.bf16 %v1497, %v1497
      %v1530 = vpack.c.bf16 %v1498, %v1498
      %v1531 = vpack.c.bf16 %v1499, %v1499
      %v1532 = vpack.c.bf16 %v1500, %v1500
      %v1533 = vpack.c.bf16 %v1501, %v1501
      %v1534 = vpack.c.bf16 %v1502, %v1502
      %v1535 = vpack.c.bf16 %v1503, %v1503
      %v1536 = vpack.c.bf16 %v1504, %v1504
      %v1537 = vpack.c.bf16 %v1505, %v1505
      %v1538 = vpack.c.bf16 %v1506, %v1506
      %v1539 = vpack.c.bf16 %v1507, %v1507
      %v1540 = vpack.c.bf16 %v1508, %v1508
      %v1541 = vpack.c.bf16 %v1509, %v1509
      %v1542 = vpack.c.bf16 %v1510, %v1510
      %v1543 = vpack.c.bf16 %v1511, %v1511
      %v1544 = vpack.c.bf16 %v1512, %v1512
      %1577 = vrot.lane.b32.xlu0 %v1513, 20
      %v1578 = vpop.permute.xlu0 %1577
      %1579 = vrot.lane.b32.xlu0 %v1514, 20
      %v1580 = vpop.permute.xlu0 %1579
      %1581 = vrot.lane.b32.xlu0 %v1515, 20
      %v1582 = vpop.permute.xlu0 %1581
      %1583 = vrot.lane.b32.xlu0 %v1516, 20
      %v1584 = vpop.permute.xlu0 %1583
      %1585 = vrot.lane.b32.xlu0 %v1517, 20
      %v1586 = vpop.permute.xlu0 %1585
      %1587 = vrot.lane.b32.xlu0 %v1518, 20
      %v1588 = vpop.permute.xlu0 %1587
      %1589 = vrot.lane.b32.xlu0 %v1519, 20
      %v1590 = vpop.permute.xlu0 %1589
      %1591 = vrot.lane.b32.xlu0 %v1520, 20
      %v1592 = vpop.permute.xlu0 %1591
      %1593 = vrot.lane.b32.xlu0 %v1521, 20
      %v1594 = vpop.permute.xlu0 %1593
      %1595 = vrot.lane.b32.xlu0 %v1522, 20
      %v1596 = vpop.permute.xlu0 %1595
      %1597 = vrot.lane.b32.xlu0 %v1523, 20
      %v1598 = vpop.permute.xlu0 %1597
      %1599 = vrot.lane.b32.xlu0 %v1524, 20
      %v1600 = vpop.permute.xlu0 %1599
      %1601 = vrot.lane.b32.xlu0 %v1525, 20
      %v1602 = vpop.permute.xlu0 %1601
      %1603 = vrot.lane.b32.xlu0 %v1526, 20
      %v1604 = vpop.permute.xlu0 %1603
      %1605 = vrot.lane.b32.xlu0 %v1527, 20
      %v1606 = vpop.permute.xlu0 %1605
      %1607 = vrot.lane.b32.xlu0 %v1528, 20
      %v1608 = vpop.permute.xlu0 %1607
      %1609 = vrot.lane.b32.xlu0 %v1529, 20
      %v1610 = vpop.permute.xlu0 %1609
      %1611 = vrot.lane.b32.xlu0 %v1530, 20
      %v1612 = vpop.permute.xlu0 %1611
      %1613 = vrot.lane.b32.xlu0 %v1531, 20
      %v1614 = vpop.permute.xlu0 %1613
      %1615 = vrot.lane.b32.xlu0 %v1532, 20
      %v1616 = vpop.permute.xlu0 %1615
      %1617 = vrot.lane.b32.xlu0 %v1533, 20
      %v1618 = vpop.permute.xlu0 %1617
      %1619 = vrot.lane.b32.xlu0 %v1534, 20
      %v1620 = vpop.permute.xlu0 %1619
      %1621 = vrot.lane.b32.xlu0 %v1535, 20
      %v1622 = vpop.permute.xlu0 %1621
      %1623 = vrot.lane.b32.xlu0 %v1536, 20
      %v1624 = vpop.permute.xlu0 %1623
      %1625 = vrot.lane.b32.xlu0 %v1537, 20
      %v1626 = vpop.permute.xlu0 %1625
      %1627 = vrot.lane.b32.xlu0 %v1538, 20
      %v1628 = vpop.permute.xlu0 %1627
      %1629 = vrot.lane.b32.xlu0 %v1539, 20
      %v1630 = vpop.permute.xlu0 %1629
      %1631 = vrot.lane.b32.xlu0 %v1540, 20
      %v1632 = vpop.permute.xlu0 %1631
      %1633 = vrot.lane.b32.xlu0 %v1541, 20
      %v1634 = vpop.permute.xlu0 %1633
      %1635 = vrot.lane.b32.xlu0 %v1542, 20
      %v1636 = vpop.permute.xlu0 %1635
      %1637 = vrot.lane.b32.xlu0 %v1543, 20
      %v1638 = vpop.permute.xlu0 %1637
      %1639 = vrot.lane.b32.xlu0 %v1544, 20
      %v1640 = vpop.permute.xlu0 %1639
      %vm1673 = vcmask 191648
      %1674 = vst.msk [vmem:[#allocation3] sm:$0xf] %vm1673, %v1578
      %1675 = vst.msk [vmem:[#allocation3 + $0x4] sm:$0xf] %vm1673, %v1580
      %1676 = vst.msk [vmem:[#allocation3 + $0x8] sm:$0xf] %vm1673, %v1582
      %1677 = vst.msk [vmem:[#allocation3 + $0xc] sm:$0xf] %vm1673, %v1584
      %1678 = vst.msk [vmem:[#allocation3 + $0x10] sm:$0xf] %vm1673, %v1586
      %1679 = vst.msk [vmem:[#allocation3 + $0x14] sm:$0xf] %vm1673, %v1588
      %1680 = vst.msk [vmem:[#allocation3 + $0x18] sm:$0xf] %vm1673, %v1590
      %1681 = vst.msk [vmem:[#allocation3 + $0x1c] sm:$0xf] %vm1673, %v1592
      %1682 = vst.msk [vmem:[#allocation3 + $0x20] sm:$0xf] %vm1673, %v1594
      %1683 = vst.msk [vmem:[#allocation3 + $0x24] sm:$0xf] %vm1673, %v1596
      %1684 = vst.msk [vmem:[#allocation3 + $0x28] sm:$0xf] %vm1673, %v1598
      %1685 = vst.msk [vmem:[#allocation3 + $0x2c] sm:$0xf] %vm1673, %v1600
      %1686 = vst.msk [vmem:[#allocation3 + $0x30] sm:$0xf] %vm1673, %v1602
      %1687 = vst.msk [vmem:[#allocation3 + $0x34] sm:$0xf] %vm1673, %v1604
      %1688 = vst.msk [vmem:[#allocation3 + $0x38] sm:$0xf] %vm1673, %v1606
      %1689 = vst.msk [vmem:[#allocation3 + $0x3c] sm:$0xf] %vm1673, %v1608
      %1690 = vst.msk [vmem:[#allocation3 + $0x40] sm:$0xf] %vm1673, %v1610
      %1691 = vst.msk [vmem:[#allocation3 + $0x44] sm:$0xf] %vm1673, %v1612
      %1692 = vst.msk [vmem:[#allocation3 + $0x48] sm:$0xf] %vm1673, %v1614
      %1693 = vst.msk [vmem:[#allocation3 + $0x4c] sm:$0xf] %vm1673, %v1616
      %1694 = vst.msk [vmem:[#allocation3 + $0x50] sm:$0xf] %vm1673, %v1618
      %1695 = vst.msk [vmem:[#allocation3 + $0x54] sm:$0xf] %vm1673, %v1620
      %1696 = vst.msk [vmem:[#allocation3 + $0x58] sm:$0xf] %vm1673, %v1622
      %1697 = vst.msk [vmem:[#allocation3 + $0x5c] sm:$0xf] %vm1673, %v1624
      %1698 = vst.msk [vmem:[#allocation3 + $0x60] sm:$0xf] %vm1673, %v1626
      %1699 = vst.msk [vmem:[#allocation3 + $0x64] sm:$0xf] %vm1673, %v1628
      %1700 = vst.msk [vmem:[#allocation3 + $0x68] sm:$0xf] %vm1673, %v1630
      %1701 = vst.msk [vmem:[#allocation3 + $0x6c] sm:$0xf] %vm1673, %v1632
      %1702 = vst.msk [vmem:[#allocation3 + $0x70] sm:$0xf] %vm1673, %v1634
      %1703 = vst.msk [vmem:[#allocation3 + $0x74] sm:$0xf] %vm1673, %v1636
      %1704 = vst.msk [vmem:[#allocation3 + $0x78] sm:$0xf] %vm1673, %v1638
      %1705 = vst.msk [vmem:[#allocation3 + $0x7c] sm:$0xf] %vm1673, %v1640
      %s1706 = scalar_lea.vmem [#allocation2], 48
      %v1707 = vld [vmem:[%s1706] sm:$0xff]
      %v1708 = vld [vmem:[%s1706 + $0x8] sm:$0xff]
      %v1709 = vld [vmem:[%s1706 + $0x18] sm:$0xff]
      %v1710 = vld [vmem:[%s1706 + $0x20] sm:$0xff]
      %v1711 = vld [vmem:[%s1706 + $0x30] sm:$0xff]
      %v1712 = vld [vmem:[%s1706 + $0x38] sm:$0xff]
      %v1713 = vld [vmem:[%s1706 + $0x48] sm:$0xff]
      %v1714 = vld [vmem:[%s1706 + $0x50] sm:$0xff]
      %v1715 = vld [vmem:[%s1706 + $0x60] sm:$0xff]
      %v1716 = vld [vmem:[%s1706 + $0x68] sm:$0xff]
      %v1717 = vld [vmem:[%s1706 + $0x78] sm:$0xff]
      %v1718 = vld [vmem:[%s1706 + $0x80] sm:$0xff]
      %v1719 = vld [vmem:[%s1706 + $0x90] sm:$0xff]
      %v1720 = vld [vmem:[%s1706 + $0x98] sm:$0xff]
      %v1721 = vld [vmem:[%s1706 + $0xa8] sm:$0xff]
      %v1722 = vld [vmem:[%s1706 + $0xb0] sm:$0xff]
      %v1723 = vld [vmem:[%s1706 + $0xc0] sm:$0xff]
      %v1724 = vld [vmem:[%s1706 + $0xc8] sm:$0xff]
      %v1725 = vld [vmem:[%s1706 + $0xd8] sm:$0xff]
      %v1726 = vld [vmem:[%s1706 + $0xe0] sm:$0xff]
      %v1727 = vld [vmem:[%s1706 + $0xf0] sm:$0xff]
      %v1728 = vld [vmem:[%s1706 + $0xf8] sm:$0xff]
      %v1729 = vld [vmem:[%s1706 + $0x108] sm:$0xff]
      %v1730 = vld [vmem:[%s1706 + $0x110] sm:$0xff]
      %v1731 = vld [vmem:[%s1706 + $0x120] sm:$0xff]
      %v1732 = vld [vmem:[%s1706 + $0x128] sm:$0xff]
      %v1733 = vld [vmem:[%s1706 + $0x138] sm:$0xff]
      %v1734 = vld [vmem:[%s1706 + $0x140] sm:$0xff]
      %v1735 = vld [vmem:[%s1706 + $0x150] sm:$0xff]
      %v1736 = vld [vmem:[%s1706 + $0x158] sm:$0xff]
      %v1737 = vld [vmem:[%s1706 + $0x168] sm:$0xff]
      %v1738 = vld [vmem:[%s1706 + $0x170] sm:$0xff]
      %v1739 = vpack.c.bf16 %v1707, %v1707
      %v1740 = vpack.c.bf16 %v1708, %v1708
      %v1741 = vpack.c.bf16 %v1709, %v1709
      %v1742 = vpack.c.bf16 %v1710, %v1710
      %v1743 = vpack.c.bf16 %v1711, %v1711
      %v1744 = vpack.c.bf16 %v1712, %v1712
      %v1745 = vpack.c.bf16 %v1713, %v1713
      %v1746 = vpack.c.bf16 %v1714, %v1714
      %v1747 = vpack.c.bf16 %v1715, %v1715
      %v1748 = vpack.c.bf16 %v1716, %v1716
      %v1749 = vpack.c.bf16 %v1717, %v1717
      %v1750 = vpack.c.bf16 %v1718, %v1718
      %v1751 = vpack.c.bf16 %v1719, %v1719
      %v1752 = vpack.c.bf16 %v1720, %v1720
      %v1753 = vpack.c.bf16 %v1721, %v1721
      %v1754 = vpack.c.bf16 %v1722, %v1722
      %v1755 = vpack.c.bf16 %v1723, %v1723
      %v1756 = vpack.c.bf16 %v1724, %v1724
      %v1757 = vpack.c.bf16 %v1725, %v1725
      %v1758 = vpack.c.bf16 %v1726, %v1726
      %v1759 = vpack.c.bf16 %v1727, %v1727
      %v1760 = vpack.c.bf16 %v1728, %v1728
      %v1761 = vpack.c.bf16 %v1729, %v1729
      %v1762 = vpack.c.bf16 %v1730, %v1730
      %v1763 = vpack.c.bf16 %v1731, %v1731
      %v1764 = vpack.c.bf16 %v1732, %v1732
      %v1765 = vpack.c.bf16 %v1733, %v1733
      %v1766 = vpack.c.bf16 %v1734, %v1734
      %v1767 = vpack.c.bf16 %v1735, %v1735
      %v1768 = vpack.c.bf16 %v1736, %v1736
      %v1769 = vpack.c.bf16 %v1737, %v1737
      %v1770 = vpack.c.bf16 %v1738, %v1738
      %1803 = vrot.lane.b32.xlu0 %v1739, 24
      %v1804 = vpop.permute.xlu0 %1803
      %1805 = vrot.lane.b32.xlu0 %v1740, 24
      %v1806 = vpop.permute.xlu0 %1805
      %1807 = vrot.lane.b32.xlu0 %v1741, 24
      %v1808 = vpop.permute.xlu0 %1807
      %1809 = vrot.lane.b32.xlu0 %v1742, 24
      %v1810 = vpop.permute.xlu0 %1809
      %1811 = vrot.lane.b32.xlu0 %v1743, 24
      %v1812 = vpop.permute.xlu0 %1811
      %1813 = vrot.lane.b32.xlu0 %v1744, 24
      %v1814 = vpop.permute.xlu0 %1813
      %1815 = vrot.lane.b32.xlu0 %v1745, 24
      %v1816 = vpop.permute.xlu0 %1815
      %1817 = vrot.lane.b32.xlu0 %v1746, 24
      %v1818 = vpop.permute.xlu0 %1817
      %1819 = vrot.lane.b32.xlu0 %v1747, 24
      %v1820 = vpop.permute.xlu0 %1819
      %1821 = vrot.lane.b32.xlu0 %v1748, 24
      %v1822 = vpop.permute.xlu0 %1821
      %1823 = vrot.lane.b32.xlu0 %v1749, 24
      %v1824 = vpop.permute.xlu0 %1823
      %1825 = vrot.lane.b32.xlu0 %v1750, 24
      %v1826 = vpop.permute.xlu0 %1825
      %1827 = vrot.lane.b32.xlu0 %v1751, 24
      %v1828 = vpop.permute.xlu0 %1827
      %1829 = vrot.lane.b32.xlu0 %v1752, 24
      %v1830 = vpop.permute.xlu0 %1829
      %1831 = vrot.lane.b32.xlu0 %v1753, 24
      %v1832 = vpop.permute.xlu0 %1831
      %1833 = vrot.lane.b32.xlu0 %v1754, 24
      %v1834 = vpop.permute.xlu0 %1833
      %1835 = vrot.lane.b32.xlu0 %v1755, 24
      %v1836 = vpop.permute.xlu0 %1835
      %1837 = vrot.lane.b32.xlu0 %v1756, 24
      %v1838 = vpop.permute.xlu0 %1837
      %1839 = vrot.lane.b32.xlu0 %v1757, 24
      %v1840 = vpop.permute.xlu0 %1839
      %1841 = vrot.lane.b32.xlu0 %v1758, 24
      %v1842 = vpop.permute.xlu0 %1841
      %1843 = vrot.lane.b32.xlu0 %v1759, 24
      %v1844 = vpop.permute.xlu0 %1843
      %1845 = vrot.lane.b32.xlu0 %v1760, 24
      %v1846 = vpop.permute.xlu0 %1845
      %1847 = vrot.lane.b32.xlu0 %v1761, 24
      %v1848 = vpop.permute.xlu0 %1847
      %1849 = vrot.lane.b32.xlu0 %v1762, 24
      %v1850 = vpop.permute.xlu0 %1849
      %1851 = vrot.lane.b32.xlu0 %v1763, 24
      %v1852 = vpop.permute.xlu0 %1851
      %1853 = vrot.lane.b32.xlu0 %v1764, 24
      %v1854 = vpop.permute.xlu0 %1853
      %1855 = vrot.lane.b32.xlu0 %v1765, 24
      %v1856 = vpop.permute.xlu0 %1855
      %1857 = vrot.lane.b32.xlu0 %v1766, 24
      %v1858 = vpop.permute.xlu0 %1857
      %1859 = vrot.lane.b32.xlu0 %v1767, 24
      %v1860 = vpop.permute.xlu0 %1859
      %1861 = vrot.lane.b32.xlu0 %v1768, 24
      %v1862 = vpop.permute.xlu0 %1861
      %1863 = vrot.lane.b32.xlu0 %v1769, 24
      %v1864 = vpop.permute.xlu0 %1863
      %1865 = vrot.lane.b32.xlu0 %v1770, 24
      %v1866 = vpop.permute.xlu0 %1865
      %vm1899 = vcmask 224448
      %1900 = vst.msk [vmem:[#allocation3] sm:$0xf] %vm1899, %v1804
      %1901 = vst.msk [vmem:[#allocation3 + $0x4] sm:$0xf] %vm1899, %v1806
      %1902 = vst.msk [vmem:[#allocation3 + $0x8] sm:$0xf] %vm1899, %v1808
      %1903 = vst.msk [vmem:[#allocation3 + $0xc] sm:$0xf] %vm1899, %v1810
      %1904 = vst.msk [vmem:[#allocation3 + $0x10] sm:$0xf] %vm1899, %v1812
      %1905 = vst.msk [vmem:[#allocation3 + $0x14] sm:$0xf] %vm1899, %v1814
      %1906 = vst.msk [vmem:[#allocation3 + $0x18] sm:$0xf] %vm1899, %v1816
      %1907 = vst.msk [vmem:[#allocation3 + $0x1c] sm:$0xf] %vm1899, %v1818
      %1908 = vst.msk [vmem:[#allocation3 + $0x20] sm:$0xf] %vm1899, %v1820
      %1909 = vst.msk [vmem:[#allocation3 + $0x24] sm:$0xf] %vm1899, %v1822
      %1910 = vst.msk [vmem:[#allocation3 + $0x28] sm:$0xf] %vm1899, %v1824
      %1911 = vst.msk [vmem:[#allocation3 + $0x2c] sm:$0xf] %vm1899, %v1826
      %1912 = vst.msk [vmem:[#allocation3 + $0x30] sm:$0xf] %vm1899, %v1828
      %1913 = vst.msk [vmem:[#allocation3 + $0x34] sm:$0xf] %vm1899, %v1830
      %1914 = vst.msk [vmem:[#allocation3 + $0x38] sm:$0xf] %vm1899, %v1832
      %1915 = vst.msk [vmem:[#allocation3 + $0x3c] sm:$0xf] %vm1899, %v1834
      %1916 = vst.msk [vmem:[#allocation3 + $0x40] sm:$0xf] %vm1899, %v1836
      %1917 = vst.msk [vmem:[#allocation3 + $0x44] sm:$0xf] %vm1899, %v1838
      %1918 = vst.msk [vmem:[#allocation3 + $0x48] sm:$0xf] %vm1899, %v1840
      %1919 = vst.msk [vmem:[#allocation3 + $0x4c] sm:$0xf] %vm1899, %v1842
      %1920 = vst.msk [vmem:[#allocation3 + $0x50] sm:$0xf] %vm1899, %v1844
      %1921 = vst.msk [vmem:[#allocation3 + $0x54] sm:$0xf] %vm1899, %v1846
      %1922 = vst.msk [vmem:[#allocation3 + $0x58] sm:$0xf] %vm1899, %v1848
      %1923 = vst.msk [vmem:[#allocation3 + $0x5c] sm:$0xf] %vm1899, %v1850
      %1924 = vst.msk [vmem:[#allocation3 + $0x60] sm:$0xf] %vm1899, %v1852
      %1925 = vst.msk [vmem:[#allocation3 + $0x64] sm:$0xf] %vm1899, %v1854
      %1926 = vst.msk [vmem:[#allocation3 + $0x68] sm:$0xf] %vm1899, %v1856
      %1927 = vst.msk [vmem:[#allocation3 + $0x6c] sm:$0xf] %vm1899, %v1858
      %1928 = vst.msk [vmem:[#allocation3 + $0x70] sm:$0xf] %vm1899, %v1860
      %1929 = vst.msk [vmem:[#allocation3 + $0x74] sm:$0xf] %vm1899, %v1862
      %1930 = vst.msk [vmem:[#allocation3 + $0x78] sm:$0xf] %vm1899, %v1864
      %1931 = vst.msk [vmem:[#allocation3 + $0x7c] sm:$0xf] %vm1899, %v1866
      %v1932 = vld [vmem:[%s1706 + $0x1] sm:$0xff]
      %v1933 = vld [vmem:[%s1706 + $0x9] sm:$0xff]
      %v1934 = vld [vmem:[%s1706 + $0x19] sm:$0xff]
      %v1935 = vld [vmem:[%s1706 + $0x21] sm:$0xff]
      %v1936 = vld [vmem:[%s1706 + $0x31] sm:$0xff]
      %v1937 = vld [vmem:[%s1706 + $0x39] sm:$0xff]
      %v1938 = vld [vmem:[%s1706 + $0x49] sm:$0xff]
      %v1939 = vld [vmem:[%s1706 + $0x51] sm:$0xff]
      %v1940 = vld [vmem:[%s1706 + $0x61] sm:$0xff]
      %v1941 = vld [vmem:[%s1706 + $0x69] sm:$0xff]
      %v1942 = vld [vmem:[%s1706 + $0x79] sm:$0xff]
      %v1943 = vld [vmem:[%s1706 + $0x81] sm:$0xff]
      %v1944 = vld [vmem:[%s1706 + $0x91] sm:$0xff]
      %v1945 = vld [vmem:[%s1706 + $0x99] sm:$0xff]
      %v1946 = vld [vmem:[%s1706 + $0xa9] sm:$0xff]
      %v1947 = vld [vmem:[%s1706 + $0xb1] sm:$0xff]
      %v1948 = vld [vmem:[%s1706 + $0xc1] sm:$0xff]
      %v1949 = vld [vmem:[%s1706 + $0xc9] sm:$0xff]
      %v1950 = vld [vmem:[%s1706 + $0xd9] sm:$0xff]
      %v1951 = vld [vmem:[%s1706 + $0xe1] sm:$0xff]
      %v1952 = vld [vmem:[%s1706 + $0xf1] sm:$0xff]
      %v1953 = vld [vmem:[%s1706 + $0xf9] sm:$0xff]
      %v1954 = vld [vmem:[%s1706 + $0x109] sm:$0xff]
      %v1955 = vld [vmem:[%s1706 + $0x111] sm:$0xff]
      %v1956 = vld [vmem:[%s1706 + $0x121] sm:$0xff]
      %v1957 = vld [vmem:[%s1706 + $0x129] sm:$0xff]
      %v1958 = vld [vmem:[%s1706 + $0x139] sm:$0xff]
      %v1959 = vld [vmem:[%s1706 + $0x141] sm:$0xff]
      %v1960 = vld [vmem:[%s1706 + $0x151] sm:$0xff]
      %v1961 = vld [vmem:[%s1706 + $0x159] sm:$0xff]
      %v1962 = vld [vmem:[%s1706 + $0x169] sm:$0xff]
      %v1963 = vld [vmem:[%s1706 + $0x171] sm:$0xff]
      %v1964 = vpack.c.bf16 %v1932, %v1932
      %v1965 = vpack.c.bf16 %v1933, %v1933
      %v1966 = vpack.c.bf16 %v1934, %v1934
      %v1967 = vpack.c.bf16 %v1935, %v1935
      %v1968 = vpack.c.bf16 %v1936, %v1936
      %v1969 = vpack.c.bf16 %v1937, %v1937
      %v1970 = vpack.c.bf16 %v1938, %v1938
      %v1971 = vpack.c.bf16 %v1939, %v1939
      %v1972 = vpack.c.bf16 %v1940, %v1940
      %v1973 = vpack.c.bf16 %v1941, %v1941
      %v1974 = vpack.c.bf16 %v1942, %v1942
      %v1975 = vpack.c.bf16 %v1943, %v1943
      %v1976 = vpack.c.bf16 %v1944, %v1944
      %v1977 = vpack.c.bf16 %v1945, %v1945
      %v1978 = vpack.c.bf16 %v1946, %v1946
      %v1979 = vpack.c.bf16 %v1947, %v1947
      %v1980 = vpack.c.bf16 %v1948, %v1948
      %v1981 = vpack.c.bf16 %v1949, %v1949
      %v1982 = vpack.c.bf16 %v1950, %v1950
      %v1983 = vpack.c.bf16 %v1951, %v1951
      %v1984 = vpack.c.bf16 %v1952, %v1952
      %v1985 = vpack.c.bf16 %v1953, %v1953
      %v1986 = vpack.c.bf16 %v1954, %v1954
      %v1987 = vpack.c.bf16 %v1955, %v1955
      %v1988 = vpack.c.bf16 %v1956, %v1956
      %v1989 = vpack.c.bf16 %v1957, %v1957
      %v1990 = vpack.c.bf16 %v1958, %v1958
      %v1991 = vpack.c.bf16 %v1959, %v1959
      %v1992 = vpack.c.bf16 %v1960, %v1960
      %v1993 = vpack.c.bf16 %v1961, %v1961
      %v1994 = vpack.c.bf16 %v1962, %v1962
      %v1995 = vpack.c.bf16 %v1963, %v1963
      %2028 = vrot.lane.b32.xlu0 %v1964, 28
      %v2029 = vpop.permute.xlu0 %2028
      %2030 = vrot.lane.b32.xlu0 %v1965, 28
      %v2031 = vpop.permute.xlu0 %2030
      %2032 = vrot.lane.b32.xlu0 %v1966, 28
      %v2033 = vpop.permute.xlu0 %2032
      %2034 = vrot.lane.b32.xlu0 %v1967, 28
      %v2035 = vpop.permute.xlu0 %2034
      %2036 = vrot.lane.b32.xlu0 %v1968, 28
      %v2037 = vpop.permute.xlu0 %2036
      %2038 = vrot.lane.b32.xlu0 %v1969, 28
      %v2039 = vpop.permute.xlu0 %2038
      %2040 = vrot.lane.b32.xlu0 %v1970, 28
      %v2041 = vpop.permute.xlu0 %2040
      %2042 = vrot.lane.b32.xlu0 %v1971, 28
      %v2043 = vpop.permute.xlu0 %2042
      %2044 = vrot.lane.b32.xlu0 %v1972, 28
      %v2045 = vpop.permute.xlu0 %2044
      %2046 = vrot.lane.b32.xlu0 %v1973, 28
      %v2047 = vpop.permute.xlu0 %2046
      %2048 = vrot.lane.b32.xlu0 %v1974, 28
      %v2049 = vpop.permute.xlu0 %2048
      %2050 = vrot.lane.b32.xlu0 %v1975, 28
      %v2051 = vpop.permute.xlu0 %2050
      %2052 = vrot.lane.b32.xlu0 %v1976, 28
      %v2053 = vpop.permute.xlu0 %2052
      %2054 = vrot.lane.b32.xlu0 %v1977, 28
      %v2055 = vpop.permute.xlu0 %2054
      %2056 = vrot.lane.b32.xlu0 %v1978, 28
      %v2057 = vpop.permute.xlu0 %2056
      %2058 = vrot.lane.b32.xlu0 %v1979, 28
      %v2059 = vpop.permute.xlu0 %2058
      %2060 = vrot.lane.b32.xlu0 %v1980, 28
      %v2061 = vpop.permute.xlu0 %2060
      %2062 = vrot.lane.b32.xlu0 %v1981, 28
      %v2063 = vpop.permute.xlu0 %2062
      %2064 = vrot.lane.b32.xlu0 %v1982, 28
      %v2065 = vpop.permute.xlu0 %2064
      %2066 = vrot.lane.b32.xlu0 %v1983, 28
      %v2067 = vpop.permute.xlu0 %2066
      %2068 = vrot.lane.b32.xlu0 %v1984, 28
      %v2069 = vpop.permute.xlu0 %2068
      %2070 = vrot.lane.b32.xlu0 %v1985, 28
      %v2071 = vpop.permute.xlu0 %2070
      %2072 = vrot.lane.b32.xlu0 %v1986, 28
      %v2073 = vpop.permute.xlu0 %2072
      %2074 = vrot.lane.b32.xlu0 %v1987, 28
      %v2075 = vpop.permute.xlu0 %2074
      %2076 = vrot.lane.b32.xlu0 %v1988, 28
      %v2077 = vpop.permute.xlu0 %2076
      %2078 = vrot.lane.b32.xlu0 %v1989, 28
      %v2079 = vpop.permute.xlu0 %2078
      %2080 = vrot.lane.b32.xlu0 %v1990, 28
      %v2081 = vpop.permute.xlu0 %2080
      %2082 = vrot.lane.b32.xlu0 %v1991, 28
      %v2083 = vpop.permute.xlu0 %2082
      %2084 = vrot.lane.b32.xlu0 %v1992, 28
      %v2085 = vpop.permute.xlu0 %2084
      %2086 = vrot.lane.b32.xlu0 %v1993, 28
      %v2087 = vpop.permute.xlu0 %2086
      %2088 = vrot.lane.b32.xlu0 %v1994, 28
      %v2089 = vpop.permute.xlu0 %2088
      %2090 = vrot.lane.b32.xlu0 %v1995, 28
      %v2091 = vpop.permute.xlu0 %2090
      %vm2124 = vcmask 257248
      %2125 = vst.msk [vmem:[#allocation3] sm:$0xf] %vm2124, %v2029
      %2126 = vst.msk [vmem:[#allocation3 + $0x4] sm:$0xf] %vm2124, %v2031
      %2127 = vst.msk [vmem:[#allocation3 + $0x8] sm:$0xf] %vm2124, %v2033
      %2128 = vst.msk [vmem:[#allocation3 + $0xc] sm:$0xf] %vm2124, %v2035
      %2129 = vst.msk [vmem:[#allocation3 + $0x10] sm:$0xf] %vm2124, %v2037
      %2130 = vst.msk [vmem:[#allocation3 + $0x14] sm:$0xf] %vm2124, %v2039
      %2131 = vst.msk [vmem:[#allocation3 + $0x18] sm:$0xf] %vm2124, %v2041
      %2132 = vst.msk [vmem:[#allocation3 + $0x1c] sm:$0xf] %vm2124, %v2043
      %2133 = vst.msk [vmem:[#allocation3 + $0x20] sm:$0xf] %vm2124, %v2045
      %2134 = vst.msk [vmem:[#allocation3 + $0x24] sm:$0xf] %vm2124, %v2047
      %2135 = vst.msk [vmem:[#allocation3 + $0x28] sm:$0xf] %vm2124, %v2049
      %2136 = vst.msk [vmem:[#allocation3 + $0x2c] sm:$0xf] %vm2124, %v2051
      %2137 = vst.msk [vmem:[#allocation3 + $0x30] sm:$0xf] %vm2124, %v2053
      %2138 = vst.msk [vmem:[#allocation3 + $0x34] sm:$0xf] %vm2124, %v2055
      %2139 = vst.msk [vmem:[#allocation3 + $0x38] sm:$0xf] %vm2124, %v2057
      %2140 = vst.msk [vmem:[#allocation3 + $0x3c] sm:$0xf] %vm2124, %v2059
      %2141 = vst.msk [vmem:[#allocation3 + $0x40] sm:$0xf] %vm2124, %v2061
      %2142 = vst.msk [vmem:[#allocation3 + $0x44] sm:$0xf] %vm2124, %v2063
      %2143 = vst.msk [vmem:[#allocation3 + $0x48] sm:$0xf] %vm2124, %v2065
      %2144 = vst.msk [vmem:[#allocation3 + $0x4c] sm:$0xf] %vm2124, %v2067
      %2145 = vst.msk [vmem:[#allocation3 + $0x50] sm:$0xf] %vm2124, %v2069
      %2146 = vst.msk [vmem:[#allocation3 + $0x54] sm:$0xf] %vm2124, %v2071
      %2147 = vst.msk [vmem:[#allocation3 + $0x58] sm:$0xf] %vm2124, %v2073
      %2148 = vst.msk [vmem:[#allocation3 + $0x5c] sm:$0xf] %vm2124, %v2075
      %2149 = vst.msk [vmem:[#allocation3 + $0x60] sm:$0xf] %vm2124, %v2077
      %2150 = vst.msk [vmem:[#allocation3 + $0x64] sm:$0xf] %vm2124, %v2079
      %2151 = vst.msk [vmem:[#allocation3 + $0x68] sm:$0xf] %vm2124, %v2081
      %2152 = vst.msk [vmem:[#allocation3 + $0x6c] sm:$0xf] %vm2124, %v2083
      %2153 = vst.msk [vmem:[#allocation3 + $0x70] sm:$0xf] %vm2124, %v2085
      %2154 = vst.msk [vmem:[#allocation3 + $0x74] sm:$0xf] %vm2124, %v2087
      %2155 = vst.msk [vmem:[#allocation3 + $0x78] sm:$0xf] %vm2124, %v2089
      %2156 = vst.msk [vmem:[#allocation3 + $0x7c] sm:$0xf] %vm2124, %v2091
      %v2157 = vld [vmem:[%s1706 + $0x2] sm:$0xff]
      %v2158 = vld [vmem:[%s1706 + $0xa] sm:$0xff]
      %v2159 = vld [vmem:[%s1706 + $0x1a] sm:$0xff]
      %v2160 = vld [vmem:[%s1706 + $0x22] sm:$0xff]
      %v2161 = vld [vmem:[%s1706 + $0x32] sm:$0xff]
      %v2162 = vld [vmem:[%s1706 + $0x3a] sm:$0xff]
      %v2163 = vld [vmem:[%s1706 + $0x4a] sm:$0xff]
      %v2164 = vld [vmem:[%s1706 + $0x52] sm:$0xff]
      %v2165 = vld [vmem:[%s1706 + $0x62] sm:$0xff]
      %v2166 = vld [vmem:[%s1706 + $0x6a] sm:$0xff]
      %v2167 = vld [vmem:[%s1706 + $0x7a] sm:$0xff]
      %v2168 = vld [vmem:[%s1706 + $0x82] sm:$0xff]
      %v2169 = vld [vmem:[%s1706 + $0x92] sm:$0xff]
      %v2170 = vld [vmem:[%s1706 + $0x9a] sm:$0xff]
      %v2171 = vld [vmem:[%s1706 + $0xaa] sm:$0xff]
      %v2172 = vld [vmem:[%s1706 + $0xb2] sm:$0xff]
      %v2173 = vld [vmem:[%s1706 + $0xc2] sm:$0xff]
      %v2174 = vld [vmem:[%s1706 + $0xca] sm:$0xff]
      %v2175 = vld [vmem:[%s1706 + $0xda] sm:$0xff]
      %v2176 = vld [vmem:[%s1706 + $0xe2] sm:$0xff]
      %v2177 = vld [vmem:[%s1706 + $0xf2] sm:$0xff]
      %v2178 = vld [vmem:[%s1706 + $0xfa] sm:$0xff]
      %v2179 = vld [vmem:[%s1706 + $0x10a] sm:$0xff]
      %v2180 = vld [vmem:[%s1706 + $0x112] sm:$0xff]
      %v2181 = vld [vmem:[%s1706 + $0x122] sm:$0xff]
      %v2182 = vld [vmem:[%s1706 + $0x12a] sm:$0xff]
      %v2183 = vld [vmem:[%s1706 + $0x13a] sm:$0xff]
      %v2184 = vld [vmem:[%s1706 + $0x142] sm:$0xff]
      %v2185 = vld [vmem:[%s1706 + $0x152] sm:$0xff]
      %v2186 = vld [vmem:[%s1706 + $0x15a] sm:$0xff]
      %v2187 = vld [vmem:[%s1706 + $0x16a] sm:$0xff]
      %v2188 = vld [vmem:[%s1706 + $0x172] sm:$0xff]
      %v2189 = vpack.c.bf16 %v2157, %v2157
      %v2190 = vpack.c.bf16 %v2158, %v2158
      %v2191 = vpack.c.bf16 %v2159, %v2159
      %v2192 = vpack.c.bf16 %v2160, %v2160
      %v2193 = vpack.c.bf16 %v2161, %v2161
      %v2194 = vpack.c.bf16 %v2162, %v2162
      %v2195 = vpack.c.bf16 %v2163, %v2163
      %v2196 = vpack.c.bf16 %v2164, %v2164
      %v2197 = vpack.c.bf16 %v2165, %v2165
      %v2198 = vpack.c.bf16 %v2166, %v2166
      %v2199 = vpack.c.bf16 %v2167, %v2167
      %v2200 = vpack.c.bf16 %v2168, %v2168
      %v2201 = vpack.c.bf16 %v2169, %v2169
      %v2202 = vpack.c.bf16 %v2170, %v2170
      %v2203 = vpack.c.bf16 %v2171, %v2171
      %v2204 = vpack.c.bf16 %v2172, %v2172
      %v2205 = vpack.c.bf16 %v2173, %v2173
      %v2206 = vpack.c.bf16 %v2174, %v2174
      %v2207 = vpack.c.bf16 %v2175, %v2175
      %v2208 = vpack.c.bf16 %v2176, %v2176
      %v2209 = vpack.c.bf16 %v2177, %v2177
      %v2210 = vpack.c.bf16 %v2178, %v2178
      %v2211 = vpack.c.bf16 %v2179, %v2179
      %v2212 = vpack.c.bf16 %v2180, %v2180
      %v2213 = vpack.c.bf16 %v2181, %v2181
      %v2214 = vpack.c.bf16 %v2182, %v2182
      %v2215 = vpack.c.bf16 %v2183, %v2183
      %v2216 = vpack.c.bf16 %v2184, %v2184
      %v2217 = vpack.c.bf16 %v2185, %v2185
      %v2218 = vpack.c.bf16 %v2186, %v2186
      %v2219 = vpack.c.bf16 %v2187, %v2187
      %v2220 = vpack.c.bf16 %v2188, %v2188
      %2253 = vrot.lane.b32.xlu0 %v2189, 32
      %v2254 = vpop.permute.xlu0 %2253
      %2255 = vrot.lane.b32.xlu0 %v2190, 32
      %v2256 = vpop.permute.xlu0 %2255
      %2257 = vrot.lane.b32.xlu0 %v2191, 32
      %v2258 = vpop.permute.xlu0 %2257
      %2259 = vrot.lane.b32.xlu0 %v2192, 32
      %v2260 = vpop.permute.xlu0 %2259
      %2261 = vrot.lane.b32.xlu0 %v2193, 32
      %v2262 = vpop.permute.xlu0 %2261
      %2263 = vrot.lane.b32.xlu0 %v2194, 32
      %v2264 = vpop.permute.xlu0 %2263
      %2265 = vrot.lane.b32.xlu0 %v2195, 32
      %v2266 = vpop.permute.xlu0 %2265
      %2267 = vrot.lane.b32.xlu0 %v2196, 32
      %v2268 = vpop.permute.xlu0 %2267
      %2269 = vrot.lane.b32.xlu0 %v2197, 32
      %v2270 = vpop.permute.xlu0 %2269
      %2271 = vrot.lane.b32.xlu0 %v2198, 32
      %v2272 = vpop.permute.xlu0 %2271
      %2273 = vrot.lane.b32.xlu0 %v2199, 32
      %v2274 = vpop.permute.xlu0 %2273
      %2275 = vrot.lane.b32.xlu0 %v2200, 32
      %v2276 = vpop.permute.xlu0 %2275
      %2277 = vrot.lane.b32.xlu0 %v2201, 32
      %v2278 = vpop.permute.xlu0 %2277
      %2279 = vrot.lane.b32.xlu0 %v2202, 32
      %v2280 = vpop.permute.xlu0 %2279
      %2281 = vrot.lane.b32.xlu0 %v2203, 32
      %v2282 = vpop.permute.xlu0 %2281
      %2283 = vrot.lane.b32.xlu0 %v2204, 32
      %v2284 = vpop.permute.xlu0 %2283
      %2285 = vrot.lane.b32.xlu0 %v2205, 32
      %v2286 = vpop.permute.xlu0 %2285
      %2287 = vrot.lane.b32.xlu0 %v2206, 32
      %v2288 = vpop.permute.xlu0 %2287
      %2289 = vrot.lane.b32.xlu0 %v2207, 32
      %v2290 = vpop.permute.xlu0 %2289
      %2291 = vrot.lane.b32.xlu0 %v2208, 32
      %v2292 = vpop.permute.xlu0 %2291
      %2293 = vrot.lane.b32.xlu0 %v2209, 32
      %v2294 = vpop.permute.xlu0 %2293
      %2295 = vrot.lane.b32.xlu0 %v2210, 32
      %v2296 = vpop.permute.xlu0 %2295
      %2297 = vrot.lane.b32.xlu0 %v2211, 32
      %v2298 = vpop.permute.xlu0 %2297
      %2299 = vrot.lane.b32.xlu0 %v2212, 32
      %v2300 = vpop.permute.xlu0 %2299
      %2301 = vrot.lane.b32.xlu0 %v2213, 32
      %v2302 = vpop.permute.xlu0 %2301
      %2303 = vrot.lane.b32.xlu0 %v2214, 32
      %v2304 = vpop.permute.xlu0 %2303
      %2305 = vrot.lane.b32.xlu0 %v2215, 32
      %v2306 = vpop.permute.xlu0 %2305
      %2307 = vrot.lane.b32.xlu0 %v2216, 32
      %v2308 = vpop.permute.xlu0 %2307
      %2309 = vrot.lane.b32.xlu0 %v2217, 32
      %v2310 = vpop.permute.xlu0 %2309
      %2311 = vrot.lane.b32.xlu0 %v2218, 32
      %v2312 = vpop.permute.xlu0 %2311
      %2313 = vrot.lane.b32.xlu0 %v2219, 32
      %v2314 = vpop.permute.xlu0 %2313
      %2315 = vrot.lane.b32.xlu0 %v2220, 32
      %v2316 = vpop.permute.xlu0 %2315
      %vm2349 = vcmask 290048
      %2350 = vst.msk [vmem:[#allocation3] sm:$0xf] %vm2349, %v2254
      %2351 = vst.msk [vmem:[#allocation3 + $0x4] sm:$0xf] %vm2349, %v2256
      %2352 = vst.msk [vmem:[#allocation3 + $0x8] sm:$0xf] %vm2349, %v2258
      %2353 = vst.msk [vmem:[#allocation3 + $0xc] sm:$0xf] %vm2349, %v2260
      %2354 = vst.msk [vmem:[#allocation3 + $0x10] sm:$0xf] %vm2349, %v2262
      %2355 = vst.msk [vmem:[#allocation3 + $0x14] sm:$0xf] %vm2349, %v2264
      %2356 = vst.msk [vmem:[#allocation3 + $0x18] sm:$0xf] %vm2349, %v2266
      %2357 = vst.msk [vmem:[#allocation3 + $0x1c] sm:$0xf] %vm2349, %v2268
      %2358 = vst.msk [vmem:[#allocation3 + $0x20] sm:$0xf] %vm2349, %v2270
      %2359 = vst.msk [vmem:[#allocation3 + $0x24] sm:$0xf] %vm2349, %v2272
      %2360 = vst.msk [vmem:[#allocation3 + $0x28] sm:$0xf] %vm2349, %v2274
      %2361 = vst.msk [vmem:[#allocation3 + $0x2c] sm:$0xf] %vm2349, %v2276
      %2362 = vst.msk [vmem:[#allocation3 + $0x30] sm:$0xf] %vm2349, %v2278
      %2363 = vst.msk [vmem:[#allocation3 + $0x34] sm:$0xf] %vm2349, %v2280
      %2364 = vst.msk [vmem:[#allocation3 + $0x38] sm:$0xf] %vm2349, %v2282
      %2365 = vst.msk [vmem:[#allocation3 + $0x3c] sm:$0xf] %vm2349, %v2284
      %2366 = vst.msk [vmem:[#allocation3 + $0x40] sm:$0xf] %vm2349, %v2286
      %2367 = vst.msk [vmem:[#allocation3 + $0x44] sm:$0xf] %vm2349, %v2288
      %2368 = vst.msk [vmem:[#allocation3 + $0x48] sm:$0xf] %vm2349, %v2290
      %2369 = vst.msk [vmem:[#allocation3 + $0x4c] sm:$0xf] %vm2349, %v2292
      %2370 = vst.msk [vmem:[#allocation3 + $0x50] sm:$0xf] %vm2349, %v2294
      %2371 = vst.msk [vmem:[#allocation3 + $0x54] sm:$0xf] %vm2349, %v2296
      %2372 = vst.msk [vmem:[#allocation3 + $0x58] sm:$0xf] %vm2349, %v2298
      %2373 = vst.msk [vmem:[#allocation3 + $0x5c] sm:$0xf] %vm2349, %v2300
      %2374 = vst.msk [vmem:[#allocation3 + $0x60] sm:$0xf] %vm2349, %v2302
      %2375 = vst.msk [vmem:[#allocation3 + $0x64] sm:$0xf] %vm2349, %v2304
      %2376 = vst.msk [vmem:[#allocation3 + $0x68] sm:$0xf] %vm2349, %v2306
      %2377 = vst.msk [vmem:[#allocation3 + $0x6c] sm:$0xf] %vm2349, %v2308
      %2378 = vst.msk [vmem:[#allocation3 + $0x70] sm:$0xf] %vm2349, %v2310
      %2379 = vst.msk [vmem:[#allocation3 + $0x74] sm:$0xf] %vm2349, %v2312
      %2380 = vst.msk [vmem:[#allocation3 + $0x78] sm:$0xf] %vm2349, %v2314
      %2381 = vst.msk [vmem:[#allocation3 + $0x7c] sm:$0xf] %vm2349, %v2316
      %v2382 = vld [vmem:[#allocation3] sm:$0xf]
      %v2383 = vld [vmem:[#allocation3 + $0x4] sm:$0xf]
      %v2384 = vld [vmem:[#allocation3 + $0x8] sm:$0xf]
      %v2385 = vld [vmem:[#allocation3 + $0xc] sm:$0xf]
      %v2386 = vld [vmem:[#allocation3 + $0x10] sm:$0xf]
      %v2387 = vld [vmem:[#allocation3 + $0x14] sm:$0xf]
      %v2388 = vld [vmem:[#allocation3 + $0x18] sm:$0xf]
      %v2389 = vld [vmem:[#allocation3 + $0x1c] sm:$0xf]
      %v2390 = vld [vmem:[#allocation3 + $0x20] sm:$0xf]
      %v2391 = vld [vmem:[#allocation3 + $0x24] sm:$0xf]
      %v2392 = vld [vmem:[#allocation3 + $0x28] sm:$0xf]
      %v2393 = vld [vmem:[#allocation3 + $0x2c] sm:$0xf]
      %v2394 = vld [vmem:[#allocation3 + $0x30] sm:$0xf]
      %v2395 = vld [vmem:[#allocation3 + $0x34] sm:$0xf]
      %v2396 = vld [vmem:[#allocation3 + $0x38] sm:$0xf]
      %v2397 = vld [vmem:[#allocation3 + $0x3c] sm:$0xf]
      %v2398 = vld [vmem:[#allocation3 + $0x40] sm:$0xf]
      %v2399 = vld [vmem:[#allocation3 + $0x44] sm:$0xf]
      %v2400 = vld [vmem:[#allocation3 + $0x48] sm:$0xf]
      %v2401 = vld [vmem:[#allocation3 + $0x4c] sm:$0xf]
      %v2402 = vld [vmem:[#allocation3 + $0x50] sm:$0xf]
      %v2403 = vld [vmem:[#allocation3 + $0x54] sm:$0xf]
      %v2404 = vld [vmem:[#allocation3 + $0x58] sm:$0xf]
      %v2405 = vld [vmem:[#allocation3 + $0x5c] sm:$0xf]
      %v2406 = vld [vmem:[#allocation3 + $0x60] sm:$0xf]
      %v2407 = vld [vmem:[#allocation3 + $0x64] sm:$0xf]
      %v2408 = vld [vmem:[#allocation3 + $0x68] sm:$0xf]
      %v2409 = vld [vmem:[#allocation3 + $0x6c] sm:$0xf]
      %v2410 = vld [vmem:[#allocation3 + $0x70] sm:$0xf]
      %v2411 = vld [vmem:[#allocation3 + $0x74] sm:$0xf]
      %v2412 = vld [vmem:[#allocation3 + $0x78] sm:$0xf]
      %v2413 = vld [vmem:[#allocation3 + $0x7c] sm:$0xf]
      %v2414 = vld [vmem:[%s3] sm:$0xf]
      %v2415 = vld [vmem:[%s3 + $0x4] sm:$0xf]
      %v2416 = vld [vmem:[%s3 + $0x8] sm:$0xf]
      %v2417 = vld [vmem:[%s3 + $0xc] sm:$0xf]
      %v2418 = vld [vmem:[%s3 + $0x10] sm:$0x3]
      %v2451 = vunpack.c.l.b16 %v2382
      %v2452 = vunpack.c.l.b16 %v2383
      %v2453 = vunpack.c.l.b16 %v2384
      %v2454 = vunpack.c.l.b16 %v2385
      %v2455 = vunpack.c.l.b16 %v2386
      %v2456 = vunpack.c.l.b16 %v2387
      %v2457 = vunpack.c.l.b16 %v2388
      %v2458 = vunpack.c.l.b16 %v2389
      %v2459 = vunpack.c.l.b16 %v2390
      %v2460 = vunpack.c.l.b16 %v2391
      %v2461 = vunpack.c.l.b16 %v2392
      %v2462 = vunpack.c.l.b16 %v2393
      %v2463 = vunpack.c.l.b16 %v2394
      %v2464 = vunpack.c.l.b16 %v2395
      %v2465 = vunpack.c.l.b16 %v2396
      %v2466 = vunpack.c.l.b16 %v2397
      %v2467 = vunpack.c.l.b16 %v2398
      %v2468 = vunpack.c.l.b16 %v2399
      %v2469 = vunpack.c.l.b16 %v2400
      %v2470 = vunpack.c.l.b16 %v2401
      %v2471 = vunpack.c.l.b16 %v2402
      %v2472 = vunpack.c.l.b16 %v2403
      %v2473 = vunpack.c.l.b16 %v2404
      %v2474 = vunpack.c.l.b16 %v2405
      %v2475 = vunpack.c.l.b16 %v2406
      %v2476 = vunpack.c.l.b16 %v2407
      %v2477 = vunpack.c.l.b16 %v2408
      %v2478 = vunpack.c.l.b16 %v2409
      %v2479 = vunpack.c.l.b16 %v2410
      %v2480 = vunpack.c.l.b16 %v2411
      %v2481 = vunpack.c.l.b16 %v2412
      %v2482 = vunpack.c.l.b16 %v2413
      %v2483 = vpack.c.b16 %v2452, %v2451
      %v2484 = vpack.c.b16 %v2454, %v2453
      %v2485 = vpack.c.b16 %v2456, %v2455
      %v2486 = vpack.c.b16 %v2458, %v2457
      %v2487 = vpack.c.b16 %v2460, %v2459
      %v2488 = vpack.c.b16 %v2462, %v2461
      %v2489 = vpack.c.b16 %v2464, %v2463
      %v2490 = vpack.c.b16 %v2466, %v2465
      %v2491 = vpack.c.b16 %v2468, %v2467
      %v2492 = vpack.c.b16 %v2470, %v2469
      %v2493 = vpack.c.b16 %v2472, %v2471
      %v2494 = vpack.c.b16 %v2474, %v2473
      %v2495 = vpack.c.b16 %v2476, %v2475
      %v2496 = vpack.c.b16 %v2478, %v2477
      %v2497 = vpack.c.b16 %v2480, %v2479
      %v2498 = vpack.c.b16 %v2482, %v2481
      %v2504 = vunpack.c.l.b16 %v2414
      %v2505 = vunpack.c.l.b16 %v2415
      %v2506 = vunpack.c.l.b16 %v2416
      %v2507 = vunpack.c.l.b16 %v2417
      %v2508 = vunpack.c.l.b16 %v2418
      %v2509 = vpack.c.b16 %v2505, %v2504
      %v2510 = vpack.c.b16 %v2507, %v2506
      %v2511 = vpack.c.b16 %v2508, %v2508
      %vm2514 = vcmask 293888
      %v2516 = vsel %vm2514, %v2483, 0
      %v2519 = vsel %vm2514, %v2484, 0
      %v2522 = vsel %vm2514, %v2485, 0
      %v2525 = vsel %vm2514, %v2486, 0
      %v2528 = vsel %vm2514, %v2487, 0
      %v2531 = vsel %vm2514, %v2488, 0
      %v2534 = vsel %vm2514, %v2489, 0
      %v2537 = vsel %vm2514, %v2490, 0
      %v2540 = vsel %vm2514, %v2491, 0
      %v2543 = vsel %vm2514, %v2492, 0
      %v2546 = vsel %vm2514, %v2493, 0
      %v2549 = vsel %vm2514, %v2494, 0
      %v2552 = vsel %vm2514, %v2495, 0
      %v2555 = vsel %vm2514, %v2496, 0
      %v2558 = vsel %vm2514, %v2497, 0
      %v2561 = vsel %vm2514, %v2498, 0
      %vm2563 = vcmask 1041408
      %v2565 = vsel %vm2563, %v2511, 0
      %2567 = vmatpush.bf16.msra.mxu0 0
      %2568 = vmatpush.bf16.msra.mxu0 0
      %2569 = vmatpush.bf16.msra.mxu0 0
      %2570 = vmatpush.bf16.msra.mxu0 0
      %2571 = vmatpush.bf16.msra.mxu0 0
      %2572 = vmatpush.bf16.msra.mxu0 %v2565
      %2573 = vmatpush.bf16.msra.mxu0 %v2510
      %2574 = vmatpush.bf16.msra.mxu0 %v2509
      %2575 = vmatmul.bf16.gmra.mxu0 %v2516
      %v2576 = vpop.f32.mrf.mxu0
      %v2577 = vadd.f32 0.0, %v2576
      %v2578 = vpop.f32.mrf.mxu0
      %v2579 = vadd.f32 0.0, %v2578
      %2580 = vmatmul.bf16.gmra.mxu0 %v2519
      %v2581 = vpop.f32.mrf.mxu0
      %v2582 = vadd.f32 0.0, %v2581
      %v2583 = vpop.f32.mrf.mxu0
      %v2584 = vadd.f32 0.0, %v2583
      %2585 = vmatmul.bf16.gmra.mxu0 %v2522
      %v2586 = vpop.f32.mrf.mxu0
      %v2587 = vadd.f32 0.0, %v2586
      %v2588 = vpop.f32.mrf.mxu0
      %v2589 = vadd.f32 0.0, %v2588
      %2590 = vmatmul.bf16.gmra.mxu0 %v2525
      %v2591 = vpop.f32.mrf.mxu0
      %v2592 = vadd.f32 0.0, %v2591
      %v2593 = vpop.f32.mrf.mxu0
      %v2594 = vadd.f32 0.0, %v2593
      %2595 = vmatmul.bf16.gmra.mxu0 %v2528
      %v2596 = vpop.f32.mrf.mxu0
      %v2597 = vadd.f32 0.0, %v2596
      %v2598 = vpop.f32.mrf.mxu0
      %v2599 = vadd.f32 0.0, %v2598
      %2600 = vmatmul.bf16.gmra.mxu0 %v2531
      %v2601 = vpop.f32.mrf.mxu0
      %v2602 = vadd.f32 0.0, %v2601
      %v2603 = vpop.f32.mrf.mxu0
      %v2604 = vadd.f32 0.0, %v2603
      %2605 = vmatmul.bf16.gmra.mxu0 %v2534
      %v2606 = vpop.f32.mrf.mxu0
      %v2607 = vadd.f32 0.0, %v2606
      %v2608 = vpop.f32.mrf.mxu0
      %v2609 = vadd.f32 0.0, %v2608
      %2610 = vmatmul.bf16.gmra.mxu0 %v2537
      %v2611 = vpop.f32.mrf.mxu0
      %v2612 = vadd.f32 0.0, %v2611
      %v2613 = vpop.f32.mrf.mxu0
      %v2614 = vadd.f32 0.0, %v2613
      %2615 = vmatmul.bf16.gmra.mxu0 %v2540
      %v2616 = vpop.f32.mrf.mxu0
      %v2617 = vadd.f32 0.0, %v2616
      %v2618 = vpop.f32.mrf.mxu0
      %v2619 = vadd.f32 0.0, %v2618
      %2620 = vmatmul.bf16.gmra.mxu0 %v2543
      %v2621 = vpop.f32.mrf.mxu0
      %v2622 = vadd.f32 0.0, %v2621
      %v2623 = vpop.f32.mrf.mxu0
      %v2624 = vadd.f32 0.0, %v2623
      %2625 = vmatmul.bf16.gmra.mxu0 %v2546
      %v2626 = vpop.f32.mrf.mxu0
      %v2627 = vadd.f32 0.0, %v2626
      %v2628 = vpop.f32.mrf.mxu0
      %v2629 = vadd.f32 0.0, %v2628
      %2630 = vmatmul.bf16.gmra.mxu0 %v2549
      %v2631 = vpop.f32.mrf.mxu0
      %v2632 = vadd.f32 0.0, %v2631
      %v2633 = vpop.f32.mrf.mxu0
      %v2634 = vadd.f32 0.0, %v2633
      %2635 = vmatmul.bf16.gmra.mxu0 %v2552
      %v2636 = vpop.f32.mrf.mxu0
      %v2637 = vadd.f32 0.0, %v2636
      %v2638 = vpop.f32.mrf.mxu0
      %v2639 = vadd.f32 0.0, %v2638
      %2640 = vmatmul.bf16.gmra.mxu0 %v2555
      %v2641 = vpop.f32.mrf.mxu0
      %v2642 = vadd.f32 0.0, %v2641
      %v2643 = vpop.f32.mrf.mxu0
      %v2644 = vadd.f32 0.0, %v2643
      %2645 = vmatmul.bf16.gmra.mxu0 %v2558
      %v2646 = vpop.f32.mrf.mxu0
      %v2647 = vadd.f32 0.0, %v2646
      %v2648 = vpop.f32.mrf.mxu0
      %v2649 = vadd.f32 0.0, %v2648
      %2650 = vmatmul.bf16.gmra.mxu0 %v2561
      %v2651 = vpop.f32.mrf.mxu0
      %v2652 = vadd.f32 0.0, %v2651
      %v2653 = vpop.f32.mrf.mxu0
      %v2654 = vadd.f32 0.0, %v2653
      %2655 = vdwg.mxu0
      %v2656 = vsel %vm405, %v2577, 0.0
      %v2657 = vsel %vm405, %v2579, 0.0
      %v2658 = vadd.f32 %v2656, %v2657
      %v2659 = vsel %vm405, %v2582, 0.0
      %v2660 = vadd.f32 %v2658, %v2659
      %v2661 = vsel %vm405, %v2584, 0.0
      %v2662 = vadd.f32 %v2660, %v2661
      %v2663 = vsel %vm405, %v2587, 0.0
      %v2664 = vadd.f32 %v2662, %v2663
      %v2665 = vsel %vm405, %v2589, 0.0
      %v2666 = vadd.f32 %v2664, %v2665
      %v2667 = vsel %vm405, %v2592, 0.0
      %v2668 = vadd.f32 %v2666, %v2667
      %v2669 = vsel %vm405, %v2594, 0.0
      %v2670 = vadd.f32 %v2668, %v2669
      %v2671 = vsel %vm405, %v2597, 0.0
      %v2672 = vadd.f32 %v2670, %v2671
      %v2673 = vsel %vm405, %v2599, 0.0
      %v2674 = vadd.f32 %v2672, %v2673
      %v2675 = vsel %vm405, %v2602, 0.0
      %v2676 = vadd.f32 %v2674, %v2675
      %v2677 = vsel %vm405, %v2604, 0.0
      %v2678 = vadd.f32 %v2676, %v2677
      %v2679 = vsel %vm405, %v2607, 0.0
      %v2680 = vadd.f32 %v2678, %v2679
      %v2681 = vsel %vm405, %v2609, 0.0
      %v2682 = vadd.f32 %v2680, %v2681
      %v2683 = vsel %vm405, %v2612, 0.0
      %v2684 = vadd.f32 %v2682, %v2683
      %v2685 = vsel %vm405, %v2614, 0.0
      %v2686 = vadd.f32 %v2684, %v2685
      %v2687 = vsel %vm405, %v2617, 0.0
      %v2688 = vadd.f32 %v2686, %v2687
      %v2689 = vsel %vm405, %v2619, 0.0
      %v2690 = vadd.f32 %v2688, %v2689
      %v2691 = vsel %vm405, %v2622, 0.0
      %v2692 = vadd.f32 %v2690, %v2691
      %v2693 = vsel %vm405, %v2624, 0.0
      %v2694 = vadd.f32 %v2692, %v2693
      %v2695 = vsel %vm405, %v2627, 0.0
      %v2696 = vadd.f32 %v2694, %v2695
      %v2697 = vsel %vm405, %v2629, 0.0
      %v2698 = vadd.f32 %v2696, %v2697
      %v2699 = vsel %vm405, %v2632, 0.0
      %v2700 = vadd.f32 %v2698, %v2699
      %v2701 = vsel %vm405, %v2634, 0.0
      %v2702 = vadd.f32 %v2700, %v2701
      %v2703 = vsel %vm405, %v2637, 0.0
      %v2704 = vadd.f32 %v2702, %v2703
      %v2705 = vsel %vm405, %v2639, 0.0
      %v2706 = vadd.f32 %v2704, %v2705
      %v2707 = vsel %vm405, %v2642, 0.0
      %v2708 = vadd.f32 %v2706, %v2707
      %v2709 = vsel %vm405, %v2644, 0.0
      %v2710 = vadd.f32 %v2708, %v2709
      %v2711 = vsel %vm405, %v2647, 0.0
      %v2712 = vadd.f32 %v2710, %v2711
      %v2713 = vsel %vm405, %v2649, 0.0
      %v2714 = vadd.f32 %v2712, %v2713
      %v2715 = vsel %vm405, %v2652, 0.0
      %v2716 = vadd.f32 %v2714, %v2715
      %v2717 = vsel %vm405, %v2654, 0.0
      %v2718 = vadd.f32 %v2716, %v2717
      %v2719 = vrot.slane %v2718, 4
      %v2720 = vadd.f32 %v2718, %v2719
      %v2721 = vrot.slane %v2720, 2
      %v2722 = vadd.f32 %v2720, %v2721
      %v2723 = vrot.slane %v2722, 1
      %v2724 = vadd.f32 %v2722, %v2723
      %v2725 = vrcp.pop 256.0
      %v2726 = vmul.f32 256.0, %v2725
      %v2727 = vsub.f32 1.0, %v2726
      %v2728 = vmul.f32 %v2725, %v2727
      %v2729 = vadd.f32 %v2725, %v2728
      %vm2730 = vweird.f32 %v2725
      %v2731 = vsel %vm2730, %v2725, %v2729
      %v2732 = vmul.f32 %v2724, %v2731
      %v2733 = vsub.f32 %v2577, %v2732
      %v2734 = vsub.f32 %v2579, %v2732
      %v2735 = vsub.f32 %v2582, %v2732
      %v2736 = vsub.f32 %v2584, %v2732
      %v2737 = vsub.f32 %v2587, %v2732
      %v2738 = vsub.f32 %v2589, %v2732
      %v2739 = vsub.f32 %v2592, %v2732
      %v2740 = vsub.f32 %v2594, %v2732
      %v2741 = vsub.f32 %v2597, %v2732
      %v2742 = vsub.f32 %v2599, %v2732
      %v2743 = vsub.f32 %v2602, %v2732
      %v2744 = vsub.f32 %v2604, %v2732
      %v2745 = vsub.f32 %v2607, %v2732
      %v2746 = vsub.f32 %v2609, %v2732
      %v2747 = vsub.f32 %v2612, %v2732
      %v2748 = vsub.f32 %v2614, %v2732
      %v2749 = vsub.f32 %v2617, %v2732
      %v2750 = vsub.f32 %v2619, %v2732
      %v2751 = vsub.f32 %v2622, %v2732
      %v2752 = vsub.f32 %v2624, %v2732
      %v2753 = vsub.f32 %v2627, %v2732
      %v2754 = vsub.f32 %v2629, %v2732
      %v2755 = vsub.f32 %v2632, %v2732
      %v2756 = vsub.f32 %v2634, %v2732
      %v2757 = vsub.f32 %v2637, %v2732
      %v2758 = vsub.f32 %v2639, %v2732
      %v2759 = vsub.f32 %v2642, %v2732
      %v2760 = vsub.f32 %v2644, %v2732
      %v2761 = vsub.f32 %v2647, %v2732
      %v2762 = vsub.f32 %v2649, %v2732
      %v2763 = vsub.f32 %v2652, %v2732
      %v2764 = vsub.f32 %v2654, %v2732
      %v2765 = vmul.f32 %v2733, %v2733
      %v2766 = vmul.f32 %v2734, %v2734
      %v2767 = vmul.f32 %v2735, %v2735
      %v2768 = vmul.f32 %v2736, %v2736
      %v2769 = vmul.f32 %v2737, %v2737
      %v2770 = vmul.f32 %v2738, %v2738
      %v2771 = vmul.f32 %v2739, %v2739
      %v2772 = vmul.f32 %v2740, %v2740
      %v2773 = vmul.f32 %v2741, %v2741
      %v2774 = vmul.f32 %v2742, %v2742
      %v2775 = vmul.f32 %v2743, %v2743
      %v2776 = vmul.f32 %v2744, %v2744
      %v2777 = vmul.f32 %v2745, %v2745
      %v2778 = vmul.f32 %v2746, %v2746
      %v2779 = vmul.f32 %v2747, %v2747
      %v2780 = vmul.f32 %v2748, %v2748
      %v2781 = vmul.f32 %v2749, %v2749
      %v2782 = vmul.f32 %v2750, %v2750
      %v2783 = vmul.f32 %v2751, %v2751
      %v2784 = vmul.f32 %v2752, %v2752
      %v2785 = vmul.f32 %v2753, %v2753
      %v2786 = vmul.f32 %v2754, %v2754
      %v2787 = vmul.f32 %v2755, %v2755
      %v2788 = vmul.f32 %v2756, %v2756
      %v2789 = vmul.f32 %v2757, %v2757
      %v2790 = vmul.f32 %v2758, %v2758
      %v2791 = vmul.f32 %v2759, %v2759
      %v2792 = vmul.f32 %v2760, %v2760
      %v2793 = vmul.f32 %v2761, %v2761
      %v2794 = vmul.f32 %v2762, %v2762
      %v2795 = vmul.f32 %v2763, %v2763
      %v2796 = vmul.f32 %v2764, %v2764
      %v2797 = vsel %vm405, %v2765, 0.0
      %v2798 = vsel %vm405, %v2766, 0.0
      %v2799 = vadd.f32 %v2797, %v2798
      %v2800 = vsel %vm405, %v2767, 0.0
      %v2801 = vadd.f32 %v2799, %v2800
      %v2802 = vsel %vm405, %v2768, 0.0
      %v2803 = vadd.f32 %v2801, %v2802
      %v2804 = vsel %vm405, %v2769, 0.0
      %v2805 = vadd.f32 %v2803, %v2804
      %v2806 = vsel %vm405, %v2770, 0.0
      %v2807 = vadd.f32 %v2805, %v2806
      %v2808 = vsel %vm405, %v2771, 0.0
      %v2809 = vadd.f32 %v2807, %v2808
      %v2810 = vsel %vm405, %v2772, 0.0
      %v2811 = vadd.f32 %v2809, %v2810
      %v2812 = vsel %vm405, %v2773, 0.0
      %v2813 = vadd.f32 %v2811, %v2812
      %v2814 = vsel %vm405, %v2774, 0.0
      %v2815 = vadd.f32 %v2813, %v2814
      %v2816 = vsel %vm405, %v2775, 0.0
      %v2817 = vadd.f32 %v2815, %v2816
      %v2818 = vsel %vm405, %v2776, 0.0
      %v2819 = vadd.f32 %v2817, %v2818
      %v2820 = vsel %vm405, %v2777, 0.0
      %v2821 = vadd.f32 %v2819, %v2820
      %v2822 = vsel %vm405, %v2778, 0.0
      %v2823 = vadd.f32 %v2821, %v2822
      %v2824 = vsel %vm405, %v2779, 0.0
      %v2825 = vadd.f32 %v2823, %v2824
      %v2826 = vsel %vm405, %v2780, 0.0
      %v2827 = vadd.f32 %v2825, %v2826
      %v2828 = vsel %vm405, %v2781, 0.0
      %v2829 = vadd.f32 %v2827, %v2828
      %v2830 = vsel %vm405, %v2782, 0.0
      %v2831 = vadd.f32 %v2829, %v2830
      %v2832 = vsel %vm405, %v2783, 0.0
      %v2833 = vadd.f32 %v2831, %v2832
      %v2834 = vsel %vm405, %v2784, 0.0
      %v2835 = vadd.f32 %v2833, %v2834
      %v2836 = vsel %vm405, %v2785, 0.0
      %v2837 = vadd.f32 %v2835, %v2836
      %v2838 = vsel %vm405, %v2786, 0.0
      %v2839 = vadd.f32 %v2837, %v2838
      %v2840 = vsel %vm405, %v2787, 0.0
      %v2841 = vadd.f32 %v2839, %v2840
      %v2842 = vsel %vm405, %v2788, 0.0
      %v2843 = vadd.f32 %v2841, %v2842
      %v2844 = vsel %vm405, %v2789, 0.0
      %v2845 = vadd.f32 %v2843, %v2844
      %v2846 = vsel %vm405, %v2790, 0.0
      %v2847 = vadd.f32 %v2845, %v2846
      %v2848 = vsel %vm405, %v2791, 0.0
      %v2849 = vadd.f32 %v2847, %v2848
      %v2850 = vsel %vm405, %v2792, 0.0
      %v2851 = vadd.f32 %v2849, %v2850
      %v2852 = vsel %vm405, %v2793, 0.0
      %v2853 = vadd.f32 %v2851, %v2852
      %v2854 = vsel %vm405, %v2794, 0.0
      %v2855 = vadd.f32 %v2853, %v2854
      %v2856 = vsel %vm405, %v2795, 0.0
      %v2857 = vadd.f32 %v2855, %v2856
      %v2858 = vsel %vm405, %v2796, 0.0
      %v2859 = vadd.f32 %v2857, %v2858
      %v2860 = vrot.slane %v2859, 4
      %v2861 = vadd.f32 %v2859, %v2860
      %v2862 = vrot.slane %v2861, 2
      %v2863 = vadd.f32 %v2861, %v2862
      %v2864 = vrot.slane %v2863, 1
      %v2865 = vadd.f32 %v2863, %v2864
      %vm2866 = vcmask 1040384
      %v2867 = vsel %vm2866, %v2732, %v2865
      %2868 = vst.msk [vmem:[%s235] sm:$0x3] %vm408, %v2867
      %v2869 = vpack.c.bf16 %v2577, %v2577
      %v2870 = vpack.c.bf16 %v2579, %v2579
      %v2871 = vpack.c.bf16 %v2582, %v2582
      %v2872 = vpack.c.bf16 %v2584, %v2584
      %v2873 = vpack.c.bf16 %v2587, %v2587
      %v2874 = vpack.c.bf16 %v2589, %v2589
      %v2875 = vpack.c.bf16 %v2592, %v2592
      %v2876 = vpack.c.bf16 %v2594, %v2594
      %v2877 = vpack.c.bf16 %v2597, %v2597
      %v2878 = vpack.c.bf16 %v2599, %v2599
      %v2879 = vpack.c.bf16 %v2602, %v2602
      %v2880 = vpack.c.bf16 %v2604, %v2604
      %v2881 = vpack.c.bf16 %v2607, %v2607
      %v2882 = vpack.c.bf16 %v2609, %v2609
      %v2883 = vpack.c.bf16 %v2612, %v2612
      %v2884 = vpack.c.bf16 %v2614, %v2614
      %v2885 = vpack.c.bf16 %v2617, %v2617
      %v2886 = vpack.c.bf16 %v2619, %v2619
      %v2887 = vpack.c.bf16 %v2622, %v2622
      %v2888 = vpack.c.bf16 %v2624, %v2624
      %v2889 = vpack.c.bf16 %v2627, %v2627
      %v2890 = vpack.c.bf16 %v2629, %v2629
      %v2891 = vpack.c.bf16 %v2632, %v2632
      %v2892 = vpack.c.bf16 %v2634, %v2634
      %v2893 = vpack.c.bf16 %v2637, %v2637
      %v2894 = vpack.c.bf16 %v2639, %v2639
      %v2895 = vpack.c.bf16 %v2642, %v2642
      %v2896 = vpack.c.bf16 %v2644, %v2644
      %v2897 = vpack.c.bf16 %v2647, %v2647
      %v2898 = vpack.c.bf16 %v2649, %v2649
      %v2899 = vpack.c.bf16 %v2652, %v2652
      %v2900 = vpack.c.bf16 %v2654, %v2654
      %2901 = vst.msk [vmem:[%s231] sm:$0xf] %vm548, %v2869
      %2902 = vst.msk [vmem:[%s231 + $0x4] sm:$0xf] %vm548, %v2870
      %2903 = vst.msk [vmem:[%s231 + $0x8] sm:$0xf] %vm548, %v2871
      %2904 = vst.msk [vmem:[%s231 + $0xc] sm:$0xf] %vm548, %v2872
      %2905 = vst.msk [vmem:[%s231 + $0x10] sm:$0xf] %vm548, %v2873
      %2906 = vst.msk [vmem:[%s231 + $0x14] sm:$0xf] %vm548, %v2874
      %2907 = vst.msk [vmem:[%s231 + $0x18] sm:$0xf] %vm548, %v2875
      %2908 = vst.msk [vmem:[%s231 + $0x1c] sm:$0xf] %vm548, %v2876
      %2909 = vst.msk [vmem:[%s231 + $0x20] sm:$0xf] %vm548, %v2877
      %2910 = vst.msk [vmem:[%s231 + $0x24] sm:$0xf] %vm548, %v2878
      %2911 = vst.msk [vmem:[%s231 + $0x28] sm:$0xf] %vm548, %v2879
      %2912 = vst.msk [vmem:[%s231 + $0x2c] sm:$0xf] %vm548, %v2880
      %2913 = vst.msk [vmem:[%s231 + $0x30] sm:$0xf] %vm548, %v2881
      %2914 = vst.msk [vmem:[%s231 + $0x34] sm:$0xf] %vm548, %v2882
      %2915 = vst.msk [vmem:[%s231 + $0x38] sm:$0xf] %vm548, %v2883
      %2916 = vst.msk [vmem:[%s231 + $0x3c] sm:$0xf] %vm548, %v2884
      %2917 = vst.msk [vmem:[%s231 + $0x40] sm:$0xf] %vm548, %v2885
      %2918 = vst.msk [vmem:[%s231 + $0x44] sm:$0xf] %vm548, %v2886
      %2919 = vst.msk [vmem:[%s231 + $0x48] sm:$0xf] %vm548, %v2887
      %2920 = vst.msk [vmem:[%s231 + $0x4c] sm:$0xf] %vm548, %v2888
      %2921 = vst.msk [vmem:[%s231 + $0x50] sm:$0xf] %vm548, %v2889
      %2922 = vst.msk [vmem:[%s231 + $0x54] sm:$0xf] %vm548, %v2890
      %2923 = vst.msk [vmem:[%s231 + $0x58] sm:$0xf] %vm548, %v2891
      %2924 = vst.msk [vmem:[%s231 + $0x5c] sm:$0xf] %vm548, %v2892
      %2925 = vst.msk [vmem:[%s231 + $0x60] sm:$0xf] %vm548, %v2893
      %2926 = vst.msk [vmem:[%s231 + $0x64] sm:$0xf] %vm548, %v2894
      %2927 = vst.msk [vmem:[%s231 + $0x68] sm:$0xf] %vm548, %v2895
      %2928 = vst.msk [vmem:[%s231 + $0x6c] sm:$0xf] %vm548, %v2896
      %2929 = vst.msk [vmem:[%s231 + $0x70] sm:$0xf] %vm548, %v2897
      %2930 = vst.msk [vmem:[%s231 + $0x74] sm:$0xf] %vm548, %v2898
      %2931 = vst.msk [vmem:[%s231 + $0x78] sm:$0xf] %vm548, %v2899
      %2932 = vst.msk [vmem:[%s231 + $0x7c] sm:$0xf] %vm548, %v2900
      %p2933 = scmp.lt.s32.totalorder %s17, 1
      %s2934 = scalar_select %p2933, %s17, 1
      %s2935 = smul.addr %s2934, 32
      %s2936 = smul.addr %s2935, 4
      %s2937 = scalar_lea.vmem %s4, %s2936
      %p2938 = scmp.lt.s32.totalorder %s17, 1
      %s2939 = scalar_select %p2938, %s17, 1
      %s2940 = smul.addr %s2939, 2
      %s2941 = scalar_lea.vmem %s5, %s2940
      // Predicated region
      $region37: #{basic_block_forward.4} parent=35 // pred_check
        %p2942 = pneg %p124
      $region38: #{basic_block_forward.4} parent=35 // pred_check_branch
        %2944 = sbr.rel (%p2942) target = $region40
      $region39: #{basic_block_forward.4} parent=35 // pred_region
        _
      $region40: #{basic_block_forward.4} parent=35 // pred_fallthru
        _
      // Predicated region
      $region41: #{basic_block_forward.4} parent=35 // pred_check
        %p2945 = pneg %p150
      $region42: #{basic_block_forward.4} parent=35 // pred_check_branch
        %2947 = sbr.rel (%p2945) target = $region44
      $region43: #{basic_block_forward.4} parent=35 // pred_region
        _
      $region44: #{basic_block_forward.4} parent=35 // pred_fallthru
        _
    $region36: #{basic_block_forward.4} parent=5 // pred_fallthru
      _
    %p2948 = scmp.le.s32.totalorder 2, %s12
    // Predicated region
    $region45: #{basic_block_forward.4} parent=5 // pred_check
      %p2949 = pneg %p2948
    $region46: #{basic_block_forward.4} parent=5 // pred_check_branch
      %2951 = sbr.rel (%p2949) target = $region48
    $region47: #{basic_block_forward.4} parent=5 // pred_region
      %s2952 = ssub.s32 %s12, 2
      // Predicated region
      $region49: #{basic_block_forward.4} parent=47 // pred_check
        %p2953 = pneg %p130
      $region50: #{basic_block_forward.4} parent=47 // pred_check_branch
        %2955 = sbr.rel (%p2953) target = $region52
      $region51: #{basic_block_forward.4} parent=47 // pred_region
        %p2956 = scmp.lt.s32.totalorder %s18, 1
        %s2957 = scalar_select %p2956, %s18, 1
        %s2958 = smul.addr %s2957, 32
        %s2959 = smul.addr %s2958, 4
        %s2960 = scalar_lea.vmem %s4, %s2959
      $region52: #{basic_block_forward.4} parent=47 // pred_fallthru
        _
      // Predicated region
      $region53: #{basic_block_forward.4} parent=47 // pred_check
        %p2961 = pneg %p156
      $region54: #{basic_block_forward.4} parent=47 // pred_check_branch
        %2963 = sbr.rel (%p2961) target = $region56
      $region55: #{basic_block_forward.4} parent=47 // pred_region
        %p2964 = scmp.lt.s32.totalorder %s18, 1
        %s2965 = scalar_select %p2964, %s18, 1
        %s2966 = smul.addr %s2965, 2
        %s2967 = scalar_lea.vmem %s5, %s2966
      $region56: #{basic_block_forward.4} parent=47 // pred_fallthru
        _
    $region48: #{basic_block_forward.4} parent=5 // pred_fallthru
      _
  $region6: #{basic_block_forward.4} parent=0 // loop_footer
    %s16 = sadd.s32 1, %s12
  $region7: #{basic_block_forward.4} parent=0 // loop_footer_branch
    %11 = sbr.rel target = $region3
  $region8: #{basic_block_forward.4} parent=0 // loop_exit
    _

</llo_original>
